<compile_context>
chip_gen: v7x
topology: tpu7x:2x2x1
jax: 0.10.0
libtpu: 0.0.40
codegen_flags: <defaults>
</compile_context>

<pallas_src>
import itertools
import numpy as np
import jax
import jax.numpy as jnp
from jax.experimental import pallas as pl
from jax.experimental.pallas import tpu as pltpu

# Module-consistent small configuration
HEIGHT, WIDTH, INPUT_WINDOW, H_NUM = 4, 4, 8, 4
HW = HEIGHT * WIDTH                  # 16, conv1 in_channels
MID = 32                             # conv1 out_channels
P = INPUT_WINDOW * HEIGHT * WIDTH    # 128 flattened positions per sample
NTAPS = 27                           # 3x3x3 taps
QG = 8                               # positions packed per kernel row
NG = P // QG                         # 16 position groups
K1 = QG * HW                         # 128 conv1 lhs lanes   (pos_in_group, channel)
N1 = QG * MID                        # 256 conv1 out lanes   (pos_in_group, mid)
KH = NG * N1                         # 4096 fused-conv2 contraction lanes (q, m)
NOUT = P * H_NUM                     # 512 fused conv2 out lanes (channel, position)


def _round_up(x, m):
    return (x + m - 1) // m * m


def make_kernel(bt):
    def kernel(x_ref, w1_ref, b1_ref, a_ref, b2_ref, o_ref, h_ref):
        # x_ref : (NG*bt, K1)   bf16, rows ordered (group, sample-in-tile)
        # w1_ref: (K1, N1)      bf16, block-diagonal kron(I_QG, W1)
        # b1_ref: (1, N1)       f32
        # a_ref : (KH, NOUT)    bf16, fused 3x3x3 conv operator
        # b2_ref: (1, NOUT)     f32
        # o_ref : (bt, NOUT)    f32   (lane-dense output, (c, p) order)
        # h_ref : (bt, KH)      bf16 VMEM scratch
        w1 = w1_ref[...]
        b1 = b1_ref[...]
        # conv1 (k=1) + bias + ReLU per position group; each result is written
        # to a 128-lane-aligned slice of the scratch (unmasked stores).
        for g in range(NG):
            xg = x_ref[g * bt:(g + 1) * bt, :]                        # (bt, K1) bf16
            hg = jnp.dot(xg, w1, preferred_element_type=jnp.float32)  # MXU
            hg = jnp.maximum(hg + b1, 0.0)                            # f32 bias+ReLU
            h_ref[:, g * N1:(g + 1) * N1] = hg.astype(jnp.bfloat16)
        # Fused 3x3x3 conv: ONE K=4096 matmul; f32 accumulation stays in the MXU.
        acc = jnp.dot(h_ref[...], a_ref[...], preferred_element_type=jnp.float32)
        o_ref[...] = jnp.maximum(acc + b2_ref[...], 0.0)              # bias + ReLU
    return kernel


def build_shift_matrices(T, H, W):
    """S[k, p, q] = 1 iff output position p reads input position q for tap k
    (zero padding => out-of-bounds taps contribute nothing)."""
    S = np.zeros((NTAPS, T * H * W, T * H * W), dtype=np.float32)
    for k, (dt, dh, dw) in enumerate(itertools.product(range(3), repeat=3)):
        for t in range(T):
            for h in range(H):
                for w in range(W):
                    tt, hh, ww = t + dt - 1, h + dh - 1, w + dw - 1
                    if 0 <= tt < T and 0 <= hh < H and 0 <= ww < W:
                        p = (t * H + h) * W + w
                        q = (tt * H + hh) * W + ww
                        S[k, p, q] = 1.0
    return S


def pack_params(w1_full, b1, w2_full, b2):
    """One-time host-side weight packing (analogue of loading the nn.Module)."""
    # conv1: (32, HW, 1,1,1) -> (HW, 32), then block-diag over the 8-position group.
    w1t = np.asarray(w1_full, np.float32)[:, :, 0, 0, 0].T              # (HW, MID)
    w1p = np.kron(np.eye(QG, dtype=np.float32), w1t)                    # (K1, N1)
    b1p = np.tile(np.asarray(b1, np.float32), QG).reshape(1, N1)
    # conv2: fuse the 27 taps + zero padding into A[(q,m),(c,p)].
    S = build_shift_matrices(INPUT_WINDOW, HEIGHT, WIDTH)               # (27, P, P)
    w2 = np.transpose(np.asarray(w2_full, np.float32),
                      (2, 3, 4, 1, 0)).reshape(NTAPS, MID, H_NUM)       # (27, MID, H_NUM)
    A = np.tensordot(S, w2, axes=(0, 0))                                # (p, q, m, c)
    A = np.ascontiguousarray(A.transpose(1, 2, 3, 0))                   # (q, m, c, p)
    a_flat = A.reshape(KH, NOUT)                                        # K=(q,m), N=(c,p)
    b2p = np.repeat(np.asarray(b2, np.float32), P).reshape(1, NOUT)     # (c, p) order
    return (jnp.asarray(w1p, jnp.bfloat16), jnp.asarray(b1p, jnp.float32),
            jnp.asarray(a_flat, jnp.bfloat16), jnp.asarray(b2p, jnp.float32))


@jax.jit
def cnn3d_forward(x, w1p, b1p, a_flat, b2p):
    # Mirror the torch reshape to NCDHW, then flatten (T,H,W) -> P.
    x = x.reshape((-1, HW, INPUT_WINDOW, HEIGHT, WIDTH))
    B = x.shape[0]

    # Batch-tile selection: big tiles to fill the MXU's M dimension and amortize
    # per-step overhead, but at least 2 grid steps (when there is enough work)
    # so v7x's two TensorCores can both be used.
    Bp8 = _round_up(B, 8)
    bt = min(256, Bp8)
    if Bp8 > 8:
        bt = min(bt, _round_up(Bp8 // 2, 8))
    Bp = _round_up(B, bt)
    nT = Bp // bt

    # Cast to bf16 BEFORE layout prep (halves HBM traffic of the transpose),
    # and fold the permutations into a single transpose:
    #   (B, c, p) -> rows (tile, group, sample), lanes (pos-in-group, channel)
    xr = x.reshape(B, HW, P).astype(jnp.bfloat16)
    if Bp != B:
        xr = jnp.concatenate([xr, jnp.zeros((Bp - B, HW, P), xr.dtype)], axis=0)
    xg = xr.reshape(nT, bt, HW, NG, QG)
    xg = jnp.transpose(xg, (0, 3, 1, 4, 2))          # (nT, NG, bt, QG, HW)
    xg = xg.reshape(nT * NG * bt, K1)

    out = pl.pallas_call(
        make_kernel(bt),
        out_shape=jax.ShapeDtypeStruct((Bp, NOUT), jnp.float32),
        grid_spec=pltpu.PrefetchScalarGridSpec(
            num_scalar_prefetch=0,
            grid=(nT,),
            in_specs=[
                pl.BlockSpec((NG * bt, K1), lambda t: (t, 0)),
                pl.BlockSpec((K1, N1), lambda t: (0, 0)),
                pl.BlockSpec((1, N1), lambda t: (0, 0)),
                pl.BlockSpec((KH, NOUT), lambda t: (0, 0)),
                pl.BlockSpec((1, NOUT), lambda t: (0, 0)),
            ],
            out_specs=pl.BlockSpec((bt, NOUT), lambda t: (t, 0)),
            scratch_shapes=[pltpu.VMEM((bt, KH), jnp.bfloat16)],
        ),
        compiler_params=pltpu.CompilerParams(
            dimension_semantics=("parallel",),
            vmem_limit_bytes=48 * 1024 * 1024,   # v5e's scoped default (16 MiB) is tight at bt=256
        ),
    )(xg, w1p, b1p, a_flat, b2p)

    # Lanes are already (h_num, T, H*W) ordered -> reshape only, no transpose.
    out = out[:B].reshape(B, H_NUM, INPUT_WINDOW, HW)
    return out[..., None]


def cnn3d_reference(x, w1_full, b1, w2_full, b2):
    """Independent plain-JAX/XLA reference of the torch forward."""
    x = x.reshape((-1, HW, INPUT_WINDOW, HEIGHT, WIDTH)).astype(jnp.float32)
    dn = ("NCDHW", "OIDHW", "NCDHW")
    h = jax.lax.conv_general_dilated(x, w1_full, (1, 1, 1), "VALID",
                                     dimension_numbers=dn)
    h = jax.nn.relu(h + b1.reshape(1, MID, 1, 1, 1))
    o = jax.lax.conv_general_dilated(h, w2_full, (1, 1, 1),
                                     ((1, 1), (1, 1), (1, 1)),
                                     dimension_numbers=dn)
    o = jax.nn.relu(o + b2.reshape(1, H_NUM, 1, 1, 1))
    return o.reshape(-1, H_NUM, INPUT_WINDOW, HW)[..., None]


if __name__ == "__main__":
    key = jax.random.PRNGKey(0)
    k1, k2, k3, k4, k5, k6 = jax.random.split(key, 6)
    # Deterministic synthetic parameters (Conv3d shapes from __init__).
    w1_full = 0.10 * jax.random.normal(k2, (MID, HW, 1, 1, 1), jnp.float32)
    b1 = 0.05 * jax.random.normal(k3, (MID,), jnp.float32)
    w2_full = 0.05 * jax.random.normal(k4, (H_NUM, MID, 3, 3, 3), jnp.float32)
    b2 = 0.05 * jax.random.normal(k5, (H_NUM,), jnp.float32)
    params = pack_params(w1_full, b1, w2_full, b2)   # one-time weight packing

    # Case 1: small batch (single grid step).
    B = 2
    x = jax.random.normal(k1, (B, HW, INPUT_WINDOW, HEIGHT, WIDTH), jnp.float32)
    out = jax.block_until_ready(cnn3d_forward(x, *params))
    assert out.shape == (B, H_NUM, INPUT_WINDOW, HW, 1), out.shape
    ref = jax.block_until_ready(cnn3d_reference(x, w1_full, b1, w2_full, b2))
    err = float(jnp.max(jnp.abs(out - ref)))
    assert err < 1e-2, f"max abs error (B=2): {err}"

    # Case 2: batch larger than one tile -> exercises nT > 1 and the index_map.
    B2 = 20
    x2 = jax.random.normal(k6, (B2, HW, INPUT_WINDOW, HEIGHT, WIDTH), jnp.float32)
    out2 = jax.block_until_ready(cnn3d_forward(x2, *params))
    assert out2.shape == (B2, H_NUM, INPUT_WINDOW, HW, 1), out2.shape
    ref2 = jax.block_until_ready(cnn3d_reference(x2, w1_full, b1, w2_full, b2))
    err2 = float(jnp.max(jnp.abs(out2 - ref2)))
    assert err2 < 1e-2, f"max abs error (B=20): {err2}"

    print("KERNEL_OK")
</pallas_src>

<mosaic_0001>
module attributes {stable_mosaic.version = 11 : i64} {
  func.func @kernel(%arg0: i32, %arg1: memref<128x128xbf16, #tpu.memory_space<vmem>>, %arg2: memref<128x256xbf16, #tpu.memory_space<vmem>>, %arg3: memref<1x256xf32, #tpu.memory_space<vmem>>, %arg4: memref<4096x512xbf16, #tpu.memory_space<vmem>>, %arg5: memref<1x512xf32, #tpu.memory_space<vmem>>, %arg6: memref<8x512xf32, #tpu.memory_space<vmem>>, %arg7: memref<8x4096xbf16, #tpu.memory_space<vmem>>) attributes {dimension_semantics = [#tpu.dimension_semantics<parallel>], iteration_bounds = array<i64: 1>, scalar_prefetch = 0 : i64, scratch_operands = 1 : i64, tpu.core_type = #tpu.core_type<tc>, window_params = [{transform_indices = @transform_0, window_bounds = array<i64: 128, 128>}, {pipeline_mode = #tpu.pipeline_mode<synchronous>, transform_indices = @transform_1, window_bounds = array<i64: 128, 256>}, {pipeline_mode = #tpu.pipeline_mode<synchronous>, transform_indices = @transform_2, window_bounds = array<i64: 1, 256>}, {pipeline_mode = #tpu.pipeline_mode<synchronous>, transform_indices = @transform_3, window_bounds = array<i64: 4096, 512>}, {pipeline_mode = #tpu.pipeline_mode<synchronous>, transform_indices = @transform_4, window_bounds = array<i64: 1, 512>}, {transform_indices = @transform_5, window_bounds = array<i64: 8, 512>}]} {
    %c0 = arith.constant 0 : index
    %c0_0 = arith.constant 0 : index
    %0 = vector.load %arg2[%c0, %c0_0] : memref<128x256xbf16, #tpu.memory_space<vmem>>, vector<128x256xbf16>
    %c0_1 = arith.constant 0 : index
    %c0_2 = arith.constant 0 : index
    %1 = vector.load %arg3[%c0_1, %c0_2] : memref<1x256xf32, #tpu.memory_space<vmem>>, vector<1x256xf32>
    %c0_3 = arith.constant 0 : index
    %c0_4 = arith.constant 0 : index
    %2 = vector.load %arg1[%c0_3, %c0_4] : memref<128x128xbf16, #tpu.memory_space<vmem>>, vector<8x128xbf16>
    %cst = arith.constant dense<0.000000e+00> : vector<8x256xf32>
    %3 = tpu.matmul %2, %0, %cst {dimension_numbers = #tpu.dot_dimension_numbers<[1], [0], [0], [1], [0, 0, 1, 1], [], []>} : vector<8x128xbf16>, vector<128x256xbf16>, vector<8x256xf32> -> vector<8x256xf32>
    %4 = vector.broadcast %1 : vector<1x256xf32> to vector<8x256xf32>
    %5 = arith.addf %3, %4 : vector<8x256xf32>
    %cst_5 = arith.constant 0.000000e+00 : f32
    %6 = vector.broadcast %cst_5 : f32 to vector<8x256xf32>
    %7 = arith.maximumf %5, %6 : vector<8x256xf32>
    %8 = arith.truncf %7 : vector<8x256xf32> to vector<8x256xbf16>
    %c0_6 = arith.constant 0 : index
    %c0_7 = arith.constant 0 : index
    %9 = vector.load %arg7[%c0_6, %c0_7] : memref<8x4096xbf16, #tpu.memory_space<vmem>>, vector<8x256xbf16>
    tpu.vector_store %arg7[%c0_6, %c0_7], %8 {strides = array<i32>} : memref<8x4096xbf16, #tpu.memory_space<vmem>>, vector<8x256xbf16>,
    %c8 = arith.constant 8 : index
    %c0_8 = arith.constant 0 : index
    %10 = vector.load %arg1[%c8, %c0_8] : memref<128x128xbf16, #tpu.memory_space<vmem>>, vector<8x128xbf16>
    %cst_9 = arith.constant dense<0.000000e+00> : vector<8x256xf32>
    %11 = tpu.matmul %10, %0, %cst_9 {dimension_numbers = #tpu.dot_dimension_numbers<[1], [0], [0], [1], [0, 0, 1, 1], [], []>} : vector<8x128xbf16>, vector<128x256xbf16>, vector<8x256xf32> -> vector<8x256xf32>
    %12 = vector.broadcast %1 : vector<1x256xf32> to vector<8x256xf32>
    %13 = arith.addf %11, %12 : vector<8x256xf32>
    %cst_10 = arith.constant 0.000000e+00 : f32
    %14 = vector.broadcast %cst_10 : f32 to vector<8x256xf32>
    %15 = arith.maximumf %13, %14 : vector<8x256xf32>
    %16 = arith.truncf %15 : vector<8x256xf32> to vector<8x256xbf16>
    %c0_11 = arith.constant 0 : index
    %c256 = arith.constant 256 : index
    %17 = vector.load %arg7[%c0_11, %c256] : memref<8x4096xbf16, #tpu.memory_space<vmem>>, vector<8x256xbf16>
    tpu.vector_store %arg7[%c0_11, %c256], %16 {strides = array<i32>} : memref<8x4096xbf16, #tpu.memory_space<vmem>>, vector<8x256xbf16>,
    %c16 = arith.constant 16 : index
    %c0_12 = arith.constant 0 : index
    %18 = vector.load %arg1[%c16, %c0_12] : memref<128x128xbf16, #tpu.memory_space<vmem>>, vector<8x128xbf16>
    %cst_13 = arith.constant dense<0.000000e+00> : vector<8x256xf32>
    %19 = tpu.matmul %18, %0, %cst_13 {dimension_numbers = #tpu.dot_dimension_numbers<[1], [0], [0], [1], [0, 0, 1, 1], [], []>} : vector<8x128xbf16>, vector<128x256xbf16>, vector<8x256xf32> -> vector<8x256xf32>
    %20 = vector.broadcast %1 : vector<1x256xf32> to vector<8x256xf32>
    %21 = arith.addf %19, %20 : vector<8x256xf32>
    %cst_14 = arith.constant 0.000000e+00 : f32
    %22 = vector.broadcast %cst_14 : f32 to vector<8x256xf32>
    %23 = arith.maximumf %21, %22 : vector<8x256xf32>
    %24 = arith.truncf %23 : vector<8x256xf32> to vector<8x256xbf16>
    %c0_15 = arith.constant 0 : index
    %c512 = arith.constant 512 : index
    %25 = vector.load %arg7[%c0_15, %c512] : memref<8x4096xbf16, #tpu.memory_space<vmem>>, vector<8x256xbf16>
    tpu.vector_store %arg7[%c0_15, %c512], %24 {strides = array<i32>} : memref<8x4096xbf16, #tpu.memory_space<vmem>>, vector<8x256xbf16>,
    %c24 = arith.constant 24 : index
    %c0_16 = arith.constant 0 : index
    %26 = vector.load %arg1[%c24, %c0_16] : memref<128x128xbf16, #tpu.memory_space<vmem>>, vector<8x128xbf16>
    %cst_17 = arith.constant dense<0.000000e+00> : vector<8x256xf32>
    %27 = tpu.matmul %26, %0, %cst_17 {dimension_numbers = #tpu.dot_dimension_numbers<[1], [0], [0], [1], [0, 0, 1, 1], [], []>} : vector<8x128xbf16>, vector<128x256xbf16>, vector<8x256xf32> -> vector<8x256xf32>
    %28 = vector.broadcast %1 : vector<1x256xf32> to vector<8x256xf32>
    %29 = arith.addf %27, %28 : vector<8x256xf32>
    %cst_18 = arith.constant 0.000000e+00 : f32
    %30 = vector.broadcast %cst_18 : f32 to vector<8x256xf32>
    %31 = arith.maximumf %29, %30 : vector<8x256xf32>
    %32 = arith.truncf %31 : vector<8x256xf32> to vector<8x256xbf16>
    %c0_19 = arith.constant 0 : index
    %c768 = arith.constant 768 : index
    %33 = vector.load %arg7[%c0_19, %c768] : memref<8x4096xbf16, #tpu.memory_space<vmem>>, vector<8x256xbf16>
    tpu.vector_store %arg7[%c0_19, %c768], %32 {strides = array<i32>} : memref<8x4096xbf16, #tpu.memory_space<vmem>>, vector<8x256xbf16>,
    %c32 = arith.constant 32 : index
    %c0_20 = arith.constant 0 : index
    %34 = vector.load %arg1[%c32, %c0_20] : memref<128x128xbf16, #tpu.memory_space<vmem>>, vector<8x128xbf16>
    %cst_21 = arith.constant dense<0.000000e+00> : vector<8x256xf32>
    %35 = tpu.matmul %34, %0, %cst_21 {dimension_numbers = #tpu.dot_dimension_numbers<[1], [0], [0], [1], [0, 0, 1, 1], [], []>} : vector<8x128xbf16>, vector<128x256xbf16>, vector<8x256xf32> -> vector<8x256xf32>
    %36 = vector.broadcast %1 : vector<1x256xf32> to vector<8x256xf32>
    %37 = arith.addf %35, %36 : vector<8x256xf32>
    %cst_22 = arith.constant 0.000000e+00 : f32
    %38 = vector.broadcast %cst_22 : f32 to vector<8x256xf32>
    %39 = arith.maximumf %37, %38 : vector<8x256xf32>
    %40 = arith.truncf %39 : vector<8x256xf32> to vector<8x256xbf16>
    %c0_23 = arith.constant 0 : index
    %c1024 = arith.constant 1024 : index
    %41 = vector.load %arg7[%c0_23, %c1024] : memref<8x4096xbf16, #tpu.memory_space<vmem>>, vector<8x256xbf16>
    tpu.vector_store %arg7[%c0_23, %c1024], %40 {strides = array<i32>} : memref<8x4096xbf16, #tpu.memory_space<vmem>>, vector<8x256xbf16>,
    %c40 = arith.constant 40 : index
    %c0_24 = arith.constant 0 : index
    %42 = vector.load %arg1[%c40, %c0_24] : memref<128x128xbf16, #tpu.memory_space<vmem>>, vector<8x128xbf16>
    %cst_25 = arith.constant dense<0.000000e+00> : vector<8x256xf32>
    %43 = tpu.matmul %42, %0, %cst_25 {dimension_numbers = #tpu.dot_dimension_numbers<[1], [0], [0], [1], [0, 0, 1, 1], [], []>} : vector<8x128xbf16>, vector<128x256xbf16>, vector<8x256xf32> -> vector<8x256xf32>
    %44 = vector.broadcast %1 : vector<1x256xf32> to vector<8x256xf32>
    %45 = arith.addf %43, %44 : vector<8x256xf32>
    %cst_26 = arith.constant 0.000000e+00 : f32
    %46 = vector.broadcast %cst_26 : f32 to vector<8x256xf32>
    %47 = arith.maximumf %45, %46 : vector<8x256xf32>
    %48 = arith.truncf %47 : vector<8x256xf32> to vector<8x256xbf16>
    %c0_27 = arith.constant 0 : index
    %c1280 = arith.constant 1280 : index
    %49 = vector.load %arg7[%c0_27, %c1280] : memref<8x4096xbf16, #tpu.memory_space<vmem>>, vector<8x256xbf16>
    tpu.vector_store %arg7[%c0_27, %c1280], %48 {strides = array<i32>} : memref<8x4096xbf16, #tpu.memory_space<vmem>>, vector<8x256xbf16>,
    %c48 = arith.constant 48 : index
    %c0_28 = arith.constant 0 : index
    %50 = vector.load %arg1[%c48, %c0_28] : memref<128x128xbf16, #tpu.memory_space<vmem>>, vector<8x128xbf16>
    %cst_29 = arith.constant dense<0.000000e+00> : vector<8x256xf32>
    %51 = tpu.matmul %50, %0, %cst_29 {dimension_numbers = #tpu.dot_dimension_numbers<[1], [0], [0], [1], [0, 0, 1, 1], [], []>} : vector<8x128xbf16>, vector<128x256xbf16>, vector<8x256xf32> -> vector<8x256xf32>
    %52 = vector.broadcast %1 : vector<1x256xf32> to vector<8x256xf32>
    %53 = arith.addf %51, %52 : vector<8x256xf32>
    %cst_30 = arith.constant 0.000000e+00 : f32
    %54 = vector.broadcast %cst_30 : f32 to vector<8x256xf32>
    %55 = arith.maximumf %53, %54 : vector<8x256xf32>
    %56 = arith.truncf %55 : vector<8x256xf32> to vector<8x256xbf16>
    %c0_31 = arith.constant 0 : index
    %c1536 = arith.constant 1536 : index
    %57 = vector.load %arg7[%c0_31, %c1536] : memref<8x4096xbf16, #tpu.memory_space<vmem>>, vector<8x256xbf16>
    tpu.vector_store %arg7[%c0_31, %c1536], %56 {strides = array<i32>} : memref<8x4096xbf16, #tpu.memory_space<vmem>>, vector<8x256xbf16>,
    %c56 = arith.constant 56 : index
    %c0_32 = arith.constant 0 : index
    %58 = vector.load %arg1[%c56, %c0_32] : memref<128x128xbf16, #tpu.memory_space<vmem>>, vector<8x128xbf16>
    %cst_33 = arith.constant dense<0.000000e+00> : vector<8x256xf32>
    %59 = tpu.matmul %58, %0, %cst_33 {dimension_numbers = #tpu.dot_dimension_numbers<[1], [0], [0], [1], [0, 0, 1, 1], [], []>} : vector<8x128xbf16>, vector<128x256xbf16>, vector<8x256xf32> -> vector<8x256xf32>
    %60 = vector.broadcast %1 : vector<1x256xf32> to vector<8x256xf32>
    %61 = arith.addf %59, %60 : vector<8x256xf32>
    %cst_34 = arith.constant 0.000000e+00 : f32
    %62 = vector.broadcast %cst_34 : f32 to vector<8x256xf32>
    %63 = arith.maximumf %61, %62 : vector<8x256xf32>
    %64 = arith.truncf %63 : vector<8x256xf32> to vector<8x256xbf16>
    %c0_35 = arith.constant 0 : index
    %c1792 = arith.constant 1792 : index
    %65 = vector.load %arg7[%c0_35, %c1792] : memref<8x4096xbf16, #tpu.memory_space<vmem>>, vector<8x256xbf16>
    tpu.vector_store %arg7[%c0_35, %c1792], %64 {strides = array<i32>} : memref<8x4096xbf16, #tpu.memory_space<vmem>>, vector<8x256xbf16>,
    %c64 = arith.constant 64 : index
    %c0_36 = arith.constant 0 : index
    %66 = vector.load %arg1[%c64, %c0_36] : memref<128x128xbf16, #tpu.memory_space<vmem>>, vector<8x128xbf16>
    %cst_37 = arith.constant dense<0.000000e+00> : vector<8x256xf32>
    %67 = tpu.matmul %66, %0, %cst_37 {dimension_numbers = #tpu.dot_dimension_numbers<[1], [0], [0], [1], [0, 0, 1, 1], [], []>} : vector<8x128xbf16>, vector<128x256xbf16>, vector<8x256xf32> -> vector<8x256xf32>
    %68 = vector.broadcast %1 : vector<1x256xf32> to vector<8x256xf32>
    %69 = arith.addf %67, %68 : vector<8x256xf32>
    %cst_38 = arith.constant 0.000000e+00 : f32
    %70 = vector.broadcast %cst_38 : f32 to vector<8x256xf32>
    %71 = arith.maximumf %69, %70 : vector<8x256xf32>
    %72 = arith.truncf %71 : vector<8x256xf32> to vector<8x256xbf16>
    %c0_39 = arith.constant 0 : index
    %c2048 = arith.constant 2048 : index
    %73 = vector.load %arg7[%c0_39, %c2048] : memref<8x4096xbf16, #tpu.memory_space<vmem>>, vector<8x256xbf16>
    tpu.vector_store %arg7[%c0_39, %c2048], %72 {strides = array<i32>} : memref<8x4096xbf16, #tpu.memory_space<vmem>>, vector<8x256xbf16>,
    %c72 = arith.constant 72 : index
    %c0_40 = arith.constant 0 : index
    %74 = vector.load %arg1[%c72, %c0_40] : memref<128x128xbf16, #tpu.memory_space<vmem>>, vector<8x128xbf16>
    %cst_41 = arith.constant dense<0.000000e+00> : vector<8x256xf32>
    %75 = tpu.matmul %74, %0, %cst_41 {dimension_numbers = #tpu.dot_dimension_numbers<[1], [0], [0], [1], [0, 0, 1, 1], [], []>} : vector<8x128xbf16>, vector<128x256xbf16>, vector<8x256xf32> -> vector<8x256xf32>
    %76 = vector.broadcast %1 : vector<1x256xf32> to vector<8x256xf32>
    %77 = arith.addf %75, %76 : vector<8x256xf32>
    %cst_42 = arith.constant 0.000000e+00 : f32
    %78 = vector.broadcast %cst_42 : f32 to vector<8x256xf32>
    %79 = arith.maximumf %77, %78 : vector<8x256xf32>
    %80 = arith.truncf %79 : vector<8x256xf32> to vector<8x256xbf16>
    %c0_43 = arith.constant 0 : index
    %c2304 = arith.constant 2304 : index
    %81 = vector.load %arg7[%c0_43, %c2304] : memref<8x4096xbf16, #tpu.memory_space<vmem>>, vector<8x256xbf16>
    tpu.vector_store %arg7[%c0_43, %c2304], %80 {strides = array<i32>} : memref<8x4096xbf16, #tpu.memory_space<vmem>>, vector<8x256xbf16>,
    %c80 = arith.constant 80 : index
    %c0_44 = arith.constant 0 : index
    %82 = vector.load %arg1[%c80, %c0_44] : memref<128x128xbf16, #tpu.memory_space<vmem>>, vector<8x128xbf16>
    %cst_45 = arith.constant dense<0.000000e+00> : vector<8x256xf32>
    %83 = tpu.matmul %82, %0, %cst_45 {dimension_numbers = #tpu.dot_dimension_numbers<[1], [0], [0], [1], [0, 0, 1, 1], [], []>} : vector<8x128xbf16>, vector<128x256xbf16>, vector<8x256xf32> -> vector<8x256xf32>
    %84 = vector.broadcast %1 : vector<1x256xf32> to vector<8x256xf32>
    %85 = arith.addf %83, %84 : vector<8x256xf32>
    %cst_46 = arith.constant 0.000000e+00 : f32
    %86 = vector.broadcast %cst_46 : f32 to vector<8x256xf32>
    %87 = arith.maximumf %85, %86 : vector<8x256xf32>
    %88 = arith.truncf %87 : vector<8x256xf32> to vector<8x256xbf16>
    %c0_47 = arith.constant 0 : index
    %c2560 = arith.constant 2560 : index
    %89 = vector.load %arg7[%c0_47, %c2560] : memref<8x4096xbf16, #tpu.memory_space<vmem>>, vector<8x256xbf16>
    tpu.vector_store %arg7[%c0_47, %c2560], %88 {strides = array<i32>} : memref<8x4096xbf16, #tpu.memory_space<vmem>>, vector<8x256xbf16>,
    %c88 = arith.constant 88 : index
    %c0_48 = arith.constant 0 : index
    %90 = vector.load %arg1[%c88, %c0_48] : memref<128x128xbf16, #tpu.memory_space<vmem>>, vector<8x128xbf16>
    %cst_49 = arith.constant dense<0.000000e+00> : vector<8x256xf32>
    %91 = tpu.matmul %90, %0, %cst_49 {dimension_numbers = #tpu.dot_dimension_numbers<[1], [0], [0], [1], [0, 0, 1, 1], [], []>} : vector<8x128xbf16>, vector<128x256xbf16>, vector<8x256xf32> -> vector<8x256xf32>
    %92 = vector.broadcast %1 : vector<1x256xf32> to vector<8x256xf32>
    %93 = arith.addf %91, %92 : vector<8x256xf32>
    %cst_50 = arith.constant 0.000000e+00 : f32
    %94 = vector.broadcast %cst_50 : f32 to vector<8x256xf32>
    %95 = arith.maximumf %93, %94 : vector<8x256xf32>
    %96 = arith.truncf %95 : vector<8x256xf32> to vector<8x256xbf16>
    %c0_51 = arith.constant 0 : index
    %c2816 = arith.constant 2816 : index
    %97 = vector.load %arg7[%c0_51, %c2816] : memref<8x4096xbf16, #tpu.memory_space<vmem>>, vector<8x256xbf16>
    tpu.vector_store %arg7[%c0_51, %c2816], %96 {strides = array<i32>} : memref<8x4096xbf16, #tpu.memory_space<vmem>>, vector<8x256xbf16>,
    %c96 = arith.constant 96 : index
    %c0_52 = arith.constant 0 : index
    %98 = vector.load %arg1[%c96, %c0_52] : memref<128x128xbf16, #tpu.memory_space<vmem>>, vector<8x128xbf16>
    %cst_53 = arith.constant dense<0.000000e+00> : vector<8x256xf32>
    %99 = tpu.matmul %98, %0, %cst_53 {dimension_numbers = #tpu.dot_dimension_numbers<[1], [0], [0], [1], [0, 0, 1, 1], [], []>} : vector<8x128xbf16>, vector<128x256xbf16>, vector<8x256xf32> -> vector<8x256xf32>
    %100 = vector.broadcast %1 : vector<1x256xf32> to vector<8x256xf32>
    %101 = arith.addf %99, %100 : vector<8x256xf32>
    %cst_54 = arith.constant 0.000000e+00 : f32
    %102 = vector.broadcast %cst_54 : f32 to vector<8x256xf32>
    %103 = arith.maximumf %101, %102 : vector<8x256xf32>
    %104 = arith.truncf %103 : vector<8x256xf32> to vector<8x256xbf16>
    %c0_55 = arith.constant 0 : index
    %c3072 = arith.constant 3072 : index
    %105 = vector.load %arg7[%c0_55, %c3072] : memref<8x4096xbf16, #tpu.memory_space<vmem>>, vector<8x256xbf16>
    tpu.vector_store %arg7[%c0_55, %c3072], %104 {strides = array<i32>} : memref<8x4096xbf16, #tpu.memory_space<vmem>>, vector<8x256xbf16>,
    %c104 = arith.constant 104 : index
    %c0_56 = arith.constant 0 : index
    %106 = vector.load %arg1[%c104, %c0_56] : memref<128x128xbf16, #tpu.memory_space<vmem>>, vector<8x128xbf16>
    %cst_57 = arith.constant dense<0.000000e+00> : vector<8x256xf32>
    %107 = tpu.matmul %106, %0, %cst_57 {dimension_numbers = #tpu.dot_dimension_numbers<[1], [0], [0], [1], [0, 0, 1, 1], [], []>} : vector<8x128xbf16>, vector<128x256xbf16>, vector<8x256xf32> -> vector<8x256xf32>
    %108 = vector.broadcast %1 : vector<1x256xf32> to vector<8x256xf32>
    %109 = arith.addf %107, %108 : vector<8x256xf32>
    %cst_58 = arith.constant 0.000000e+00 : f32
    %110 = vector.broadcast %cst_58 : f32 to vector<8x256xf32>
    %111 = arith.maximumf %109, %110 : vector<8x256xf32>
    %112 = arith.truncf %111 : vector<8x256xf32> to vector<8x256xbf16>
    %c0_59 = arith.constant 0 : index
    %c3328 = arith.constant 3328 : index
    %113 = vector.load %arg7[%c0_59, %c3328] : memref<8x4096xbf16, #tpu.memory_space<vmem>>, vector<8x256xbf16>
    tpu.vector_store %arg7[%c0_59, %c3328], %112 {strides = array<i32>} : memref<8x4096xbf16, #tpu.memory_space<vmem>>, vector<8x256xbf16>,
    %c112 = arith.constant 112 : index
    %c0_60 = arith.constant 0 : index
    %114 = vector.load %arg1[%c112, %c0_60] : memref<128x128xbf16, #tpu.memory_space<vmem>>, vector<8x128xbf16>
    %cst_61 = arith.constant dense<0.000000e+00> : vector<8x256xf32>
    %115 = tpu.matmul %114, %0, %cst_61 {dimension_numbers = #tpu.dot_dimension_numbers<[1], [0], [0], [1], [0, 0, 1, 1], [], []>} : vector<8x128xbf16>, vector<128x256xbf16>, vector<8x256xf32> -> vector<8x256xf32>
    %116 = vector.broadcast %1 : vector<1x256xf32> to vector<8x256xf32>
    %117 = arith.addf %115, %116 : vector<8x256xf32>
    %cst_62 = arith.constant 0.000000e+00 : f32
    %118 = vector.broadcast %cst_62 : f32 to vector<8x256xf32>
    %119 = arith.maximumf %117, %118 : vector<8x256xf32>
    %120 = arith.truncf %119 : vector<8x256xf32> to vector<8x256xbf16>
    %c0_63 = arith.constant 0 : index
    %c3584 = arith.constant 3584 : index
    %121 = vector.load %arg7[%c0_63, %c3584] : memref<8x4096xbf16, #tpu.memory_space<vmem>>, vector<8x256xbf16>
    tpu.vector_store %arg7[%c0_63, %c3584], %120 {strides = array<i32>} : memref<8x4096xbf16, #tpu.memory_space<vmem>>, vector<8x256xbf16>,
    %c120 = arith.constant 120 : index
    %c0_64 = arith.constant 0 : index
    %122 = vector.load %arg1[%c120, %c0_64] : memref<128x128xbf16, #tpu.memory_space<vmem>>, vector<8x128xbf16>
    %cst_65 = arith.constant dense<0.000000e+00> : vector<8x256xf32>
    %123 = tpu.matmul %122, %0, %cst_65 {dimension_numbers = #tpu.dot_dimension_numbers<[1], [0], [0], [1], [0, 0, 1, 1], [], []>} : vector<8x128xbf16>, vector<128x256xbf16>, vector<8x256xf32> -> vector<8x256xf32>
    %124 = vector.broadcast %1 : vector<1x256xf32> to vector<8x256xf32>
    %125 = arith.addf %123, %124 : vector<8x256xf32>
    %cst_66 = arith.constant 0.000000e+00 : f32
    %126 = vector.broadcast %cst_66 : f32 to vector<8x256xf32>
    %127 = arith.maximumf %125, %126 : vector<8x256xf32>
    %128 = arith.truncf %127 : vector<8x256xf32> to vector<8x256xbf16>
    %c0_67 = arith.constant 0 : index
    %c3840 = arith.constant 3840 : index
    %129 = vector.load %arg7[%c0_67, %c3840] : memref<8x4096xbf16, #tpu.memory_space<vmem>>, vector<8x256xbf16>
    tpu.vector_store %arg7[%c0_67, %c3840], %128 {strides = array<i32>} : memref<8x4096xbf16, #tpu.memory_space<vmem>>, vector<8x256xbf16>,
    %c0_68 = arith.constant 0 : index
    %c0_69 = arith.constant 0 : index
    %130 = vector.load %arg7[%c0_68, %c0_69] : memref<8x4096xbf16, #tpu.memory_space<vmem>>, vector<8x4096xbf16>
    %c0_70 = arith.constant 0 : index
    %c0_71 = arith.constant 0 : index
    %131 = vector.load %arg4[%c0_70, %c0_71] : memref<4096x512xbf16, #tpu.memory_space<vmem>>, vector<4096x512xbf16>
    %cst_72 = arith.constant dense<0.000000e+00> : vector<8x512xf32>
    %132 = tpu.matmul %130, %131, %cst_72 {dimension_numbers = #tpu.dot_dimension_numbers<[1], [0], [0], [1], [0, 0, 1, 1], [], []>} : vector<8x4096xbf16>, vector<4096x512xbf16>, vector<8x512xf32> -> vector<8x512xf32>
    %c0_73 = arith.constant 0 : index
    %c0_74 = arith.constant 0 : index
    %133 = vector.load %arg5[%c0_73, %c0_74] : memref<1x512xf32, #tpu.memory_space<vmem>>, vector<1x512xf32>
    %134 = vector.broadcast %133 : vector<1x512xf32> to vector<8x512xf32>
    %135 = arith.addf %132, %134 : vector<8x512xf32>
    %cst_75 = arith.constant 0.000000e+00 : f32
    %136 = vector.broadcast %cst_75 : f32 to vector<8x512xf32>
    %137 = arith.maximumf %135, %136 : vector<8x512xf32>
    %c0_76 = arith.constant 0 : index
    %c0_77 = arith.constant 0 : index
    %138 = vector.load %arg6[%c0_76, %c0_77] : memref<8x512xf32, #tpu.memory_space<vmem>>, vector<8x512xf32>
    tpu.vector_store %arg6[%c0_76, %c0_77], %137 {strides = array<i32>} : memref<8x512xf32, #tpu.memory_space<vmem>>, vector<8x512xf32>,
    return
  }
  func.func @transform_0(%arg0: i32) -> (i32, i32) {
    %c0_i32 = arith.constant 0 : i32
    %c0_i32_0 = arith.constant 0 : i32
    return %arg0, %c0_i32 : i32, i32
  }
  func.func @transform_1(%arg0: i32) -> (i32, i32) {
    %c0_i32 = arith.constant 0 : i32
    %c0_i32_0 = arith.constant 0 : i32
    %c0_i32_1 = arith.constant 0 : i32
    return %c0_i32, %c0_i32_0 : i32, i32
  }
  func.func @transform_2(%arg0: i32) -> (i32, i32) {
    %c0_i32 = arith.constant 0 : i32
    %c0_i32_0 = arith.constant 0 : i32
    %c0_i32_1 = arith.constant 0 : i32
    return %c0_i32, %c0_i32_0 : i32, i32
  }
  func.func @transform_3(%arg0: i32) -> (i32, i32) {
    %c0_i32 = arith.constant 0 : i32
    %c0_i32_0 = arith.constant 0 : i32
    %c0_i32_1 = arith.constant 0 : i32
    return %c0_i32, %c0_i32_0 : i32, i32
  }
  func.func @transform_4(%arg0: i32) -> (i32, i32) {
    %c0_i32 = arith.constant 0 : i32
    %c0_i32_0 = arith.constant 0 : i32
    %c0_i32_1 = arith.constant 0 : i32
    return %c0_i32, %c0_i32_0 : i32, i32
  }
  func.func @transform_5(%arg0: i32) -> (i32, i32) {
    %c0_i32 = arith.constant 0 : i32
    %c0_i32_0 = arith.constant 0 : i32
    return %arg0, %c0_i32 : i32, i32
  }
}

</mosaic_0001>

<llo_original>
// kernel: cnn3d_forward.1
$region0: #{cnn3d_forward.1}
  #allocation0 [shape = 'u32[]', space=smem, size = 0x4, offset = 0x4, fixed_abs, tag = 'smem constant byte address 0x4 - core index']
  #allocation1 [shape = 'u32[144,128]{1,0:T(1,128)}', space=vmem, size = 0x12000, scoped, tag = 'internal scratch']
  #allocation2 [shape = 'bf16[8,4096]{1,0:T(8,128)(2,1)}', space=vmem, size = 0x10000, scoped, tag = 'scratch operand']
  %s0 = inlined_call_operand.vmem [shape: bf16[128,128], index: 0, kind: input, shape index: {}]
  %s1 = inlined_call_operand.hbm [shape: bf16[128,256], index: 1, kind: input, shape index: {}]
  %s2 = inlined_call_operand.hbm [shape: f32[1,256], index: 2, kind: input, shape index: {}]
  %s3 = inlined_call_operand.hbm [shape: bf16[4096,512], index: 3, kind: input, shape index: {}]
  %s4 = inlined_call_operand.hbm [shape: f32[1,512], index: 4, kind: input, shape index: {}]
  %s5 = inlined_call_operand.vmem [shape: f32[8,512], index: 5, kind: output, shape index: {}]
  %s6 = sld [smem:[#allocation0]]
  $region46: #{cnn3d_forward.1} parent=0
    _
  %s8 = ssub.s32 1, %s6
  %s9 = scalar_select 0, %s8, %s6
  $region1: #{cnn3d_forward.1} parent=0
    #allocation3 [shape = 'u8[65536]{0}', space=vmem, size = 0x10000, scoped, tag = 'input window, operand 1, single buffered']
    #allocation4 [shape = 's32[1]{0}', space=sflag, size = 0x4, scoped, tag = 'scoped memory for cnn3d_forward.1']
    #allocation5 [shape = 'u8[1024]{0}', space=vmem, size = 0x400, scoped, tag = 'input window, operand 2, single buffered']
    #allocation6 [shape = 's32[1]{0}', space=sflag, size = 0x4, scoped, tag = 'scoped memory for cnn3d_forward.1']
    #allocation7 [shape = 'u8[4194304]{0}', space=vmem, size = 0x400000, scoped, tag = 'input window, operand 3, single buffered']
    #allocation8 [shape = 'u8[2048]{0}', space=vmem, size = 0x800, scoped, tag = 'input window, operand 4, single buffered']
    #allocation9 [shape = 's32[1]{0}', space=sflag, size = 0x4, scoped, tag = 'scoped memory for cnn3d_forward.1']
    %10 = vsyncpa [#allocation4], 0
    %11 = vsyncpa [#allocation6], 0
    %12 = vsyncpa [#allocation9], 0
    // Predicated region
    $region2: #{cnn3d_forward.1} parent=1 // pred_check
      _
    $region3: #{cnn3d_forward.1} parent=1 // pred_check_branch
      %14 = sbr.rel (0) target = $region5
    $region4: #{cnn3d_forward.1} parent=1 // pred_region
      _
    $region5: #{cnn3d_forward.1} parent=1 // pred_fallthru
      _
    // Predicated region
    $region6: #{cnn3d_forward.1} parent=1 // pred_check
      _
    $region7: #{cnn3d_forward.1} parent=1 // pred_check_branch
      %16 = sbr.rel (0) target = $region9
    $region8: #{cnn3d_forward.1} parent=1 // pred_region
      %s18 = ssub.s32 2048, 2048
      %19 = vsyncadd [#allocation4], %s18
      %s20 = sshll.u32 [#allocation3], 4
      %s21 = int_to_ptr.vmem [resolvable:$true] %s20
      %26 = dma.hbm_to_vmem [thread:$0]  %s1, 2048, %s21, [#allocation4], 128, 128, 8
    $region9: #{cnn3d_forward.1} parent=1 // pred_fallthru
      _
    // Predicated region
    $region10: #{cnn3d_forward.1} parent=1 // pred_check
      _
    $region11: #{cnn3d_forward.1} parent=1 // pred_check_branch
      %28 = sbr.rel (0) target = $region13
    $region12: #{cnn3d_forward.1} parent=1 // pred_region
      %s30 = ssub.s32 32, 32
      %31 = vsyncadd [#allocation6], %s30
      %s33 = sshll.u32 [#allocation5], 4
      %s34 = int_to_ptr.vmem [resolvable:$true] %s33
      %36 = dma.hbm_to_vmem [thread:$0]  %s2, 32, %s34, [#allocation6]
    $region13: #{cnn3d_forward.1} parent=1 // pred_fallthru
      _
    // Predicated region
    $region14: #{cnn3d_forward.1} parent=1 // pred_check
      _
    $region15: #{cnn3d_forward.1} parent=1 // pred_check_branch
      %38 = sbr.rel (0) target = $region17
    $region16: #{cnn3d_forward.1} parent=1 // pred_region
      %s40 = ssub.s32 131072, 131072
      %41 = vsyncadd [#allocation6], %s40
      %s42 = sshll.u32 [#allocation7], 4
      %s43 = int_to_ptr.vmem [resolvable:$true] %s42
      %48 = dma.hbm_to_vmem [thread:$0]  %s3, 131072, %s43, [#allocation6], 256, 256, 16
    $region17: #{cnn3d_forward.1} parent=1 // pred_fallthru
      _
    // Predicated region
    $region18: #{cnn3d_forward.1} parent=1 // pred_check
      _
    $region19: #{cnn3d_forward.1} parent=1 // pred_check_branch
      %50 = sbr.rel (0) target = $region21
    $region20: #{cnn3d_forward.1} parent=1 // pred_region
      %s52 = ssub.s32 64, 64
      %53 = vsyncadd [#allocation9], %s52
      %s55 = sshll.u32 [#allocation8], 4
      %s56 = int_to_ptr.vmem [resolvable:$true] %s55
      %58 = dma.hbm_to_vmem [thread:$0]  %s4, 64, %s56, [#allocation9]
    $region21: #{cnn3d_forward.1} parent=1 // pred_fallthru
      _
    // Predicated region
    $region22: #{cnn3d_forward.1} parent=1 // pred_check
      _
    $region23: #{cnn3d_forward.1} parent=1 // pred_check_branch
      %60 = sbr.rel (0) target = $region25
    $region24: #{cnn3d_forward.1} parent=1 // pred_region
      %61 = dma.done [#allocation4], 2048
    $region25: #{cnn3d_forward.1} parent=1 // pred_fallthru
      _
    // Predicated region
    $region26: #{cnn3d_forward.1} parent=1 // pred_check
      _
    $region27: #{cnn3d_forward.1} parent=1 // pred_check_branch
      %63 = sbr.rel (0) target = $region29
    $region28: #{cnn3d_forward.1} parent=1 // pred_region
      %64 = dma.done [#allocation6], 32
    $region29: #{cnn3d_forward.1} parent=1 // pred_fallthru
      _
    // Predicated region
    $region30: #{cnn3d_forward.1} parent=1 // pred_check
      _
    $region31: #{cnn3d_forward.1} parent=1 // pred_check_branch
      %66 = sbr.rel (0) target = $region33
    $region32: #{cnn3d_forward.1} parent=1 // pred_region
      %67 = dma.done [#allocation6], 131072
    $region33: #{cnn3d_forward.1} parent=1 // pred_fallthru
      _
    // Predicated region
    $region34: #{cnn3d_forward.1} parent=1 // pred_check
      _
    $region35: #{cnn3d_forward.1} parent=1 // pred_check_branch
      %69 = sbr.rel (0) target = $region37
    $region36: #{cnn3d_forward.1} parent=1 // pred_region
      %70 = dma.done [#allocation9], 64
    $region37: #{cnn3d_forward.1} parent=1 // pred_fallthru
      _
    %v72 = vld [vmem:[#allocation3] sm:$0xff]
    %v73 = vld [vmem:[#allocation3 + $0x8] sm:$0xff]
    %v74 = vld [vmem:[#allocation3 + $0x10] sm:$0xff]
    %v75 = vld [vmem:[#allocation3 + $0x18] sm:$0xff]
    %v76 = vld [vmem:[#allocation3 + $0x20] sm:$0xff]
    %v77 = vld [vmem:[#allocation3 + $0x28] sm:$0xff]
    %v78 = vld [vmem:[#allocation3 + $0x30] sm:$0xff]
    %v79 = vld [vmem:[#allocation3 + $0x38] sm:$0xff]
    %v80 = vld [vmem:[#allocation3 + $0x40] sm:$0xff]
    %v81 = vld [vmem:[#allocation3 + $0x48] sm:$0xff]
    %v82 = vld [vmem:[#allocation3 + $0x50] sm:$0xff]
    %v83 = vld [vmem:[#allocation3 + $0x58] sm:$0xff]
    %v84 = vld [vmem:[#allocation3 + $0x60] sm:$0xff]
    %v85 = vld [vmem:[#allocation3 + $0x68] sm:$0xff]
    %v86 = vld [vmem:[#allocation3 + $0x70] sm:$0xff]
    %v87 = vld [vmem:[#allocation3 + $0x78] sm:$0xff]
    %v88 = vld [vmem:[#allocation5] sm:$0x3]
    %v89 = vld [vmem:[%s0] sm:$0xf]
    %v91 = vlaneseq
    %v92 = vshrl.u32 %v91, 7
    %v93 = vsub.s32 0, %v92
    %v94 = vrot.slane %v88, %v93
    %v95 = vlaneseq
    %v96 = vshrl.u32 %v95, 7
    %v97 = vsub.s32 1, %v96
    %v98 = vrot.slane %v88, %v97
    %v117 = vunpack.c.l.b16 %v72
    %v118 = vunpack.c.h.b16 %v72
    %v119 = vunpack.c.l.b16 %v73
    %v120 = vunpack.c.h.b16 %v73
    %v121 = vunpack.c.l.b16 %v74
    %v122 = vunpack.c.h.b16 %v74
    %v123 = vunpack.c.l.b16 %v75
    %v124 = vunpack.c.h.b16 %v75
    %v125 = vunpack.c.l.b16 %v76
    %v126 = vunpack.c.h.b16 %v76
    %v127 = vunpack.c.l.b16 %v77
    %v128 = vunpack.c.h.b16 %v77
    %v129 = vunpack.c.l.b16 %v78
    %v130 = vunpack.c.h.b16 %v78
    %v131 = vunpack.c.l.b16 %v79
    %v132 = vunpack.c.h.b16 %v79
    %v133 = vunpack.c.l.b16 %v80
    %v134 = vunpack.c.h.b16 %v80
    %v135 = vunpack.c.l.b16 %v81
    %v136 = vunpack.c.h.b16 %v81
    %v137 = vunpack.c.l.b16 %v82
    %v138 = vunpack.c.h.b16 %v82
    %v139 = vunpack.c.l.b16 %v83
    %v140 = vunpack.c.h.b16 %v83
    %v141 = vunpack.c.l.b16 %v84
    %v142 = vunpack.c.h.b16 %v84
    %v143 = vunpack.c.l.b16 %v85
    %v144 = vunpack.c.h.b16 %v85
    %v145 = vunpack.c.l.b16 %v86
    %v146 = vunpack.c.h.b16 %v86
    %v147 = vunpack.c.l.b16 %v87
    %v148 = vunpack.c.h.b16 %v87
    %v149 = vpack.c.b16 %v119, %v117
    %v150 = vpack.c.b16 %v120, %v118
    %v151 = vpack.c.b16 %v123, %v121
    %v152 = vpack.c.b16 %v124, %v122
    %v153 = vpack.c.b16 %v127, %v125
    %v154 = vpack.c.b16 %v128, %v126
    %v155 = vpack.c.b16 %v131, %v129
    %v156 = vpack.c.b16 %v132, %v130
    %v157 = vpack.c.b16 %v135, %v133
    %v158 = vpack.c.b16 %v136, %v134
    %v159 = vpack.c.b16 %v139, %v137
    %v160 = vpack.c.b16 %v140, %v138
    %v161 = vpack.c.b16 %v143, %v141
    %v162 = vpack.c.b16 %v144, %v142
    %v163 = vpack.c.b16 %v147, %v145
    %v164 = vpack.c.b16 %v148, %v146
    %181 = vmatprep.subr.bf16.mxu0 %v150
    %182 = vmatpush1.bf16.msra.mxu0 %v149
    %183 = vmatprep.subr.bf16.mxu0 %v152
    %184 = vmatpush1.bf16.msra.mxu0 %v151
    %185 = vmatprep.subr.bf16.mxu0 %v154
    %186 = vmatpush1.bf16.msra.mxu0 %v153
    %187 = vmatprep.subr.bf16.mxu0 %v156
    %188 = vmatpush1.bf16.msra.mxu0 %v155
    %189 = vmatprep.subr.bf16.mxu0 %v158
    %190 = vmatpush1.bf16.msra.mxu0 %v157
    %191 = vmatprep.subr.bf16.mxu0 %v160
    %192 = vmatpush1.bf16.msra.mxu0 %v159
    %193 = vmatprep.subr.bf16.mxu0 %v162
    %194 = vmatpush1.bf16.msra.mxu0 %v161
    %195 = vmatprep.subr.bf16.mxu0 %v164
    %196 = vmatpush1.bf16.msra.mxu0 %v163
    %197 = vmatprep.subr.bf16.mxu0 0
    %198 = vmatpush1.bf16.msra.mxu0 0
    %199 = vmatprep.subr.bf16.mxu0 0
    %200 = vmatpush1.bf16.msra.mxu0 0
    %201 = vmatprep.subr.bf16.mxu0 0
    %202 = vmatpush1.bf16.msra.mxu0 0
    %203 = vmatprep.subr.bf16.mxu0 0
    %204 = vmatpush1.bf16.msra.mxu0 0
    %205 = vmatprep.subr.bf16.mxu0 0
    %206 = vmatpush1.bf16.msra.mxu0 0
    %207 = vmatprep.subr.bf16.mxu0 0
    %208 = vmatpush1.bf16.msra.mxu0 0
    %209 = vmatprep.subr.bf16.mxu0 0
    %210 = vmatpush1.bf16.msra.mxu0 0
    %211 = vmatprep.subr.bf16.mxu0 0
    %212 = vmatpush1.bf16.msra.mxu0 0
    %213 = vmatprep.mubr.bf16.mxu0 0
    %214 = vmatmul.mubr.bf16.gmra.mrb[0].mxu0 %v89
    %v215 = vpop.f32.mrb[0].mxu0
    %v216 = vadd.f32 %v94, %v215
    %v217 = vpop.f32.mrb[0].mxu0
    %v218 = vadd.f32 %v98, %v217
    %v219 = vpop.f32.mrb[0].mxu0
    %v220 = vpop.f32.mrb[0].mxu0
    %221 = vdwg.mxu0
    %v222 = vmax.f32 %v216, 0.0
    %v223 = vmax.f32 %v218, 0.0
    %v224 = vpack.c.bf16 %v222, %v222
    %v225 = vpack.c.bf16 %v223, %v223
    %v228 = vunpack.c.l.b16 %v224
    %v229 = vunpack.c.l.b16 %v225
    %v230 = vpack.c.b16 %v229, %v228
    %232 = vst [vmem:[#allocation2] sm:$0xff] %v230
    %v233 = vld [vmem:[%s0 + $0x4] sm:$0xf]
    %234 = vmatprep.subr.bf16.mxu0 %v150
    %235 = vmatpush1.bf16.msra.mxu0 %v149
    %236 = vmatprep.subr.bf16.mxu0 %v152
    %237 = vmatpush1.bf16.msra.mxu0 %v151
    %238 = vmatprep.subr.bf16.mxu0 %v154
    %239 = vmatpush1.bf16.msra.mxu0 %v153
    %240 = vmatprep.subr.bf16.mxu0 %v156
    %241 = vmatpush1.bf16.msra.mxu0 %v155
    %242 = vmatprep.subr.bf16.mxu0 %v158
    %243 = vmatpush1.bf16.msra.mxu0 %v157
    %244 = vmatprep.subr.bf16.mxu0 %v160
    %245 = vmatpush1.bf16.msra.mxu0 %v159
    %246 = vmatprep.subr.bf16.mxu0 %v162
    %247 = vmatpush1.bf16.msra.mxu0 %v161
    %248 = vmatprep.subr.bf16.mxu0 %v164
    %249 = vmatpush1.bf16.msra.mxu0 %v163
    %250 = vmatprep.subr.bf16.mxu0 0
    %251 = vmatpush1.bf16.msra.mxu0 0
    %252 = vmatprep.subr.bf16.mxu0 0
    %253 = vmatpush1.bf16.msra.mxu0 0
    %254 = vmatprep.subr.bf16.mxu0 0
    %255 = vmatpush1.bf16.msra.mxu0 0
    %256 = vmatprep.subr.bf16.mxu0 0
    %257 = vmatpush1.bf16.msra.mxu0 0
    %258 = vmatprep.subr.bf16.mxu0 0
    %259 = vmatpush1.bf16.msra.mxu0 0
    %260 = vmatprep.subr.bf16.mxu0 0
    %261 = vmatpush1.bf16.msra.mxu0 0
    %262 = vmatprep.subr.bf16.mxu0 0
    %263 = vmatpush1.bf16.msra.mxu0 0
    %264 = vmatprep.subr.bf16.mxu0 0
    %265 = vmatpush1.bf16.msra.mxu0 0
    %266 = vmatprep.mubr.bf16.mxu0 0
    %267 = vmatmul.mubr.bf16.gmra.mrb[0].mxu0 %v233
    %v268 = vpop.f32.mrb[0].mxu0
    %v269 = vadd.f32 %v94, %v268
    %v270 = vpop.f32.mrb[0].mxu0
    %v271 = vadd.f32 %v98, %v270
    %v272 = vpop.f32.mrb[0].mxu0
    %v273 = vpop.f32.mrb[0].mxu0
    %274 = vdwg.mxu0
    %v275 = vmax.f32 %v269, 0.0
    %v276 = vmax.f32 %v271, 0.0
    %v277 = vpack.c.bf16 %v275, %v275
    %v278 = vpack.c.bf16 %v276, %v276
    %v281 = vunpack.c.l.b16 %v277
    %v282 = vunpack.c.l.b16 %v278
    %v283 = vpack.c.b16 %v282, %v281
    %285 = vst [vmem:[#allocation2 + $0x8] sm:$0xff] %v283
    %v286 = vld [vmem:[%s0 + $0x8] sm:$0xf]
    %287 = vmatprep.subr.bf16.mxu0 %v150
    %288 = vmatpush1.bf16.msra.mxu0 %v149
    %289 = vmatprep.subr.bf16.mxu0 %v152
    %290 = vmatpush1.bf16.msra.mxu0 %v151
    %291 = vmatprep.subr.bf16.mxu0 %v154
    %292 = vmatpush1.bf16.msra.mxu0 %v153
    %293 = vmatprep.subr.bf16.mxu0 %v156
    %294 = vmatpush1.bf16.msra.mxu0 %v155
    %295 = vmatprep.subr.bf16.mxu0 %v158
    %296 = vmatpush1.bf16.msra.mxu0 %v157
    %297 = vmatprep.subr.bf16.mxu0 %v160
    %298 = vmatpush1.bf16.msra.mxu0 %v159
    %299 = vmatprep.subr.bf16.mxu0 %v162
    %300 = vmatpush1.bf16.msra.mxu0 %v161
    %301 = vmatprep.subr.bf16.mxu0 %v164
    %302 = vmatpush1.bf16.msra.mxu0 %v163
    %303 = vmatprep.subr.bf16.mxu0 0
    %304 = vmatpush1.bf16.msra.mxu0 0
    %305 = vmatprep.subr.bf16.mxu0 0
    %306 = vmatpush1.bf16.msra.mxu0 0
    %307 = vmatprep.subr.bf16.mxu0 0
    %308 = vmatpush1.bf16.msra.mxu0 0
    %309 = vmatprep.subr.bf16.mxu0 0
    %310 = vmatpush1.bf16.msra.mxu0 0
    %311 = vmatprep.subr.bf16.mxu0 0
    %312 = vmatpush1.bf16.msra.mxu0 0
    %313 = vmatprep.subr.bf16.mxu0 0
    %314 = vmatpush1.bf16.msra.mxu0 0
    %315 = vmatprep.subr.bf16.mxu0 0
    %316 = vmatpush1.bf16.msra.mxu0 0
    %317 = vmatprep.subr.bf16.mxu0 0
    %318 = vmatpush1.bf16.msra.mxu0 0
    %319 = vmatprep.mubr.bf16.mxu0 0
    %320 = vmatmul.mubr.bf16.gmra.mrb[0].mxu0 %v286
    %v321 = vpop.f32.mrb[0].mxu0
    %v322 = vadd.f32 %v94, %v321
    %v323 = vpop.f32.mrb[0].mxu0
    %v324 = vadd.f32 %v98, %v323
    %v325 = vpop.f32.mrb[0].mxu0
    %v326 = vpop.f32.mrb[0].mxu0
    %327 = vdwg.mxu0
    %v328 = vmax.f32 %v322, 0.0
    %v329 = vmax.f32 %v324, 0.0
    %v330 = vpack.c.bf16 %v328, %v328
    %v331 = vpack.c.bf16 %v329, %v329
    %v334 = vunpack.c.l.b16 %v330
    %v335 = vunpack.c.l.b16 %v331
    %v336 = vpack.c.b16 %v335, %v334
    %338 = vst [vmem:[#allocation2 + $0x10] sm:$0xff] %v336
    %v339 = vld [vmem:[%s0 + $0xc] sm:$0xf]
    %340 = vmatprep.subr.bf16.mxu0 %v150
    %341 = vmatpush1.bf16.msra.mxu0 %v149
    %342 = vmatprep.subr.bf16.mxu0 %v152
    %343 = vmatpush1.bf16.msra.mxu0 %v151
    %344 = vmatprep.subr.bf16.mxu0 %v154
    %345 = vmatpush1.bf16.msra.mxu0 %v153
    %346 = vmatprep.subr.bf16.mxu0 %v156
    %347 = vmatpush1.bf16.msra.mxu0 %v155
    %348 = vmatprep.subr.bf16.mxu0 %v158
    %349 = vmatpush1.bf16.msra.mxu0 %v157
    %350 = vmatprep.subr.bf16.mxu0 %v160
    %351 = vmatpush1.bf16.msra.mxu0 %v159
    %352 = vmatprep.subr.bf16.mxu0 %v162
    %353 = vmatpush1.bf16.msra.mxu0 %v161
    %354 = vmatprep.subr.bf16.mxu0 %v164
    %355 = vmatpush1.bf16.msra.mxu0 %v163
    %356 = vmatprep.subr.bf16.mxu0 0
    %357 = vmatpush1.bf16.msra.mxu0 0
    %358 = vmatprep.subr.bf16.mxu0 0
    %359 = vmatpush1.bf16.msra.mxu0 0
    %360 = vmatprep.subr.bf16.mxu0 0
    %361 = vmatpush1.bf16.msra.mxu0 0
    %362 = vmatprep.subr.bf16.mxu0 0
    %363 = vmatpush1.bf16.msra.mxu0 0
    %364 = vmatprep.subr.bf16.mxu0 0
    %365 = vmatpush1.bf16.msra.mxu0 0
    %366 = vmatprep.subr.bf16.mxu0 0
    %367 = vmatpush1.bf16.msra.mxu0 0
    %368 = vmatprep.subr.bf16.mxu0 0
    %369 = vmatpush1.bf16.msra.mxu0 0
    %370 = vmatprep.subr.bf16.mxu0 0
    %371 = vmatpush1.bf16.msra.mxu0 0
    %372 = vmatprep.mubr.bf16.mxu0 0
    %373 = vmatmul.mubr.bf16.gmra.mrb[0].mxu0 %v339
    %v374 = vpop.f32.mrb[0].mxu0
    %v375 = vadd.f32 %v94, %v374
    %v376 = vpop.f32.mrb[0].mxu0
    %v377 = vadd.f32 %v98, %v376
    %v378 = vpop.f32.mrb[0].mxu0
    %v379 = vpop.f32.mrb[0].mxu0
    %380 = vdwg.mxu0
    %v381 = vmax.f32 %v375, 0.0
    %v382 = vmax.f32 %v377, 0.0
    %v383 = vpack.c.bf16 %v381, %v381
    %v384 = vpack.c.bf16 %v382, %v382
    %v387 = vunpack.c.l.b16 %v383
    %v388 = vunpack.c.l.b16 %v384
    %v389 = vpack.c.b16 %v388, %v387
    %391 = vst [vmem:[#allocation2 + $0x18] sm:$0xff] %v389
    %v392 = vld [vmem:[%s0 + $0x10] sm:$0xf]
    %393 = vmatprep.subr.bf16.mxu0 %v150
    %394 = vmatpush1.bf16.msra.mxu0 %v149
    %395 = vmatprep.subr.bf16.mxu0 %v152
    %396 = vmatpush1.bf16.msra.mxu0 %v151
    %397 = vmatprep.subr.bf16.mxu0 %v154
    %398 = vmatpush1.bf16.msra.mxu0 %v153
    %399 = vmatprep.subr.bf16.mxu0 %v156
    %400 = vmatpush1.bf16.msra.mxu0 %v155
    %401 = vmatprep.subr.bf16.mxu0 %v158
    %402 = vmatpush1.bf16.msra.mxu0 %v157
    %403 = vmatprep.subr.bf16.mxu0 %v160
    %404 = vmatpush1.bf16.msra.mxu0 %v159
    %405 = vmatprep.subr.bf16.mxu0 %v162
    %406 = vmatpush1.bf16.msra.mxu0 %v161
    %407 = vmatprep.subr.bf16.mxu0 %v164
    %408 = vmatpush1.bf16.msra.mxu0 %v163
    %409 = vmatprep.subr.bf16.mxu0 0
    %410 = vmatpush1.bf16.msra.mxu0 0
    %411 = vmatprep.subr.bf16.mxu0 0
    %412 = vmatpush1.bf16.msra.mxu0 0
    %413 = vmatprep.subr.bf16.mxu0 0
    %414 = vmatpush1.bf16.msra.mxu0 0
    %415 = vmatprep.subr.bf16.mxu0 0
    %416 = vmatpush1.bf16.msra.mxu0 0
    %417 = vmatprep.subr.bf16.mxu0 0
    %418 = vmatpush1.bf16.msra.mxu0 0
    %419 = vmatprep.subr.bf16.mxu0 0
    %420 = vmatpush1.bf16.msra.mxu0 0
    %421 = vmatprep.subr.bf16.mxu0 0
    %422 = vmatpush1.bf16.msra.mxu0 0
    %423 = vmatprep.subr.bf16.mxu0 0
    %424 = vmatpush1.bf16.msra.mxu0 0
    %425 = vmatprep.mubr.bf16.mxu0 0
    %426 = vmatmul.mubr.bf16.gmra.mrb[0].mxu0 %v392
    %v427 = vpop.f32.mrb[0].mxu0
    %v428 = vadd.f32 %v94, %v427
    %v429 = vpop.f32.mrb[0].mxu0
    %v430 = vadd.f32 %v98, %v429
    %v431 = vpop.f32.mrb[0].mxu0
    %v432 = vpop.f32.mrb[0].mxu0
    %433 = vdwg.mxu0
    %v434 = vmax.f32 %v428, 0.0
    %v435 = vmax.f32 %v430, 0.0
    %v436 = vpack.c.bf16 %v434, %v434
    %v437 = vpack.c.bf16 %v435, %v435
    %v440 = vunpack.c.l.b16 %v436
    %v441 = vunpack.c.l.b16 %v437
    %v442 = vpack.c.b16 %v441, %v440
    %444 = vst [vmem:[#allocation2 + $0x20] sm:$0xff] %v442
    %v445 = vld [vmem:[%s0 + $0x14] sm:$0xf]
    %446 = vmatprep.subr.bf16.mxu0 %v150
    %447 = vmatpush1.bf16.msra.mxu0 %v149
    %448 = vmatprep.subr.bf16.mxu0 %v152
    %449 = vmatpush1.bf16.msra.mxu0 %v151
    %450 = vmatprep.subr.bf16.mxu0 %v154
    %451 = vmatpush1.bf16.msra.mxu0 %v153
    %452 = vmatprep.subr.bf16.mxu0 %v156
    %453 = vmatpush1.bf16.msra.mxu0 %v155
    %454 = vmatprep.subr.bf16.mxu0 %v158
    %455 = vmatpush1.bf16.msra.mxu0 %v157
    %456 = vmatprep.subr.bf16.mxu0 %v160
    %457 = vmatpush1.bf16.msra.mxu0 %v159
    %458 = vmatprep.subr.bf16.mxu0 %v162
    %459 = vmatpush1.bf16.msra.mxu0 %v161
    %460 = vmatprep.subr.bf16.mxu0 %v164
    %461 = vmatpush1.bf16.msra.mxu0 %v163
    %462 = vmatprep.subr.bf16.mxu0 0
    %463 = vmatpush1.bf16.msra.mxu0 0
    %464 = vmatprep.subr.bf16.mxu0 0
    %465 = vmatpush1.bf16.msra.mxu0 0
    %466 = vmatprep.subr.bf16.mxu0 0
    %467 = vmatpush1.bf16.msra.mxu0 0
    %468 = vmatprep.subr.bf16.mxu0 0
    %469 = vmatpush1.bf16.msra.mxu0 0
    %470 = vmatprep.subr.bf16.mxu0 0
    %471 = vmatpush1.bf16.msra.mxu0 0
    %472 = vmatprep.subr.bf16.mxu0 0
    %473 = vmatpush1.bf16.msra.mxu0 0
    %474 = vmatprep.subr.bf16.mxu0 0
    %475 = vmatpush1.bf16.msra.mxu0 0
    %476 = vmatprep.subr.bf16.mxu0 0
    %477 = vmatpush1.bf16.msra.mxu0 0
    %478 = vmatprep.mubr.bf16.mxu0 0
    %479 = vmatmul.mubr.bf16.gmra.mrb[0].mxu0 %v445
    %v480 = vpop.f32.mrb[0].mxu0
    %v481 = vadd.f32 %v94, %v480
    %v482 = vpop.f32.mrb[0].mxu0
    %v483 = vadd.f32 %v98, %v482
    %v484 = vpop.f32.mrb[0].mxu0
    %v485 = vpop.f32.mrb[0].mxu0
    %486 = vdwg.mxu0
    %v487 = vmax.f32 %v481, 0.0
    %v488 = vmax.f32 %v483, 0.0
    %v489 = vpack.c.bf16 %v487, %v487
    %v490 = vpack.c.bf16 %v488, %v488
    %v493 = vunpack.c.l.b16 %v489
    %v494 = vunpack.c.l.b16 %v490
    %v495 = vpack.c.b16 %v494, %v493
    %497 = vst [vmem:[#allocation2 + $0x28] sm:$0xff] %v495
    %v498 = vld [vmem:[%s0 + $0x18] sm:$0xf]
    %499 = vmatprep.subr.bf16.mxu0 %v150
    %500 = vmatpush1.bf16.msra.mxu0 %v149
    %501 = vmatprep.subr.bf16.mxu0 %v152
    %502 = vmatpush1.bf16.msra.mxu0 %v151
    %503 = vmatprep.subr.bf16.mxu0 %v154
    %504 = vmatpush1.bf16.msra.mxu0 %v153
    %505 = vmatprep.subr.bf16.mxu0 %v156
    %506 = vmatpush1.bf16.msra.mxu0 %v155
    %507 = vmatprep.subr.bf16.mxu0 %v158
    %508 = vmatpush1.bf16.msra.mxu0 %v157
    %509 = vmatprep.subr.bf16.mxu0 %v160
    %510 = vmatpush1.bf16.msra.mxu0 %v159
    %511 = vmatprep.subr.bf16.mxu0 %v162
    %512 = vmatpush1.bf16.msra.mxu0 %v161
    %513 = vmatprep.subr.bf16.mxu0 %v164
    %514 = vmatpush1.bf16.msra.mxu0 %v163
    %515 = vmatprep.subr.bf16.mxu0 0
    %516 = vmatpush1.bf16.msra.mxu0 0
    %517 = vmatprep.subr.bf16.mxu0 0
    %518 = vmatpush1.bf16.msra.mxu0 0
    %519 = vmatprep.subr.bf16.mxu0 0
    %520 = vmatpush1.bf16.msra.mxu0 0
    %521 = vmatprep.subr.bf16.mxu0 0
    %522 = vmatpush1.bf16.msra.mxu0 0
    %523 = vmatprep.subr.bf16.mxu0 0
    %524 = vmatpush1.bf16.msra.mxu0 0
    %525 = vmatprep.subr.bf16.mxu0 0
    %526 = vmatpush1.bf16.msra.mxu0 0
    %527 = vmatprep.subr.bf16.mxu0 0
    %528 = vmatpush1.bf16.msra.mxu0 0
    %529 = vmatprep.subr.bf16.mxu0 0
    %530 = vmatpush1.bf16.msra.mxu0 0
    %531 = vmatprep.mubr.bf16.mxu0 0
    %532 = vmatmul.mubr.bf16.gmra.mrb[0].mxu0 %v498
    %v533 = vpop.f32.mrb[0].mxu0
    %v534 = vadd.f32 %v94, %v533
    %v535 = vpop.f32.mrb[0].mxu0
    %v536 = vadd.f32 %v98, %v535
    %v537 = vpop.f32.mrb[0].mxu0
    %v538 = vpop.f32.mrb[0].mxu0
    %539 = vdwg.mxu0
    %v540 = vmax.f32 %v534, 0.0
    %v541 = vmax.f32 %v536, 0.0
    %v542 = vpack.c.bf16 %v540, %v540
    %v543 = vpack.c.bf16 %v541, %v541
    %v546 = vunpack.c.l.b16 %v542
    %v547 = vunpack.c.l.b16 %v543
    %v548 = vpack.c.b16 %v547, %v546
    %550 = vst [vmem:[#allocation2 + $0x30] sm:$0xff] %v548
    %v551 = vld [vmem:[%s0 + $0x1c] sm:$0xf]
    %552 = vmatprep.subr.bf16.mxu0 %v150
    %553 = vmatpush1.bf16.msra.mxu0 %v149
    %554 = vmatprep.subr.bf16.mxu0 %v152
    %555 = vmatpush1.bf16.msra.mxu0 %v151
    %556 = vmatprep.subr.bf16.mxu0 %v154
    %557 = vmatpush1.bf16.msra.mxu0 %v153
    %558 = vmatprep.subr.bf16.mxu0 %v156
    %559 = vmatpush1.bf16.msra.mxu0 %v155
    %560 = vmatprep.subr.bf16.mxu0 %v158
    %561 = vmatpush1.bf16.msra.mxu0 %v157
    %562 = vmatprep.subr.bf16.mxu0 %v160
    %563 = vmatpush1.bf16.msra.mxu0 %v159
    %564 = vmatprep.subr.bf16.mxu0 %v162
    %565 = vmatpush1.bf16.msra.mxu0 %v161
    %566 = vmatprep.subr.bf16.mxu0 %v164
    %567 = vmatpush1.bf16.msra.mxu0 %v163
    %568 = vmatprep.subr.bf16.mxu0 0
    %569 = vmatpush1.bf16.msra.mxu0 0
    %570 = vmatprep.subr.bf16.mxu0 0
    %571 = vmatpush1.bf16.msra.mxu0 0
    %572 = vmatprep.subr.bf16.mxu0 0
    %573 = vmatpush1.bf16.msra.mxu0 0
    %574 = vmatprep.subr.bf16.mxu0 0
    %575 = vmatpush1.bf16.msra.mxu0 0
    %576 = vmatprep.subr.bf16.mxu0 0
    %577 = vmatpush1.bf16.msra.mxu0 0
    %578 = vmatprep.subr.bf16.mxu0 0
    %579 = vmatpush1.bf16.msra.mxu0 0
    %580 = vmatprep.subr.bf16.mxu0 0
    %581 = vmatpush1.bf16.msra.mxu0 0
    %582 = vmatprep.subr.bf16.mxu0 0
    %583 = vmatpush1.bf16.msra.mxu0 0
    %584 = vmatprep.mubr.bf16.mxu0 0
    %585 = vmatmul.mubr.bf16.gmra.mrb[0].mxu0 %v551
    %v586 = vpop.f32.mrb[0].mxu0
    %v587 = vadd.f32 %v94, %v586
    %v588 = vpop.f32.mrb[0].mxu0
    %v589 = vadd.f32 %v98, %v588
    %v590 = vpop.f32.mrb[0].mxu0
    %v591 = vpop.f32.mrb[0].mxu0
    %592 = vdwg.mxu0
    %v593 = vmax.f32 %v587, 0.0
    %v594 = vmax.f32 %v589, 0.0
    %v595 = vpack.c.bf16 %v593, %v593
    %v596 = vpack.c.bf16 %v594, %v594
    %v599 = vunpack.c.l.b16 %v595
    %v600 = vunpack.c.l.b16 %v596
    %v601 = vpack.c.b16 %v600, %v599
    %603 = vst [vmem:[#allocation2 + $0x38] sm:$0xff] %v601
    %v604 = vld [vmem:[%s0 + $0x20] sm:$0xf]
    %605 = vmatprep.subr.bf16.mxu0 %v150
    %606 = vmatpush1.bf16.msra.mxu0 %v149
    %607 = vmatprep.subr.bf16.mxu0 %v152
    %608 = vmatpush1.bf16.msra.mxu0 %v151
    %609 = vmatprep.subr.bf16.mxu0 %v154
    %610 = vmatpush1.bf16.msra.mxu0 %v153
    %611 = vmatprep.subr.bf16.mxu0 %v156
    %612 = vmatpush1.bf16.msra.mxu0 %v155
    %613 = vmatprep.subr.bf16.mxu0 %v158
    %614 = vmatpush1.bf16.msra.mxu0 %v157
    %615 = vmatprep.subr.bf16.mxu0 %v160
    %616 = vmatpush1.bf16.msra.mxu0 %v159
    %617 = vmatprep.subr.bf16.mxu0 %v162
    %618 = vmatpush1.bf16.msra.mxu0 %v161
    %619 = vmatprep.subr.bf16.mxu0 %v164
    %620 = vmatpush1.bf16.msra.mxu0 %v163
    %621 = vmatprep.subr.bf16.mxu0 0
    %622 = vmatpush1.bf16.msra.mxu0 0
    %623 = vmatprep.subr.bf16.mxu0 0
    %624 = vmatpush1.bf16.msra.mxu0 0
    %625 = vmatprep.subr.bf16.mxu0 0
    %626 = vmatpush1.bf16.msra.mxu0 0
    %627 = vmatprep.subr.bf16.mxu0 0
    %628 = vmatpush1.bf16.msra.mxu0 0
    %629 = vmatprep.subr.bf16.mxu0 0
    %630 = vmatpush1.bf16.msra.mxu0 0
    %631 = vmatprep.subr.bf16.mxu0 0
    %632 = vmatpush1.bf16.msra.mxu0 0
    %633 = vmatprep.subr.bf16.mxu0 0
    %634 = vmatpush1.bf16.msra.mxu0 0
    %635 = vmatprep.subr.bf16.mxu0 0
    %636 = vmatpush1.bf16.msra.mxu0 0
    %637 = vmatprep.mubr.bf16.mxu0 0
    %638 = vmatmul.mubr.bf16.gmra.mrb[0].mxu0 %v604
    %v639 = vpop.f32.mrb[0].mxu0
    %v640 = vadd.f32 %v94, %v639
    %v641 = vpop.f32.mrb[0].mxu0
    %v642 = vadd.f32 %v98, %v641
    %v643 = vpop.f32.mrb[0].mxu0
    %v644 = vpop.f32.mrb[0].mxu0
    %645 = vdwg.mxu0
    %v646 = vmax.f32 %v640, 0.0
    %v647 = vmax.f32 %v642, 0.0
    %v648 = vpack.c.bf16 %v646, %v646
    %v649 = vpack.c.bf16 %v647, %v647
    %v652 = vunpack.c.l.b16 %v648
    %v653 = vunpack.c.l.b16 %v649
    %v654 = vpack.c.b16 %v653, %v652
    %656 = vst [vmem:[#allocation2 + $0x40] sm:$0xff] %v654
    %v657 = vld [vmem:[%s0 + $0x24] sm:$0xf]
    %658 = vmatprep.subr.bf16.mxu0 %v150
    %659 = vmatpush1.bf16.msra.mxu0 %v149
    %660 = vmatprep.subr.bf16.mxu0 %v152
    %661 = vmatpush1.bf16.msra.mxu0 %v151
    %662 = vmatprep.subr.bf16.mxu0 %v154
    %663 = vmatpush1.bf16.msra.mxu0 %v153
    %664 = vmatprep.subr.bf16.mxu0 %v156
    %665 = vmatpush1.bf16.msra.mxu0 %v155
    %666 = vmatprep.subr.bf16.mxu0 %v158
    %667 = vmatpush1.bf16.msra.mxu0 %v157
    %668 = vmatprep.subr.bf16.mxu0 %v160
    %669 = vmatpush1.bf16.msra.mxu0 %v159
    %670 = vmatprep.subr.bf16.mxu0 %v162
    %671 = vmatpush1.bf16.msra.mxu0 %v161
    %672 = vmatprep.subr.bf16.mxu0 %v164
    %673 = vmatpush1.bf16.msra.mxu0 %v163
    %674 = vmatprep.subr.bf16.mxu0 0
    %675 = vmatpush1.bf16.msra.mxu0 0
    %676 = vmatprep.subr.bf16.mxu0 0
    %677 = vmatpush1.bf16.msra.mxu0 0
    %678 = vmatprep.subr.bf16.mxu0 0
    %679 = vmatpush1.bf16.msra.mxu0 0
    %680 = vmatprep.subr.bf16.mxu0 0
    %681 = vmatpush1.bf16.msra.mxu0 0
    %682 = vmatprep.subr.bf16.mxu0 0
    %683 = vmatpush1.bf16.msra.mxu0 0
    %684 = vmatprep.subr.bf16.mxu0 0
    %685 = vmatpush1.bf16.msra.mxu0 0
    %686 = vmatprep.subr.bf16.mxu0 0
    %687 = vmatpush1.bf16.msra.mxu0 0
    %688 = vmatprep.subr.bf16.mxu0 0
    %689 = vmatpush1.bf16.msra.mxu0 0
    %690 = vmatprep.mubr.bf16.mxu0 0
    %691 = vmatmul.mubr.bf16.gmra.mrb[0].mxu0 %v657
    %v692 = vpop.f32.mrb[0].mxu0
    %v693 = vadd.f32 %v94, %v692
    %v694 = vpop.f32.mrb[0].mxu0
    %v695 = vadd.f32 %v98, %v694
    %v696 = vpop.f32.mrb[0].mxu0
    %v697 = vpop.f32.mrb[0].mxu0
    %698 = vdwg.mxu0
    %v699 = vmax.f32 %v693, 0.0
    %v700 = vmax.f32 %v695, 0.0
    %v701 = vpack.c.bf16 %v699, %v699
    %v702 = vpack.c.bf16 %v700, %v700
    %v705 = vunpack.c.l.b16 %v701
    %v706 = vunpack.c.l.b16 %v702
    %v707 = vpack.c.b16 %v706, %v705
    %709 = vst [vmem:[#allocation2 + $0x48] sm:$0xff] %v707
    %v710 = vld [vmem:[%s0 + $0x28] sm:$0xf]
    %711 = vmatprep.subr.bf16.mxu0 %v150
    %712 = vmatpush1.bf16.msra.mxu0 %v149
    %713 = vmatprep.subr.bf16.mxu0 %v152
    %714 = vmatpush1.bf16.msra.mxu0 %v151
    %715 = vmatprep.subr.bf16.mxu0 %v154
    %716 = vmatpush1.bf16.msra.mxu0 %v153
    %717 = vmatprep.subr.bf16.mxu0 %v156
    %718 = vmatpush1.bf16.msra.mxu0 %v155
    %719 = vmatprep.subr.bf16.mxu0 %v158
    %720 = vmatpush1.bf16.msra.mxu0 %v157
    %721 = vmatprep.subr.bf16.mxu0 %v160
    %722 = vmatpush1.bf16.msra.mxu0 %v159
    %723 = vmatprep.subr.bf16.mxu0 %v162
    %724 = vmatpush1.bf16.msra.mxu0 %v161
    %725 = vmatprep.subr.bf16.mxu0 %v164
    %726 = vmatpush1.bf16.msra.mxu0 %v163
    %727 = vmatprep.subr.bf16.mxu0 0
    %728 = vmatpush1.bf16.msra.mxu0 0
    %729 = vmatprep.subr.bf16.mxu0 0
    %730 = vmatpush1.bf16.msra.mxu0 0
    %731 = vmatprep.subr.bf16.mxu0 0
    %732 = vmatpush1.bf16.msra.mxu0 0
    %733 = vmatprep.subr.bf16.mxu0 0
    %734 = vmatpush1.bf16.msra.mxu0 0
    %735 = vmatprep.subr.bf16.mxu0 0
    %736 = vmatpush1.bf16.msra.mxu0 0
    %737 = vmatprep.subr.bf16.mxu0 0
    %738 = vmatpush1.bf16.msra.mxu0 0
    %739 = vmatprep.subr.bf16.mxu0 0
    %740 = vmatpush1.bf16.msra.mxu0 0
    %741 = vmatprep.subr.bf16.mxu0 0
    %742 = vmatpush1.bf16.msra.mxu0 0
    %743 = vmatprep.mubr.bf16.mxu0 0
    %744 = vmatmul.mubr.bf16.gmra.mrb[0].mxu0 %v710
    %v745 = vpop.f32.mrb[0].mxu0
    %v746 = vadd.f32 %v94, %v745
    %v747 = vpop.f32.mrb[0].mxu0
    %v748 = vadd.f32 %v98, %v747
    %v749 = vpop.f32.mrb[0].mxu0
    %v750 = vpop.f32.mrb[0].mxu0
    %751 = vdwg.mxu0
    %v752 = vmax.f32 %v746, 0.0
    %v753 = vmax.f32 %v748, 0.0
    %v754 = vpack.c.bf16 %v752, %v752
    %v755 = vpack.c.bf16 %v753, %v753
    %v758 = vunpack.c.l.b16 %v754
    %v759 = vunpack.c.l.b16 %v755
    %v760 = vpack.c.b16 %v759, %v758
    %762 = vst [vmem:[#allocation2 + $0x50] sm:$0xff] %v760
    %v763 = vld [vmem:[%s0 + $0x2c] sm:$0xf]
    %764 = vmatprep.subr.bf16.mxu0 %v150
    %765 = vmatpush1.bf16.msra.mxu0 %v149
    %766 = vmatprep.subr.bf16.mxu0 %v152
    %767 = vmatpush1.bf16.msra.mxu0 %v151
    %768 = vmatprep.subr.bf16.mxu0 %v154
    %769 = vmatpush1.bf16.msra.mxu0 %v153
    %770 = vmatprep.subr.bf16.mxu0 %v156
    %771 = vmatpush1.bf16.msra.mxu0 %v155
    %772 = vmatprep.subr.bf16.mxu0 %v158
    %773 = vmatpush1.bf16.msra.mxu0 %v157
    %774 = vmatprep.subr.bf16.mxu0 %v160
    %775 = vmatpush1.bf16.msra.mxu0 %v159
    %776 = vmatprep.subr.bf16.mxu0 %v162
    %777 = vmatpush1.bf16.msra.mxu0 %v161
    %778 = vmatprep.subr.bf16.mxu0 %v164
    %779 = vmatpush1.bf16.msra.mxu0 %v163
    %780 = vmatprep.subr.bf16.mxu0 0
    %781 = vmatpush1.bf16.msra.mxu0 0
    %782 = vmatprep.subr.bf16.mxu0 0
    %783 = vmatpush1.bf16.msra.mxu0 0
    %784 = vmatprep.subr.bf16.mxu0 0
    %785 = vmatpush1.bf16.msra.mxu0 0
    %786 = vmatprep.subr.bf16.mxu0 0
    %787 = vmatpush1.bf16.msra.mxu0 0
    %788 = vmatprep.subr.bf16.mxu0 0
    %789 = vmatpush1.bf16.msra.mxu0 0
    %790 = vmatprep.subr.bf16.mxu0 0
    %791 = vmatpush1.bf16.msra.mxu0 0
    %792 = vmatprep.subr.bf16.mxu0 0
    %793 = vmatpush1.bf16.msra.mxu0 0
    %794 = vmatprep.subr.bf16.mxu0 0
    %795 = vmatpush1.bf16.msra.mxu0 0
    %796 = vmatprep.mubr.bf16.mxu0 0
    %797 = vmatmul.mubr.bf16.gmra.mrb[0].mxu0 %v763
    %v798 = vpop.f32.mrb[0].mxu0
    %v799 = vadd.f32 %v94, %v798
    %v800 = vpop.f32.mrb[0].mxu0
    %v801 = vadd.f32 %v98, %v800
    %v802 = vpop.f32.mrb[0].mxu0
    %v803 = vpop.f32.mrb[0].mxu0
    %804 = vdwg.mxu0
    %v805 = vmax.f32 %v799, 0.0
    %v806 = vmax.f32 %v801, 0.0
    %v807 = vpack.c.bf16 %v805, %v805
    %v808 = vpack.c.bf16 %v806, %v806
    %v811 = vunpack.c.l.b16 %v807
    %v812 = vunpack.c.l.b16 %v808
    %v813 = vpack.c.b16 %v812, %v811
    %815 = vst [vmem:[#allocation2 + $0x58] sm:$0xff] %v813
    %v816 = vld [vmem:[%s0 + $0x30] sm:$0xf]
    %817 = vmatprep.subr.bf16.mxu0 %v150
    %818 = vmatpush1.bf16.msra.mxu0 %v149
    %819 = vmatprep.subr.bf16.mxu0 %v152
    %820 = vmatpush1.bf16.msra.mxu0 %v151
    %821 = vmatprep.subr.bf16.mxu0 %v154
    %822 = vmatpush1.bf16.msra.mxu0 %v153
    %823 = vmatprep.subr.bf16.mxu0 %v156
    %824 = vmatpush1.bf16.msra.mxu0 %v155
    %825 = vmatprep.subr.bf16.mxu0 %v158
    %826 = vmatpush1.bf16.msra.mxu0 %v157
    %827 = vmatprep.subr.bf16.mxu0 %v160
    %828 = vmatpush1.bf16.msra.mxu0 %v159
    %829 = vmatprep.subr.bf16.mxu0 %v162
    %830 = vmatpush1.bf16.msra.mxu0 %v161
    %831 = vmatprep.subr.bf16.mxu0 %v164
    %832 = vmatpush1.bf16.msra.mxu0 %v163
    %833 = vmatprep.subr.bf16.mxu0 0
    %834 = vmatpush1.bf16.msra.mxu0 0
    %835 = vmatprep.subr.bf16.mxu0 0
    %836 = vmatpush1.bf16.msra.mxu0 0
    %837 = vmatprep.subr.bf16.mxu0 0
    %838 = vmatpush1.bf16.msra.mxu0 0
    %839 = vmatprep.subr.bf16.mxu0 0
    %840 = vmatpush1.bf16.msra.mxu0 0
    %841 = vmatprep.subr.bf16.mxu0 0
    %842 = vmatpush1.bf16.msra.mxu0 0
    %843 = vmatprep.subr.bf16.mxu0 0
    %844 = vmatpush1.bf16.msra.mxu0 0
    %845 = vmatprep.subr.bf16.mxu0 0
    %846 = vmatpush1.bf16.msra.mxu0 0
    %847 = vmatprep.subr.bf16.mxu0 0
    %848 = vmatpush1.bf16.msra.mxu0 0
    %849 = vmatprep.mubr.bf16.mxu0 0
    %850 = vmatmul.mubr.bf16.gmra.mrb[0].mxu0 %v816
    %v851 = vpop.f32.mrb[0].mxu0
    %v852 = vadd.f32 %v94, %v851
    %v853 = vpop.f32.mrb[0].mxu0
    %v854 = vadd.f32 %v98, %v853
    %v855 = vpop.f32.mrb[0].mxu0
    %v856 = vpop.f32.mrb[0].mxu0
    %857 = vdwg.mxu0
    %v858 = vmax.f32 %v852, 0.0
    %v859 = vmax.f32 %v854, 0.0
    %v860 = vpack.c.bf16 %v858, %v858
    %v861 = vpack.c.bf16 %v859, %v859
    %v864 = vunpack.c.l.b16 %v860
    %v865 = vunpack.c.l.b16 %v861
    %v866 = vpack.c.b16 %v865, %v864
    %868 = vst [vmem:[#allocation2 + $0x60] sm:$0xff] %v866
    %v869 = vld [vmem:[%s0 + $0x34] sm:$0xf]
    %870 = vmatprep.subr.bf16.mxu0 %v150
    %871 = vmatpush1.bf16.msra.mxu0 %v149
    %872 = vmatprep.subr.bf16.mxu0 %v152
    %873 = vmatpush1.bf16.msra.mxu0 %v151
    %874 = vmatprep.subr.bf16.mxu0 %v154
    %875 = vmatpush1.bf16.msra.mxu0 %v153
    %876 = vmatprep.subr.bf16.mxu0 %v156
    %877 = vmatpush1.bf16.msra.mxu0 %v155
    %878 = vmatprep.subr.bf16.mxu0 %v158
    %879 = vmatpush1.bf16.msra.mxu0 %v157
    %880 = vmatprep.subr.bf16.mxu0 %v160
    %881 = vmatpush1.bf16.msra.mxu0 %v159
    %882 = vmatprep.subr.bf16.mxu0 %v162
    %883 = vmatpush1.bf16.msra.mxu0 %v161
    %884 = vmatprep.subr.bf16.mxu0 %v164
    %885 = vmatpush1.bf16.msra.mxu0 %v163
    %886 = vmatprep.subr.bf16.mxu0 0
    %887 = vmatpush1.bf16.msra.mxu0 0
    %888 = vmatprep.subr.bf16.mxu0 0
    %889 = vmatpush1.bf16.msra.mxu0 0
    %890 = vmatprep.subr.bf16.mxu0 0
    %891 = vmatpush1.bf16.msra.mxu0 0
    %892 = vmatprep.subr.bf16.mxu0 0
    %893 = vmatpush1.bf16.msra.mxu0 0
    %894 = vmatprep.subr.bf16.mxu0 0
    %895 = vmatpush1.bf16.msra.mxu0 0
    %896 = vmatprep.subr.bf16.mxu0 0
    %897 = vmatpush1.bf16.msra.mxu0 0
    %898 = vmatprep.subr.bf16.mxu0 0
    %899 = vmatpush1.bf16.msra.mxu0 0
    %900 = vmatprep.subr.bf16.mxu0 0
    %901 = vmatpush1.bf16.msra.mxu0 0
    %902 = vmatprep.mubr.bf16.mxu0 0
    %903 = vmatmul.mubr.bf16.gmra.mrb[0].mxu0 %v869
    %v904 = vpop.f32.mrb[0].mxu0
    %v905 = vadd.f32 %v94, %v904
    %v906 = vpop.f32.mrb[0].mxu0
    %v907 = vadd.f32 %v98, %v906
    %v908 = vpop.f32.mrb[0].mxu0
    %v909 = vpop.f32.mrb[0].mxu0
    %910 = vdwg.mxu0
    %v911 = vmax.f32 %v905, 0.0
    %v912 = vmax.f32 %v907, 0.0
    %v913 = vpack.c.bf16 %v911, %v911
    %v914 = vpack.c.bf16 %v912, %v912
    %v917 = vunpack.c.l.b16 %v913
    %v918 = vunpack.c.l.b16 %v914
    %v919 = vpack.c.b16 %v918, %v917
    %921 = vst [vmem:[#allocation2 + $0x68] sm:$0xff] %v919
    %v922 = vld [vmem:[%s0 + $0x38] sm:$0xf]
    %923 = vmatprep.subr.bf16.mxu0 %v150
    %924 = vmatpush1.bf16.msra.mxu0 %v149
    %925 = vmatprep.subr.bf16.mxu0 %v152
    %926 = vmatpush1.bf16.msra.mxu0 %v151
    %927 = vmatprep.subr.bf16.mxu0 %v154
    %928 = vmatpush1.bf16.msra.mxu0 %v153
    %929 = vmatprep.subr.bf16.mxu0 %v156
    %930 = vmatpush1.bf16.msra.mxu0 %v155
    %931 = vmatprep.subr.bf16.mxu0 %v158
    %932 = vmatpush1.bf16.msra.mxu0 %v157
    %933 = vmatprep.subr.bf16.mxu0 %v160
    %934 = vmatpush1.bf16.msra.mxu0 %v159
    %935 = vmatprep.subr.bf16.mxu0 %v162
    %936 = vmatpush1.bf16.msra.mxu0 %v161
    %937 = vmatprep.subr.bf16.mxu0 %v164
    %938 = vmatpush1.bf16.msra.mxu0 %v163
    %939 = vmatprep.subr.bf16.mxu0 0
    %940 = vmatpush1.bf16.msra.mxu0 0
    %941 = vmatprep.subr.bf16.mxu0 0
    %942 = vmatpush1.bf16.msra.mxu0 0
    %943 = vmatprep.subr.bf16.mxu0 0
    %944 = vmatpush1.bf16.msra.mxu0 0
    %945 = vmatprep.subr.bf16.mxu0 0
    %946 = vmatpush1.bf16.msra.mxu0 0
    %947 = vmatprep.subr.bf16.mxu0 0
    %948 = vmatpush1.bf16.msra.mxu0 0
    %949 = vmatprep.subr.bf16.mxu0 0
    %950 = vmatpush1.bf16.msra.mxu0 0
    %951 = vmatprep.subr.bf16.mxu0 0
    %952 = vmatpush1.bf16.msra.mxu0 0
    %953 = vmatprep.subr.bf16.mxu0 0
    %954 = vmatpush1.bf16.msra.mxu0 0
    %955 = vmatprep.mubr.bf16.mxu0 0
    %956 = vmatmul.mubr.bf16.gmra.mrb[0].mxu0 %v922
    %v957 = vpop.f32.mrb[0].mxu0
    %v958 = vadd.f32 %v94, %v957
    %v959 = vpop.f32.mrb[0].mxu0
    %v960 = vadd.f32 %v98, %v959
    %v961 = vpop.f32.mrb[0].mxu0
    %v962 = vpop.f32.mrb[0].mxu0
    %963 = vdwg.mxu0
    %v964 = vmax.f32 %v958, 0.0
    %v965 = vmax.f32 %v960, 0.0
    %v966 = vpack.c.bf16 %v964, %v964
    %v967 = vpack.c.bf16 %v965, %v965
    %v970 = vunpack.c.l.b16 %v966
    %v971 = vunpack.c.l.b16 %v967
    %v972 = vpack.c.b16 %v971, %v970
    %974 = vst [vmem:[#allocation2 + $0x70] sm:$0xff] %v972
    %v975 = vld [vmem:[%s0 + $0x3c] sm:$0xf]
    %976 = vmatprep.subr.bf16.mxu0 %v150
    %977 = vmatpush1.bf16.msra.mxu0 %v149
    %978 = vmatprep.subr.bf16.mxu0 %v152
    %979 = vmatpush1.bf16.msra.mxu0 %v151
    %980 = vmatprep.subr.bf16.mxu0 %v154
    %981 = vmatpush1.bf16.msra.mxu0 %v153
    %982 = vmatprep.subr.bf16.mxu0 %v156
    %983 = vmatpush1.bf16.msra.mxu0 %v155
    %984 = vmatprep.subr.bf16.mxu0 %v158
    %985 = vmatpush1.bf16.msra.mxu0 %v157
    %986 = vmatprep.subr.bf16.mxu0 %v160
    %987 = vmatpush1.bf16.msra.mxu0 %v159
    %988 = vmatprep.subr.bf16.mxu0 %v162
    %989 = vmatpush1.bf16.msra.mxu0 %v161
    %990 = vmatprep.subr.bf16.mxu0 %v164
    %991 = vmatpush1.bf16.msra.mxu0 %v163
    %992 = vmatprep.subr.bf16.mxu0 0
    %993 = vmatpush1.bf16.msra.mxu0 0
    %994 = vmatprep.subr.bf16.mxu0 0
    %995 = vmatpush1.bf16.msra.mxu0 0
    %996 = vmatprep.subr.bf16.mxu0 0
    %997 = vmatpush1.bf16.msra.mxu0 0
    %998 = vmatprep.subr.bf16.mxu0 0
    %999 = vmatpush1.bf16.msra.mxu0 0
    %1000 = vmatprep.subr.bf16.mxu0 0
    %1001 = vmatpush1.bf16.msra.mxu0 0
    %1002 = vmatprep.subr.bf16.mxu0 0
    %1003 = vmatpush1.bf16.msra.mxu0 0
    %1004 = vmatprep.subr.bf16.mxu0 0
    %1005 = vmatpush1.bf16.msra.mxu0 0
    %1006 = vmatprep.subr.bf16.mxu0 0
    %1007 = vmatpush1.bf16.msra.mxu0 0
    %1008 = vmatprep.mubr.bf16.mxu0 0
    %1009 = vmatmul.mubr.bf16.gmra.mrb[0].mxu0 %v975
    %v1010 = vpop.f32.mrb[0].mxu0
    %v1011 = vadd.f32 %v94, %v1010
    %v1012 = vpop.f32.mrb[0].mxu0
    %v1013 = vadd.f32 %v98, %v1012
    %v1014 = vpop.f32.mrb[0].mxu0
    %v1015 = vpop.f32.mrb[0].mxu0
    %1016 = vdwg.mxu0
    %v1017 = vmax.f32 %v1011, 0.0
    %v1018 = vmax.f32 %v1013, 0.0
    %v1019 = vpack.c.bf16 %v1017, %v1017
    %v1020 = vpack.c.bf16 %v1018, %v1018
    %v1023 = vunpack.c.l.b16 %v1019
    %v1024 = vunpack.c.l.b16 %v1020
    %v1025 = vpack.c.b16 %v1024, %v1023
    %1027 = vst [vmem:[#allocation2 + $0x78] sm:$0xff] %v1025
    %v1028 = vld [vmem:[#allocation2] sm:$0xff]
    %v1029 = vld [vmem:[#allocation2 + $0x8] sm:$0xff]
    %v1030 = vld [vmem:[#allocation2 + $0x10] sm:$0xff]
    %v1031 = vld [vmem:[#allocation2 + $0x18] sm:$0xff]
    %v1032 = vld [vmem:[#allocation2 + $0x20] sm:$0xff]
    %v1033 = vld [vmem:[#allocation2 + $0x28] sm:$0xff]
    %v1034 = vld [vmem:[#allocation2 + $0x30] sm:$0xff]
    %v1035 = vld [vmem:[#allocation2 + $0x38] sm:$0xff]
    %v1036 = vld [vmem:[#allocation2 + $0x40] sm:$0xff]
    %v1037 = vld [vmem:[#allocation2 + $0x48] sm:$0xff]
    %v1038 = vld [vmem:[#allocation2 + $0x50] sm:$0xff]
    %v1039 = vld [vmem:[#allocation2 + $0x58] sm:$0xff]
    %v1040 = vld [vmem:[#allocation2 + $0x60] sm:$0xff]
    %v1041 = vld [vmem:[#allocation2 + $0x68] sm:$0xff]
    %v1042 = vld [vmem:[#allocation2 + $0x70] sm:$0xff]
    %v1043 = vld [vmem:[#allocation2 + $0x78] sm:$0xff]
    %v1044 = vld [vmem:[#allocation7] sm:$0xff]
    %v1045 = vld [vmem:[#allocation7 + $0x8] sm:$0xff]
    %v1046 = vld [vmem:[#allocation7 + $0x10] sm:$0xff]
    %v1047 = vld [vmem:[#allocation7 + $0x18] sm:$0xff]
    %v1048 = vld [vmem:[#allocation7 + $0x20] sm:$0xff]
    %v1049 = vld [vmem:[#allocation7 + $0x28] sm:$0xff]
    %v1050 = vld [vmem:[#allocation7 + $0x30] sm:$0xff]
    %v1051 = vld [vmem:[#allocation7 + $0x38] sm:$0xff]
    %v1052 = vld [vmem:[#allocation7 + $0x40] sm:$0xff]
    %v1053 = vld [vmem:[#allocation7 + $0x48] sm:$0xff]
    %v1054 = vld [vmem:[#allocation7 + $0x50] sm:$0xff]
    %v1055 = vld [vmem:[#allocation7 + $0x58] sm:$0xff]
    %v1056 = vld [vmem:[#allocation7 + $0x60] sm:$0xff]
    %v1057 = vld [vmem:[#allocation7 + $0x68] sm:$0xff]
    %v1058 = vld [vmem:[#allocation7 + $0x70] sm:$0xff]
    %v1059 = vld [vmem:[#allocation7 + $0x78] sm:$0xff]
    %v1060 = vld [vmem:[#allocation7 + $0x80] sm:$0xff]
    %v1061 = vld [vmem:[#allocation7 + $0x88] sm:$0xff]
    %v1062 = vld [vmem:[#allocation7 + $0x90] sm:$0xff]
    %v1063 = vld [vmem:[#allocation7 + $0x98] sm:$0xff]
    %v1064 = vld [vmem:[#allocation7 + $0xa0] sm:$0xff]
    %v1065 = vld [vmem:[#allocation7 + $0xa8] sm:$0xff]
    %v1066 = vld [vmem:[#allocation7 + $0xb0] sm:$0xff]
    %v1067 = vld [vmem:[#allocation7 + $0xb8] sm:$0xff]
    %v1068 = vld [vmem:[#allocation7 + $0xc0] sm:$0xff]
    %v1069 = vld [vmem:[#allocation7 + $0xc8] sm:$0xff]
    %v1070 = vld [vmem:[#allocation7 + $0xd0] sm:$0xff]
    %v1071 = vld [vmem:[#allocation7 + $0xd8] sm:$0xff]
    %v1072 = vld [vmem:[#allocation7 + $0xe0] sm:$0xff]
    %v1073 = vld [vmem:[#allocation7 + $0xe8] sm:$0xff]
    %v1074 = vld [vmem:[#allocation7 + $0xf0] sm:$0xff]
    %v1075 = vld [vmem:[#allocation7 + $0xf8] sm:$0xff]
    %v1076 = vld [vmem:[#allocation7 + $0x100] sm:$0xff]
    %v1077 = vld [vmem:[#allocation7 + $0x108] sm:$0xff]
    %v1078 = vld [vmem:[#allocation7 + $0x110] sm:$0xff]
    %v1079 = vld [vmem:[#allocation7 + $0x118] sm:$0xff]
    %v1080 = vld [vmem:[#allocation7 + $0x120] sm:$0xff]
    %v1081 = vld [vmem:[#allocation7 + $0x128] sm:$0xff]
    %v1082 = vld [vmem:[#allocation7 + $0x130] sm:$0xff]
    %v1083 = vld [vmem:[#allocation7 + $0x138] sm:$0xff]
    %v1084 = vld [vmem:[#allocation7 + $0x140] sm:$0xff]
    %v1085 = vld [vmem:[#allocation7 + $0x148] sm:$0xff]
    %v1086 = vld [vmem:[#allocation7 + $0x150] sm:$0xff]
    %v1087 = vld [vmem:[#allocation7 + $0x158] sm:$0xff]
    %v1088 = vld [vmem:[#allocation7 + $0x160] sm:$0xff]
    %v1089 = vld [vmem:[#allocation7 + $0x168] sm:$0xff]
    %v1090 = vld [vmem:[#allocation7 + $0x170] sm:$0xff]
    %v1091 = vld [vmem:[#allocation7 + $0x178] sm:$0xff]
    %v1092 = vld [vmem:[#allocation7 + $0x180] sm:$0xff]
    %v1093 = vld [vmem:[#allocation7 + $0x188] sm:$0xff]
    %v1094 = vld [vmem:[#allocation7 + $0x190] sm:$0xff]
    %v1095 = vld [vmem:[#allocation7 + $0x198] sm:$0xff]
    %v1096 = vld [vmem:[#allocation7 + $0x1a0] sm:$0xff]
    %v1097 = vld [vmem:[#allocation7 + $0x1a8] sm:$0xff]
    %v1098 = vld [vmem:[#allocation7 + $0x1b0] sm:$0xff]
    %v1099 = vld [vmem:[#allocation7 + $0x1b8] sm:$0xff]
    %v1100 = vld [vmem:[#allocation7 + $0x1c0] sm:$0xff]
    %v1101 = vld [vmem:[#allocation7 + $0x1c8] sm:$0xff]
    %v1102 = vld [vmem:[#allocation7 + $0x1d0] sm:$0xff]
    %v1103 = vld [vmem:[#allocation7 + $0x1d8] sm:$0xff]
    %v1104 = vld [vmem:[#allocation7 + $0x1e0] sm:$0xff]
    %v1105 = vld [vmem:[#allocation7 + $0x1e8] sm:$0xff]
    %v1106 = vld [vmem:[#allocation7 + $0x1f0] sm:$0xff]
    %v1107 = vld [vmem:[#allocation7 + $0x1f8] sm:$0xff]
    %v1108 = vld [vmem:[#allocation7 + $0x200] sm:$0xff]
    %v1109 = vld [vmem:[#allocation7 + $0x208] sm:$0xff]
    %v1110 = vld [vmem:[#allocation7 + $0x210] sm:$0xff]
    %v1111 = vld [vmem:[#allocation7 + $0x218] sm:$0xff]
    %v1112 = vld [vmem:[#allocation7 + $0x220] sm:$0xff]
    %v1113 = vld [vmem:[#allocation7 + $0x228] sm:$0xff]
    %v1114 = vld [vmem:[#allocation7 + $0x230] sm:$0xff]
    %v1115 = vld [vmem:[#allocation7 + $0x238] sm:$0xff]
    %v1116 = vld [vmem:[#allocation7 + $0x240] sm:$0xff]
    %v1117 = vld [vmem:[#allocation7 + $0x248] sm:$0xff]
    %v1118 = vld [vmem:[#allocation7 + $0x250] sm:$0xff]
    %v1119 = vld [vmem:[#allocation7 + $0x258] sm:$0xff]
    %v1120 = vld [vmem:[#allocation7 + $0x260] sm:$0xff]
    %v1121 = vld [vmem:[#allocation7 + $0x268] sm:$0xff]
    %v1122 = vld [vmem:[#allocation7 + $0x270] sm:$0xff]
    %v1123 = vld [vmem:[#allocation7 + $0x278] sm:$0xff]
    %v1124 = vld [vmem:[#allocation7 + $0x280] sm:$0xff]
    %v1125 = vld [vmem:[#allocation7 + $0x288] sm:$0xff]
    %v1126 = vld [vmem:[#allocation7 + $0x290] sm:$0xff]
    %v1127 = vld [vmem:[#allocation7 + $0x298] sm:$0xff]
    %v1128 = vld [vmem:[#allocation7 + $0x2a0] sm:$0xff]
    %v1129 = vld [vmem:[#allocation7 + $0x2a8] sm:$0xff]
    %v1130 = vld [vmem:[#allocation7 + $0x2b0] sm:$0xff]
    %v1131 = vld [vmem:[#allocation7 + $0x2b8] sm:$0xff]
    %v1132 = vld [vmem:[#allocation7 + $0x2c0] sm:$0xff]
    %v1133 = vld [vmem:[#allocation7 + $0x2c8] sm:$0xff]
    %v1134 = vld [vmem:[#allocation7 + $0x2d0] sm:$0xff]
    %v1135 = vld [vmem:[#allocation7 + $0x2d8] sm:$0xff]
    %v1136 = vld [vmem:[#allocation7 + $0x2e0] sm:$0xff]
    %v1137 = vld [vmem:[#allocation7 + $0x2e8] sm:$0xff]
    %v1138 = vld [vmem:[#allocation7 + $0x2f0] sm:$0xff]
    %v1139 = vld [vmem:[#allocation7 + $0x2f8] sm:$0xff]
    %v1140 = vld [vmem:[#allocation7 + $0x300] sm:$0xff]
    %v1141 = vld [vmem:[#allocation7 + $0x308] sm:$0xff]
    %v1142 = vld [vmem:[#allocation7 + $0x310] sm:$0xff]
    %v1143 = vld [vmem:[#allocation7 + $0x318] sm:$0xff]
    %v1144 = vld [vmem:[#allocation7 + $0x320] sm:$0xff]
    %v1145 = vld [vmem:[#allocation7 + $0x328] sm:$0xff]
    %v1146 = vld [vmem:[#allocation7 + $0x330] sm:$0xff]
    %v1147 = vld [vmem:[#allocation7 + $0x338] sm:$0xff]
    %v1148 = vld [vmem:[#allocation7 + $0x340] sm:$0xff]
    %v1149 = vld [vmem:[#allocation7 + $0x348] sm:$0xff]
    %v1150 = vld [vmem:[#allocation7 + $0x350] sm:$0xff]
    %v1151 = vld [vmem:[#allocation7 + $0x358] sm:$0xff]
    %v1152 = vld [vmem:[#allocation7 + $0x360] sm:$0xff]
    %v1153 = vld [vmem:[#allocation7 + $0x368] sm:$0xff]
    %v1154 = vld [vmem:[#allocation7 + $0x370] sm:$0xff]
    %v1155 = vld [vmem:[#allocation7 + $0x378] sm:$0xff]
    %v1156 = vld [vmem:[#allocation7 + $0x380] sm:$0xff]
    %v1157 = vld [vmem:[#allocation7 + $0x388] sm:$0xff]
    %v1158 = vld [vmem:[#allocation7 + $0x390] sm:$0xff]
    %v1159 = vld [vmem:[#allocation7 + $0x398] sm:$0xff]
    %v1160 = vld [vmem:[#allocation7 + $0x3a0] sm:$0xff]
    %v1161 = vld [vmem:[#allocation7 + $0x3a8] sm:$0xff]
    %v1162 = vld [vmem:[#allocation7 + $0x3b0] sm:$0xff]
    %v1163 = vld [vmem:[#allocation7 + $0x3b8] sm:$0xff]
    %v1164 = vld [vmem:[#allocation7 + $0x3c0] sm:$0xff]
    %v1165 = vld [vmem:[#allocation7 + $0x3c8] sm:$0xff]
    %v1166 = vld [vmem:[#allocation7 + $0x3d0] sm:$0xff]
    %v1167 = vld [vmem:[#allocation7 + $0x3d8] sm:$0xff]
    %v1168 = vld [vmem:[#allocation7 + $0x3e0] sm:$0xff]
    %v1169 = vld [vmem:[#allocation7 + $0x3e8] sm:$0xff]
    %v1170 = vld [vmem:[#allocation7 + $0x3f0] sm:$0xff]
    %v1171 = vld [vmem:[#allocation7 + $0x3f8] sm:$0xff]
    %v1172 = vld [vmem:[#allocation7 + $0x400] sm:$0xff]
    %v1173 = vld [vmem:[#allocation7 + $0x408] sm:$0xff]
    %v1174 = vld [vmem:[#allocation7 + $0x410] sm:$0xff]
    %v1175 = vld [vmem:[#allocation7 + $0x418] sm:$0xff]
    %v1176 = vld [vmem:[#allocation7 + $0x420] sm:$0xff]
    %v1177 = vld [vmem:[#allocation7 + $0x428] sm:$0xff]
    %v1178 = vld [vmem:[#allocation7 + $0x430] sm:$0xff]
    %v1179 = vld [vmem:[#allocation7 + $0x438] sm:$0xff]
    %v1180 = vld [vmem:[#allocation7 + $0x440] sm:$0xff]
    %v1181 = vld [vmem:[#allocation7 + $0x448] sm:$0xff]
    %v1182 = vld [vmem:[#allocation7 + $0x450] sm:$0xff]
    %v1183 = vld [vmem:[#allocation7 + $0x458] sm:$0xff]
    %v1184 = vld [vmem:[#allocation7 + $0x460] sm:$0xff]
    %v1185 = vld [vmem:[#allocation7 + $0x468] sm:$0xff]
    %v1186 = vld [vmem:[#allocation7 + $0x470] sm:$0xff]
    %v1187 = vld [vmem:[#allocation7 + $0x478] sm:$0xff]
    %v1188 = vld [vmem:[#allocation7 + $0x480] sm:$0xff]
    %v1189 = vld [vmem:[#allocation7 + $0x488] sm:$0xff]
    %v1190 = vld [vmem:[#allocation7 + $0x490] sm:$0xff]
    %v1191 = vld [vmem:[#allocation7 + $0x498] sm:$0xff]
    %v1192 = vld [vmem:[#allocation7 + $0x4a0] sm:$0xff]
    %v1193 = vld [vmem:[#allocation7 + $0x4a8] sm:$0xff]
    %v1194 = vld [vmem:[#allocation7 + $0x4b0] sm:$0xff]
    %v1195 = vld [vmem:[#allocation7 + $0x4b8] sm:$0xff]
    %v1196 = vld [vmem:[#allocation7 + $0x4c0] sm:$0xff]
    %v1197 = vld [vmem:[#allocation7 + $0x4c8] sm:$0xff]
    %v1198 = vld [vmem:[#allocation7 + $0x4d0] sm:$0xff]
    %v1199 = vld [vmem:[#allocation7 + $0x4d8] sm:$0xff]
    %v1200 = vld [vmem:[#allocation7 + $0x4e0] sm:$0xff]
    %v1201 = vld [vmem:[#allocation7 + $0x4e8] sm:$0xff]
    %v1202 = vld [vmem:[#allocation7 + $0x4f0] sm:$0xff]
    %v1203 = vld [vmem:[#allocation7 + $0x4f8] sm:$0xff]
    %v1204 = vld [vmem:[#allocation7 + $0x500] sm:$0xff]
    %v1205 = vld [vmem:[#allocation7 + $0x508] sm:$0xff]
    %v1206 = vld [vmem:[#allocation7 + $0x510] sm:$0xff]
    %v1207 = vld [vmem:[#allocation7 + $0x518] sm:$0xff]
    %v1208 = vld [vmem:[#allocation7 + $0x520] sm:$0xff]
    %v1209 = vld [vmem:[#allocation7 + $0x528] sm:$0xff]
    %v1210 = vld [vmem:[#allocation7 + $0x530] sm:$0xff]
    %v1211 = vld [vmem:[#allocation7 + $0x538] sm:$0xff]
    %v1212 = vld [vmem:[#allocation7 + $0x540] sm:$0xff]
    %v1213 = vld [vmem:[#allocation7 + $0x548] sm:$0xff]
    %v1214 = vld [vmem:[#allocation7 + $0x550] sm:$0xff]
    %v1215 = vld [vmem:[#allocation7 + $0x558] sm:$0xff]
    %v1216 = vld [vmem:[#allocation7 + $0x560] sm:$0xff]
    %v1217 = vld [vmem:[#allocation7 + $0x568] sm:$0xff]
    %v1218 = vld [vmem:[#allocation7 + $0x570] sm:$0xff]
    %v1219 = vld [vmem:[#allocation7 + $0x578] sm:$0xff]
    %v1220 = vld [vmem:[#allocation7 + $0x580] sm:$0xff]
    %v1221 = vld [vmem:[#allocation7 + $0x588] sm:$0xff]
    %v1222 = vld [vmem:[#allocation7 + $0x590] sm:$0xff]
    %v1223 = vld [vmem:[#allocation7 + $0x598] sm:$0xff]
    %v1224 = vld [vmem:[#allocation7 + $0x5a0] sm:$0xff]
    %v1225 = vld [vmem:[#allocation7 + $0x5a8] sm:$0xff]
    %v1226 = vld [vmem:[#allocation7 + $0x5b0] sm:$0xff]
    %v1227 = vld [vmem:[#allocation7 + $0x5b8] sm:$0xff]
    %v1228 = vld [vmem:[#allocation7 + $0x5c0] sm:$0xff]
    %v1229 = vld [vmem:[#allocation7 + $0x5c8] sm:$0xff]
    %v1230 = vld [vmem:[#allocation7 + $0x5d0] sm:$0xff]
    %v1231 = vld [vmem:[#allocation7 + $0x5d8] sm:$0xff]
    %v1232 = vld [vmem:[#allocation7 + $0x5e0] sm:$0xff]
    %v1233 = vld [vmem:[#allocation7 + $0x5e8] sm:$0xff]
    %v1234 = vld [vmem:[#allocation7 + $0x5f0] sm:$0xff]
    %v1235 = vld [vmem:[#allocation7 + $0x5f8] sm:$0xff]
    %v1236 = vld [vmem:[#allocation7 + $0x600] sm:$0xff]
    %v1237 = vld [vmem:[#allocation7 + $0x608] sm:$0xff]
    %v1238 = vld [vmem:[#allocation7 + $0x610] sm:$0xff]
    %v1239 = vld [vmem:[#allocation7 + $0x618] sm:$0xff]
    %v1240 = vld [vmem:[#allocation7 + $0x620] sm:$0xff]
    %v1241 = vld [vmem:[#allocation7 + $0x628] sm:$0xff]
    %v1242 = vld [vmem:[#allocation7 + $0x630] sm:$0xff]
    %v1243 = vld [vmem:[#allocation7 + $0x638] sm:$0xff]
    %v1244 = vld [vmem:[#allocation7 + $0x640] sm:$0xff]
    %v1245 = vld [vmem:[#allocation7 + $0x648] sm:$0xff]
    %v1246 = vld [vmem:[#allocation7 + $0x650] sm:$0xff]
    %v1247 = vld [vmem:[#allocation7 + $0x658] sm:$0xff]
    %v1248 = vld [vmem:[#allocation7 + $0x660] sm:$0xff]
    %v1249 = vld [vmem:[#allocation7 + $0x668] sm:$0xff]
    %v1250 = vld [vmem:[#allocation7 + $0x670] sm:$0xff]
    %v1251 = vld [vmem:[#allocation7 + $0x678] sm:$0xff]
    %v1252 = vld [vmem:[#allocation7 + $0x680] sm:$0xff]
    %v1253 = vld [vmem:[#allocation7 + $0x688] sm:$0xff]
    %v1254 = vld [vmem:[#allocation7 + $0x690] sm:$0xff]
    %v1255 = vld [vmem:[#allocation7 + $0x698] sm:$0xff]
    %v1256 = vld [vmem:[#allocation7 + $0x6a0] sm:$0xff]
    %v1257 = vld [vmem:[#allocation7 + $0x6a8] sm:$0xff]
    %v1258 = vld [vmem:[#allocation7 + $0x6b0] sm:$0xff]
    %v1259 = vld [vmem:[#allocation7 + $0x6b8] sm:$0xff]
    %v1260 = vld [vmem:[#allocation7 + $0x6c0] sm:$0xff]
    %v1261 = vld [vmem:[#allocation7 + $0x6c8] sm:$0xff]
    %v1262 = vld [vmem:[#allocation7 + $0x6d0] sm:$0xff]
    %v1263 = vld [vmem:[#allocation7 + $0x6d8] sm:$0xff]
    %v1264 = vld [vmem:[#allocation7 + $0x6e0] sm:$0xff]
    %v1265 = vld [vmem:[#allocation7 + $0x6e8] sm:$0xff]
    %v1266 = vld [vmem:[#allocation7 + $0x6f0] sm:$0xff]
    %v1267 = vld [vmem:[#allocation7 + $0x6f8] sm:$0xff]
    %v1268 = vld [vmem:[#allocation7 + $0x700] sm:$0xff]
    %v1269 = vld [vmem:[#allocation7 + $0x708] sm:$0xff]
    %v1270 = vld [vmem:[#allocation7 + $0x710] sm:$0xff]
    %v1271 = vld [vmem:[#allocation7 + $0x718] sm:$0xff]
    %v1272 = vld [vmem:[#allocation7 + $0x720] sm:$0xff]
    %v1273 = vld [vmem:[#allocation7 + $0x728] sm:$0xff]
    %v1274 = vld [vmem:[#allocation7 + $0x730] sm:$0xff]
    %v1275 = vld [vmem:[#allocation7 + $0x738] sm:$0xff]
    %v1276 = vld [vmem:[#allocation7 + $0x740] sm:$0xff]
    %v1277 = vld [vmem:[#allocation7 + $0x748] sm:$0xff]
    %v1278 = vld [vmem:[#allocation7 + $0x750] sm:$0xff]
    %v1279 = vld [vmem:[#allocation7 + $0x758] sm:$0xff]
    %v1280 = vld [vmem:[#allocation7 + $0x760] sm:$0xff]
    %v1281 = vld [vmem:[#allocation7 + $0x768] sm:$0xff]
    %v1282 = vld [vmem:[#allocation7 + $0x770] sm:$0xff]
    %v1283 = vld [vmem:[#allocation7 + $0x778] sm:$0xff]
    %v1284 = vld [vmem:[#allocation7 + $0x780] sm:$0xff]
    %v1285 = vld [vmem:[#allocation7 + $0x788] sm:$0xff]
    %v1286 = vld [vmem:[#allocation7 + $0x790] sm:$0xff]
    %v1287 = vld [vmem:[#allocation7 + $0x798] sm:$0xff]
    %v1288 = vld [vmem:[#allocation7 + $0x7a0] sm:$0xff]
    %v1289 = vld [vmem:[#allocation7 + $0x7a8] sm:$0xff]
    %v1290 = vld [vmem:[#allocation7 + $0x7b0] sm:$0xff]
    %v1291 = vld [vmem:[#allocation7 + $0x7b8] sm:$0xff]
    %v1292 = vld [vmem:[#allocation7 + $0x7c0] sm:$0xff]
    %v1293 = vld [vmem:[#allocation7 + $0x7c8] sm:$0xff]
    %v1294 = vld [vmem:[#allocation7 + $0x7d0] sm:$0xff]
    %v1295 = vld [vmem:[#allocation7 + $0x7d8] sm:$0xff]
    %v1296 = vld [vmem:[#allocation7 + $0x7e0] sm:$0xff]
    %v1297 = vld [vmem:[#allocation7 + $0x7e8] sm:$0xff]
    %v1298 = vld [vmem:[#allocation7 + $0x7f0] sm:$0xff]
    %v1299 = vld [vmem:[#allocation7 + $0x7f8] sm:$0xff]
    %v1300 = vld [vmem:[#allocation7 + $0x800] sm:$0xff]
    %v1301 = vld [vmem:[#allocation7 + $0x808] sm:$0xff]
    %v1302 = vld [vmem:[#allocation7 + $0x810] sm:$0xff]
    %v1303 = vld [vmem:[#allocation7 + $0x818] sm:$0xff]
    %v1304 = vld [vmem:[#allocation7 + $0x820] sm:$0xff]
    %v1305 = vld [vmem:[#allocation7 + $0x828] sm:$0xff]
    %v1306 = vld [vmem:[#allocation7 + $0x830] sm:$0xff]
    %v1307 = vld [vmem:[#allocation7 + $0x838] sm:$0xff]
    %v1308 = vld [vmem:[#allocation7 + $0x840] sm:$0xff]
    %v1309 = vld [vmem:[#allocation7 + $0x848] sm:$0xff]
    %v1310 = vld [vmem:[#allocation7 + $0x850] sm:$0xff]
    %v1311 = vld [vmem:[#allocation7 + $0x858] sm:$0xff]
    %v1312 = vld [vmem:[#allocation7 + $0x860] sm:$0xff]
    %v1313 = vld [vmem:[#allocation7 + $0x868] sm:$0xff]
    %v1314 = vld [vmem:[#allocation7 + $0x870] sm:$0xff]
    %v1315 = vld [vmem:[#allocation7 + $0x878] sm:$0xff]
    %v1316 = vld [vmem:[#allocation7 + $0x880] sm:$0xff]
    %v1317 = vld [vmem:[#allocation7 + $0x888] sm:$0xff]
    %v1318 = vld [vmem:[#allocation7 + $0x890] sm:$0xff]
    %v1319 = vld [vmem:[#allocation7 + $0x898] sm:$0xff]
    %v1320 = vld [vmem:[#allocation7 + $0x8a0] sm:$0xff]
    %v1321 = vld [vmem:[#allocation7 + $0x8a8] sm:$0xff]
    %v1322 = vld [vmem:[#allocation7 + $0x8b0] sm:$0xff]
    %v1323 = vld [vmem:[#allocation7 + $0x8b8] sm:$0xff]
    %v1324 = vld [vmem:[#allocation7 + $0x8c0] sm:$0xff]
    %v1325 = vld [vmem:[#allocation7 + $0x8c8] sm:$0xff]
    %v1326 = vld [vmem:[#allocation7 + $0x8d0] sm:$0xff]
    %v1327 = vld [vmem:[#allocation7 + $0x8d8] sm:$0xff]
    %v1328 = vld [vmem:[#allocation7 + $0x8e0] sm:$0xff]
    %v1329 = vld [vmem:[#allocation7 + $0x8e8] sm:$0xff]
    %v1330 = vld [vmem:[#allocation7 + $0x8f0] sm:$0xff]
    %v1331 = vld [vmem:[#allocation7 + $0x8f8] sm:$0xff]
    %v1332 = vld [vmem:[#allocation7 + $0x900] sm:$0xff]
    %v1333 = vld [vmem:[#allocation7 + $0x908] sm:$0xff]
    %v1334 = vld [vmem:[#allocation7 + $0x910] sm:$0xff]
    %v1335 = vld [vmem:[#allocation7 + $0x918] sm:$0xff]
    %v1336 = vld [vmem:[#allocation7 + $0x920] sm:$0xff]
    %v1337 = vld [vmem:[#allocation7 + $0x928] sm:$0xff]
    %v1338 = vld [vmem:[#allocation7 + $0x930] sm:$0xff]
    %v1339 = vld [vmem:[#allocation7 + $0x938] sm:$0xff]
    %v1340 = vld [vmem:[#allocation7 + $0x940] sm:$0xff]
    %v1341 = vld [vmem:[#allocation7 + $0x948] sm:$0xff]
    %v1342 = vld [vmem:[#allocation7 + $0x950] sm:$0xff]
    %v1343 = vld [vmem:[#allocation7 + $0x958] sm:$0xff]
    %v1344 = vld [vmem:[#allocation7 + $0x960] sm:$0xff]
    %v1345 = vld [vmem:[#allocation7 + $0x968] sm:$0xff]
    %v1346 = vld [vmem:[#allocation7 + $0x970] sm:$0xff]
    %v1347 = vld [vmem:[#allocation7 + $0x978] sm:$0xff]
    %v1348 = vld [vmem:[#allocation7 + $0x980] sm:$0xff]
    %v1349 = vld [vmem:[#allocation7 + $0x988] sm:$0xff]
    %v1350 = vld [vmem:[#allocation7 + $0x990] sm:$0xff]
    %v1351 = vld [vmem:[#allocation7 + $0x998] sm:$0xff]
    %v1352 = vld [vmem:[#allocation7 + $0x9a0] sm:$0xff]
    %v1353 = vld [vmem:[#allocation7 + $0x9a8] sm:$0xff]
    %v1354 = vld [vmem:[#allocation7 + $0x9b0] sm:$0xff]
    %v1355 = vld [vmem:[#allocation7 + $0x9b8] sm:$0xff]
    %v1356 = vld [vmem:[#allocation7 + $0x9c0] sm:$0xff]
    %v1357 = vld [vmem:[#allocation7 + $0x9c8] sm:$0xff]
    %v1358 = vld [vmem:[#allocation7 + $0x9d0] sm:$0xff]
    %v1359 = vld [vmem:[#allocation7 + $0x9d8] sm:$0xff]
    %v1360 = vld [vmem:[#allocation7 + $0x9e0] sm:$0xff]
    %v1361 = vld [vmem:[#allocation7 + $0x9e8] sm:$0xff]
    %v1362 = vld [vmem:[#allocation7 + $0x9f0] sm:$0xff]
    %v1363 = vld [vmem:[#allocation7 + $0x9f8] sm:$0xff]
    %v1364 = vld [vmem:[#allocation7 + $0xa00] sm:$0xff]
    %v1365 = vld [vmem:[#allocation7 + $0xa08] sm:$0xff]
    %v1366 = vld [vmem:[#allocation7 + $0xa10] sm:$0xff]
    %v1367 = vld [vmem:[#allocation7 + $0xa18] sm:$0xff]
    %v1368 = vld [vmem:[#allocation7 + $0xa20] sm:$0xff]
    %v1369 = vld [vmem:[#allocation7 + $0xa28] sm:$0xff]
    %v1370 = vld [vmem:[#allocation7 + $0xa30] sm:$0xff]
    %v1371 = vld [vmem:[#allocation7 + $0xa38] sm:$0xff]
    %v1372 = vld [vmem:[#allocation7 + $0xa40] sm:$0xff]
    %v1373 = vld [vmem:[#allocation7 + $0xa48] sm:$0xff]
    %v1374 = vld [vmem:[#allocation7 + $0xa50] sm:$0xff]
    %v1375 = vld [vmem:[#allocation7 + $0xa58] sm:$0xff]
    %v1376 = vld [vmem:[#allocation7 + $0xa60] sm:$0xff]
    %v1377 = vld [vmem:[#allocation7 + $0xa68] sm:$0xff]
    %v1378 = vld [vmem:[#allocation7 + $0xa70] sm:$0xff]
    %v1379 = vld [vmem:[#allocation7 + $0xa78] sm:$0xff]
    %v1380 = vld [vmem:[#allocation7 + $0xa80] sm:$0xff]
    %v1381 = vld [vmem:[#allocation7 + $0xa88] sm:$0xff]
    %v1382 = vld [vmem:[#allocation7 + $0xa90] sm:$0xff]
    %v1383 = vld [vmem:[#allocation7 + $0xa98] sm:$0xff]
    %v1384 = vld [vmem:[#allocation7 + $0xaa0] sm:$0xff]
    %v1385 = vld [vmem:[#allocation7 + $0xaa8] sm:$0xff]
    %v1386 = vld [vmem:[#allocation7 + $0xab0] sm:$0xff]
    %v1387 = vld [vmem:[#allocation7 + $0xab8] sm:$0xff]
    %v1388 = vld [vmem:[#allocation7 + $0xac0] sm:$0xff]
    %v1389 = vld [vmem:[#allocation7 + $0xac8] sm:$0xff]
    %v1390 = vld [vmem:[#allocation7 + $0xad0] sm:$0xff]
    %v1391 = vld [vmem:[#allocation7 + $0xad8] sm:$0xff]
    %v1392 = vld [vmem:[#allocation7 + $0xae0] sm:$0xff]
    %v1393 = vld [vmem:[#allocation7 + $0xae8] sm:$0xff]
    %v1394 = vld [vmem:[#allocation7 + $0xaf0] sm:$0xff]
    %v1395 = vld [vmem:[#allocation7 + $0xaf8] sm:$0xff]
    %v1396 = vld [vmem:[#allocation7 + $0xb00] sm:$0xff]
    %v1397 = vld [vmem:[#allocation7 + $0xb08] sm:$0xff]
    %v1398 = vld [vmem:[#allocation7 + $0xb10] sm:$0xff]
    %v1399 = vld [vmem:[#allocation7 + $0xb18] sm:$0xff]
    %v1400 = vld [vmem:[#allocation7 + $0xb20] sm:$0xff]
    %v1401 = vld [vmem:[#allocation7 + $0xb28] sm:$0xff]
    %v1402 = vld [vmem:[#allocation7 + $0xb30] sm:$0xff]
    %v1403 = vld [vmem:[#allocation7 + $0xb38] sm:$0xff]
    %v1404 = vld [vmem:[#allocation7 + $0xb40] sm:$0xff]
    %v1405 = vld [vmem:[#allocation7 + $0xb48] sm:$0xff]
    %v1406 = vld [vmem:[#allocation7 + $0xb50] sm:$0xff]
    %v1407 = vld [vmem:[#allocation7 + $0xb58] sm:$0xff]
    %v1408 = vld [vmem:[#allocation7 + $0xb60] sm:$0xff]
    %v1409 = vld [vmem:[#allocation7 + $0xb68] sm:$0xff]
    %v1410 = vld [vmem:[#allocation7 + $0xb70] sm:$0xff]
    %v1411 = vld [vmem:[#allocation7 + $0xb78] sm:$0xff]
    %v1412 = vld [vmem:[#allocation7 + $0xb80] sm:$0xff]
    %v1413 = vld [vmem:[#allocation7 + $0xb88] sm:$0xff]
    %v1414 = vld [vmem:[#allocation7 + $0xb90] sm:$0xff]
    %v1415 = vld [vmem:[#allocation7 + $0xb98] sm:$0xff]
    %v1416 = vld [vmem:[#allocation7 + $0xba0] sm:$0xff]
    %v1417 = vld [vmem:[#allocation7 + $0xba8] sm:$0xff]
    %v1418 = vld [vmem:[#allocation7 + $0xbb0] sm:$0xff]
    %v1419 = vld [vmem:[#allocation7 + $0xbb8] sm:$0xff]
    %v1420 = vld [vmem:[#allocation7 + $0xbc0] sm:$0xff]
    %v1421 = vld [vmem:[#allocation7 + $0xbc8] sm:$0xff]
    %v1422 = vld [vmem:[#allocation7 + $0xbd0] sm:$0xff]
    %v1423 = vld [vmem:[#allocation7 + $0xbd8] sm:$0xff]
    %v1424 = vld [vmem:[#allocation7 + $0xbe0] sm:$0xff]
    %v1425 = vld [vmem:[#allocation7 + $0xbe8] sm:$0xff]
    %v1426 = vld [vmem:[#allocation7 + $0xbf0] sm:$0xff]
    %v1427 = vld [vmem:[#allocation7 + $0xbf8] sm:$0xff]
    %v1428 = vld [vmem:[#allocation7 + $0xc00] sm:$0xff]
    %v1429 = vld [vmem:[#allocation7 + $0xc08] sm:$0xff]
    %v1430 = vld [vmem:[#allocation7 + $0xc10] sm:$0xff]
    %v1431 = vld [vmem:[#allocation7 + $0xc18] sm:$0xff]
    %v1432 = vld [vmem:[#allocation7 + $0xc20] sm:$0xff]
    %v1433 = vld [vmem:[#allocation7 + $0xc28] sm:$0xff]
    %v1434 = vld [vmem:[#allocation7 + $0xc30] sm:$0xff]
    %v1435 = vld [vmem:[#allocation7 + $0xc38] sm:$0xff]
    %v1436 = vld [vmem:[#allocation7 + $0xc40] sm:$0xff]
    %v1437 = vld [vmem:[#allocation7 + $0xc48] sm:$0xff]
    %v1438 = vld [vmem:[#allocation7 + $0xc50] sm:$0xff]
    %v1439 = vld [vmem:[#allocation7 + $0xc58] sm:$0xff]
    %v1440 = vld [vmem:[#allocation7 + $0xc60] sm:$0xff]
    %v1441 = vld [vmem:[#allocation7 + $0xc68] sm:$0xff]
    %v1442 = vld [vmem:[#allocation7 + $0xc70] sm:$0xff]
    %v1443 = vld [vmem:[#allocation7 + $0xc78] sm:$0xff]
    %v1444 = vld [vmem:[#allocation7 + $0xc80] sm:$0xff]
    %v1445 = vld [vmem:[#allocation7 + $0xc88] sm:$0xff]
    %v1446 = vld [vmem:[#allocation7 + $0xc90] sm:$0xff]
    %v1447 = vld [vmem:[#allocation7 + $0xc98] sm:$0xff]
    %v1448 = vld [vmem:[#allocation7 + $0xca0] sm:$0xff]
    %v1449 = vld [vmem:[#allocation7 + $0xca8] sm:$0xff]
    %v1450 = vld [vmem:[#allocation7 + $0xcb0] sm:$0xff]
    %v1451 = vld [vmem:[#allocation7 + $0xcb8] sm:$0xff]
    %v1452 = vld [vmem:[#allocation7 + $0xcc0] sm:$0xff]
    %v1453 = vld [vmem:[#allocation7 + $0xcc8] sm:$0xff]
    %v1454 = vld [vmem:[#allocation7 + $0xcd0] sm:$0xff]
    %v1455 = vld [vmem:[#allocation7 + $0xcd8] sm:$0xff]
    %v1456 = vld [vmem:[#allocation7 + $0xce0] sm:$0xff]
    %v1457 = vld [vmem:[#allocation7 + $0xce8] sm:$0xff]
    %v1458 = vld [vmem:[#allocation7 + $0xcf0] sm:$0xff]
    %v1459 = vld [vmem:[#allocation7 + $0xcf8] sm:$0xff]
    %v1460 = vld [vmem:[#allocation7 + $0xd00] sm:$0xff]
    %v1461 = vld [vmem:[#allocation7 + $0xd08] sm:$0xff]
    %v1462 = vld [vmem:[#allocation7 + $0xd10] sm:$0xff]
    %v1463 = vld [vmem:[#allocation7 + $0xd18] sm:$0xff]
    %v1464 = vld [vmem:[#allocation7 + $0xd20] sm:$0xff]
    %v1465 = vld [vmem:[#allocation7 + $0xd28] sm:$0xff]
    %v1466 = vld [vmem:[#allocation7 + $0xd30] sm:$0xff]
    %v1467 = vld [vmem:[#allocation7 + $0xd38] sm:$0xff]
    %v1468 = vld [vmem:[#allocation7 + $0xd40] sm:$0xff]
    %v1469 = vld [vmem:[#allocation7 + $0xd48] sm:$0xff]
    %v1470 = vld [vmem:[#allocation7 + $0xd50] sm:$0xff]
    %v1471 = vld [vmem:[#allocation7 + $0xd58] sm:$0xff]
    %v1472 = vld [vmem:[#allocation7 + $0xd60] sm:$0xff]
    %v1473 = vld [vmem:[#allocation7 + $0xd68] sm:$0xff]
    %v1474 = vld [vmem:[#allocation7 + $0xd70] sm:$0xff]
    %v1475 = vld [vmem:[#allocation7 + $0xd78] sm:$0xff]
    %v1476 = vld [vmem:[#allocation7 + $0xd80] sm:$0xff]
    %v1477 = vld [vmem:[#allocation7 + $0xd88] sm:$0xff]
    %v1478 = vld [vmem:[#allocation7 + $0xd90] sm:$0xff]
    %v1479 = vld [vmem:[#allocation7 + $0xd98] sm:$0xff]
    %v1480 = vld [vmem:[#allocation7 + $0xda0] sm:$0xff]
    %v1481 = vld [vmem:[#allocation7 + $0xda8] sm:$0xff]
    %v1482 = vld [vmem:[#allocation7 + $0xdb0] sm:$0xff]
    %v1483 = vld [vmem:[#allocation7 + $0xdb8] sm:$0xff]
    %v1484 = vld [vmem:[#allocation7 + $0xdc0] sm:$0xff]
    %v1485 = vld [vmem:[#allocation7 + $0xdc8] sm:$0xff]
    %v1486 = vld [vmem:[#allocation7 + $0xdd0] sm:$0xff]
    %v1487 = vld [vmem:[#allocation7 + $0xdd8] sm:$0xff]
    %v1488 = vld [vmem:[#allocation7 + $0xde0] sm:$0xff]
    %v1489 = vld [vmem:[#allocation7 + $0xde8] sm:$0xff]
    %v1490 = vld [vmem:[#allocation7 + $0xdf0] sm:$0xff]
    %v1491 = vld [vmem:[#allocation7 + $0xdf8] sm:$0xff]
    %v1492 = vld [vmem:[#allocation7 + $0xe00] sm:$0xff]
    %v1493 = vld [vmem:[#allocation7 + $0xe08] sm:$0xff]
    %v1494 = vld [vmem:[#allocation7 + $0xe10] sm:$0xff]
    %v1495 = vld [vmem:[#allocation7 + $0xe18] sm:$0xff]
    %v1496 = vld [vmem:[#allocation7 + $0xe20] sm:$0xff]
    %v1497 = vld [vmem:[#allocation7 + $0xe28] sm:$0xff]
    %v1498 = vld [vmem:[#allocation7 + $0xe30] sm:$0xff]
    %v1499 = vld [vmem:[#allocation7 + $0xe38] sm:$0xff]
    %v1500 = vld [vmem:[#allocation7 + $0xe40] sm:$0xff]
    %v1501 = vld [vmem:[#allocation7 + $0xe48] sm:$0xff]
    %v1502 = vld [vmem:[#allocation7 + $0xe50] sm:$0xff]
    %v1503 = vld [vmem:[#allocation7 + $0xe58] sm:$0xff]
    %v1504 = vld [vmem:[#allocation7 + $0xe60] sm:$0xff]
    %v1505 = vld [vmem:[#allocation7 + $0xe68] sm:$0xff]
    %v1506 = vld [vmem:[#allocation7 + $0xe70] sm:$0xff]
    %v1507 = vld [vmem:[#allocation7 + $0xe78] sm:$0xff]
    %v1508 = vld [vmem:[#allocation7 + $0xe80] sm:$0xff]
    %v1509 = vld [vmem:[#allocation7 + $0xe88] sm:$0xff]
    %v1510 = vld [vmem:[#allocation7 + $0xe90] sm:$0xff]
    %v1511 = vld [vmem:[#allocation7 + $0xe98] sm:$0xff]
    %v1512 = vld [vmem:[#allocation7 + $0xea0] sm:$0xff]
    %v1513 = vld [vmem:[#allocation7 + $0xea8] sm:$0xff]
    %v1514 = vld [vmem:[#allocation7 + $0xeb0] sm:$0xff]
    %v1515 = vld [vmem:[#allocation7 + $0xeb8] sm:$0xff]
    %v1516 = vld [vmem:[#allocation7 + $0xec0] sm:$0xff]
    %v1517 = vld [vmem:[#allocation7 + $0xec8] sm:$0xff]
    %v1518 = vld [vmem:[#allocation7 + $0xed0] sm:$0xff]
    %v1519 = vld [vmem:[#allocation7 + $0xed8] sm:$0xff]
    %v1520 = vld [vmem:[#allocation7 + $0xee0] sm:$0xff]
    %v1521 = vld [vmem:[#allocation7 + $0xee8] sm:$0xff]
    %v1522 = vld [vmem:[#allocation7 + $0xef0] sm:$0xff]
    %v1523 = vld [vmem:[#allocation7 + $0xef8] sm:$0xff]
    %v1524 = vld [vmem:[#allocation7 + $0xf00] sm:$0xff]
    %v1525 = vld [vmem:[#allocation7 + $0xf08] sm:$0xff]
    %v1526 = vld [vmem:[#allocation7 + $0xf10] sm:$0xff]
    %v1527 = vld [vmem:[#allocation7 + $0xf18] sm:$0xff]
    %v1528 = vld [vmem:[#allocation7 + $0xf20] sm:$0xff]
    %v1529 = vld [vmem:[#allocation7 + $0xf28] sm:$0xff]
    %v1530 = vld [vmem:[#allocation7 + $0xf30] sm:$0xff]
    %v1531 = vld [vmem:[#allocation7 + $0xf38] sm:$0xff]
    %v1532 = vld [vmem:[#allocation7 + $0xf40] sm:$0xff]
    %v1533 = vld [vmem:[#allocation7 + $0xf48] sm:$0xff]
    %v1534 = vld [vmem:[#allocation7 + $0xf50] sm:$0xff]
    %v1535 = vld [vmem:[#allocation7 + $0xf58] sm:$0xff]
    %v1536 = vld [vmem:[#allocation7 + $0xf60] sm:$0xff]
    %v1537 = vld [vmem:[#allocation7 + $0xf68] sm:$0xff]
    %v1538 = vld [vmem:[#allocation7 + $0xf70] sm:$0xff]
    %v1539 = vld [vmem:[#allocation7 + $0xf78] sm:$0xff]
    %v1540 = vld [vmem:[#allocation7 + $0xf80] sm:$0xff]
    %v1541 = vld [vmem:[#allocation7 + $0xf88] sm:$0xff]
    %v1542 = vld [vmem:[#allocation7 + $0xf90] sm:$0xff]
    %v1543 = vld [vmem:[#allocation7 + $0xf98] sm:$0xff]
    %v1544 = vld [vmem:[#allocation7 + $0xfa0] sm:$0xff]
    %v1545 = vld [vmem:[#allocation7 + $0xfa8] sm:$0xff]
    %v1546 = vld [vmem:[#allocation7 + $0xfb0] sm:$0xff]
    %v1547 = vld [vmem:[#allocation7 + $0xfb8] sm:$0xff]
    %v1548 = vld [vmem:[#allocation7 + $0xfc0] sm:$0xff]
    %v1549 = vld [vmem:[#allocation7 + $0xfc8] sm:$0xff]
    %v1550 = vld [vmem:[#allocation7 + $0xfd0] sm:$0xff]
    %v1551 = vld [vmem:[#allocation7 + $0xfd8] sm:$0xff]
    %v1552 = vld [vmem:[#allocation7 + $0xfe0] sm:$0xff]
    %v1553 = vld [vmem:[#allocation7 + $0xfe8] sm:$0xff]
    %v1554 = vld [vmem:[#allocation7 + $0xff0] sm:$0xff]
    %v1555 = vld [vmem:[#allocation7 + $0xff8] sm:$0xff]
    %v1556 = vld [vmem:[#allocation7 + $0x1000] sm:$0xff]
    %v1557 = vld [vmem:[#allocation7 + $0x1008] sm:$0xff]
    %v1558 = vld [vmem:[#allocation7 + $0x1010] sm:$0xff]
    %v1559 = vld [vmem:[#allocation7 + $0x1018] sm:$0xff]
    %v1560 = vld [vmem:[#allocation7 + $0x1020] sm:$0xff]
    %v1561 = vld [vmem:[#allocation7 + $0x1028] sm:$0xff]
    %v1562 = vld [vmem:[#allocation7 + $0x1030] sm:$0xff]
    %v1563 = vld [vmem:[#allocation7 + $0x1038] sm:$0xff]
    %v1564 = vld [vmem:[#allocation7 + $0x1040] sm:$0xff]
    %v1565 = vld [vmem:[#allocation7 + $0x1048] sm:$0xff]
    %v1566 = vld [vmem:[#allocation7 + $0x1050] sm:$0xff]
    %v1567 = vld [vmem:[#allocation7 + $0x1058] sm:$0xff]
    %v1568 = vld [vmem:[#allocation7 + $0x1060] sm:$0xff]
    %v1569 = vld [vmem:[#allocation7 + $0x1068] sm:$0xff]
    %v1570 = vld [vmem:[#allocation7 + $0x1070] sm:$0xff]
    %v1571 = vld [vmem:[#allocation7 + $0x1078] sm:$0xff]
    %v1572 = vld [vmem:[#allocation7 + $0x1080] sm:$0xff]
    %v1573 = vld [vmem:[#allocation7 + $0x1088] sm:$0xff]
    %v1574 = vld [vmem:[#allocation7 + $0x1090] sm:$0xff]
    %v1575 = vld [vmem:[#allocation7 + $0x1098] sm:$0xff]
    %v1576 = vld [vmem:[#allocation7 + $0x10a0] sm:$0xff]
    %v1577 = vld [vmem:[#allocation7 + $0x10a8] sm:$0xff]
    %v1578 = vld [vmem:[#allocation7 + $0x10b0] sm:$0xff]
    %v1579 = vld [vmem:[#allocation7 + $0x10b8] sm:$0xff]
    %v1580 = vld [vmem:[#allocation7 + $0x10c0] sm:$0xff]
    %v1581 = vld [vmem:[#allocation7 + $0x10c8] sm:$0xff]
    %v1582 = vld [vmem:[#allocation7 + $0x10d0] sm:$0xff]
    %v1583 = vld [vmem:[#allocation7 + $0x10d8] sm:$0xff]
    %v1584 = vld [vmem:[#allocation7 + $0x10e0] sm:$0xff]
    %v1585 = vld [vmem:[#allocation7 + $0x10e8] sm:$0xff]
    %v1586 = vld [vmem:[#allocation7 + $0x10f0] sm:$0xff]
    %v1587 = vld [vmem:[#allocation7 + $0x10f8] sm:$0xff]
    %v1588 = vld [vmem:[#allocation7 + $0x1100] sm:$0xff]
    %v1589 = vld [vmem:[#allocation7 + $0x1108] sm:$0xff]
    %v1590 = vld [vmem:[#allocation7 + $0x1110] sm:$0xff]
    %v1591 = vld [vmem:[#allocation7 + $0x1118] sm:$0xff]
    %v1592 = vld [vmem:[#allocation7 + $0x1120] sm:$0xff]
    %v1593 = vld [vmem:[#allocation7 + $0x1128] sm:$0xff]
    %v1594 = vld [vmem:[#allocation7 + $0x1130] sm:$0xff]
    %v1595 = vld [vmem:[#allocation7 + $0x1138] sm:$0xff]
    %v1596 = vld [vmem:[#allocation7 + $0x1140] sm:$0xff]
    %v1597 = vld [vmem:[#allocation7 + $0x1148] sm:$0xff]
    %v1598 = vld [vmem:[#allocation7 + $0x1150] sm:$0xff]
    %v1599 = vld [vmem:[#allocation7 + $0x1158] sm:$0xff]
    %v1600 = vld [vmem:[#allocation7 + $0x1160] sm:$0xff]
    %v1601 = vld [vmem:[#allocation7 + $0x1168] sm:$0xff]
    %v1602 = vld [vmem:[#allocation7 + $0x1170] sm:$0xff]
    %v1603 = vld [vmem:[#allocation7 + $0x1178] sm:$0xff]
    %v1604 = vld [vmem:[#allocation7 + $0x1180] sm:$0xff]
    %v1605 = vld [vmem:[#allocation7 + $0x1188] sm:$0xff]
    %v1606 = vld [vmem:[#allocation7 + $0x1190] sm:$0xff]
    %v1607 = vld [vmem:[#allocation7 + $0x1198] sm:$0xff]
    %v1608 = vld [vmem:[#allocation7 + $0x11a0] sm:$0xff]
    %v1609 = vld [vmem:[#allocation7 + $0x11a8] sm:$0xff]
    %v1610 = vld [vmem:[#allocation7 + $0x11b0] sm:$0xff]
    %v1611 = vld [vmem:[#allocation7 + $0x11b8] sm:$0xff]
    %v1612 = vld [vmem:[#allocation7 + $0x11c0] sm:$0xff]
    %v1613 = vld [vmem:[#allocation7 + $0x11c8] sm:$0xff]
    %v1614 = vld [vmem:[#allocation7 + $0x11d0] sm:$0xff]
    %v1615 = vld [vmem:[#allocation7 + $0x11d8] sm:$0xff]
    %v1616 = vld [vmem:[#allocation7 + $0x11e0] sm:$0xff]
    %v1617 = vld [vmem:[#allocation7 + $0x11e8] sm:$0xff]
    %v1618 = vld [vmem:[#allocation7 + $0x11f0] sm:$0xff]
    %v1619 = vld [vmem:[#allocation7 + $0x11f8] sm:$0xff]
    %v1620 = vld [vmem:[#allocation7 + $0x1200] sm:$0xff]
    %v1621 = vld [vmem:[#allocation7 + $0x1208] sm:$0xff]
    %v1622 = vld [vmem:[#allocation7 + $0x1210] sm:$0xff]
    %v1623 = vld [vmem:[#allocation7 + $0x1218] sm:$0xff]
    %v1624 = vld [vmem:[#allocation7 + $0x1220] sm:$0xff]
    %v1625 = vld [vmem:[#allocation7 + $0x1228] sm:$0xff]
    %v1626 = vld [vmem:[#allocation7 + $0x1230] sm:$0xff]
    %v1627 = vld [vmem:[#allocation7 + $0x1238] sm:$0xff]
    %v1628 = vld [vmem:[#allocation7 + $0x1240] sm:$0xff]
    %v1629 = vld [vmem:[#allocation7 + $0x1248] sm:$0xff]
    %v1630 = vld [vmem:[#allocation7 + $0x1250] sm:$0xff]
    %v1631 = vld [vmem:[#allocation7 + $0x1258] sm:$0xff]
    %v1632 = vld [vmem:[#allocation7 + $0x1260] sm:$0xff]
    %v1633 = vld [vmem:[#allocation7 + $0x1268] sm:$0xff]
    %v1634 = vld [vmem:[#allocation7 + $0x1270] sm:$0xff]
    %v1635 = vld [vmem:[#allocation7 + $0x1278] sm:$0xff]
    %v1636 = vld [vmem:[#allocation7 + $0x1280] sm:$0xff]
    %v1637 = vld [vmem:[#allocation7 + $0x1288] sm:$0xff]
    %v1638 = vld [vmem:[#allocation7 + $0x1290] sm:$0xff]
    %v1639 = vld [vmem:[#allocation7 + $0x1298] sm:$0xff]
    %v1640 = vld [vmem:[#allocation7 + $0x12a0] sm:$0xff]
    %v1641 = vld [vmem:[#allocation7 + $0x12a8] sm:$0xff]
    %v1642 = vld [vmem:[#allocation7 + $0x12b0] sm:$0xff]
    %v1643 = vld [vmem:[#allocation7 + $0x12b8] sm:$0xff]
    %v1644 = vld [vmem:[#allocation7 + $0x12c0] sm:$0xff]
    %v1645 = vld [vmem:[#allocation7 + $0x12c8] sm:$0xff]
    %v1646 = vld [vmem:[#allocation7 + $0x12d0] sm:$0xff]
    %v1647 = vld [vmem:[#allocation7 + $0x12d8] sm:$0xff]
    %v1648 = vld [vmem:[#allocation7 + $0x12e0] sm:$0xff]
    %v1649 = vld [vmem:[#allocation7 + $0x12e8] sm:$0xff]
    %v1650 = vld [vmem:[#allocation7 + $0x12f0] sm:$0xff]
    %v1651 = vld [vmem:[#allocation7 + $0x12f8] sm:$0xff]
    %v1652 = vld [vmem:[#allocation7 + $0x1300] sm:$0xff]
    %v1653 = vld [vmem:[#allocation7 + $0x1308] sm:$0xff]
    %v1654 = vld [vmem:[#allocation7 + $0x1310] sm:$0xff]
    %v1655 = vld [vmem:[#allocation7 + $0x1318] sm:$0xff]
    %v1656 = vld [vmem:[#allocation7 + $0x1320] sm:$0xff]
    %v1657 = vld [vmem:[#allocation7 + $0x1328] sm:$0xff]
    %v1658 = vld [vmem:[#allocation7 + $0x1330] sm:$0xff]
    %v1659 = vld [vmem:[#allocation7 + $0x1338] sm:$0xff]
    %v1660 = vld [vmem:[#allocation7 + $0x1340] sm:$0xff]
    %v1661 = vld [vmem:[#allocation7 + $0x1348] sm:$0xff]
    %v1662 = vld [vmem:[#allocation7 + $0x1350] sm:$0xff]
    %v1663 = vld [vmem:[#allocation7 + $0x1358] sm:$0xff]
    %v1664 = vld [vmem:[#allocation7 + $0x1360] sm:$0xff]
    %v1665 = vld [vmem:[#allocation7 + $0x1368] sm:$0xff]
    %v1666 = vld [vmem:[#allocation7 + $0x1370] sm:$0xff]
    %v1667 = vld [vmem:[#allocation7 + $0x1378] sm:$0xff]
    %v1668 = vld [vmem:[#allocation7 + $0x1380] sm:$0xff]
    %v1669 = vld [vmem:[#allocation7 + $0x1388] sm:$0xff]
    %v1670 = vld [vmem:[#allocation7 + $0x1390] sm:$0xff]
    %v1671 = vld [vmem:[#allocation7 + $0x1398] sm:$0xff]
    %v1672 = vld [vmem:[#allocation7 + $0x13a0] sm:$0xff]
    %v1673 = vld [vmem:[#allocation7 + $0x13a8] sm:$0xff]
    %v1674 = vld [vmem:[#allocation7 + $0x13b0] sm:$0xff]
    %v1675 = vld [vmem:[#allocation7 + $0x13b8] sm:$0xff]
    %v1676 = vld [vmem:[#allocation7 + $0x13c0] sm:$0xff]
    %v1677 = vld [vmem:[#allocation7 + $0x13c8] sm:$0xff]
    %v1678 = vld [vmem:[#allocation7 + $0x13d0] sm:$0xff]
    %v1679 = vld [vmem:[#allocation7 + $0x13d8] sm:$0xff]
    %v1680 = vld [vmem:[#allocation7 + $0x13e0] sm:$0xff]
    %v1681 = vld [vmem:[#allocation7 + $0x13e8] sm:$0xff]
    %v1682 = vld [vmem:[#allocation7 + $0x13f0] sm:$0xff]
    %v1683 = vld [vmem:[#allocation7 + $0x13f8] sm:$0xff]
    %v1684 = vld [vmem:[#allocation7 + $0x1400] sm:$0xff]
    %v1685 = vld [vmem:[#allocation7 + $0x1408] sm:$0xff]
    %v1686 = vld [vmem:[#allocation7 + $0x1410] sm:$0xff]
    %v1687 = vld [vmem:[#allocation7 + $0x1418] sm:$0xff]
    %v1688 = vld [vmem:[#allocation7 + $0x1420] sm:$0xff]
    %v1689 = vld [vmem:[#allocation7 + $0x1428] sm:$0xff]
    %v1690 = vld [vmem:[#allocation7 + $0x1430] sm:$0xff]
    %v1691 = vld [vmem:[#allocation7 + $0x1438] sm:$0xff]
    %v1692 = vld [vmem:[#allocation7 + $0x1440] sm:$0xff]
    %v1693 = vld [vmem:[#allocation7 + $0x1448] sm:$0xff]
    %v1694 = vld [vmem:[#allocation7 + $0x1450] sm:$0xff]
    %v1695 = vld [vmem:[#allocation7 + $0x1458] sm:$0xff]
    %v1696 = vld [vmem:[#allocation7 + $0x1460] sm:$0xff]
    %v1697 = vld [vmem:[#allocation7 + $0x1468] sm:$0xff]
    %v1698 = vld [vmem:[#allocation7 + $0x1470] sm:$0xff]
    %v1699 = vld [vmem:[#allocation7 + $0x1478] sm:$0xff]
    %v1700 = vld [vmem:[#allocation7 + $0x1480] sm:$0xff]
    %v1701 = vld [vmem:[#allocation7 + $0x1488] sm:$0xff]
    %v1702 = vld [vmem:[#allocation7 + $0x1490] sm:$0xff]
    %v1703 = vld [vmem:[#allocation7 + $0x1498] sm:$0xff]
    %v1704 = vld [vmem:[#allocation7 + $0x14a0] sm:$0xff]
    %v1705 = vld [vmem:[#allocation7 + $0x14a8] sm:$0xff]
    %v1706 = vld [vmem:[#allocation7 + $0x14b0] sm:$0xff]
    %v1707 = vld [vmem:[#allocation7 + $0x14b8] sm:$0xff]
    %v1708 = vld [vmem:[#allocation7 + $0x14c0] sm:$0xff]
    %v1709 = vld [vmem:[#allocation7 + $0x14c8] sm:$0xff]
    %v1710 = vld [vmem:[#allocation7 + $0x14d0] sm:$0xff]
    %v1711 = vld [vmem:[#allocation7 + $0x14d8] sm:$0xff]
    %v1712 = vld [vmem:[#allocation7 + $0x14e0] sm:$0xff]
    %v1713 = vld [vmem:[#allocation7 + $0x14e8] sm:$0xff]
    %v1714 = vld [vmem:[#allocation7 + $0x14f0] sm:$0xff]
    %v1715 = vld [vmem:[#allocation7 + $0x14f8] sm:$0xff]
    %v1716 = vld [vmem:[#allocation7 + $0x1500] sm:$0xff]
    %v1717 = vld [vmem:[#allocation7 + $0x1508] sm:$0xff]
    %v1718 = vld [vmem:[#allocation7 + $0x1510] sm:$0xff]
    %v1719 = vld [vmem:[#allocation7 + $0x1518] sm:$0xff]
    %v1720 = vld [vmem:[#allocation7 + $0x1520] sm:$0xff]
    %v1721 = vld [vmem:[#allocation7 + $0x1528] sm:$0xff]
    %v1722 = vld [vmem:[#allocation7 + $0x1530] sm:$0xff]
    %v1723 = vld [vmem:[#allocation7 + $0x1538] sm:$0xff]
    %v1724 = vld [vmem:[#allocation7 + $0x1540] sm:$0xff]
    %v1725 = vld [vmem:[#allocation7 + $0x1548] sm:$0xff]
    %v1726 = vld [vmem:[#allocation7 + $0x1550] sm:$0xff]
    %v1727 = vld [vmem:[#allocation7 + $0x1558] sm:$0xff]
    %v1728 = vld [vmem:[#allocation7 + $0x1560] sm:$0xff]
    %v1729 = vld [vmem:[#allocation7 + $0x1568] sm:$0xff]
    %v1730 = vld [vmem:[#allocation7 + $0x1570] sm:$0xff]
    %v1731 = vld [vmem:[#allocation7 + $0x1578] sm:$0xff]
    %v1732 = vld [vmem:[#allocation7 + $0x1580] sm:$0xff]
    %v1733 = vld [vmem:[#allocation7 + $0x1588] sm:$0xff]
    %v1734 = vld [vmem:[#allocation7 + $0x1590] sm:$0xff]
    %v1735 = vld [vmem:[#allocation7 + $0x1598] sm:$0xff]
    %v1736 = vld [vmem:[#allocation7 + $0x15a0] sm:$0xff]
    %v1737 = vld [vmem:[#allocation7 + $0x15a8] sm:$0xff]
    %v1738 = vld [vmem:[#allocation7 + $0x15b0] sm:$0xff]
    %v1739 = vld [vmem:[#allocation7 + $0x15b8] sm:$0xff]
    %v1740 = vld [vmem:[#allocation7 + $0x15c0] sm:$0xff]
    %v1741 = vld [vmem:[#allocation7 + $0x15c8] sm:$0xff]
    %v1742 = vld [vmem:[#allocation7 + $0x15d0] sm:$0xff]
    %v1743 = vld [vmem:[#allocation7 + $0x15d8] sm:$0xff]
    %v1744 = vld [vmem:[#allocation7 + $0x15e0] sm:$0xff]
    %v1745 = vld [vmem:[#allocation7 + $0x15e8] sm:$0xff]
    %v1746 = vld [vmem:[#allocation7 + $0x15f0] sm:$0xff]
    %v1747 = vld [vmem:[#allocation7 + $0x15f8] sm:$0xff]
    %v1748 = vld [vmem:[#allocation7 + $0x1600] sm:$0xff]
    %v1749 = vld [vmem:[#allocation7 + $0x1608] sm:$0xff]
    %v1750 = vld [vmem:[#allocation7 + $0x1610] sm:$0xff]
    %v1751 = vld [vmem:[#allocation7 + $0x1618] sm:$0xff]
    %v1752 = vld [vmem:[#allocation7 + $0x1620] sm:$0xff]
    %v1753 = vld [vmem:[#allocation7 + $0x1628] sm:$0xff]
    %v1754 = vld [vmem:[#allocation7 + $0x1630] sm:$0xff]
    %v1755 = vld [vmem:[#allocation7 + $0x1638] sm:$0xff]
    %v1756 = vld [vmem:[#allocation7 + $0x1640] sm:$0xff]
    %v1757 = vld [vmem:[#allocation7 + $0x1648] sm:$0xff]
    %v1758 = vld [vmem:[#allocation7 + $0x1650] sm:$0xff]
    %v1759 = vld [vmem:[#allocation7 + $0x1658] sm:$0xff]
    %v1760 = vld [vmem:[#allocation7 + $0x1660] sm:$0xff]
    %v1761 = vld [vmem:[#allocation7 + $0x1668] sm:$0xff]
    %v1762 = vld [vmem:[#allocation7 + $0x1670] sm:$0xff]
    %v1763 = vld [vmem:[#allocation7 + $0x1678] sm:$0xff]
    %v1764 = vld [vmem:[#allocation7 + $0x1680] sm:$0xff]
    %v1765 = vld [vmem:[#allocation7 + $0x1688] sm:$0xff]
    %v1766 = vld [vmem:[#allocation7 + $0x1690] sm:$0xff]
    %v1767 = vld [vmem:[#allocation7 + $0x1698] sm:$0xff]
    %v1768 = vld [vmem:[#allocation7 + $0x16a0] sm:$0xff]
    %v1769 = vld [vmem:[#allocation7 + $0x16a8] sm:$0xff]
    %v1770 = vld [vmem:[#allocation7 + $0x16b0] sm:$0xff]
    %v1771 = vld [vmem:[#allocation7 + $0x16b8] sm:$0xff]
    %v1772 = vld [vmem:[#allocation7 + $0x16c0] sm:$0xff]
    %v1773 = vld [vmem:[#allocation7 + $0x16c8] sm:$0xff]
    %v1774 = vld [vmem:[#allocation7 + $0x16d0] sm:$0xff]
    %v1775 = vld [vmem:[#allocation7 + $0x16d8] sm:$0xff]
    %v1776 = vld [vmem:[#allocation7 + $0x16e0] sm:$0xff]
    %v1777 = vld [vmem:[#allocation7 + $0x16e8] sm:$0xff]
    %v1778 = vld [vmem:[#allocation7 + $0x16f0] sm:$0xff]
    %v1779 = vld [vmem:[#allocation7 + $0x16f8] sm:$0xff]
    %v1780 = vld [vmem:[#allocation7 + $0x1700] sm:$0xff]
    %v1781 = vld [vmem:[#allocation7 + $0x1708] sm:$0xff]
    %v1782 = vld [vmem:[#allocation7 + $0x1710] sm:$0xff]
    %v1783 = vld [vmem:[#allocation7 + $0x1718] sm:$0xff]
    %v1784 = vld [vmem:[#allocation7 + $0x1720] sm:$0xff]
    %v1785 = vld [vmem:[#allocation7 + $0x1728] sm:$0xff]
    %v1786 = vld [vmem:[#allocation7 + $0x1730] sm:$0xff]
    %v1787 = vld [vmem:[#allocation7 + $0x1738] sm:$0xff]
    %v1788 = vld [vmem:[#allocation7 + $0x1740] sm:$0xff]
    %v1789 = vld [vmem:[#allocation7 + $0x1748] sm:$0xff]
    %v1790 = vld [vmem:[#allocation7 + $0x1750] sm:$0xff]
    %v1791 = vld [vmem:[#allocation7 + $0x1758] sm:$0xff]
    %v1792 = vld [vmem:[#allocation7 + $0x1760] sm:$0xff]
    %v1793 = vld [vmem:[#allocation7 + $0x1768] sm:$0xff]
    %v1794 = vld [vmem:[#allocation7 + $0x1770] sm:$0xff]
    %v1795 = vld [vmem:[#allocation7 + $0x1778] sm:$0xff]
    %v1796 = vld [vmem:[#allocation7 + $0x1780] sm:$0xff]
    %v1797 = vld [vmem:[#allocation7 + $0x1788] sm:$0xff]
    %v1798 = vld [vmem:[#allocation7 + $0x1790] sm:$0xff]
    %v1799 = vld [vmem:[#allocation7 + $0x1798] sm:$0xff]
    %v1800 = vld [vmem:[#allocation7 + $0x17a0] sm:$0xff]
    %v1801 = vld [vmem:[#allocation7 + $0x17a8] sm:$0xff]
    %v1802 = vld [vmem:[#allocation7 + $0x17b0] sm:$0xff]
    %v1803 = vld [vmem:[#allocation7 + $0x17b8] sm:$0xff]
    %v1804 = vld [vmem:[#allocation7 + $0x17c0] sm:$0xff]
    %v1805 = vld [vmem:[#allocation7 + $0x17c8] sm:$0xff]
    %v1806 = vld [vmem:[#allocation7 + $0x17d0] sm:$0xff]
    %v1807 = vld [vmem:[#allocation7 + $0x17d8] sm:$0xff]
    %v1808 = vld [vmem:[#allocation7 + $0x17e0] sm:$0xff]
    %v1809 = vld [vmem:[#allocation7 + $0x17e8] sm:$0xff]
    %v1810 = vld [vmem:[#allocation7 + $0x17f0] sm:$0xff]
    %v1811 = vld [vmem:[#allocation7 + $0x17f8] sm:$0xff]
    %v1812 = vld [vmem:[#allocation7 + $0x1800] sm:$0xff]
    %v1813 = vld [vmem:[#allocation7 + $0x1808] sm:$0xff]
    %v1814 = vld [vmem:[#allocation7 + $0x1810] sm:$0xff]
    %v1815 = vld [vmem:[#allocation7 + $0x1818] sm:$0xff]
    %v1816 = vld [vmem:[#allocation7 + $0x1820] sm:$0xff]
    %v1817 = vld [vmem:[#allocation7 + $0x1828] sm:$0xff]
    %v1818 = vld [vmem:[#allocation7 + $0x1830] sm:$0xff]
    %v1819 = vld [vmem:[#allocation7 + $0x1838] sm:$0xff]
    %v1820 = vld [vmem:[#allocation7 + $0x1840] sm:$0xff]
    %v1821 = vld [vmem:[#allocation7 + $0x1848] sm:$0xff]
    %v1822 = vld [vmem:[#allocation7 + $0x1850] sm:$0xff]
    %v1823 = vld [vmem:[#allocation7 + $0x1858] sm:$0xff]
    %v1824 = vld [vmem:[#allocation7 + $0x1860] sm:$0xff]
    %v1825 = vld [vmem:[#allocation7 + $0x1868] sm:$0xff]
    %v1826 = vld [vmem:[#allocation7 + $0x1870] sm:$0xff]
    %v1827 = vld [vmem:[#allocation7 + $0x1878] sm:$0xff]
    %v1828 = vld [vmem:[#allocation7 + $0x1880] sm:$0xff]
    %v1829 = vld [vmem:[#allocation7 + $0x1888] sm:$0xff]
    %v1830 = vld [vmem:[#allocation7 + $0x1890] sm:$0xff]
    %v1831 = vld [vmem:[#allocation7 + $0x1898] sm:$0xff]
    %v1832 = vld [vmem:[#allocation7 + $0x18a0] sm:$0xff]
    %v1833 = vld [vmem:[#allocation7 + $0x18a8] sm:$0xff]
    %v1834 = vld [vmem:[#allocation7 + $0x18b0] sm:$0xff]
    %v1835 = vld [vmem:[#allocation7 + $0x18b8] sm:$0xff]
    %v1836 = vld [vmem:[#allocation7 + $0x18c0] sm:$0xff]
    %v1837 = vld [vmem:[#allocation7 + $0x18c8] sm:$0xff]
    %v1838 = vld [vmem:[#allocation7 + $0x18d0] sm:$0xff]
    %v1839 = vld [vmem:[#allocation7 + $0x18d8] sm:$0xff]
    %v1840 = vld [vmem:[#allocation7 + $0x18e0] sm:$0xff]
    %v1841 = vld [vmem:[#allocation7 + $0x18e8] sm:$0xff]
    %v1842 = vld [vmem:[#allocation7 + $0x18f0] sm:$0xff]
    %v1843 = vld [vmem:[#allocation7 + $0x18f8] sm:$0xff]
    %v1844 = vld [vmem:[#allocation7 + $0x1900] sm:$0xff]
    %v1845 = vld [vmem:[#allocation7 + $0x1908] sm:$0xff]
    %v1846 = vld [vmem:[#allocation7 + $0x1910] sm:$0xff]
    %v1847 = vld [vmem:[#allocation7 + $0x1918] sm:$0xff]
    %v1848 = vld [vmem:[#allocation7 + $0x1920] sm:$0xff]
    %v1849 = vld [vmem:[#allocation7 + $0x1928] sm:$0xff]
    %v1850 = vld [vmem:[#allocation7 + $0x1930] sm:$0xff]
    %v1851 = vld [vmem:[#allocation7 + $0x1938] sm:$0xff]
    %v1852 = vld [vmem:[#allocation7 + $0x1940] sm:$0xff]
    %v1853 = vld [vmem:[#allocation7 + $0x1948] sm:$0xff]
    %v1854 = vld [vmem:[#allocation7 + $0x1950] sm:$0xff]
    %v1855 = vld [vmem:[#allocation7 + $0x1958] sm:$0xff]
    %v1856 = vld [vmem:[#allocation7 + $0x1960] sm:$0xff]
    %v1857 = vld [vmem:[#allocation7 + $0x1968] sm:$0xff]
    %v1858 = vld [vmem:[#allocation7 + $0x1970] sm:$0xff]
    %v1859 = vld [vmem:[#allocation7 + $0x1978] sm:$0xff]
    %v1860 = vld [vmem:[#allocation7 + $0x1980] sm:$0xff]
    %v1861 = vld [vmem:[#allocation7 + $0x1988] sm:$0xff]
    %v1862 = vld [vmem:[#allocation7 + $0x1990] sm:$0xff]
    %v1863 = vld [vmem:[#allocation7 + $0x1998] sm:$0xff]
    %v1864 = vld [vmem:[#allocation7 + $0x19a0] sm:$0xff]
    %v1865 = vld [vmem:[#allocation7 + $0x19a8] sm:$0xff]
    %v1866 = vld [vmem:[#allocation7 + $0x19b0] sm:$0xff]
    %v1867 = vld [vmem:[#allocation7 + $0x19b8] sm:$0xff]
    %v1868 = vld [vmem:[#allocation7 + $0x19c0] sm:$0xff]
    %v1869 = vld [vmem:[#allocation7 + $0x19c8] sm:$0xff]
    %v1870 = vld [vmem:[#allocation7 + $0x19d0] sm:$0xff]
    %v1871 = vld [vmem:[#allocation7 + $0x19d8] sm:$0xff]
    %v1872 = vld [vmem:[#allocation7 + $0x19e0] sm:$0xff]
    %v1873 = vld [vmem:[#allocation7 + $0x19e8] sm:$0xff]
    %v1874 = vld [vmem:[#allocation7 + $0x19f0] sm:$0xff]
    %v1875 = vld [vmem:[#allocation7 + $0x19f8] sm:$0xff]
    %v1876 = vld [vmem:[#allocation7 + $0x1a00] sm:$0xff]
    %v1877 = vld [vmem:[#allocation7 + $0x1a08] sm:$0xff]
    %v1878 = vld [vmem:[#allocation7 + $0x1a10] sm:$0xff]
    %v1879 = vld [vmem:[#allocation7 + $0x1a18] sm:$0xff]
    %v1880 = vld [vmem:[#allocation7 + $0x1a20] sm:$0xff]
    %v1881 = vld [vmem:[#allocation7 + $0x1a28] sm:$0xff]
    %v1882 = vld [vmem:[#allocation7 + $0x1a30] sm:$0xff]
    %v1883 = vld [vmem:[#allocation7 + $0x1a38] sm:$0xff]
    %v1884 = vld [vmem:[#allocation7 + $0x1a40] sm:$0xff]
    %v1885 = vld [vmem:[#allocation7 + $0x1a48] sm:$0xff]
    %v1886 = vld [vmem:[#allocation7 + $0x1a50] sm:$0xff]
    %v1887 = vld [vmem:[#allocation7 + $0x1a58] sm:$0xff]
    %v1888 = vld [vmem:[#allocation7 + $0x1a60] sm:$0xff]
    %v1889 = vld [vmem:[#allocation7 + $0x1a68] sm:$0xff]
    %v1890 = vld [vmem:[#allocation7 + $0x1a70] sm:$0xff]
    %v1891 = vld [vmem:[#allocation7 + $0x1a78] sm:$0xff]
    %v1892 = vld [vmem:[#allocation7 + $0x1a80] sm:$0xff]
    %v1893 = vld [vmem:[#allocation7 + $0x1a88] sm:$0xff]
    %v1894 = vld [vmem:[#allocation7 + $0x1a90] sm:$0xff]
    %v1895 = vld [vmem:[#allocation7 + $0x1a98] sm:$0xff]
    %v1896 = vld [vmem:[#allocation7 + $0x1aa0] sm:$0xff]
    %v1897 = vld [vmem:[#allocation7 + $0x1aa8] sm:$0xff]
    %v1898 = vld [vmem:[#allocation7 + $0x1ab0] sm:$0xff]
    %v1899 = vld [vmem:[#allocation7 + $0x1ab8] sm:$0xff]
    %v1900 = vld [vmem:[#allocation7 + $0x1ac0] sm:$0xff]
    %v1901 = vld [vmem:[#allocation7 + $0x1ac8] sm:$0xff]
    %v1902 = vld [vmem:[#allocation7 + $0x1ad0] sm:$0xff]
    %v1903 = vld [vmem:[#allocation7 + $0x1ad8] sm:$0xff]
    %v1904 = vld [vmem:[#allocation7 + $0x1ae0] sm:$0xff]
    %v1905 = vld [vmem:[#allocation7 + $0x1ae8] sm:$0xff]
    %v1906 = vld [vmem:[#allocation7 + $0x1af0] sm:$0xff]
    %v1907 = vld [vmem:[#allocation7 + $0x1af8] sm:$0xff]
    %v1908 = vld [vmem:[#allocation7 + $0x1b00] sm:$0xff]
    %v1909 = vld [vmem:[#allocation7 + $0x1b08] sm:$0xff]
    %v1910 = vld [vmem:[#allocation7 + $0x1b10] sm:$0xff]
    %v1911 = vld [vmem:[#allocation7 + $0x1b18] sm:$0xff]
    %v1912 = vld [vmem:[#allocation7 + $0x1b20] sm:$0xff]
    %v1913 = vld [vmem:[#allocation7 + $0x1b28] sm:$0xff]
    %v1914 = vld [vmem:[#allocation7 + $0x1b30] sm:$0xff]
    %v1915 = vld [vmem:[#allocation7 + $0x1b38] sm:$0xff]
    %v1916 = vld [vmem:[#allocation7 + $0x1b40] sm:$0xff]
    %v1917 = vld [vmem:[#allocation7 + $0x1b48] sm:$0xff]
    %v1918 = vld [vmem:[#allocation7 + $0x1b50] sm:$0xff]
    %v1919 = vld [vmem:[#allocation7 + $0x1b58] sm:$0xff]
    %v1920 = vld [vmem:[#allocation7 + $0x1b60] sm:$0xff]
    %v1921 = vld [vmem:[#allocation7 + $0x1b68] sm:$0xff]
    %v1922 = vld [vmem:[#allocation7 + $0x1b70] sm:$0xff]
    %v1923 = vld [vmem:[#allocation7 + $0x1b78] sm:$0xff]
    %v1924 = vld [vmem:[#allocation7 + $0x1b80] sm:$0xff]
    %v1925 = vld [vmem:[#allocation7 + $0x1b88] sm:$0xff]
    %v1926 = vld [vmem:[#allocation7 + $0x1b90] sm:$0xff]
    %v1927 = vld [vmem:[#allocation7 + $0x1b98] sm:$0xff]
    %v1928 = vld [vmem:[#allocation7 + $0x1ba0] sm:$0xff]
    %v1929 = vld [vmem:[#allocation7 + $0x1ba8] sm:$0xff]
    %v1930 = vld [vmem:[#allocation7 + $0x1bb0] sm:$0xff]
    %v1931 = vld [vmem:[#allocation7 + $0x1bb8] sm:$0xff]
    %v1932 = vld [vmem:[#allocation7 + $0x1bc0] sm:$0xff]
    %v1933 = vld [vmem:[#allocation7 + $0x1bc8] sm:$0xff]
    %v1934 = vld [vmem:[#allocation7 + $0x1bd0] sm:$0xff]
    %v1935 = vld [vmem:[#allocation7 + $0x1bd8] sm:$0xff]
    %v1936 = vld [vmem:[#allocation7 + $0x1be0] sm:$0xff]
    %v1937 = vld [vmem:[#allocation7 + $0x1be8] sm:$0xff]
    %v1938 = vld [vmem:[#allocation7 + $0x1bf0] sm:$0xff]
    %v1939 = vld [vmem:[#allocation7 + $0x1bf8] sm:$0xff]
    %v1940 = vld [vmem:[#allocation7 + $0x1c00] sm:$0xff]
    %v1941 = vld [vmem:[#allocation7 + $0x1c08] sm:$0xff]
    %v1942 = vld [vmem:[#allocation7 + $0x1c10] sm:$0xff]
    %v1943 = vld [vmem:[#allocation7 + $0x1c18] sm:$0xff]
    %v1944 = vld [vmem:[#allocation7 + $0x1c20] sm:$0xff]
    %v1945 = vld [vmem:[#allocation7 + $0x1c28] sm:$0xff]
    %v1946 = vld [vmem:[#allocation7 + $0x1c30] sm:$0xff]
    %v1947 = vld [vmem:[#allocation7 + $0x1c38] sm:$0xff]
    %v1948 = vld [vmem:[#allocation7 + $0x1c40] sm:$0xff]
    %v1949 = vld [vmem:[#allocation7 + $0x1c48] sm:$0xff]
    %v1950 = vld [vmem:[#allocation7 + $0x1c50] sm:$0xff]
    %v1951 = vld [vmem:[#allocation7 + $0x1c58] sm:$0xff]
    %v1952 = vld [vmem:[#allocation7 + $0x1c60] sm:$0xff]
    %v1953 = vld [vmem:[#allocation7 + $0x1c68] sm:$0xff]
    %v1954 = vld [vmem:[#allocation7 + $0x1c70] sm:$0xff]
    %v1955 = vld [vmem:[#allocation7 + $0x1c78] sm:$0xff]
    %v1956 = vld [vmem:[#allocation7 + $0x1c80] sm:$0xff]
    %v1957 = vld [vmem:[#allocation7 + $0x1c88] sm:$0xff]
    %v1958 = vld [vmem:[#allocation7 + $0x1c90] sm:$0xff]
    %v1959 = vld [vmem:[#allocation7 + $0x1c98] sm:$0xff]
    %v1960 = vld [vmem:[#allocation7 + $0x1ca0] sm:$0xff]
    %v1961 = vld [vmem:[#allocation7 + $0x1ca8] sm:$0xff]
    %v1962 = vld [vmem:[#allocation7 + $0x1cb0] sm:$0xff]
    %v1963 = vld [vmem:[#allocation7 + $0x1cb8] sm:$0xff]
    %v1964 = vld [vmem:[#allocation7 + $0x1cc0] sm:$0xff]
    %v1965 = vld [vmem:[#allocation7 + $0x1cc8] sm:$0xff]
    %v1966 = vld [vmem:[#allocation7 + $0x1cd0] sm:$0xff]
    %v1967 = vld [vmem:[#allocation7 + $0x1cd8] sm:$0xff]
    %v1968 = vld [vmem:[#allocation7 + $0x1ce0] sm:$0xff]
    %v1969 = vld [vmem:[#allocation7 + $0x1ce8] sm:$0xff]
    %v1970 = vld [vmem:[#allocation7 + $0x1cf0] sm:$0xff]
    %v1971 = vld [vmem:[#allocation7 + $0x1cf8] sm:$0xff]
    %v1972 = vld [vmem:[#allocation7 + $0x1d00] sm:$0xff]
    %v1973 = vld [vmem:[#allocation7 + $0x1d08] sm:$0xff]
    %v1974 = vld [vmem:[#allocation7 + $0x1d10] sm:$0xff]
    %v1975 = vld [vmem:[#allocation7 + $0x1d18] sm:$0xff]
    %v1976 = vld [vmem:[#allocation7 + $0x1d20] sm:$0xff]
    %v1977 = vld [vmem:[#allocation7 + $0x1d28] sm:$0xff]
    %v1978 = vld [vmem:[#allocation7 + $0x1d30] sm:$0xff]
    %v1979 = vld [vmem:[#allocation7 + $0x1d38] sm:$0xff]
    %v1980 = vld [vmem:[#allocation7 + $0x1d40] sm:$0xff]
    %v1981 = vld [vmem:[#allocation7 + $0x1d48] sm:$0xff]
    %v1982 = vld [vmem:[#allocation7 + $0x1d50] sm:$0xff]
    %v1983 = vld [vmem:[#allocation7 + $0x1d58] sm:$0xff]
    %v1984 = vld [vmem:[#allocation7 + $0x1d60] sm:$0xff]
    %v1985 = vld [vmem:[#allocation7 + $0x1d68] sm:$0xff]
    %v1986 = vld [vmem:[#allocation7 + $0x1d70] sm:$0xff]
    %v1987 = vld [vmem:[#allocation7 + $0x1d78] sm:$0xff]
    %v1988 = vld [vmem:[#allocation7 + $0x1d80] sm:$0xff]
    %v1989 = vld [vmem:[#allocation7 + $0x1d88] sm:$0xff]
    %v1990 = vld [vmem:[#allocation7 + $0x1d90] sm:$0xff]
    %v1991 = vld [vmem:[#allocation7 + $0x1d98] sm:$0xff]
    %v1992 = vld [vmem:[#allocation7 + $0x1da0] sm:$0xff]
    %v1993 = vld [vmem:[#allocation7 + $0x1da8] sm:$0xff]
    %v1994 = vld [vmem:[#allocation7 + $0x1db0] sm:$0xff]
    %v1995 = vld [vmem:[#allocation7 + $0x1db8] sm:$0xff]
    %v1996 = vld [vmem:[#allocation7 + $0x1dc0] sm:$0xff]
    %v1997 = vld [vmem:[#allocation7 + $0x1dc8] sm:$0xff]
    %v1998 = vld [vmem:[#allocation7 + $0x1dd0] sm:$0xff]
    %v1999 = vld [vmem:[#allocation7 + $0x1dd8] sm:$0xff]
    %v2000 = vld [vmem:[#allocation7 + $0x1de0] sm:$0xff]
    %v2001 = vld [vmem:[#allocation7 + $0x1de8] sm:$0xff]
    %v2002 = vld [vmem:[#allocation7 + $0x1df0] sm:$0xff]
    %v2003 = vld [vmem:[#allocation7 + $0x1df8] sm:$0xff]
    %v2004 = vld [vmem:[#allocation7 + $0x1e00] sm:$0xff]
    %v2005 = vld [vmem:[#allocation7 + $0x1e08] sm:$0xff]
    %v2006 = vld [vmem:[#allocation7 + $0x1e10] sm:$0xff]
    %v2007 = vld [vmem:[#allocation7 + $0x1e18] sm:$0xff]
    %v2008 = vld [vmem:[#allocation7 + $0x1e20] sm:$0xff]
    %v2009 = vld [vmem:[#allocation7 + $0x1e28] sm:$0xff]
    %v2010 = vld [vmem:[#allocation7 + $0x1e30] sm:$0xff]
    %v2011 = vld [vmem:[#allocation7 + $0x1e38] sm:$0xff]
    %v2012 = vld [vmem:[#allocation7 + $0x1e40] sm:$0xff]
    %v2013 = vld [vmem:[#allocation7 + $0x1e48] sm:$0xff]
    %v2014 = vld [vmem:[#allocation7 + $0x1e50] sm:$0xff]
    %v2015 = vld [vmem:[#allocation7 + $0x1e58] sm:$0xff]
    %v2016 = vld [vmem:[#allocation7 + $0x1e60] sm:$0xff]
    %v2017 = vld [vmem:[#allocation7 + $0x1e68] sm:$0xff]
    %v2018 = vld [vmem:[#allocation7 + $0x1e70] sm:$0xff]
    %v2019 = vld [vmem:[#allocation7 + $0x1e78] sm:$0xff]
    %v2020 = vld [vmem:[#allocation7 + $0x1e80] sm:$0xff]
    %v2021 = vld [vmem:[#allocation7 + $0x1e88] sm:$0xff]
    %v2022 = vld [vmem:[#allocation7 + $0x1e90] sm:$0xff]
    %v2023 = vld [vmem:[#allocation7 + $0x1e98] sm:$0xff]
    %v2024 = vld [vmem:[#allocation7 + $0x1ea0] sm:$0xff]
    %v2025 = vld [vmem:[#allocation7 + $0x1ea8] sm:$0xff]
    %v2026 = vld [vmem:[#allocation7 + $0x1eb0] sm:$0xff]
    %v2027 = vld [vmem:[#allocation7 + $0x1eb8] sm:$0xff]
    %v2028 = vld [vmem:[#allocation7 + $0x1ec0] sm:$0xff]
    %v2029 = vld [vmem:[#allocation7 + $0x1ec8] sm:$0xff]
    %v2030 = vld [vmem:[#allocation7 + $0x1ed0] sm:$0xff]
    %v2031 = vld [vmem:[#allocation7 + $0x1ed8] sm:$0xff]
    %v2032 = vld [vmem:[#allocation7 + $0x1ee0] sm:$0xff]
    %v2033 = vld [vmem:[#allocation7 + $0x1ee8] sm:$0xff]
    %v2034 = vld [vmem:[#allocation7 + $0x1ef0] sm:$0xff]
    %v2035 = vld [vmem:[#allocation7 + $0x1ef8] sm:$0xff]
    %v2036 = vld [vmem:[#allocation7 + $0x1f00] sm:$0xff]
    %v2037 = vld [vmem:[#allocation7 + $0x1f08] sm:$0xff]
    %v2038 = vld [vmem:[#allocation7 + $0x1f10] sm:$0xff]
    %v2039 = vld [vmem:[#allocation7 + $0x1f18] sm:$0xff]
    %v2040 = vld [vmem:[#allocation7 + $0x1f20] sm:$0xff]
    %v2041 = vld [vmem:[#allocation7 + $0x1f28] sm:$0xff]
    %v2042 = vld [vmem:[#allocation7 + $0x1f30] sm:$0xff]
    %v2043 = vld [vmem:[#allocation7 + $0x1f38] sm:$0xff]
    %v2044 = vld [vmem:[#allocation7 + $0x1f40] sm:$0xff]
    %v2045 = vld [vmem:[#allocation7 + $0x1f48] sm:$0xff]
    %v2046 = vld [vmem:[#allocation7 + $0x1f50] sm:$0xff]
    %v2047 = vld [vmem:[#allocation7 + $0x1f58] sm:$0xff]
    %v2048 = vld [vmem:[#allocation7 + $0x1f60] sm:$0xff]
    %v2049 = vld [vmem:[#allocation7 + $0x1f68] sm:$0xff]
    %v2050 = vld [vmem:[#allocation7 + $0x1f70] sm:$0xff]
    %v2051 = vld [vmem:[#allocation7 + $0x1f78] sm:$0xff]
    %v2052 = vld [vmem:[#allocation7 + $0x1f80] sm:$0xff]
    %v2053 = vld [vmem:[#allocation7 + $0x1f88] sm:$0xff]
    %v2054 = vld [vmem:[#allocation7 + $0x1f90] sm:$0xff]
    %v2055 = vld [vmem:[#allocation7 + $0x1f98] sm:$0xff]
    %v2056 = vld [vmem:[#allocation7 + $0x1fa0] sm:$0xff]
    %v2057 = vld [vmem:[#allocation7 + $0x1fa8] sm:$0xff]
    %v2058 = vld [vmem:[#allocation7 + $0x1fb0] sm:$0xff]
    %v2059 = vld [vmem:[#allocation7 + $0x1fb8] sm:$0xff]
    %v2060 = vld [vmem:[#allocation7 + $0x1fc0] sm:$0xff]
    %v2061 = vld [vmem:[#allocation7 + $0x1fc8] sm:$0xff]
    %v2062 = vld [vmem:[#allocation7 + $0x1fd0] sm:$0xff]
    %v2063 = vld [vmem:[#allocation7 + $0x1fd8] sm:$0xff]
    %v2064 = vld [vmem:[#allocation7 + $0x1fe0] sm:$0xff]
    %v2065 = vld [vmem:[#allocation7 + $0x1fe8] sm:$0xff]
    %v2066 = vld [vmem:[#allocation7 + $0x1ff0] sm:$0xff]
    %v2067 = vld [vmem:[#allocation7 + $0x1ff8] sm:$0xff]
    %v2068 = vld [vmem:[#allocation8] sm:$0xf]
    %v2070 = vlaneseq
    %v2071 = vshrl.u32 %v2070, 7
    %v2072 = vsub.s32 0, %v2071
    %v2073 = vrot.slane %v2068, %v2072
    %v2074 = vlaneseq
    %v2075 = vshrl.u32 %v2074, 7
    %v2076 = vsub.s32 1, %v2075
    %v2077 = vrot.slane %v2068, %v2076
    %v2078 = vlaneseq
    %v2079 = vshrl.u32 %v2078, 7
    %v2080 = vsub.s32 2, %v2079
    %v2081 = vrot.slane %v2068, %v2080
    %v2082 = vlaneseq
    %v2083 = vshrl.u32 %v2082, 7
    %v2084 = vsub.s32 3, %v2083
    %v2085 = vrot.slane %v2068, %v2084
    %v2106 = vunpack.c.l.b16 %v1028
    %v2107 = vunpack.c.h.b16 %v1028
    %v2108 = vunpack.c.l.b16 %v1029
    %v2109 = vunpack.c.h.b16 %v1029
    %v2110 = vunpack.c.l.b16 %v1030
    %v2111 = vunpack.c.h.b16 %v1030
    %v2112 = vunpack.c.l.b16 %v1031
    %v2113 = vunpack.c.h.b16 %v1031
    %v2114 = vunpack.c.l.b16 %v1032
    %v2115 = vunpack.c.h.b16 %v1032
    %v2116 = vunpack.c.l.b16 %v1033
    %v2117 = vunpack.c.h.b16 %v1033
    %v2118 = vunpack.c.l.b16 %v1034
    %v2119 = vunpack.c.h.b16 %v1034
    %v2120 = vunpack.c.l.b16 %v1035
    %v2121 = vunpack.c.h.b16 %v1035
    %v2122 = vunpack.c.l.b16 %v1036
    %v2123 = vunpack.c.h.b16 %v1036
    %v2124 = vunpack.c.l.b16 %v1037
    %v2125 = vunpack.c.h.b16 %v1037
    %v2126 = vunpack.c.l.b16 %v1038
    %v2127 = vunpack.c.h.b16 %v1038
    %v2128 = vunpack.c.l.b16 %v1039
    %v2129 = vunpack.c.h.b16 %v1039
    %v2130 = vunpack.c.l.b16 %v1040
    %v2131 = vunpack.c.h.b16 %v1040
    %v2132 = vunpack.c.l.b16 %v1041
    %v2133 = vunpack.c.h.b16 %v1041
    %v2134 = vunpack.c.l.b16 %v1042
    %v2135 = vunpack.c.h.b16 %v1042
    %v2136 = vunpack.c.l.b16 %v1043
    %v2137 = vunpack.c.h.b16 %v1043
    %v2138 = vpack.c.b16 %v2106, %v2106
    %v2139 = vpack.c.b16 %v2107, %v2107
    %v2140 = vpack.c.b16 %v2108, %v2108
    %v2141 = vpack.c.b16 %v2109, %v2109
    %v2142 = vpack.c.b16 %v2110, %v2110
    %v2143 = vpack.c.b16 %v2111, %v2111
    %v2144 = vpack.c.b16 %v2112, %v2112
    %v2145 = vpack.c.b16 %v2113, %v2113
    %v2146 = vpack.c.b16 %v2114, %v2114
    %v2147 = vpack.c.b16 %v2115, %v2115
    %v2148 = vpack.c.b16 %v2116, %v2116
    %v2149 = vpack.c.b16 %v2117, %v2117
    %v2150 = vpack.c.b16 %v2118, %v2118
    %v2151 = vpack.c.b16 %v2119, %v2119
    %v2152 = vpack.c.b16 %v2120, %v2120
    %v2153 = vpack.c.b16 %v2121, %v2121
    %v2154 = vpack.c.b16 %v2122, %v2122
    %v2155 = vpack.c.b16 %v2123, %v2123
    %v2156 = vpack.c.b16 %v2124, %v2124
    %v2157 = vpack.c.b16 %v2125, %v2125
    %v2158 = vpack.c.b16 %v2126, %v2126
    %v2159 = vpack.c.b16 %v2127, %v2127
    %v2160 = vpack.c.b16 %v2128, %v2128
    %v2161 = vpack.c.b16 %v2129, %v2129
    %v2162 = vpack.c.b16 %v2130, %v2130
    %v2163 = vpack.c.b16 %v2131, %v2131
    %v2164 = vpack.c.b16 %v2132, %v2132
    %v2165 = vpack.c.b16 %v2133, %v2133
    %v2166 = vpack.c.b16 %v2134, %v2134
    %v2167 = vpack.c.b16 %v2135, %v2135
    %v2168 = vpack.c.b16 %v2136, %v2136
    %v2169 = vpack.c.b16 %v2137, %v2137
    %v3226 = vunpack.c.l.b16 %v1044
    %v3227 = vunpack.c.h.b16 %v1044
    %v3228 = vunpack.c.l.b16 %v1045
    %v3229 = vunpack.c.h.b16 %v1045
    %v3230 = vunpack.c.l.b16 %v1046
    %v3231 = vunpack.c.h.b16 %v1046
    %v3232 = vunpack.c.l.b16 %v1047
    %v3233 = vunpack.c.h.b16 %v1047
    %v3234 = vunpack.c.l.b16 %v1048
    %v3235 = vunpack.c.h.b16 %v1048
    %v3236 = vunpack.c.l.b16 %v1049
    %v3237 = vunpack.c.h.b16 %v1049
    %v3238 = vunpack.c.l.b16 %v1050
    %v3239 = vunpack.c.h.b16 %v1050
    %v3240 = vunpack.c.l.b16 %v1051
    %v3241 = vunpack.c.h.b16 %v1051
    %v3242 = vunpack.c.l.b16 %v1052
    %v3243 = vunpack.c.h.b16 %v1052
    %v3244 = vunpack.c.l.b16 %v1053
    %v3245 = vunpack.c.h.b16 %v1053
    %v3246 = vunpack.c.l.b16 %v1054
    %v3247 = vunpack.c.h.b16 %v1054
    %v3248 = vunpack.c.l.b16 %v1055
    %v3249 = vunpack.c.h.b16 %v1055
    %v3250 = vunpack.c.l.b16 %v1056
    %v3251 = vunpack.c.h.b16 %v1056
    %v3252 = vunpack.c.l.b16 %v1057
    %v3253 = vunpack.c.h.b16 %v1057
    %v3254 = vunpack.c.l.b16 %v1058
    %v3255 = vunpack.c.h.b16 %v1058
    %v3256 = vunpack.c.l.b16 %v1059
    %v3257 = vunpack.c.h.b16 %v1059
    %v3258 = vunpack.c.l.b16 %v1060
    %v3259 = vunpack.c.h.b16 %v1060
    %v3260 = vunpack.c.l.b16 %v1061
    %v3261 = vunpack.c.h.b16 %v1061
    %v3262 = vunpack.c.l.b16 %v1062
    %v3263 = vunpack.c.h.b16 %v1062
    %v3264 = vunpack.c.l.b16 %v1063
    %v3265 = vunpack.c.h.b16 %v1063
    %v3266 = vunpack.c.l.b16 %v1064
    %v3267 = vunpack.c.h.b16 %v1064
    %v3268 = vunpack.c.l.b16 %v1065
    %v3269 = vunpack.c.h.b16 %v1065
    %v3270 = vunpack.c.l.b16 %v1066
    %v3271 = vunpack.c.h.b16 %v1066
    %v3272 = vunpack.c.l.b16 %v1067
    %v3273 = vunpack.c.h.b16 %v1067
    %v3274 = vunpack.c.l.b16 %v1068
    %v3275 = vunpack.c.h.b16 %v1068
    %v3276 = vunpack.c.l.b16 %v1069
    %v3277 = vunpack.c.h.b16 %v1069
    %v3278 = vunpack.c.l.b16 %v1070
    %v3279 = vunpack.c.h.b16 %v1070
    %v3280 = vunpack.c.l.b16 %v1071
    %v3281 = vunpack.c.h.b16 %v1071
    %v3282 = vunpack.c.l.b16 %v1072
    %v3283 = vunpack.c.h.b16 %v1072
    %v3284 = vunpack.c.l.b16 %v1073
    %v3285 = vunpack.c.h.b16 %v1073
    %v3286 = vunpack.c.l.b16 %v1074
    %v3287 = vunpack.c.h.b16 %v1074
    %v3288 = vunpack.c.l.b16 %v1075
    %v3289 = vunpack.c.h.b16 %v1075
    %v3290 = vunpack.c.l.b16 %v1076
    %v3291 = vunpack.c.h.b16 %v1076
    %v3292 = vunpack.c.l.b16 %v1077
    %v3293 = vunpack.c.h.b16 %v1077
    %v3294 = vunpack.c.l.b16 %v1078
    %v3295 = vunpack.c.h.b16 %v1078
    %v3296 = vunpack.c.l.b16 %v1079
    %v3297 = vunpack.c.h.b16 %v1079
    %v3298 = vunpack.c.l.b16 %v1080
    %v3299 = vunpack.c.h.b16 %v1080
    %v3300 = vunpack.c.l.b16 %v1081
    %v3301 = vunpack.c.h.b16 %v1081
    %v3302 = vunpack.c.l.b16 %v1082
    %v3303 = vunpack.c.h.b16 %v1082
    %v3304 = vunpack.c.l.b16 %v1083
    %v3305 = vunpack.c.h.b16 %v1083
    %v3306 = vunpack.c.l.b16 %v1084
    %v3307 = vunpack.c.h.b16 %v1084
    %v3308 = vunpack.c.l.b16 %v1085
    %v3309 = vunpack.c.h.b16 %v1085
    %v3310 = vunpack.c.l.b16 %v1086
    %v3311 = vunpack.c.h.b16 %v1086
    %v3312 = vunpack.c.l.b16 %v1087
    %v3313 = vunpack.c.h.b16 %v1087
    %v3314 = vunpack.c.l.b16 %v1088
    %v3315 = vunpack.c.h.b16 %v1088
    %v3316 = vunpack.c.l.b16 %v1089
    %v3317 = vunpack.c.h.b16 %v1089
    %v3318 = vunpack.c.l.b16 %v1090
    %v3319 = vunpack.c.h.b16 %v1090
    %v3320 = vunpack.c.l.b16 %v1091
    %v3321 = vunpack.c.h.b16 %v1091
    %v3322 = vunpack.c.l.b16 %v1092
    %v3323 = vunpack.c.h.b16 %v1092
    %v3324 = vunpack.c.l.b16 %v1093
    %v3325 = vunpack.c.h.b16 %v1093
    %v3326 = vunpack.c.l.b16 %v1094
    %v3327 = vunpack.c.h.b16 %v1094
    %v3328 = vunpack.c.l.b16 %v1095
    %v3329 = vunpack.c.h.b16 %v1095
    %v3330 = vunpack.c.l.b16 %v1096
    %v3331 = vunpack.c.h.b16 %v1096
    %v3332 = vunpack.c.l.b16 %v1097
    %v3333 = vunpack.c.h.b16 %v1097
    %v3334 = vunpack.c.l.b16 %v1098
    %v3335 = vunpack.c.h.b16 %v1098
    %v3336 = vunpack.c.l.b16 %v1099
    %v3337 = vunpack.c.h.b16 %v1099
    %v3338 = vunpack.c.l.b16 %v1100
    %v3339 = vunpack.c.h.b16 %v1100
    %v3340 = vunpack.c.l.b16 %v1101
    %v3341 = vunpack.c.h.b16 %v1101
    %v3342 = vunpack.c.l.b16 %v1102
    %v3343 = vunpack.c.h.b16 %v1102
    %v3344 = vunpack.c.l.b16 %v1103
    %v3345 = vunpack.c.h.b16 %v1103
    %v3346 = vunpack.c.l.b16 %v1104
    %v3347 = vunpack.c.h.b16 %v1104
    %v3348 = vunpack.c.l.b16 %v1105
    %v3349 = vunpack.c.h.b16 %v1105
    %v3350 = vunpack.c.l.b16 %v1106
    %v3351 = vunpack.c.h.b16 %v1106
    %v3352 = vunpack.c.l.b16 %v1107
    %v3353 = vunpack.c.h.b16 %v1107
    %v3354 = vunpack.c.l.b16 %v1108
    %v3355 = vunpack.c.h.b16 %v1108
    %v3356 = vunpack.c.l.b16 %v1109
    %v3357 = vunpack.c.h.b16 %v1109
    %v3358 = vunpack.c.l.b16 %v1110
    %v3359 = vunpack.c.h.b16 %v1110
    %v3360 = vunpack.c.l.b16 %v1111
    %v3361 = vunpack.c.h.b16 %v1111
    %v3362 = vunpack.c.l.b16 %v1112
    %v3363 = vunpack.c.h.b16 %v1112
    %v3364 = vunpack.c.l.b16 %v1113
    %v3365 = vunpack.c.h.b16 %v1113
    %v3366 = vunpack.c.l.b16 %v1114
    %v3367 = vunpack.c.h.b16 %v1114
    %v3368 = vunpack.c.l.b16 %v1115
    %v3369 = vunpack.c.h.b16 %v1115
    %v3370 = vunpack.c.l.b16 %v1116
    %v3371 = vunpack.c.h.b16 %v1116
    %v3372 = vunpack.c.l.b16 %v1117
    %v3373 = vunpack.c.h.b16 %v1117
    %v3374 = vunpack.c.l.b16 %v1118
    %v3375 = vunpack.c.h.b16 %v1118
    %v3376 = vunpack.c.l.b16 %v1119
    %v3377 = vunpack.c.h.b16 %v1119
    %v3378 = vunpack.c.l.b16 %v1120
    %v3379 = vunpack.c.h.b16 %v1120
    %v3380 = vunpack.c.l.b16 %v1121
    %v3381 = vunpack.c.h.b16 %v1121
    %v3382 = vunpack.c.l.b16 %v1122
    %v3383 = vunpack.c.h.b16 %v1122
    %v3384 = vunpack.c.l.b16 %v1123
    %v3385 = vunpack.c.h.b16 %v1123
    %v3386 = vunpack.c.l.b16 %v1124
    %v3387 = vunpack.c.h.b16 %v1124
    %v3388 = vunpack.c.l.b16 %v1125
    %v3389 = vunpack.c.h.b16 %v1125
    %v3390 = vunpack.c.l.b16 %v1126
    %v3391 = vunpack.c.h.b16 %v1126
    %v3392 = vunpack.c.l.b16 %v1127
    %v3393 = vunpack.c.h.b16 %v1127
    %v3394 = vunpack.c.l.b16 %v1128
    %v3395 = vunpack.c.h.b16 %v1128
    %v3396 = vunpack.c.l.b16 %v1129
    %v3397 = vunpack.c.h.b16 %v1129
    %v3398 = vunpack.c.l.b16 %v1130
    %v3399 = vunpack.c.h.b16 %v1130
    %v3400 = vunpack.c.l.b16 %v1131
    %v3401 = vunpack.c.h.b16 %v1131
    %v3402 = vunpack.c.l.b16 %v1132
    %v3403 = vunpack.c.h.b16 %v1132
    %v3404 = vunpack.c.l.b16 %v1133
    %v3405 = vunpack.c.h.b16 %v1133
    %v3406 = vunpack.c.l.b16 %v1134
    %v3407 = vunpack.c.h.b16 %v1134
    %v3408 = vunpack.c.l.b16 %v1135
    %v3409 = vunpack.c.h.b16 %v1135
    %v3410 = vunpack.c.l.b16 %v1136
    %v3411 = vunpack.c.h.b16 %v1136
    %v3412 = vunpack.c.l.b16 %v1137
    %v3413 = vunpack.c.h.b16 %v1137
    %v3414 = vunpack.c.l.b16 %v1138
    %v3415 = vunpack.c.h.b16 %v1138
    %v3416 = vunpack.c.l.b16 %v1139
    %v3417 = vunpack.c.h.b16 %v1139
    %v3418 = vunpack.c.l.b16 %v1140
    %v3419 = vunpack.c.h.b16 %v1140
    %v3420 = vunpack.c.l.b16 %v1141
    %v3421 = vunpack.c.h.b16 %v1141
    %v3422 = vunpack.c.l.b16 %v1142
    %v3423 = vunpack.c.h.b16 %v1142
    %v3424 = vunpack.c.l.b16 %v1143
    %v3425 = vunpack.c.h.b16 %v1143
    %v3426 = vunpack.c.l.b16 %v1144
    %v3427 = vunpack.c.h.b16 %v1144
    %v3428 = vunpack.c.l.b16 %v1145
    %v3429 = vunpack.c.h.b16 %v1145
    %v3430 = vunpack.c.l.b16 %v1146
    %v3431 = vunpack.c.h.b16 %v1146
    %v3432 = vunpack.c.l.b16 %v1147
    %v3433 = vunpack.c.h.b16 %v1147
    %v3434 = vunpack.c.l.b16 %v1148
    %v3435 = vunpack.c.h.b16 %v1148
    %v3436 = vunpack.c.l.b16 %v1149
    %v3437 = vunpack.c.h.b16 %v1149
    %v3438 = vunpack.c.l.b16 %v1150
    %v3439 = vunpack.c.h.b16 %v1150
    %v3440 = vunpack.c.l.b16 %v1151
    %v3441 = vunpack.c.h.b16 %v1151
    %v3442 = vunpack.c.l.b16 %v1152
    %v3443 = vunpack.c.h.b16 %v1152
    %v3444 = vunpack.c.l.b16 %v1153
    %v3445 = vunpack.c.h.b16 %v1153
    %v3446 = vunpack.c.l.b16 %v1154
    %v3447 = vunpack.c.h.b16 %v1154
    %v3448 = vunpack.c.l.b16 %v1155
    %v3449 = vunpack.c.h.b16 %v1155
    %v3450 = vunpack.c.l.b16 %v1156
    %v3451 = vunpack.c.h.b16 %v1156
    %v3452 = vunpack.c.l.b16 %v1157
    %v3453 = vunpack.c.h.b16 %v1157
    %v3454 = vunpack.c.l.b16 %v1158
    %v3455 = vunpack.c.h.b16 %v1158
    %v3456 = vunpack.c.l.b16 %v1159
    %v3457 = vunpack.c.h.b16 %v1159
    %v3458 = vunpack.c.l.b16 %v1160
    %v3459 = vunpack.c.h.b16 %v1160
    %v3460 = vunpack.c.l.b16 %v1161
    %v3461 = vunpack.c.h.b16 %v1161
    %v3462 = vunpack.c.l.b16 %v1162
    %v3463 = vunpack.c.h.b16 %v1162
    %v3464 = vunpack.c.l.b16 %v1163
    %v3465 = vunpack.c.h.b16 %v1163
    %v3466 = vunpack.c.l.b16 %v1164
    %v3467 = vunpack.c.h.b16 %v1164
    %v3468 = vunpack.c.l.b16 %v1165
    %v3469 = vunpack.c.h.b16 %v1165
    %v3470 = vunpack.c.l.b16 %v1166
    %v3471 = vunpack.c.h.b16 %v1166
    %v3472 = vunpack.c.l.b16 %v1167
    %v3473 = vunpack.c.h.b16 %v1167
    %v3474 = vunpack.c.l.b16 %v1168
    %v3475 = vunpack.c.h.b16 %v1168
    %v3476 = vunpack.c.l.b16 %v1169
    %v3477 = vunpack.c.h.b16 %v1169
    %v3478 = vunpack.c.l.b16 %v1170
    %v3479 = vunpack.c.h.b16 %v1170
    %v3480 = vunpack.c.l.b16 %v1171
    %v3481 = vunpack.c.h.b16 %v1171
    %v3482 = vunpack.c.l.b16 %v1172
    %v3483 = vunpack.c.h.b16 %v1172
    %v3484 = vunpack.c.l.b16 %v1173
    %v3485 = vunpack.c.h.b16 %v1173
    %v3486 = vunpack.c.l.b16 %v1174
    %v3487 = vunpack.c.h.b16 %v1174
    %v3488 = vunpack.c.l.b16 %v1175
    %v3489 = vunpack.c.h.b16 %v1175
    %v3490 = vunpack.c.l.b16 %v1176
    %v3491 = vunpack.c.h.b16 %v1176
    %v3492 = vunpack.c.l.b16 %v1177
    %v3493 = vunpack.c.h.b16 %v1177
    %v3494 = vunpack.c.l.b16 %v1178
    %v3495 = vunpack.c.h.b16 %v1178
    %v3496 = vunpack.c.l.b16 %v1179
    %v3497 = vunpack.c.h.b16 %v1179
    %v3498 = vunpack.c.l.b16 %v1180
    %v3499 = vunpack.c.h.b16 %v1180
    %v3500 = vunpack.c.l.b16 %v1181
    %v3501 = vunpack.c.h.b16 %v1181
    %v3502 = vunpack.c.l.b16 %v1182
    %v3503 = vunpack.c.h.b16 %v1182
    %v3504 = vunpack.c.l.b16 %v1183
    %v3505 = vunpack.c.h.b16 %v1183
    %v3506 = vunpack.c.l.b16 %v1184
    %v3507 = vunpack.c.h.b16 %v1184
    %v3508 = vunpack.c.l.b16 %v1185
    %v3509 = vunpack.c.h.b16 %v1185
    %v3510 = vunpack.c.l.b16 %v1186
    %v3511 = vunpack.c.h.b16 %v1186
    %v3512 = vunpack.c.l.b16 %v1187
    %v3513 = vunpack.c.h.b16 %v1187
    %v3514 = vunpack.c.l.b16 %v1188
    %v3515 = vunpack.c.h.b16 %v1188
    %v3516 = vunpack.c.l.b16 %v1189
    %v3517 = vunpack.c.h.b16 %v1189
    %v3518 = vunpack.c.l.b16 %v1190
    %v3519 = vunpack.c.h.b16 %v1190
    %v3520 = vunpack.c.l.b16 %v1191
    %v3521 = vunpack.c.h.b16 %v1191
    %v3522 = vunpack.c.l.b16 %v1192
    %v3523 = vunpack.c.h.b16 %v1192
    %v3524 = vunpack.c.l.b16 %v1193
    %v3525 = vunpack.c.h.b16 %v1193
    %v3526 = vunpack.c.l.b16 %v1194
    %v3527 = vunpack.c.h.b16 %v1194
    %v3528 = vunpack.c.l.b16 %v1195
    %v3529 = vunpack.c.h.b16 %v1195
    %v3530 = vunpack.c.l.b16 %v1196
    %v3531 = vunpack.c.h.b16 %v1196
    %v3532 = vunpack.c.l.b16 %v1197
    %v3533 = vunpack.c.h.b16 %v1197
    %v3534 = vunpack.c.l.b16 %v1198
    %v3535 = vunpack.c.h.b16 %v1198
    %v3536 = vunpack.c.l.b16 %v1199
    %v3537 = vunpack.c.h.b16 %v1199
    %v3538 = vunpack.c.l.b16 %v1200
    %v3539 = vunpack.c.h.b16 %v1200
    %v3540 = vunpack.c.l.b16 %v1201
    %v3541 = vunpack.c.h.b16 %v1201
    %v3542 = vunpack.c.l.b16 %v1202
    %v3543 = vunpack.c.h.b16 %v1202
    %v3544 = vunpack.c.l.b16 %v1203
    %v3545 = vunpack.c.h.b16 %v1203
    %v3546 = vunpack.c.l.b16 %v1204
    %v3547 = vunpack.c.h.b16 %v1204
    %v3548 = vunpack.c.l.b16 %v1205
    %v3549 = vunpack.c.h.b16 %v1205
    %v3550 = vunpack.c.l.b16 %v1206
    %v3551 = vunpack.c.h.b16 %v1206
    %v3552 = vunpack.c.l.b16 %v1207
    %v3553 = vunpack.c.h.b16 %v1207
    %v3554 = vunpack.c.l.b16 %v1208
    %v3555 = vunpack.c.h.b16 %v1208
    %v3556 = vunpack.c.l.b16 %v1209
    %v3557 = vunpack.c.h.b16 %v1209
    %v3558 = vunpack.c.l.b16 %v1210
    %v3559 = vunpack.c.h.b16 %v1210
    %v3560 = vunpack.c.l.b16 %v1211
    %v3561 = vunpack.c.h.b16 %v1211
    %v3562 = vunpack.c.l.b16 %v1212
    %v3563 = vunpack.c.h.b16 %v1212
    %v3564 = vunpack.c.l.b16 %v1213
    %v3565 = vunpack.c.h.b16 %v1213
    %v3566 = vunpack.c.l.b16 %v1214
    %v3567 = vunpack.c.h.b16 %v1214
    %v3568 = vunpack.c.l.b16 %v1215
    %v3569 = vunpack.c.h.b16 %v1215
    %v3570 = vunpack.c.l.b16 %v1216
    %v3571 = vunpack.c.h.b16 %v1216
    %v3572 = vunpack.c.l.b16 %v1217
    %v3573 = vunpack.c.h.b16 %v1217
    %v3574 = vunpack.c.l.b16 %v1218
    %v3575 = vunpack.c.h.b16 %v1218
    %v3576 = vunpack.c.l.b16 %v1219
    %v3577 = vunpack.c.h.b16 %v1219
    %v3578 = vunpack.c.l.b16 %v1220
    %v3579 = vunpack.c.h.b16 %v1220
    %v3580 = vunpack.c.l.b16 %v1221
    %v3581 = vunpack.c.h.b16 %v1221
    %v3582 = vunpack.c.l.b16 %v1222
    %v3583 = vunpack.c.h.b16 %v1222
    %v3584 = vunpack.c.l.b16 %v1223
    %v3585 = vunpack.c.h.b16 %v1223
    %v3586 = vunpack.c.l.b16 %v1224
    %v3587 = vunpack.c.h.b16 %v1224
    %v3588 = vunpack.c.l.b16 %v1225
    %v3589 = vunpack.c.h.b16 %v1225
    %v3590 = vunpack.c.l.b16 %v1226
    %v3591 = vunpack.c.h.b16 %v1226
    %v3592 = vunpack.c.l.b16 %v1227
    %v3593 = vunpack.c.h.b16 %v1227
    %v3594 = vunpack.c.l.b16 %v1228
    %v3595 = vunpack.c.h.b16 %v1228
    %v3596 = vunpack.c.l.b16 %v1229
    %v3597 = vunpack.c.h.b16 %v1229
    %v3598 = vunpack.c.l.b16 %v1230
    %v3599 = vunpack.c.h.b16 %v1230
    %v3600 = vunpack.c.l.b16 %v1231
    %v3601 = vunpack.c.h.b16 %v1231
    %v3602 = vunpack.c.l.b16 %v1232
    %v3603 = vunpack.c.h.b16 %v1232
    %v3604 = vunpack.c.l.b16 %v1233
    %v3605 = vunpack.c.h.b16 %v1233
    %v3606 = vunpack.c.l.b16 %v1234
    %v3607 = vunpack.c.h.b16 %v1234
    %v3608 = vunpack.c.l.b16 %v1235
    %v3609 = vunpack.c.h.b16 %v1235
    %v3610 = vunpack.c.l.b16 %v1236
    %v3611 = vunpack.c.h.b16 %v1236
    %v3612 = vunpack.c.l.b16 %v1237
    %v3613 = vunpack.c.h.b16 %v1237
    %v3614 = vunpack.c.l.b16 %v1238
    %v3615 = vunpack.c.h.b16 %v1238
    %v3616 = vunpack.c.l.b16 %v1239
    %v3617 = vunpack.c.h.b16 %v1239
    %v3618 = vunpack.c.l.b16 %v1240
    %v3619 = vunpack.c.h.b16 %v1240
    %v3620 = vunpack.c.l.b16 %v1241
    %v3621 = vunpack.c.h.b16 %v1241
    %v3622 = vunpack.c.l.b16 %v1242
    %v3623 = vunpack.c.h.b16 %v1242
    %v3624 = vunpack.c.l.b16 %v1243
    %v3625 = vunpack.c.h.b16 %v1243
    %v3626 = vunpack.c.l.b16 %v1244
    %v3627 = vunpack.c.h.b16 %v1244
    %v3628 = vunpack.c.l.b16 %v1245
    %v3629 = vunpack.c.h.b16 %v1245
    %v3630 = vunpack.c.l.b16 %v1246
    %v3631 = vunpack.c.h.b16 %v1246
    %v3632 = vunpack.c.l.b16 %v1247
    %v3633 = vunpack.c.h.b16 %v1247
    %v3634 = vunpack.c.l.b16 %v1248
    %v3635 = vunpack.c.h.b16 %v1248
    %v3636 = vunpack.c.l.b16 %v1249
    %v3637 = vunpack.c.h.b16 %v1249
    %v3638 = vunpack.c.l.b16 %v1250
    %v3639 = vunpack.c.h.b16 %v1250
    %v3640 = vunpack.c.l.b16 %v1251
    %v3641 = vunpack.c.h.b16 %v1251
    %v3642 = vunpack.c.l.b16 %v1252
    %v3643 = vunpack.c.h.b16 %v1252
    %v3644 = vunpack.c.l.b16 %v1253
    %v3645 = vunpack.c.h.b16 %v1253
    %v3646 = vunpack.c.l.b16 %v1254
    %v3647 = vunpack.c.h.b16 %v1254
    %v3648 = vunpack.c.l.b16 %v1255
    %v3649 = vunpack.c.h.b16 %v1255
    %v3650 = vunpack.c.l.b16 %v1256
    %v3651 = vunpack.c.h.b16 %v1256
    %v3652 = vunpack.c.l.b16 %v1257
    %v3653 = vunpack.c.h.b16 %v1257
    %v3654 = vunpack.c.l.b16 %v1258
    %v3655 = vunpack.c.h.b16 %v1258
    %v3656 = vunpack.c.l.b16 %v1259
    %v3657 = vunpack.c.h.b16 %v1259
    %v3658 = vunpack.c.l.b16 %v1260
    %v3659 = vunpack.c.h.b16 %v1260
    %v3660 = vunpack.c.l.b16 %v1261
    %v3661 = vunpack.c.h.b16 %v1261
    %v3662 = vunpack.c.l.b16 %v1262
    %v3663 = vunpack.c.h.b16 %v1262
    %v3664 = vunpack.c.l.b16 %v1263
    %v3665 = vunpack.c.h.b16 %v1263
    %v3666 = vunpack.c.l.b16 %v1264
    %v3667 = vunpack.c.h.b16 %v1264
    %v3668 = vunpack.c.l.b16 %v1265
    %v3669 = vunpack.c.h.b16 %v1265
    %v3670 = vunpack.c.l.b16 %v1266
    %v3671 = vunpack.c.h.b16 %v1266
    %v3672 = vunpack.c.l.b16 %v1267
    %v3673 = vunpack.c.h.b16 %v1267
    %v3674 = vunpack.c.l.b16 %v1268
    %v3675 = vunpack.c.h.b16 %v1268
    %v3676 = vunpack.c.l.b16 %v1269
    %v3677 = vunpack.c.h.b16 %v1269
    %v3678 = vunpack.c.l.b16 %v1270
    %v3679 = vunpack.c.h.b16 %v1270
    %v3680 = vunpack.c.l.b16 %v1271
    %v3681 = vunpack.c.h.b16 %v1271
    %v3682 = vunpack.c.l.b16 %v1272
    %v3683 = vunpack.c.h.b16 %v1272
    %v3684 = vunpack.c.l.b16 %v1273
    %v3685 = vunpack.c.h.b16 %v1273
    %v3686 = vunpack.c.l.b16 %v1274
    %v3687 = vunpack.c.h.b16 %v1274
    %v3688 = vunpack.c.l.b16 %v1275
    %v3689 = vunpack.c.h.b16 %v1275
    %v3690 = vunpack.c.l.b16 %v1276
    %v3691 = vunpack.c.h.b16 %v1276
    %v3692 = vunpack.c.l.b16 %v1277
    %v3693 = vunpack.c.h.b16 %v1277
    %v3694 = vunpack.c.l.b16 %v1278
    %v3695 = vunpack.c.h.b16 %v1278
    %v3696 = vunpack.c.l.b16 %v1279
    %v3697 = vunpack.c.h.b16 %v1279
    %v3698 = vunpack.c.l.b16 %v1280
    %v3699 = vunpack.c.h.b16 %v1280
    %v3700 = vunpack.c.l.b16 %v1281
    %v3701 = vunpack.c.h.b16 %v1281
    %v3702 = vunpack.c.l.b16 %v1282
    %v3703 = vunpack.c.h.b16 %v1282
    %v3704 = vunpack.c.l.b16 %v1283
    %v3705 = vunpack.c.h.b16 %v1283
    %v3706 = vunpack.c.l.b16 %v1284
    %v3707 = vunpack.c.h.b16 %v1284
    %v3708 = vunpack.c.l.b16 %v1285
    %v3709 = vunpack.c.h.b16 %v1285
    %v3710 = vunpack.c.l.b16 %v1286
    %v3711 = vunpack.c.h.b16 %v1286
    %v3712 = vunpack.c.l.b16 %v1287
    %v3713 = vunpack.c.h.b16 %v1287
    %v3714 = vunpack.c.l.b16 %v1288
    %v3715 = vunpack.c.h.b16 %v1288
    %v3716 = vunpack.c.l.b16 %v1289
    %v3717 = vunpack.c.h.b16 %v1289
    %v3718 = vunpack.c.l.b16 %v1290
    %v3719 = vunpack.c.h.b16 %v1290
    %v3720 = vunpack.c.l.b16 %v1291
    %v3721 = vunpack.c.h.b16 %v1291
    %v3722 = vunpack.c.l.b16 %v1292
    %v3723 = vunpack.c.h.b16 %v1292
    %v3724 = vunpack.c.l.b16 %v1293
    %v3725 = vunpack.c.h.b16 %v1293
    %v3726 = vunpack.c.l.b16 %v1294
    %v3727 = vunpack.c.h.b16 %v1294
    %v3728 = vunpack.c.l.b16 %v1295
    %v3729 = vunpack.c.h.b16 %v1295
    %v3730 = vunpack.c.l.b16 %v1296
    %v3731 = vunpack.c.h.b16 %v1296
    %v3732 = vunpack.c.l.b16 %v1297
    %v3733 = vunpack.c.h.b16 %v1297
    %v3734 = vunpack.c.l.b16 %v1298
    %v3735 = vunpack.c.h.b16 %v1298
    %v3736 = vunpack.c.l.b16 %v1299
    %v3737 = vunpack.c.h.b16 %v1299
    %v3738 = vunpack.c.l.b16 %v1300
    %v3739 = vunpack.c.h.b16 %v1300
    %v3740 = vunpack.c.l.b16 %v1301
    %v3741 = vunpack.c.h.b16 %v1301
    %v3742 = vunpack.c.l.b16 %v1302
    %v3743 = vunpack.c.h.b16 %v1302
    %v3744 = vunpack.c.l.b16 %v1303
    %v3745 = vunpack.c.h.b16 %v1303
    %v3746 = vunpack.c.l.b16 %v1304
    %v3747 = vunpack.c.h.b16 %v1304
    %v3748 = vunpack.c.l.b16 %v1305
    %v3749 = vunpack.c.h.b16 %v1305
    %v3750 = vunpack.c.l.b16 %v1306
    %v3751 = vunpack.c.h.b16 %v1306
    %v3752 = vunpack.c.l.b16 %v1307
    %v3753 = vunpack.c.h.b16 %v1307
    %v3754 = vunpack.c.l.b16 %v1308
    %v3755 = vunpack.c.h.b16 %v1308
    %v3756 = vunpack.c.l.b16 %v1309
    %v3757 = vunpack.c.h.b16 %v1309
    %v3758 = vunpack.c.l.b16 %v1310
    %v3759 = vunpack.c.h.b16 %v1310
    %v3760 = vunpack.c.l.b16 %v1311
    %v3761 = vunpack.c.h.b16 %v1311
    %v3762 = vunpack.c.l.b16 %v1312
    %v3763 = vunpack.c.h.b16 %v1312
    %v3764 = vunpack.c.l.b16 %v1313
    %v3765 = vunpack.c.h.b16 %v1313
    %v3766 = vunpack.c.l.b16 %v1314
    %v3767 = vunpack.c.h.b16 %v1314
    %v3768 = vunpack.c.l.b16 %v1315
    %v3769 = vunpack.c.h.b16 %v1315
    %v3770 = vunpack.c.l.b16 %v1316
    %v3771 = vunpack.c.h.b16 %v1316
    %v3772 = vunpack.c.l.b16 %v1317
    %v3773 = vunpack.c.h.b16 %v1317
    %v3774 = vunpack.c.l.b16 %v1318
    %v3775 = vunpack.c.h.b16 %v1318
    %v3776 = vunpack.c.l.b16 %v1319
    %v3777 = vunpack.c.h.b16 %v1319
    %v3778 = vunpack.c.l.b16 %v1320
    %v3779 = vunpack.c.h.b16 %v1320
    %v3780 = vunpack.c.l.b16 %v1321
    %v3781 = vunpack.c.h.b16 %v1321
    %v3782 = vunpack.c.l.b16 %v1322
    %v3783 = vunpack.c.h.b16 %v1322
    %v3784 = vunpack.c.l.b16 %v1323
    %v3785 = vunpack.c.h.b16 %v1323
    %v3786 = vunpack.c.l.b16 %v1324
    %v3787 = vunpack.c.h.b16 %v1324
    %v3788 = vunpack.c.l.b16 %v1325
    %v3789 = vunpack.c.h.b16 %v1325
    %v3790 = vunpack.c.l.b16 %v1326
    %v3791 = vunpack.c.h.b16 %v1326
    %v3792 = vunpack.c.l.b16 %v1327
    %v3793 = vunpack.c.h.b16 %v1327
    %v3794 = vunpack.c.l.b16 %v1328
    %v3795 = vunpack.c.h.b16 %v1328
    %v3796 = vunpack.c.l.b16 %v1329
    %v3797 = vunpack.c.h.b16 %v1329
    %v3798 = vunpack.c.l.b16 %v1330
    %v3799 = vunpack.c.h.b16 %v1330
    %v3800 = vunpack.c.l.b16 %v1331
    %v3801 = vunpack.c.h.b16 %v1331
    %v3802 = vunpack.c.l.b16 %v1332
    %v3803 = vunpack.c.h.b16 %v1332
    %v3804 = vunpack.c.l.b16 %v1333
    %v3805 = vunpack.c.h.b16 %v1333
    %v3806 = vunpack.c.l.b16 %v1334
    %v3807 = vunpack.c.h.b16 %v1334
    %v3808 = vunpack.c.l.b16 %v1335
    %v3809 = vunpack.c.h.b16 %v1335
    %v3810 = vunpack.c.l.b16 %v1336
    %v3811 = vunpack.c.h.b16 %v1336
    %v3812 = vunpack.c.l.b16 %v1337
    %v3813 = vunpack.c.h.b16 %v1337
    %v3814 = vunpack.c.l.b16 %v1338
    %v3815 = vunpack.c.h.b16 %v1338
    %v3816 = vunpack.c.l.b16 %v1339
    %v3817 = vunpack.c.h.b16 %v1339
    %v3818 = vunpack.c.l.b16 %v1340
    %v3819 = vunpack.c.h.b16 %v1340
    %v3820 = vunpack.c.l.b16 %v1341
    %v3821 = vunpack.c.h.b16 %v1341
    %v3822 = vunpack.c.l.b16 %v1342
    %v3823 = vunpack.c.h.b16 %v1342
    %v3824 = vunpack.c.l.b16 %v1343
    %v3825 = vunpack.c.h.b16 %v1343
    %v3826 = vunpack.c.l.b16 %v1344
    %v3827 = vunpack.c.h.b16 %v1344
    %v3828 = vunpack.c.l.b16 %v1345
    %v3829 = vunpack.c.h.b16 %v1345
    %v3830 = vunpack.c.l.b16 %v1346
    %v3831 = vunpack.c.h.b16 %v1346
    %v3832 = vunpack.c.l.b16 %v1347
    %v3833 = vunpack.c.h.b16 %v1347
    %v3834 = vunpack.c.l.b16 %v1348
    %v3835 = vunpack.c.h.b16 %v1348
    %v3836 = vunpack.c.l.b16 %v1349
    %v3837 = vunpack.c.h.b16 %v1349
    %v3838 = vunpack.c.l.b16 %v1350
    %v3839 = vunpack.c.h.b16 %v1350
    %v3840 = vunpack.c.l.b16 %v1351
    %v3841 = vunpack.c.h.b16 %v1351
    %v3842 = vunpack.c.l.b16 %v1352
    %v3843 = vunpack.c.h.b16 %v1352
    %v3844 = vunpack.c.l.b16 %v1353
    %v3845 = vunpack.c.h.b16 %v1353
    %v3846 = vunpack.c.l.b16 %v1354
    %v3847 = vunpack.c.h.b16 %v1354
    %v3848 = vunpack.c.l.b16 %v1355
    %v3849 = vunpack.c.h.b16 %v1355
    %v3850 = vunpack.c.l.b16 %v1356
    %v3851 = vunpack.c.h.b16 %v1356
    %v3852 = vunpack.c.l.b16 %v1357
    %v3853 = vunpack.c.h.b16 %v1357
    %v3854 = vunpack.c.l.b16 %v1358
    %v3855 = vunpack.c.h.b16 %v1358
    %v3856 = vunpack.c.l.b16 %v1359
    %v3857 = vunpack.c.h.b16 %v1359
    %v3858 = vunpack.c.l.b16 %v1360
    %v3859 = vunpack.c.h.b16 %v1360
    %v3860 = vunpack.c.l.b16 %v1361
    %v3861 = vunpack.c.h.b16 %v1361
    %v3862 = vunpack.c.l.b16 %v1362
    %v3863 = vunpack.c.h.b16 %v1362
    %v3864 = vunpack.c.l.b16 %v1363
    %v3865 = vunpack.c.h.b16 %v1363
    %v3866 = vunpack.c.l.b16 %v1364
    %v3867 = vunpack.c.h.b16 %v1364
    %v3868 = vunpack.c.l.b16 %v1365
    %v3869 = vunpack.c.h.b16 %v1365
    %v3870 = vunpack.c.l.b16 %v1366
    %v3871 = vunpack.c.h.b16 %v1366
    %v3872 = vunpack.c.l.b16 %v1367
    %v3873 = vunpack.c.h.b16 %v1367
    %v3874 = vunpack.c.l.b16 %v1368
    %v3875 = vunpack.c.h.b16 %v1368
    %v3876 = vunpack.c.l.b16 %v1369
    %v3877 = vunpack.c.h.b16 %v1369
    %v3878 = vunpack.c.l.b16 %v1370
    %v3879 = vunpack.c.h.b16 %v1370
    %v3880 = vunpack.c.l.b16 %v1371
    %v3881 = vunpack.c.h.b16 %v1371
    %v3882 = vunpack.c.l.b16 %v1372
    %v3883 = vunpack.c.h.b16 %v1372
    %v3884 = vunpack.c.l.b16 %v1373
    %v3885 = vunpack.c.h.b16 %v1373
    %v3886 = vunpack.c.l.b16 %v1374
    %v3887 = vunpack.c.h.b16 %v1374
    %v3888 = vunpack.c.l.b16 %v1375
    %v3889 = vunpack.c.h.b16 %v1375
    %v3890 = vunpack.c.l.b16 %v1376
    %v3891 = vunpack.c.h.b16 %v1376
    %v3892 = vunpack.c.l.b16 %v1377
    %v3893 = vunpack.c.h.b16 %v1377
    %v3894 = vunpack.c.l.b16 %v1378
    %v3895 = vunpack.c.h.b16 %v1378
    %v3896 = vunpack.c.l.b16 %v1379
    %v3897 = vunpack.c.h.b16 %v1379
    %v3898 = vunpack.c.l.b16 %v1380
    %v3899 = vunpack.c.h.b16 %v1380
    %v3900 = vunpack.c.l.b16 %v1381
    %v3901 = vunpack.c.h.b16 %v1381
    %v3902 = vunpack.c.l.b16 %v1382
    %v3903 = vunpack.c.h.b16 %v1382
    %v3904 = vunpack.c.l.b16 %v1383
    %v3905 = vunpack.c.h.b16 %v1383
    %v3906 = vunpack.c.l.b16 %v1384
    %v3907 = vunpack.c.h.b16 %v1384
    %v3908 = vunpack.c.l.b16 %v1385
    %v3909 = vunpack.c.h.b16 %v1385
    %v3910 = vunpack.c.l.b16 %v1386
    %v3911 = vunpack.c.h.b16 %v1386
    %v3912 = vunpack.c.l.b16 %v1387
    %v3913 = vunpack.c.h.b16 %v1387
    %v3914 = vunpack.c.l.b16 %v1388
    %v3915 = vunpack.c.h.b16 %v1388
    %v3916 = vunpack.c.l.b16 %v1389
    %v3917 = vunpack.c.h.b16 %v1389
    %v3918 = vunpack.c.l.b16 %v1390
    %v3919 = vunpack.c.h.b16 %v1390
    %v3920 = vunpack.c.l.b16 %v1391
    %v3921 = vunpack.c.h.b16 %v1391
    %v3922 = vunpack.c.l.b16 %v1392
    %v3923 = vunpack.c.h.b16 %v1392
    %v3924 = vunpack.c.l.b16 %v1393
    %v3925 = vunpack.c.h.b16 %v1393
    %v3926 = vunpack.c.l.b16 %v1394
    %v3927 = vunpack.c.h.b16 %v1394
    %v3928 = vunpack.c.l.b16 %v1395
    %v3929 = vunpack.c.h.b16 %v1395
    %v3930 = vunpack.c.l.b16 %v1396
    %v3931 = vunpack.c.h.b16 %v1396
    %v3932 = vunpack.c.l.b16 %v1397
    %v3933 = vunpack.c.h.b16 %v1397
    %v3934 = vunpack.c.l.b16 %v1398
    %v3935 = vunpack.c.h.b16 %v1398
    %v3936 = vunpack.c.l.b16 %v1399
    %v3937 = vunpack.c.h.b16 %v1399
    %v3938 = vunpack.c.l.b16 %v1400
    %v3939 = vunpack.c.h.b16 %v1400
    %v3940 = vunpack.c.l.b16 %v1401
    %v3941 = vunpack.c.h.b16 %v1401
    %v3942 = vunpack.c.l.b16 %v1402
    %v3943 = vunpack.c.h.b16 %v1402
    %v3944 = vunpack.c.l.b16 %v1403
    %v3945 = vunpack.c.h.b16 %v1403
    %v3946 = vunpack.c.l.b16 %v1404
    %v3947 = vunpack.c.h.b16 %v1404
    %v3948 = vunpack.c.l.b16 %v1405
    %v3949 = vunpack.c.h.b16 %v1405
    %v3950 = vunpack.c.l.b16 %v1406
    %v3951 = vunpack.c.h.b16 %v1406
    %v3952 = vunpack.c.l.b16 %v1407
    %v3953 = vunpack.c.h.b16 %v1407
    %v3954 = vunpack.c.l.b16 %v1408
    %v3955 = vunpack.c.h.b16 %v1408
    %v3956 = vunpack.c.l.b16 %v1409
    %v3957 = vunpack.c.h.b16 %v1409
    %v3958 = vunpack.c.l.b16 %v1410
    %v3959 = vunpack.c.h.b16 %v1410
    %v3960 = vunpack.c.l.b16 %v1411
    %v3961 = vunpack.c.h.b16 %v1411
    %v3962 = vunpack.c.l.b16 %v1412
    %v3963 = vunpack.c.h.b16 %v1412
    %v3964 = vunpack.c.l.b16 %v1413
    %v3965 = vunpack.c.h.b16 %v1413
    %v3966 = vunpack.c.l.b16 %v1414
    %v3967 = vunpack.c.h.b16 %v1414
    %v3968 = vunpack.c.l.b16 %v1415
    %v3969 = vunpack.c.h.b16 %v1415
    %v3970 = vunpack.c.l.b16 %v1416
    %v3971 = vunpack.c.h.b16 %v1416
    %v3972 = vunpack.c.l.b16 %v1417
    %v3973 = vunpack.c.h.b16 %v1417
    %v3974 = vunpack.c.l.b16 %v1418
    %v3975 = vunpack.c.h.b16 %v1418
    %v3976 = vunpack.c.l.b16 %v1419
    %v3977 = vunpack.c.h.b16 %v1419
    %v3978 = vunpack.c.l.b16 %v1420
    %v3979 = vunpack.c.h.b16 %v1420
    %v3980 = vunpack.c.l.b16 %v1421
    %v3981 = vunpack.c.h.b16 %v1421
    %v3982 = vunpack.c.l.b16 %v1422
    %v3983 = vunpack.c.h.b16 %v1422
    %v3984 = vunpack.c.l.b16 %v1423
    %v3985 = vunpack.c.h.b16 %v1423
    %v3986 = vunpack.c.l.b16 %v1424
    %v3987 = vunpack.c.h.b16 %v1424
    %v3988 = vunpack.c.l.b16 %v1425
    %v3989 = vunpack.c.h.b16 %v1425
    %v3990 = vunpack.c.l.b16 %v1426
    %v3991 = vunpack.c.h.b16 %v1426
    %v3992 = vunpack.c.l.b16 %v1427
    %v3993 = vunpack.c.h.b16 %v1427
    %v3994 = vunpack.c.l.b16 %v1428
    %v3995 = vunpack.c.h.b16 %v1428
    %v3996 = vunpack.c.l.b16 %v1429
    %v3997 = vunpack.c.h.b16 %v1429
    %v3998 = vunpack.c.l.b16 %v1430
    %v3999 = vunpack.c.h.b16 %v1430
    %v4000 = vunpack.c.l.b16 %v1431
    %v4001 = vunpack.c.h.b16 %v1431
    %v4002 = vunpack.c.l.b16 %v1432
    %v4003 = vunpack.c.h.b16 %v1432
    %v4004 = vunpack.c.l.b16 %v1433
    %v4005 = vunpack.c.h.b16 %v1433
    %v4006 = vunpack.c.l.b16 %v1434
    %v4007 = vunpack.c.h.b16 %v1434
    %v4008 = vunpack.c.l.b16 %v1435
    %v4009 = vunpack.c.h.b16 %v1435
    %v4010 = vunpack.c.l.b16 %v1436
    %v4011 = vunpack.c.h.b16 %v1436
    %v4012 = vunpack.c.l.b16 %v1437
    %v4013 = vunpack.c.h.b16 %v1437
    %v4014 = vunpack.c.l.b16 %v1438
    %v4015 = vunpack.c.h.b16 %v1438
    %v4016 = vunpack.c.l.b16 %v1439
    %v4017 = vunpack.c.h.b16 %v1439
    %v4018 = vunpack.c.l.b16 %v1440
    %v4019 = vunpack.c.h.b16 %v1440
    %v4020 = vunpack.c.l.b16 %v1441
    %v4021 = vunpack.c.h.b16 %v1441
    %v4022 = vunpack.c.l.b16 %v1442
    %v4023 = vunpack.c.h.b16 %v1442
    %v4024 = vunpack.c.l.b16 %v1443
    %v4025 = vunpack.c.h.b16 %v1443
    %v4026 = vunpack.c.l.b16 %v1444
    %v4027 = vunpack.c.h.b16 %v1444
    %v4028 = vunpack.c.l.b16 %v1445
    %v4029 = vunpack.c.h.b16 %v1445
    %v4030 = vunpack.c.l.b16 %v1446
    %v4031 = vunpack.c.h.b16 %v1446
    %v4032 = vunpack.c.l.b16 %v1447
    %v4033 = vunpack.c.h.b16 %v1447
    %v4034 = vunpack.c.l.b16 %v1448
    %v4035 = vunpack.c.h.b16 %v1448
    %v4036 = vunpack.c.l.b16 %v1449
    %v4037 = vunpack.c.h.b16 %v1449
    %v4038 = vunpack.c.l.b16 %v1450
    %v4039 = vunpack.c.h.b16 %v1450
    %v4040 = vunpack.c.l.b16 %v1451
    %v4041 = vunpack.c.h.b16 %v1451
    %v4042 = vunpack.c.l.b16 %v1452
    %v4043 = vunpack.c.h.b16 %v1452
    %v4044 = vunpack.c.l.b16 %v1453
    %v4045 = vunpack.c.h.b16 %v1453
    %v4046 = vunpack.c.l.b16 %v1454
    %v4047 = vunpack.c.h.b16 %v1454
    %v4048 = vunpack.c.l.b16 %v1455
    %v4049 = vunpack.c.h.b16 %v1455
    %v4050 = vunpack.c.l.b16 %v1456
    %v4051 = vunpack.c.h.b16 %v1456
    %v4052 = vunpack.c.l.b16 %v1457
    %v4053 = vunpack.c.h.b16 %v1457
    %v4054 = vunpack.c.l.b16 %v1458
    %v4055 = vunpack.c.h.b16 %v1458
    %v4056 = vunpack.c.l.b16 %v1459
    %v4057 = vunpack.c.h.b16 %v1459
    %v4058 = vunpack.c.l.b16 %v1460
    %v4059 = vunpack.c.h.b16 %v1460
    %v4060 = vunpack.c.l.b16 %v1461
    %v4061 = vunpack.c.h.b16 %v1461
    %v4062 = vunpack.c.l.b16 %v1462
    %v4063 = vunpack.c.h.b16 %v1462
    %v4064 = vunpack.c.l.b16 %v1463
    %v4065 = vunpack.c.h.b16 %v1463
    %v4066 = vunpack.c.l.b16 %v1464
    %v4067 = vunpack.c.h.b16 %v1464
    %v4068 = vunpack.c.l.b16 %v1465
    %v4069 = vunpack.c.h.b16 %v1465
    %v4070 = vunpack.c.l.b16 %v1466
    %v4071 = vunpack.c.h.b16 %v1466
    %v4072 = vunpack.c.l.b16 %v1467
    %v4073 = vunpack.c.h.b16 %v1467
    %v4074 = vunpack.c.l.b16 %v1468
    %v4075 = vunpack.c.h.b16 %v1468
    %v4076 = vunpack.c.l.b16 %v1469
    %v4077 = vunpack.c.h.b16 %v1469
    %v4078 = vunpack.c.l.b16 %v1470
    %v4079 = vunpack.c.h.b16 %v1470
    %v4080 = vunpack.c.l.b16 %v1471
    %v4081 = vunpack.c.h.b16 %v1471
    %v4082 = vunpack.c.l.b16 %v1472
    %v4083 = vunpack.c.h.b16 %v1472
    %v4084 = vunpack.c.l.b16 %v1473
    %v4085 = vunpack.c.h.b16 %v1473
    %v4086 = vunpack.c.l.b16 %v1474
    %v4087 = vunpack.c.h.b16 %v1474
    %v4088 = vunpack.c.l.b16 %v1475
    %v4089 = vunpack.c.h.b16 %v1475
    %v4090 = vunpack.c.l.b16 %v1476
    %v4091 = vunpack.c.h.b16 %v1476
    %v4092 = vunpack.c.l.b16 %v1477
    %v4093 = vunpack.c.h.b16 %v1477
    %v4094 = vunpack.c.l.b16 %v1478
    %v4095 = vunpack.c.h.b16 %v1478
    %v4096 = vunpack.c.l.b16 %v1479
    %v4097 = vunpack.c.h.b16 %v1479
    %v4098 = vunpack.c.l.b16 %v1480
    %v4099 = vunpack.c.h.b16 %v1480
    %v4100 = vunpack.c.l.b16 %v1481
    %v4101 = vunpack.c.h.b16 %v1481
    %v4102 = vunpack.c.l.b16 %v1482
    %v4103 = vunpack.c.h.b16 %v1482
    %v4104 = vunpack.c.l.b16 %v1483
    %v4105 = vunpack.c.h.b16 %v1483
    %v4106 = vunpack.c.l.b16 %v1484
    %v4107 = vunpack.c.h.b16 %v1484
    %v4108 = vunpack.c.l.b16 %v1485
    %v4109 = vunpack.c.h.b16 %v1485
    %v4110 = vunpack.c.l.b16 %v1486
    %v4111 = vunpack.c.h.b16 %v1486
    %v4112 = vunpack.c.l.b16 %v1487
    %v4113 = vunpack.c.h.b16 %v1487
    %v4114 = vunpack.c.l.b16 %v1488
    %v4115 = vunpack.c.h.b16 %v1488
    %v4116 = vunpack.c.l.b16 %v1489
    %v4117 = vunpack.c.h.b16 %v1489
    %v4118 = vunpack.c.l.b16 %v1490
    %v4119 = vunpack.c.h.b16 %v1490
    %v4120 = vunpack.c.l.b16 %v1491
    %v4121 = vunpack.c.h.b16 %v1491
    %v4122 = vunpack.c.l.b16 %v1492
    %v4123 = vunpack.c.h.b16 %v1492
    %v4124 = vunpack.c.l.b16 %v1493
    %v4125 = vunpack.c.h.b16 %v1493
    %v4126 = vunpack.c.l.b16 %v1494
    %v4127 = vunpack.c.h.b16 %v1494
    %v4128 = vunpack.c.l.b16 %v1495
    %v4129 = vunpack.c.h.b16 %v1495
    %v4130 = vunpack.c.l.b16 %v1496
    %v4131 = vunpack.c.h.b16 %v1496
    %v4132 = vunpack.c.l.b16 %v1497
    %v4133 = vunpack.c.h.b16 %v1497
    %v4134 = vunpack.c.l.b16 %v1498
    %v4135 = vunpack.c.h.b16 %v1498
    %v4136 = vunpack.c.l.b16 %v1499
    %v4137 = vunpack.c.h.b16 %v1499
    %v4138 = vunpack.c.l.b16 %v1500
    %v4139 = vunpack.c.h.b16 %v1500
    %v4140 = vunpack.c.l.b16 %v1501
    %v4141 = vunpack.c.h.b16 %v1501
    %v4142 = vunpack.c.l.b16 %v1502
    %v4143 = vunpack.c.h.b16 %v1502
    %v4144 = vunpack.c.l.b16 %v1503
    %v4145 = vunpack.c.h.b16 %v1503
    %v4146 = vunpack.c.l.b16 %v1504
    %v4147 = vunpack.c.h.b16 %v1504
    %v4148 = vunpack.c.l.b16 %v1505
    %v4149 = vunpack.c.h.b16 %v1505
    %v4150 = vunpack.c.l.b16 %v1506
    %v4151 = vunpack.c.h.b16 %v1506
    %v4152 = vunpack.c.l.b16 %v1507
    %v4153 = vunpack.c.h.b16 %v1507
    %v4154 = vunpack.c.l.b16 %v1508
    %v4155 = vunpack.c.h.b16 %v1508
    %v4156 = vunpack.c.l.b16 %v1509
    %v4157 = vunpack.c.h.b16 %v1509
    %v4158 = vunpack.c.l.b16 %v1510
    %v4159 = vunpack.c.h.b16 %v1510
    %v4160 = vunpack.c.l.b16 %v1511
    %v4161 = vunpack.c.h.b16 %v1511
    %v4162 = vunpack.c.l.b16 %v1512
    %v4163 = vunpack.c.h.b16 %v1512
    %v4164 = vunpack.c.l.b16 %v1513
    %v4165 = vunpack.c.h.b16 %v1513
    %v4166 = vunpack.c.l.b16 %v1514
    %v4167 = vunpack.c.h.b16 %v1514
    %v4168 = vunpack.c.l.b16 %v1515
    %v4169 = vunpack.c.h.b16 %v1515
    %v4170 = vunpack.c.l.b16 %v1516
    %v4171 = vunpack.c.h.b16 %v1516
    %v4172 = vunpack.c.l.b16 %v1517
    %v4173 = vunpack.c.h.b16 %v1517
    %v4174 = vunpack.c.l.b16 %v1518
    %v4175 = vunpack.c.h.b16 %v1518
    %v4176 = vunpack.c.l.b16 %v1519
    %v4177 = vunpack.c.h.b16 %v1519
    %v4178 = vunpack.c.l.b16 %v1520
    %v4179 = vunpack.c.h.b16 %v1520
    %v4180 = vunpack.c.l.b16 %v1521
    %v4181 = vunpack.c.h.b16 %v1521
    %v4182 = vunpack.c.l.b16 %v1522
    %v4183 = vunpack.c.h.b16 %v1522
    %v4184 = vunpack.c.l.b16 %v1523
    %v4185 = vunpack.c.h.b16 %v1523
    %v4186 = vunpack.c.l.b16 %v1524
    %v4187 = vunpack.c.h.b16 %v1524
    %v4188 = vunpack.c.l.b16 %v1525
    %v4189 = vunpack.c.h.b16 %v1525
    %v4190 = vunpack.c.l.b16 %v1526
    %v4191 = vunpack.c.h.b16 %v1526
    %v4192 = vunpack.c.l.b16 %v1527
    %v4193 = vunpack.c.h.b16 %v1527
    %v4194 = vunpack.c.l.b16 %v1528
    %v4195 = vunpack.c.h.b16 %v1528
    %v4196 = vunpack.c.l.b16 %v1529
    %v4197 = vunpack.c.h.b16 %v1529
    %v4198 = vunpack.c.l.b16 %v1530
    %v4199 = vunpack.c.h.b16 %v1530
    %v4200 = vunpack.c.l.b16 %v1531
    %v4201 = vunpack.c.h.b16 %v1531
    %v4202 = vunpack.c.l.b16 %v1532
    %v4203 = vunpack.c.h.b16 %v1532
    %v4204 = vunpack.c.l.b16 %v1533
    %v4205 = vunpack.c.h.b16 %v1533
    %v4206 = vunpack.c.l.b16 %v1534
    %v4207 = vunpack.c.h.b16 %v1534
    %v4208 = vunpack.c.l.b16 %v1535
    %v4209 = vunpack.c.h.b16 %v1535
    %v4210 = vunpack.c.l.b16 %v1536
    %v4211 = vunpack.c.h.b16 %v1536
    %v4212 = vunpack.c.l.b16 %v1537
    %v4213 = vunpack.c.h.b16 %v1537
    %v4214 = vunpack.c.l.b16 %v1538
    %v4215 = vunpack.c.h.b16 %v1538
    %v4216 = vunpack.c.l.b16 %v1539
    %v4217 = vunpack.c.h.b16 %v1539
    %v4218 = vunpack.c.l.b16 %v1540
    %v4219 = vunpack.c.h.b16 %v1540
    %v4220 = vunpack.c.l.b16 %v1541
    %v4221 = vunpack.c.h.b16 %v1541
    %v4222 = vunpack.c.l.b16 %v1542
    %v4223 = vunpack.c.h.b16 %v1542
    %v4224 = vunpack.c.l.b16 %v1543
    %v4225 = vunpack.c.h.b16 %v1543
    %v4226 = vunpack.c.l.b16 %v1544
    %v4227 = vunpack.c.h.b16 %v1544
    %v4228 = vunpack.c.l.b16 %v1545
    %v4229 = vunpack.c.h.b16 %v1545
    %v4230 = vunpack.c.l.b16 %v1546
    %v4231 = vunpack.c.h.b16 %v1546
    %v4232 = vunpack.c.l.b16 %v1547
    %v4233 = vunpack.c.h.b16 %v1547
    %v4234 = vunpack.c.l.b16 %v1548
    %v4235 = vunpack.c.h.b16 %v1548
    %v4236 = vunpack.c.l.b16 %v1549
    %v4237 = vunpack.c.h.b16 %v1549
    %v4238 = vunpack.c.l.b16 %v1550
    %v4239 = vunpack.c.h.b16 %v1550
    %v4240 = vunpack.c.l.b16 %v1551
    %v4241 = vunpack.c.h.b16 %v1551
    %v4242 = vunpack.c.l.b16 %v1552
    %v4243 = vunpack.c.h.b16 %v1552
    %v4244 = vunpack.c.l.b16 %v1553
    %v4245 = vunpack.c.h.b16 %v1553
    %v4246 = vunpack.c.l.b16 %v1554
    %v4247 = vunpack.c.h.b16 %v1554
    %v4248 = vunpack.c.l.b16 %v1555
    %v4249 = vunpack.c.h.b16 %v1555
    %v4250 = vunpack.c.l.b16 %v1556
    %v4251 = vunpack.c.h.b16 %v1556
    %v4252 = vunpack.c.l.b16 %v1557
    %v4253 = vunpack.c.h.b16 %v1557
    %v4254 = vunpack.c.l.b16 %v1558
    %v4255 = vunpack.c.h.b16 %v1558
    %v4256 = vunpack.c.l.b16 %v1559
    %v4257 = vunpack.c.h.b16 %v1559
    %v4258 = vunpack.c.l.b16 %v1560
    %v4259 = vunpack.c.h.b16 %v1560
    %v4260 = vunpack.c.l.b16 %v1561
    %v4261 = vunpack.c.h.b16 %v1561
    %v4262 = vunpack.c.l.b16 %v1562
    %v4263 = vunpack.c.h.b16 %v1562
    %v4264 = vunpack.c.l.b16 %v1563
    %v4265 = vunpack.c.h.b16 %v1563
    %v4266 = vunpack.c.l.b16 %v1564
    %v4267 = vunpack.c.h.b16 %v1564
    %v4268 = vunpack.c.l.b16 %v1565
    %v4269 = vunpack.c.h.b16 %v1565
    %v4270 = vunpack.c.l.b16 %v1566
    %v4271 = vunpack.c.h.b16 %v1566
    %v4272 = vunpack.c.l.b16 %v1567
    %v4273 = vunpack.c.h.b16 %v1567
    %v4274 = vunpack.c.l.b16 %v1568
    %v4275 = vunpack.c.h.b16 %v1568
    %v4276 = vunpack.c.l.b16 %v1569
    %v4277 = vunpack.c.h.b16 %v1569
    %v4278 = vunpack.c.l.b16 %v1570
    %v4279 = vunpack.c.h.b16 %v1570
    %v4280 = vunpack.c.l.b16 %v1571
    %v4281 = vunpack.c.h.b16 %v1571
    %v4282 = vunpack.c.l.b16 %v1572
    %v4283 = vunpack.c.h.b16 %v1572
    %v4284 = vunpack.c.l.b16 %v1573
    %v4285 = vunpack.c.h.b16 %v1573
    %v4286 = vunpack.c.l.b16 %v1574
    %v4287 = vunpack.c.h.b16 %v1574
    %v4288 = vunpack.c.l.b16 %v1575
    %v4289 = vunpack.c.h.b16 %v1575
    %v4290 = vunpack.c.l.b16 %v1576
    %v4291 = vunpack.c.h.b16 %v1576
    %v4292 = vunpack.c.l.b16 %v1577
    %v4293 = vunpack.c.h.b16 %v1577
    %v4294 = vunpack.c.l.b16 %v1578
    %v4295 = vunpack.c.h.b16 %v1578
    %v4296 = vunpack.c.l.b16 %v1579
    %v4297 = vunpack.c.h.b16 %v1579
    %v4298 = vunpack.c.l.b16 %v1580
    %v4299 = vunpack.c.h.b16 %v1580
    %v4300 = vunpack.c.l.b16 %v1581
    %v4301 = vunpack.c.h.b16 %v1581
    %v4302 = vunpack.c.l.b16 %v1582
    %v4303 = vunpack.c.h.b16 %v1582
    %v4304 = vunpack.c.l.b16 %v1583
    %v4305 = vunpack.c.h.b16 %v1583
    %v4306 = vunpack.c.l.b16 %v1584
    %v4307 = vunpack.c.h.b16 %v1584
    %v4308 = vunpack.c.l.b16 %v1585
    %v4309 = vunpack.c.h.b16 %v1585
    %v4310 = vunpack.c.l.b16 %v1586
    %v4311 = vunpack.c.h.b16 %v1586
    %v4312 = vunpack.c.l.b16 %v1587
    %v4313 = vunpack.c.h.b16 %v1587
    %v4314 = vunpack.c.l.b16 %v1588
    %v4315 = vunpack.c.h.b16 %v1588
    %v4316 = vunpack.c.l.b16 %v1589
    %v4317 = vunpack.c.h.b16 %v1589
    %v4318 = vunpack.c.l.b16 %v1590
    %v4319 = vunpack.c.h.b16 %v1590
    %v4320 = vunpack.c.l.b16 %v1591
    %v4321 = vunpack.c.h.b16 %v1591
    %v4322 = vunpack.c.l.b16 %v1592
    %v4323 = vunpack.c.h.b16 %v1592
    %v4324 = vunpack.c.l.b16 %v1593
    %v4325 = vunpack.c.h.b16 %v1593
    %v4326 = vunpack.c.l.b16 %v1594
    %v4327 = vunpack.c.h.b16 %v1594
    %v4328 = vunpack.c.l.b16 %v1595
    %v4329 = vunpack.c.h.b16 %v1595
    %v4330 = vunpack.c.l.b16 %v1596
    %v4331 = vunpack.c.h.b16 %v1596
    %v4332 = vunpack.c.l.b16 %v1597
    %v4333 = vunpack.c.h.b16 %v1597
    %v4334 = vunpack.c.l.b16 %v1598
    %v4335 = vunpack.c.h.b16 %v1598
    %v4336 = vunpack.c.l.b16 %v1599
    %v4337 = vunpack.c.h.b16 %v1599
    %v4338 = vunpack.c.l.b16 %v1600
    %v4339 = vunpack.c.h.b16 %v1600
    %v4340 = vunpack.c.l.b16 %v1601
    %v4341 = vunpack.c.h.b16 %v1601
    %v4342 = vunpack.c.l.b16 %v1602
    %v4343 = vunpack.c.h.b16 %v1602
    %v4344 = vunpack.c.l.b16 %v1603
    %v4345 = vunpack.c.h.b16 %v1603
    %v4346 = vunpack.c.l.b16 %v1604
    %v4347 = vunpack.c.h.b16 %v1604
    %v4348 = vunpack.c.l.b16 %v1605
    %v4349 = vunpack.c.h.b16 %v1605
    %v4350 = vunpack.c.l.b16 %v1606
    %v4351 = vunpack.c.h.b16 %v1606
    %v4352 = vunpack.c.l.b16 %v1607
    %v4353 = vunpack.c.h.b16 %v1607
    %v4354 = vunpack.c.l.b16 %v1608
    %v4355 = vunpack.c.h.b16 %v1608
    %v4356 = vunpack.c.l.b16 %v1609
    %v4357 = vunpack.c.h.b16 %v1609
    %v4358 = vunpack.c.l.b16 %v1610
    %v4359 = vunpack.c.h.b16 %v1610
    %v4360 = vunpack.c.l.b16 %v1611
    %v4361 = vunpack.c.h.b16 %v1611
    %v4362 = vunpack.c.l.b16 %v1612
    %v4363 = vunpack.c.h.b16 %v1612
    %v4364 = vunpack.c.l.b16 %v1613
    %v4365 = vunpack.c.h.b16 %v1613
    %v4366 = vunpack.c.l.b16 %v1614
    %v4367 = vunpack.c.h.b16 %v1614
    %v4368 = vunpack.c.l.b16 %v1615
    %v4369 = vunpack.c.h.b16 %v1615
    %v4370 = vunpack.c.l.b16 %v1616
    %v4371 = vunpack.c.h.b16 %v1616
    %v4372 = vunpack.c.l.b16 %v1617
    %v4373 = vunpack.c.h.b16 %v1617
    %v4374 = vunpack.c.l.b16 %v1618
    %v4375 = vunpack.c.h.b16 %v1618
    %v4376 = vunpack.c.l.b16 %v1619
    %v4377 = vunpack.c.h.b16 %v1619
    %v4378 = vunpack.c.l.b16 %v1620
    %v4379 = vunpack.c.h.b16 %v1620
    %v4380 = vunpack.c.l.b16 %v1621
    %v4381 = vunpack.c.h.b16 %v1621
    %v4382 = vunpack.c.l.b16 %v1622
    %v4383 = vunpack.c.h.b16 %v1622
    %v4384 = vunpack.c.l.b16 %v1623
    %v4385 = vunpack.c.h.b16 %v1623
    %v4386 = vunpack.c.l.b16 %v1624
    %v4387 = vunpack.c.h.b16 %v1624
    %v4388 = vunpack.c.l.b16 %v1625
    %v4389 = vunpack.c.h.b16 %v1625
    %v4390 = vunpack.c.l.b16 %v1626
    %v4391 = vunpack.c.h.b16 %v1626
    %v4392 = vunpack.c.l.b16 %v1627
    %v4393 = vunpack.c.h.b16 %v1627
    %v4394 = vunpack.c.l.b16 %v1628
    %v4395 = vunpack.c.h.b16 %v1628
    %v4396 = vunpack.c.l.b16 %v1629
    %v4397 = vunpack.c.h.b16 %v1629
    %v4398 = vunpack.c.l.b16 %v1630
    %v4399 = vunpack.c.h.b16 %v1630
    %v4400 = vunpack.c.l.b16 %v1631
    %v4401 = vunpack.c.h.b16 %v1631
    %v4402 = vunpack.c.l.b16 %v1632
    %v4403 = vunpack.c.h.b16 %v1632
    %v4404 = vunpack.c.l.b16 %v1633
    %v4405 = vunpack.c.h.b16 %v1633
    %v4406 = vunpack.c.l.b16 %v1634
    %v4407 = vunpack.c.h.b16 %v1634
    %v4408 = vunpack.c.l.b16 %v1635
    %v4409 = vunpack.c.h.b16 %v1635
    %v4410 = vunpack.c.l.b16 %v1636
    %v4411 = vunpack.c.h.b16 %v1636
    %v4412 = vunpack.c.l.b16 %v1637
    %v4413 = vunpack.c.h.b16 %v1637
    %v4414 = vunpack.c.l.b16 %v1638
    %v4415 = vunpack.c.h.b16 %v1638
    %v4416 = vunpack.c.l.b16 %v1639
    %v4417 = vunpack.c.h.b16 %v1639
    %v4418 = vunpack.c.l.b16 %v1640
    %v4419 = vunpack.c.h.b16 %v1640
    %v4420 = vunpack.c.l.b16 %v1641
    %v4421 = vunpack.c.h.b16 %v1641
    %v4422 = vunpack.c.l.b16 %v1642
    %v4423 = vunpack.c.h.b16 %v1642
    %v4424 = vunpack.c.l.b16 %v1643
    %v4425 = vunpack.c.h.b16 %v1643
    %v4426 = vunpack.c.l.b16 %v1644
    %v4427 = vunpack.c.h.b16 %v1644
    %v4428 = vunpack.c.l.b16 %v1645
    %v4429 = vunpack.c.h.b16 %v1645
    %v4430 = vunpack.c.l.b16 %v1646
    %v4431 = vunpack.c.h.b16 %v1646
    %v4432 = vunpack.c.l.b16 %v1647
    %v4433 = vunpack.c.h.b16 %v1647
    %v4434 = vunpack.c.l.b16 %v1648
    %v4435 = vunpack.c.h.b16 %v1648
    %v4436 = vunpack.c.l.b16 %v1649
    %v4437 = vunpack.c.h.b16 %v1649
    %v4438 = vunpack.c.l.b16 %v1650
    %v4439 = vunpack.c.h.b16 %v1650
    %v4440 = vunpack.c.l.b16 %v1651
    %v4441 = vunpack.c.h.b16 %v1651
    %v4442 = vunpack.c.l.b16 %v1652
    %v4443 = vunpack.c.h.b16 %v1652
    %v4444 = vunpack.c.l.b16 %v1653
    %v4445 = vunpack.c.h.b16 %v1653
    %v4446 = vunpack.c.l.b16 %v1654
    %v4447 = vunpack.c.h.b16 %v1654
    %v4448 = vunpack.c.l.b16 %v1655
    %v4449 = vunpack.c.h.b16 %v1655
    %v4450 = vunpack.c.l.b16 %v1656
    %v4451 = vunpack.c.h.b16 %v1656
    %v4452 = vunpack.c.l.b16 %v1657
    %v4453 = vunpack.c.h.b16 %v1657
    %v4454 = vunpack.c.l.b16 %v1658
    %v4455 = vunpack.c.h.b16 %v1658
    %v4456 = vunpack.c.l.b16 %v1659
    %v4457 = vunpack.c.h.b16 %v1659
    %v4458 = vunpack.c.l.b16 %v1660
    %v4459 = vunpack.c.h.b16 %v1660
    %v4460 = vunpack.c.l.b16 %v1661
    %v4461 = vunpack.c.h.b16 %v1661
    %v4462 = vunpack.c.l.b16 %v1662
    %v4463 = vunpack.c.h.b16 %v1662
    %v4464 = vunpack.c.l.b16 %v1663
    %v4465 = vunpack.c.h.b16 %v1663
    %v4466 = vunpack.c.l.b16 %v1664
    %v4467 = vunpack.c.h.b16 %v1664
    %v4468 = vunpack.c.l.b16 %v1665
    %v4469 = vunpack.c.h.b16 %v1665
    %v4470 = vunpack.c.l.b16 %v1666
    %v4471 = vunpack.c.h.b16 %v1666
    %v4472 = vunpack.c.l.b16 %v1667
    %v4473 = vunpack.c.h.b16 %v1667
    %v4474 = vunpack.c.l.b16 %v1668
    %v4475 = vunpack.c.h.b16 %v1668
    %v4476 = vunpack.c.l.b16 %v1669
    %v4477 = vunpack.c.h.b16 %v1669
    %v4478 = vunpack.c.l.b16 %v1670
    %v4479 = vunpack.c.h.b16 %v1670
    %v4480 = vunpack.c.l.b16 %v1671
    %v4481 = vunpack.c.h.b16 %v1671
    %v4482 = vunpack.c.l.b16 %v1672
    %v4483 = vunpack.c.h.b16 %v1672
    %v4484 = vunpack.c.l.b16 %v1673
    %v4485 = vunpack.c.h.b16 %v1673
    %v4486 = vunpack.c.l.b16 %v1674
    %v4487 = vunpack.c.h.b16 %v1674
    %v4488 = vunpack.c.l.b16 %v1675
    %v4489 = vunpack.c.h.b16 %v1675
    %v4490 = vunpack.c.l.b16 %v1676
    %v4491 = vunpack.c.h.b16 %v1676
    %v4492 = vunpack.c.l.b16 %v1677
    %v4493 = vunpack.c.h.b16 %v1677
    %v4494 = vunpack.c.l.b16 %v1678
    %v4495 = vunpack.c.h.b16 %v1678
    %v4496 = vunpack.c.l.b16 %v1679
    %v4497 = vunpack.c.h.b16 %v1679
    %v4498 = vunpack.c.l.b16 %v1680
    %v4499 = vunpack.c.h.b16 %v1680
    %v4500 = vunpack.c.l.b16 %v1681
    %v4501 = vunpack.c.h.b16 %v1681
    %v4502 = vunpack.c.l.b16 %v1682
    %v4503 = vunpack.c.h.b16 %v1682
    %v4504 = vunpack.c.l.b16 %v1683
    %v4505 = vunpack.c.h.b16 %v1683
    %v4506 = vunpack.c.l.b16 %v1684
    %v4507 = vunpack.c.h.b16 %v1684
    %v4508 = vunpack.c.l.b16 %v1685
    %v4509 = vunpack.c.h.b16 %v1685
    %v4510 = vunpack.c.l.b16 %v1686
    %v4511 = vunpack.c.h.b16 %v1686
    %v4512 = vunpack.c.l.b16 %v1687
    %v4513 = vunpack.c.h.b16 %v1687
    %v4514 = vunpack.c.l.b16 %v1688
    %v4515 = vunpack.c.h.b16 %v1688
    %v4516 = vunpack.c.l.b16 %v1689
    %v4517 = vunpack.c.h.b16 %v1689
    %v4518 = vunpack.c.l.b16 %v1690
    %v4519 = vunpack.c.h.b16 %v1690
    %v4520 = vunpack.c.l.b16 %v1691
    %v4521 = vunpack.c.h.b16 %v1691
    %v4522 = vunpack.c.l.b16 %v1692
    %v4523 = vunpack.c.h.b16 %v1692
    %v4524 = vunpack.c.l.b16 %v1693
    %v4525 = vunpack.c.h.b16 %v1693
    %v4526 = vunpack.c.l.b16 %v1694
    %v4527 = vunpack.c.h.b16 %v1694
    %v4528 = vunpack.c.l.b16 %v1695
    %v4529 = vunpack.c.h.b16 %v1695
    %v4530 = vunpack.c.l.b16 %v1696
    %v4531 = vunpack.c.h.b16 %v1696
    %v4532 = vunpack.c.l.b16 %v1697
    %v4533 = vunpack.c.h.b16 %v1697
    %v4534 = vunpack.c.l.b16 %v1698
    %v4535 = vunpack.c.h.b16 %v1698
    %v4536 = vunpack.c.l.b16 %v1699
    %v4537 = vunpack.c.h.b16 %v1699
    %v4538 = vunpack.c.l.b16 %v1700
    %v4539 = vunpack.c.h.b16 %v1700
    %v4540 = vunpack.c.l.b16 %v1701
    %v4541 = vunpack.c.h.b16 %v1701
    %v4542 = vunpack.c.l.b16 %v1702
    %v4543 = vunpack.c.h.b16 %v1702
    %v4544 = vunpack.c.l.b16 %v1703
    %v4545 = vunpack.c.h.b16 %v1703
    %v4546 = vunpack.c.l.b16 %v1704
    %v4547 = vunpack.c.h.b16 %v1704
    %v4548 = vunpack.c.l.b16 %v1705
    %v4549 = vunpack.c.h.b16 %v1705
    %v4550 = vunpack.c.l.b16 %v1706
    %v4551 = vunpack.c.h.b16 %v1706
    %v4552 = vunpack.c.l.b16 %v1707
    %v4553 = vunpack.c.h.b16 %v1707
    %v4554 = vunpack.c.l.b16 %v1708
    %v4555 = vunpack.c.h.b16 %v1708
    %v4556 = vunpack.c.l.b16 %v1709
    %v4557 = vunpack.c.h.b16 %v1709
    %v4558 = vunpack.c.l.b16 %v1710
    %v4559 = vunpack.c.h.b16 %v1710
    %v4560 = vunpack.c.l.b16 %v1711
    %v4561 = vunpack.c.h.b16 %v1711
    %v4562 = vunpack.c.l.b16 %v1712
    %v4563 = vunpack.c.h.b16 %v1712
    %v4564 = vunpack.c.l.b16 %v1713
    %v4565 = vunpack.c.h.b16 %v1713
    %v4566 = vunpack.c.l.b16 %v1714
    %v4567 = vunpack.c.h.b16 %v1714
    %v4568 = vunpack.c.l.b16 %v1715
    %v4569 = vunpack.c.h.b16 %v1715
    %v4570 = vunpack.c.l.b16 %v1716
    %v4571 = vunpack.c.h.b16 %v1716
    %v4572 = vunpack.c.l.b16 %v1717
    %v4573 = vunpack.c.h.b16 %v1717
    %v4574 = vunpack.c.l.b16 %v1718
    %v4575 = vunpack.c.h.b16 %v1718
    %v4576 = vunpack.c.l.b16 %v1719
    %v4577 = vunpack.c.h.b16 %v1719
    %v4578 = vunpack.c.l.b16 %v1720
    %v4579 = vunpack.c.h.b16 %v1720
    %v4580 = vunpack.c.l.b16 %v1721
    %v4581 = vunpack.c.h.b16 %v1721
    %v4582 = vunpack.c.l.b16 %v1722
    %v4583 = vunpack.c.h.b16 %v1722
    %v4584 = vunpack.c.l.b16 %v1723
    %v4585 = vunpack.c.h.b16 %v1723
    %v4586 = vunpack.c.l.b16 %v1724
    %v4587 = vunpack.c.h.b16 %v1724
    %v4588 = vunpack.c.l.b16 %v1725
    %v4589 = vunpack.c.h.b16 %v1725
    %v4590 = vunpack.c.l.b16 %v1726
    %v4591 = vunpack.c.h.b16 %v1726
    %v4592 = vunpack.c.l.b16 %v1727
    %v4593 = vunpack.c.h.b16 %v1727
    %v4594 = vunpack.c.l.b16 %v1728
    %v4595 = vunpack.c.h.b16 %v1728
    %v4596 = vunpack.c.l.b16 %v1729
    %v4597 = vunpack.c.h.b16 %v1729
    %v4598 = vunpack.c.l.b16 %v1730
    %v4599 = vunpack.c.h.b16 %v1730
    %v4600 = vunpack.c.l.b16 %v1731
    %v4601 = vunpack.c.h.b16 %v1731
    %v4602 = vunpack.c.l.b16 %v1732
    %v4603 = vunpack.c.h.b16 %v1732
    %v4604 = vunpack.c.l.b16 %v1733
    %v4605 = vunpack.c.h.b16 %v1733
    %v4606 = vunpack.c.l.b16 %v1734
    %v4607 = vunpack.c.h.b16 %v1734
    %v4608 = vunpack.c.l.b16 %v1735
    %v4609 = vunpack.c.h.b16 %v1735
    %v4610 = vunpack.c.l.b16 %v1736
    %v4611 = vunpack.c.h.b16 %v1736
    %v4612 = vunpack.c.l.b16 %v1737
    %v4613 = vunpack.c.h.b16 %v1737
    %v4614 = vunpack.c.l.b16 %v1738
    %v4615 = vunpack.c.h.b16 %v1738
    %v4616 = vunpack.c.l.b16 %v1739
    %v4617 = vunpack.c.h.b16 %v1739
    %v4618 = vunpack.c.l.b16 %v1740
    %v4619 = vunpack.c.h.b16 %v1740
    %v4620 = vunpack.c.l.b16 %v1741
    %v4621 = vunpack.c.h.b16 %v1741
    %v4622 = vunpack.c.l.b16 %v1742
    %v4623 = vunpack.c.h.b16 %v1742
    %v4624 = vunpack.c.l.b16 %v1743
    %v4625 = vunpack.c.h.b16 %v1743
    %v4626 = vunpack.c.l.b16 %v1744
    %v4627 = vunpack.c.h.b16 %v1744
    %v4628 = vunpack.c.l.b16 %v1745
    %v4629 = vunpack.c.h.b16 %v1745
    %v4630 = vunpack.c.l.b16 %v1746
    %v4631 = vunpack.c.h.b16 %v1746
    %v4632 = vunpack.c.l.b16 %v1747
    %v4633 = vunpack.c.h.b16 %v1747
    %v4634 = vunpack.c.l.b16 %v1748
    %v4635 = vunpack.c.h.b16 %v1748
    %v4636 = vunpack.c.l.b16 %v1749
    %v4637 = vunpack.c.h.b16 %v1749
    %v4638 = vunpack.c.l.b16 %v1750
    %v4639 = vunpack.c.h.b16 %v1750
    %v4640 = vunpack.c.l.b16 %v1751
    %v4641 = vunpack.c.h.b16 %v1751
    %v4642 = vunpack.c.l.b16 %v1752
    %v4643 = vunpack.c.h.b16 %v1752
    %v4644 = vunpack.c.l.b16 %v1753
    %v4645 = vunpack.c.h.b16 %v1753
    %v4646 = vunpack.c.l.b16 %v1754
    %v4647 = vunpack.c.h.b16 %v1754
    %v4648 = vunpack.c.l.b16 %v1755
    %v4649 = vunpack.c.h.b16 %v1755
    %v4650 = vunpack.c.l.b16 %v1756
    %v4651 = vunpack.c.h.b16 %v1756
    %v4652 = vunpack.c.l.b16 %v1757
    %v4653 = vunpack.c.h.b16 %v1757
    %v4654 = vunpack.c.l.b16 %v1758
    %v4655 = vunpack.c.h.b16 %v1758
    %v4656 = vunpack.c.l.b16 %v1759
    %v4657 = vunpack.c.h.b16 %v1759
    %v4658 = vunpack.c.l.b16 %v1760
    %v4659 = vunpack.c.h.b16 %v1760
    %v4660 = vunpack.c.l.b16 %v1761
    %v4661 = vunpack.c.h.b16 %v1761
    %v4662 = vunpack.c.l.b16 %v1762
    %v4663 = vunpack.c.h.b16 %v1762
    %v4664 = vunpack.c.l.b16 %v1763
    %v4665 = vunpack.c.h.b16 %v1763
    %v4666 = vunpack.c.l.b16 %v1764
    %v4667 = vunpack.c.h.b16 %v1764
    %v4668 = vunpack.c.l.b16 %v1765
    %v4669 = vunpack.c.h.b16 %v1765
    %v4670 = vunpack.c.l.b16 %v1766
    %v4671 = vunpack.c.h.b16 %v1766
    %v4672 = vunpack.c.l.b16 %v1767
    %v4673 = vunpack.c.h.b16 %v1767
    %v4674 = vunpack.c.l.b16 %v1768
    %v4675 = vunpack.c.h.b16 %v1768
    %v4676 = vunpack.c.l.b16 %v1769
    %v4677 = vunpack.c.h.b16 %v1769
    %v4678 = vunpack.c.l.b16 %v1770
    %v4679 = vunpack.c.h.b16 %v1770
    %v4680 = vunpack.c.l.b16 %v1771
    %v4681 = vunpack.c.h.b16 %v1771
    %v4682 = vunpack.c.l.b16 %v1772
    %v4683 = vunpack.c.h.b16 %v1772
    %v4684 = vunpack.c.l.b16 %v1773
    %v4685 = vunpack.c.h.b16 %v1773
    %v4686 = vunpack.c.l.b16 %v1774
    %v4687 = vunpack.c.h.b16 %v1774
    %v4688 = vunpack.c.l.b16 %v1775
    %v4689 = vunpack.c.h.b16 %v1775
    %v4690 = vunpack.c.l.b16 %v1776
    %v4691 = vunpack.c.h.b16 %v1776
    %v4692 = vunpack.c.l.b16 %v1777
    %v4693 = vunpack.c.h.b16 %v1777
    %v4694 = vunpack.c.l.b16 %v1778
    %v4695 = vunpack.c.h.b16 %v1778
    %v4696 = vunpack.c.l.b16 %v1779
    %v4697 = vunpack.c.h.b16 %v1779
    %v4698 = vunpack.c.l.b16 %v1780
    %v4699 = vunpack.c.h.b16 %v1780
    %v4700 = vunpack.c.l.b16 %v1781
    %v4701 = vunpack.c.h.b16 %v1781
    %v4702 = vunpack.c.l.b16 %v1782
    %v4703 = vunpack.c.h.b16 %v1782
    %v4704 = vunpack.c.l.b16 %v1783
    %v4705 = vunpack.c.h.b16 %v1783
    %v4706 = vunpack.c.l.b16 %v1784
    %v4707 = vunpack.c.h.b16 %v1784
    %v4708 = vunpack.c.l.b16 %v1785
    %v4709 = vunpack.c.h.b16 %v1785
    %v4710 = vunpack.c.l.b16 %v1786
    %v4711 = vunpack.c.h.b16 %v1786
    %v4712 = vunpack.c.l.b16 %v1787
    %v4713 = vunpack.c.h.b16 %v1787
    %v4714 = vunpack.c.l.b16 %v1788
    %v4715 = vunpack.c.h.b16 %v1788
    %v4716 = vunpack.c.l.b16 %v1789
    %v4717 = vunpack.c.h.b16 %v1789
    %v4718 = vunpack.c.l.b16 %v1790
    %v4719 = vunpack.c.h.b16 %v1790
    %v4720 = vunpack.c.l.b16 %v1791
    %v4721 = vunpack.c.h.b16 %v1791
    %v4722 = vunpack.c.l.b16 %v1792
    %v4723 = vunpack.c.h.b16 %v1792
    %v4724 = vunpack.c.l.b16 %v1793
    %v4725 = vunpack.c.h.b16 %v1793
    %v4726 = vunpack.c.l.b16 %v1794
    %v4727 = vunpack.c.h.b16 %v1794
    %v4728 = vunpack.c.l.b16 %v1795
    %v4729 = vunpack.c.h.b16 %v1795
    %v4730 = vunpack.c.l.b16 %v1796
    %v4731 = vunpack.c.h.b16 %v1796
    %v4732 = vunpack.c.l.b16 %v1797
    %v4733 = vunpack.c.h.b16 %v1797
    %v4734 = vunpack.c.l.b16 %v1798
    %v4735 = vunpack.c.h.b16 %v1798
    %v4736 = vunpack.c.l.b16 %v1799
    %v4737 = vunpack.c.h.b16 %v1799
    %v4738 = vunpack.c.l.b16 %v1800
    %v4739 = vunpack.c.h.b16 %v1800
    %v4740 = vunpack.c.l.b16 %v1801
    %v4741 = vunpack.c.h.b16 %v1801
    %v4742 = vunpack.c.l.b16 %v1802
    %v4743 = vunpack.c.h.b16 %v1802
    %v4744 = vunpack.c.l.b16 %v1803
    %v4745 = vunpack.c.h.b16 %v1803
    %v4746 = vunpack.c.l.b16 %v1804
    %v4747 = vunpack.c.h.b16 %v1804
    %v4748 = vunpack.c.l.b16 %v1805
    %v4749 = vunpack.c.h.b16 %v1805
    %v4750 = vunpack.c.l.b16 %v1806
    %v4751 = vunpack.c.h.b16 %v1806
    %v4752 = vunpack.c.l.b16 %v1807
    %v4753 = vunpack.c.h.b16 %v1807
    %v4754 = vunpack.c.l.b16 %v1808
    %v4755 = vunpack.c.h.b16 %v1808
    %v4756 = vunpack.c.l.b16 %v1809
    %v4757 = vunpack.c.h.b16 %v1809
    %v4758 = vunpack.c.l.b16 %v1810
    %v4759 = vunpack.c.h.b16 %v1810
    %v4760 = vunpack.c.l.b16 %v1811
    %v4761 = vunpack.c.h.b16 %v1811
    %v4762 = vunpack.c.l.b16 %v1812
    %v4763 = vunpack.c.h.b16 %v1812
    %v4764 = vunpack.c.l.b16 %v1813
    %v4765 = vunpack.c.h.b16 %v1813
    %v4766 = vunpack.c.l.b16 %v1814
    %v4767 = vunpack.c.h.b16 %v1814
    %v4768 = vunpack.c.l.b16 %v1815
    %v4769 = vunpack.c.h.b16 %v1815
    %v4770 = vunpack.c.l.b16 %v1816
    %v4771 = vunpack.c.h.b16 %v1816
    %v4772 = vunpack.c.l.b16 %v1817
    %v4773 = vunpack.c.h.b16 %v1817
    %v4774 = vunpack.c.l.b16 %v1818
    %v4775 = vunpack.c.h.b16 %v1818
    %v4776 = vunpack.c.l.b16 %v1819
    %v4777 = vunpack.c.h.b16 %v1819
    %v4778 = vunpack.c.l.b16 %v1820
    %v4779 = vunpack.c.h.b16 %v1820
    %v4780 = vunpack.c.l.b16 %v1821
    %v4781 = vunpack.c.h.b16 %v1821
    %v4782 = vunpack.c.l.b16 %v1822
    %v4783 = vunpack.c.h.b16 %v1822
    %v4784 = vunpack.c.l.b16 %v1823
    %v4785 = vunpack.c.h.b16 %v1823
    %v4786 = vunpack.c.l.b16 %v1824
    %v4787 = vunpack.c.h.b16 %v1824
    %v4788 = vunpack.c.l.b16 %v1825
    %v4789 = vunpack.c.h.b16 %v1825
    %v4790 = vunpack.c.l.b16 %v1826
    %v4791 = vunpack.c.h.b16 %v1826
    %v4792 = vunpack.c.l.b16 %v1827
    %v4793 = vunpack.c.h.b16 %v1827
    %v4794 = vunpack.c.l.b16 %v1828
    %v4795 = vunpack.c.h.b16 %v1828
    %v4796 = vunpack.c.l.b16 %v1829
    %v4797 = vunpack.c.h.b16 %v1829
    %v4798 = vunpack.c.l.b16 %v1830
    %v4799 = vunpack.c.h.b16 %v1830
    %v4800 = vunpack.c.l.b16 %v1831
    %v4801 = vunpack.c.h.b16 %v1831
    %v4802 = vunpack.c.l.b16 %v1832
    %v4803 = vunpack.c.h.b16 %v1832
    %v4804 = vunpack.c.l.b16 %v1833
    %v4805 = vunpack.c.h.b16 %v1833
    %v4806 = vunpack.c.l.b16 %v1834
    %v4807 = vunpack.c.h.b16 %v1834
    %v4808 = vunpack.c.l.b16 %v1835
    %v4809 = vunpack.c.h.b16 %v1835
    %v4810 = vunpack.c.l.b16 %v1836
    %v4811 = vunpack.c.h.b16 %v1836
    %v4812 = vunpack.c.l.b16 %v1837
    %v4813 = vunpack.c.h.b16 %v1837
    %v4814 = vunpack.c.l.b16 %v1838
    %v4815 = vunpack.c.h.b16 %v1838
    %v4816 = vunpack.c.l.b16 %v1839
    %v4817 = vunpack.c.h.b16 %v1839
    %v4818 = vunpack.c.l.b16 %v1840
    %v4819 = vunpack.c.h.b16 %v1840
    %v4820 = vunpack.c.l.b16 %v1841
    %v4821 = vunpack.c.h.b16 %v1841
    %v4822 = vunpack.c.l.b16 %v1842
    %v4823 = vunpack.c.h.b16 %v1842
    %v4824 = vunpack.c.l.b16 %v1843
    %v4825 = vunpack.c.h.b16 %v1843
    %v4826 = vunpack.c.l.b16 %v1844
    %v4827 = vunpack.c.h.b16 %v1844
    %v4828 = vunpack.c.l.b16 %v1845
    %v4829 = vunpack.c.h.b16 %v1845
    %v4830 = vunpack.c.l.b16 %v1846
    %v4831 = vunpack.c.h.b16 %v1846
    %v4832 = vunpack.c.l.b16 %v1847
    %v4833 = vunpack.c.h.b16 %v1847
    %v4834 = vunpack.c.l.b16 %v1848
    %v4835 = vunpack.c.h.b16 %v1848
    %v4836 = vunpack.c.l.b16 %v1849
    %v4837 = vunpack.c.h.b16 %v1849
    %v4838 = vunpack.c.l.b16 %v1850
    %v4839 = vunpack.c.h.b16 %v1850
    %v4840 = vunpack.c.l.b16 %v1851
    %v4841 = vunpack.c.h.b16 %v1851
    %v4842 = vunpack.c.l.b16 %v1852
    %v4843 = vunpack.c.h.b16 %v1852
    %v4844 = vunpack.c.l.b16 %v1853
    %v4845 = vunpack.c.h.b16 %v1853
    %v4846 = vunpack.c.l.b16 %v1854
    %v4847 = vunpack.c.h.b16 %v1854
    %v4848 = vunpack.c.l.b16 %v1855
    %v4849 = vunpack.c.h.b16 %v1855
    %v4850 = vunpack.c.l.b16 %v1856
    %v4851 = vunpack.c.h.b16 %v1856
    %v4852 = vunpack.c.l.b16 %v1857
    %v4853 = vunpack.c.h.b16 %v1857
    %v4854 = vunpack.c.l.b16 %v1858
    %v4855 = vunpack.c.h.b16 %v1858
    %v4856 = vunpack.c.l.b16 %v1859
    %v4857 = vunpack.c.h.b16 %v1859
    %v4858 = vunpack.c.l.b16 %v1860
    %v4859 = vunpack.c.h.b16 %v1860
    %v4860 = vunpack.c.l.b16 %v1861
    %v4861 = vunpack.c.h.b16 %v1861
    %v4862 = vunpack.c.l.b16 %v1862
    %v4863 = vunpack.c.h.b16 %v1862
    %v4864 = vunpack.c.l.b16 %v1863
    %v4865 = vunpack.c.h.b16 %v1863
    %v4866 = vunpack.c.l.b16 %v1864
    %v4867 = vunpack.c.h.b16 %v1864
    %v4868 = vunpack.c.l.b16 %v1865
    %v4869 = vunpack.c.h.b16 %v1865
    %v4870 = vunpack.c.l.b16 %v1866
    %v4871 = vunpack.c.h.b16 %v1866
    %v4872 = vunpack.c.l.b16 %v1867
    %v4873 = vunpack.c.h.b16 %v1867
    %v4874 = vunpack.c.l.b16 %v1868
    %v4875 = vunpack.c.h.b16 %v1868
    %v4876 = vunpack.c.l.b16 %v1869
    %v4877 = vunpack.c.h.b16 %v1869
    %v4878 = vunpack.c.l.b16 %v1870
    %v4879 = vunpack.c.h.b16 %v1870
    %v4880 = vunpack.c.l.b16 %v1871
    %v4881 = vunpack.c.h.b16 %v1871
    %v4882 = vunpack.c.l.b16 %v1872
    %v4883 = vunpack.c.h.b16 %v1872
    %v4884 = vunpack.c.l.b16 %v1873
    %v4885 = vunpack.c.h.b16 %v1873
    %v4886 = vunpack.c.l.b16 %v1874
    %v4887 = vunpack.c.h.b16 %v1874
    %v4888 = vunpack.c.l.b16 %v1875
    %v4889 = vunpack.c.h.b16 %v1875
    %v4890 = vunpack.c.l.b16 %v1876
    %v4891 = vunpack.c.h.b16 %v1876
    %v4892 = vunpack.c.l.b16 %v1877
    %v4893 = vunpack.c.h.b16 %v1877
    %v4894 = vunpack.c.l.b16 %v1878
    %v4895 = vunpack.c.h.b16 %v1878
    %v4896 = vunpack.c.l.b16 %v1879
    %v4897 = vunpack.c.h.b16 %v1879
    %v4898 = vunpack.c.l.b16 %v1880
    %v4899 = vunpack.c.h.b16 %v1880
    %v4900 = vunpack.c.l.b16 %v1881
    %v4901 = vunpack.c.h.b16 %v1881
    %v4902 = vunpack.c.l.b16 %v1882
    %v4903 = vunpack.c.h.b16 %v1882
    %v4904 = vunpack.c.l.b16 %v1883
    %v4905 = vunpack.c.h.b16 %v1883
    %v4906 = vunpack.c.l.b16 %v1884
    %v4907 = vunpack.c.h.b16 %v1884
    %v4908 = vunpack.c.l.b16 %v1885
    %v4909 = vunpack.c.h.b16 %v1885
    %v4910 = vunpack.c.l.b16 %v1886
    %v4911 = vunpack.c.h.b16 %v1886
    %v4912 = vunpack.c.l.b16 %v1887
    %v4913 = vunpack.c.h.b16 %v1887
    %v4914 = vunpack.c.l.b16 %v1888
    %v4915 = vunpack.c.h.b16 %v1888
    %v4916 = vunpack.c.l.b16 %v1889
    %v4917 = vunpack.c.h.b16 %v1889
    %v4918 = vunpack.c.l.b16 %v1890
    %v4919 = vunpack.c.h.b16 %v1890
    %v4920 = vunpack.c.l.b16 %v1891
    %v4921 = vunpack.c.h.b16 %v1891
    %v4922 = vunpack.c.l.b16 %v1892
    %v4923 = vunpack.c.h.b16 %v1892
    %v4924 = vunpack.c.l.b16 %v1893
    %v4925 = vunpack.c.h.b16 %v1893
    %v4926 = vunpack.c.l.b16 %v1894
    %v4927 = vunpack.c.h.b16 %v1894
    %v4928 = vunpack.c.l.b16 %v1895
    %v4929 = vunpack.c.h.b16 %v1895
    %v4930 = vunpack.c.l.b16 %v1896
    %v4931 = vunpack.c.h.b16 %v1896
    %v4932 = vunpack.c.l.b16 %v1897
    %v4933 = vunpack.c.h.b16 %v1897
    %v4934 = vunpack.c.l.b16 %v1898
    %v4935 = vunpack.c.h.b16 %v1898
    %v4936 = vunpack.c.l.b16 %v1899
    %v4937 = vunpack.c.h.b16 %v1899
    %v4938 = vunpack.c.l.b16 %v1900
    %v4939 = vunpack.c.h.b16 %v1900
    %v4940 = vunpack.c.l.b16 %v1901
    %v4941 = vunpack.c.h.b16 %v1901
    %v4942 = vunpack.c.l.b16 %v1902
    %v4943 = vunpack.c.h.b16 %v1902
    %v4944 = vunpack.c.l.b16 %v1903
    %v4945 = vunpack.c.h.b16 %v1903
    %v4946 = vunpack.c.l.b16 %v1904
    %v4947 = vunpack.c.h.b16 %v1904
    %v4948 = vunpack.c.l.b16 %v1905
    %v4949 = vunpack.c.h.b16 %v1905
    %v4950 = vunpack.c.l.b16 %v1906
    %v4951 = vunpack.c.h.b16 %v1906
    %v4952 = vunpack.c.l.b16 %v1907
    %v4953 = vunpack.c.h.b16 %v1907
    %v4954 = vunpack.c.l.b16 %v1908
    %v4955 = vunpack.c.h.b16 %v1908
    %v4956 = vunpack.c.l.b16 %v1909
    %v4957 = vunpack.c.h.b16 %v1909
    %v4958 = vunpack.c.l.b16 %v1910
    %v4959 = vunpack.c.h.b16 %v1910
    %v4960 = vunpack.c.l.b16 %v1911
    %v4961 = vunpack.c.h.b16 %v1911
    %v4962 = vunpack.c.l.b16 %v1912
    %v4963 = vunpack.c.h.b16 %v1912
    %v4964 = vunpack.c.l.b16 %v1913
    %v4965 = vunpack.c.h.b16 %v1913
    %v4966 = vunpack.c.l.b16 %v1914
    %v4967 = vunpack.c.h.b16 %v1914
    %v4968 = vunpack.c.l.b16 %v1915
    %v4969 = vunpack.c.h.b16 %v1915
    %v4970 = vunpack.c.l.b16 %v1916
    %v4971 = vunpack.c.h.b16 %v1916
    %v4972 = vunpack.c.l.b16 %v1917
    %v4973 = vunpack.c.h.b16 %v1917
    %v4974 = vunpack.c.l.b16 %v1918
    %v4975 = vunpack.c.h.b16 %v1918
    %v4976 = vunpack.c.l.b16 %v1919
    %v4977 = vunpack.c.h.b16 %v1919
    %v4978 = vunpack.c.l.b16 %v1920
    %v4979 = vunpack.c.h.b16 %v1920
    %v4980 = vunpack.c.l.b16 %v1921
    %v4981 = vunpack.c.h.b16 %v1921
    %v4982 = vunpack.c.l.b16 %v1922
    %v4983 = vunpack.c.h.b16 %v1922
    %v4984 = vunpack.c.l.b16 %v1923
    %v4985 = vunpack.c.h.b16 %v1923
    %v4986 = vunpack.c.l.b16 %v1924
    %v4987 = vunpack.c.h.b16 %v1924
    %v4988 = vunpack.c.l.b16 %v1925
    %v4989 = vunpack.c.h.b16 %v1925
    %v4990 = vunpack.c.l.b16 %v1926
    %v4991 = vunpack.c.h.b16 %v1926
    %v4992 = vunpack.c.l.b16 %v1927
    %v4993 = vunpack.c.h.b16 %v1927
    %v4994 = vunpack.c.l.b16 %v1928
    %v4995 = vunpack.c.h.b16 %v1928
    %v4996 = vunpack.c.l.b16 %v1929
    %v4997 = vunpack.c.h.b16 %v1929
    %v4998 = vunpack.c.l.b16 %v1930
    %v4999 = vunpack.c.h.b16 %v1930
    %v5000 = vunpack.c.l.b16 %v1931
    %v5001 = vunpack.c.h.b16 %v1931
    %v5002 = vunpack.c.l.b16 %v1932
    %v5003 = vunpack.c.h.b16 %v1932
    %v5004 = vunpack.c.l.b16 %v1933
    %v5005 = vunpack.c.h.b16 %v1933
    %v5006 = vunpack.c.l.b16 %v1934
    %v5007 = vunpack.c.h.b16 %v1934
    %v5008 = vunpack.c.l.b16 %v1935
    %v5009 = vunpack.c.h.b16 %v1935
    %v5010 = vunpack.c.l.b16 %v1936
    %v5011 = vunpack.c.h.b16 %v1936
    %v5012 = vunpack.c.l.b16 %v1937
    %v5013 = vunpack.c.h.b16 %v1937
    %v5014 = vunpack.c.l.b16 %v1938
    %v5015 = vunpack.c.h.b16 %v1938
    %v5016 = vunpack.c.l.b16 %v1939
    %v5017 = vunpack.c.h.b16 %v1939
    %v5018 = vunpack.c.l.b16 %v1940
    %v5019 = vunpack.c.h.b16 %v1940
    %v5020 = vunpack.c.l.b16 %v1941
    %v5021 = vunpack.c.h.b16 %v1941
    %v5022 = vunpack.c.l.b16 %v1942
    %v5023 = vunpack.c.h.b16 %v1942
    %v5024 = vunpack.c.l.b16 %v1943
    %v5025 = vunpack.c.h.b16 %v1943
    %v5026 = vunpack.c.l.b16 %v1944
    %v5027 = vunpack.c.h.b16 %v1944
    %v5028 = vunpack.c.l.b16 %v1945
    %v5029 = vunpack.c.h.b16 %v1945
    %v5030 = vunpack.c.l.b16 %v1946
    %v5031 = vunpack.c.h.b16 %v1946
    %v5032 = vunpack.c.l.b16 %v1947
    %v5033 = vunpack.c.h.b16 %v1947
    %v5034 = vunpack.c.l.b16 %v1948
    %v5035 = vunpack.c.h.b16 %v1948
    %v5036 = vunpack.c.l.b16 %v1949
    %v5037 = vunpack.c.h.b16 %v1949
    %v5038 = vunpack.c.l.b16 %v1950
    %v5039 = vunpack.c.h.b16 %v1950
    %v5040 = vunpack.c.l.b16 %v1951
    %v5041 = vunpack.c.h.b16 %v1951
    %v5042 = vunpack.c.l.b16 %v1952
    %v5043 = vunpack.c.h.b16 %v1952
    %v5044 = vunpack.c.l.b16 %v1953
    %v5045 = vunpack.c.h.b16 %v1953
    %v5046 = vunpack.c.l.b16 %v1954
    %v5047 = vunpack.c.h.b16 %v1954
    %v5048 = vunpack.c.l.b16 %v1955
    %v5049 = vunpack.c.h.b16 %v1955
    %v5050 = vunpack.c.l.b16 %v1956
    %v5051 = vunpack.c.h.b16 %v1956
    %v5052 = vunpack.c.l.b16 %v1957
    %v5053 = vunpack.c.h.b16 %v1957
    %v5054 = vunpack.c.l.b16 %v1958
    %v5055 = vunpack.c.h.b16 %v1958
    %v5056 = vunpack.c.l.b16 %v1959
    %v5057 = vunpack.c.h.b16 %v1959
    %v5058 = vunpack.c.l.b16 %v1960
    %v5059 = vunpack.c.h.b16 %v1960
    %v5060 = vunpack.c.l.b16 %v1961
    %v5061 = vunpack.c.h.b16 %v1961
    %v5062 = vunpack.c.l.b16 %v1962
    %v5063 = vunpack.c.h.b16 %v1962
    %v5064 = vunpack.c.l.b16 %v1963
    %v5065 = vunpack.c.h.b16 %v1963
    %v5066 = vunpack.c.l.b16 %v1964
    %v5067 = vunpack.c.h.b16 %v1964
    %v5068 = vunpack.c.l.b16 %v1965
    %v5069 = vunpack.c.h.b16 %v1965
    %v5070 = vunpack.c.l.b16 %v1966
    %v5071 = vunpack.c.h.b16 %v1966
    %v5072 = vunpack.c.l.b16 %v1967
    %v5073 = vunpack.c.h.b16 %v1967
    %v5074 = vunpack.c.l.b16 %v1968
    %v5075 = vunpack.c.h.b16 %v1968
    %v5076 = vunpack.c.l.b16 %v1969
    %v5077 = vunpack.c.h.b16 %v1969
    %v5078 = vunpack.c.l.b16 %v1970
    %v5079 = vunpack.c.h.b16 %v1970
    %v5080 = vunpack.c.l.b16 %v1971
    %v5081 = vunpack.c.h.b16 %v1971
    %v5082 = vunpack.c.l.b16 %v1972
    %v5083 = vunpack.c.h.b16 %v1972
    %v5084 = vunpack.c.l.b16 %v1973
    %v5085 = vunpack.c.h.b16 %v1973
    %v5086 = vunpack.c.l.b16 %v1974
    %v5087 = vunpack.c.h.b16 %v1974
    %v5088 = vunpack.c.l.b16 %v1975
    %v5089 = vunpack.c.h.b16 %v1975
    %v5090 = vunpack.c.l.b16 %v1976
    %v5091 = vunpack.c.h.b16 %v1976
    %v5092 = vunpack.c.l.b16 %v1977
    %v5093 = vunpack.c.h.b16 %v1977
    %v5094 = vunpack.c.l.b16 %v1978
    %v5095 = vunpack.c.h.b16 %v1978
    %v5096 = vunpack.c.l.b16 %v1979
    %v5097 = vunpack.c.h.b16 %v1979
    %v5098 = vunpack.c.l.b16 %v1980
    %v5099 = vunpack.c.h.b16 %v1980
    %v5100 = vunpack.c.l.b16 %v1981
    %v5101 = vunpack.c.h.b16 %v1981
    %v5102 = vunpack.c.l.b16 %v1982
    %v5103 = vunpack.c.h.b16 %v1982
    %v5104 = vunpack.c.l.b16 %v1983
    %v5105 = vunpack.c.h.b16 %v1983
    %v5106 = vunpack.c.l.b16 %v1984
    %v5107 = vunpack.c.h.b16 %v1984
    %v5108 = vunpack.c.l.b16 %v1985
    %v5109 = vunpack.c.h.b16 %v1985
    %v5110 = vunpack.c.l.b16 %v1986
    %v5111 = vunpack.c.h.b16 %v1986
    %v5112 = vunpack.c.l.b16 %v1987
    %v5113 = vunpack.c.h.b16 %v1987
    %v5114 = vunpack.c.l.b16 %v1988
    %v5115 = vunpack.c.h.b16 %v1988
    %v5116 = vunpack.c.l.b16 %v1989
    %v5117 = vunpack.c.h.b16 %v1989
    %v5118 = vunpack.c.l.b16 %v1990
    %v5119 = vunpack.c.h.b16 %v1990
    %v5120 = vunpack.c.l.b16 %v1991
    %v5121 = vunpack.c.h.b16 %v1991
    %v5122 = vunpack.c.l.b16 %v1992
    %v5123 = vunpack.c.h.b16 %v1992
    %v5124 = vunpack.c.l.b16 %v1993
    %v5125 = vunpack.c.h.b16 %v1993
    %v5126 = vunpack.c.l.b16 %v1994
    %v5127 = vunpack.c.h.b16 %v1994
    %v5128 = vunpack.c.l.b16 %v1995
    %v5129 = vunpack.c.h.b16 %v1995
    %v5130 = vunpack.c.l.b16 %v1996
    %v5131 = vunpack.c.h.b16 %v1996
    %v5132 = vunpack.c.l.b16 %v1997
    %v5133 = vunpack.c.h.b16 %v1997
    %v5134 = vunpack.c.l.b16 %v1998
    %v5135 = vunpack.c.h.b16 %v1998
    %v5136 = vunpack.c.l.b16 %v1999
    %v5137 = vunpack.c.h.b16 %v1999
    %v5138 = vunpack.c.l.b16 %v2000
    %v5139 = vunpack.c.h.b16 %v2000
    %v5140 = vunpack.c.l.b16 %v2001
    %v5141 = vunpack.c.h.b16 %v2001
    %v5142 = vunpack.c.l.b16 %v2002
    %v5143 = vunpack.c.h.b16 %v2002
    %v5144 = vunpack.c.l.b16 %v2003
    %v5145 = vunpack.c.h.b16 %v2003
    %v5146 = vunpack.c.l.b16 %v2004
    %v5147 = vunpack.c.h.b16 %v2004
    %v5148 = vunpack.c.l.b16 %v2005
    %v5149 = vunpack.c.h.b16 %v2005
    %v5150 = vunpack.c.l.b16 %v2006
    %v5151 = vunpack.c.h.b16 %v2006
    %v5152 = vunpack.c.l.b16 %v2007
    %v5153 = vunpack.c.h.b16 %v2007
    %v5154 = vunpack.c.l.b16 %v2008
    %v5155 = vunpack.c.h.b16 %v2008
    %v5156 = vunpack.c.l.b16 %v2009
    %v5157 = vunpack.c.h.b16 %v2009
    %v5158 = vunpack.c.l.b16 %v2010
    %v5159 = vunpack.c.h.b16 %v2010
    %v5160 = vunpack.c.l.b16 %v2011
    %v5161 = vunpack.c.h.b16 %v2011
    %v5162 = vunpack.c.l.b16 %v2012
    %v5163 = vunpack.c.h.b16 %v2012
    %v5164 = vunpack.c.l.b16 %v2013
    %v5165 = vunpack.c.h.b16 %v2013
    %v5166 = vunpack.c.l.b16 %v2014
    %v5167 = vunpack.c.h.b16 %v2014
    %v5168 = vunpack.c.l.b16 %v2015
    %v5169 = vunpack.c.h.b16 %v2015
    %v5170 = vunpack.c.l.b16 %v2016
    %v5171 = vunpack.c.h.b16 %v2016
    %v5172 = vunpack.c.l.b16 %v2017
    %v5173 = vunpack.c.h.b16 %v2017
    %v5174 = vunpack.c.l.b16 %v2018
    %v5175 = vunpack.c.h.b16 %v2018
    %v5176 = vunpack.c.l.b16 %v2019
    %v5177 = vunpack.c.h.b16 %v2019
    %v5178 = vunpack.c.l.b16 %v2020
    %v5179 = vunpack.c.h.b16 %v2020
    %v5180 = vunpack.c.l.b16 %v2021
    %v5181 = vunpack.c.h.b16 %v2021
    %v5182 = vunpack.c.l.b16 %v2022
    %v5183 = vunpack.c.h.b16 %v2022
    %v5184 = vunpack.c.l.b16 %v2023
    %v5185 = vunpack.c.h.b16 %v2023
    %v5186 = vunpack.c.l.b16 %v2024
    %v5187 = vunpack.c.h.b16 %v2024
    %v5188 = vunpack.c.l.b16 %v2025
    %v5189 = vunpack.c.h.b16 %v2025
    %v5190 = vunpack.c.l.b16 %v2026
    %v5191 = vunpack.c.h.b16 %v2026
    %v5192 = vunpack.c.l.b16 %v2027
    %v5193 = vunpack.c.h.b16 %v2027
    %v5194 = vunpack.c.l.b16 %v2028
    %v5195 = vunpack.c.h.b16 %v2028
    %v5196 = vunpack.c.l.b16 %v2029
    %v5197 = vunpack.c.h.b16 %v2029
    %v5198 = vunpack.c.l.b16 %v2030
    %v5199 = vunpack.c.h.b16 %v2030
    %v5200 = vunpack.c.l.b16 %v2031
    %v5201 = vunpack.c.h.b16 %v2031
    %v5202 = vunpack.c.l.b16 %v2032
    %v5203 = vunpack.c.h.b16 %v2032
    %v5204 = vunpack.c.l.b16 %v2033
    %v5205 = vunpack.c.h.b16 %v2033
    %v5206 = vunpack.c.l.b16 %v2034
    %v5207 = vunpack.c.h.b16 %v2034
    %v5208 = vunpack.c.l.b16 %v2035
    %v5209 = vunpack.c.h.b16 %v2035
    %v5210 = vunpack.c.l.b16 %v2036
    %v5211 = vunpack.c.h.b16 %v2036
    %v5212 = vunpack.c.l.b16 %v2037
    %v5213 = vunpack.c.h.b16 %v2037
    %v5214 = vunpack.c.l.b16 %v2038
    %v5215 = vunpack.c.h.b16 %v2038
    %v5216 = vunpack.c.l.b16 %v2039
    %v5217 = vunpack.c.h.b16 %v2039
    %v5218 = vunpack.c.l.b16 %v2040
    %v5219 = vunpack.c.h.b16 %v2040
    %v5220 = vunpack.c.l.b16 %v2041
    %v5221 = vunpack.c.h.b16 %v2041
    %v5222 = vunpack.c.l.b16 %v2042
    %v5223 = vunpack.c.h.b16 %v2042
    %v5224 = vunpack.c.l.b16 %v2043
    %v5225 = vunpack.c.h.b16 %v2043
    %v5226 = vunpack.c.l.b16 %v2044
    %v5227 = vunpack.c.h.b16 %v2044
    %v5228 = vunpack.c.l.b16 %v2045
    %v5229 = vunpack.c.h.b16 %v2045
    %v5230 = vunpack.c.l.b16 %v2046
    %v5231 = vunpack.c.h.b16 %v2046
    %v5232 = vunpack.c.l.b16 %v2047
    %v5233 = vunpack.c.h.b16 %v2047
    %v5234 = vunpack.c.l.b16 %v2048
    %v5235 = vunpack.c.h.b16 %v2048
    %v5236 = vunpack.c.l.b16 %v2049
    %v5237 = vunpack.c.h.b16 %v2049
    %v5238 = vunpack.c.l.b16 %v2050
    %v5239 = vunpack.c.h.b16 %v2050
    %v5240 = vunpack.c.l.b16 %v2051
    %v5241 = vunpack.c.h.b16 %v2051
    %v5242 = vunpack.c.l.b16 %v2052
    %v5243 = vunpack.c.h.b16 %v2052
    %v5244 = vunpack.c.l.b16 %v2053
    %v5245 = vunpack.c.h.b16 %v2053
    %v5246 = vunpack.c.l.b16 %v2054
    %v5247 = vunpack.c.h.b16 %v2054
    %v5248 = vunpack.c.l.b16 %v2055
    %v5249 = vunpack.c.h.b16 %v2055
    %v5250 = vunpack.c.l.b16 %v2056
    %v5251 = vunpack.c.h.b16 %v2056
    %v5252 = vunpack.c.l.b16 %v2057
    %v5253 = vunpack.c.h.b16 %v2057
    %v5254 = vunpack.c.l.b16 %v2058
    %v5255 = vunpack.c.h.b16 %v2058
    %v5256 = vunpack.c.l.b16 %v2059
    %v5257 = vunpack.c.h.b16 %v2059
    %v5258 = vunpack.c.l.b16 %v2060
    %v5259 = vunpack.c.h.b16 %v2060
    %v5260 = vunpack.c.l.b16 %v2061
    %v5261 = vunpack.c.h.b16 %v2061
    %v5262 = vunpack.c.l.b16 %v2062
    %v5263 = vunpack.c.h.b16 %v2062
    %v5264 = vunpack.c.l.b16 %v2063
    %v5265 = vunpack.c.h.b16 %v2063
    %v5266 = vunpack.c.l.b16 %v2064
    %v5267 = vunpack.c.h.b16 %v2064
    %v5268 = vunpack.c.l.b16 %v2065
    %v5269 = vunpack.c.h.b16 %v2065
    %v5270 = vunpack.c.l.b16 %v2066
    %v5271 = vunpack.c.h.b16 %v2066
    %v5272 = vunpack.c.l.b16 %v2067
    %v5273 = vunpack.c.h.b16 %v2067
    %v5274 = vpack.c.b16 %v3230, %v3226
    %v5275 = vpack.c.b16 %v3231, %v3227
    %v5276 = vpack.c.b16 %v3232, %v3228
    %v5277 = vpack.c.b16 %v3233, %v3229
    %v5278 = vpack.c.b16 %v3238, %v3234
    %v5279 = vpack.c.b16 %v3239, %v3235
    %v5280 = vpack.c.b16 %v3240, %v3236
    %v5281 = vpack.c.b16 %v3241, %v3237
    %v5282 = vpack.c.b16 %v3246, %v3242
    %v5283 = vpack.c.b16 %v3247, %v3243
    %v5284 = vpack.c.b16 %v3248, %v3244
    %v5285 = vpack.c.b16 %v3249, %v3245
    %v5286 = vpack.c.b16 %v3254, %v3250
    %v5287 = vpack.c.b16 %v3255, %v3251
    %v5288 = vpack.c.b16 %v3256, %v3252
    %v5289 = vpack.c.b16 %v3257, %v3253
    %v5290 = vpack.c.b16 %v3262, %v3258
    %v5291 = vpack.c.b16 %v3263, %v3259
    %v5292 = vpack.c.b16 %v3264, %v3260
    %v5293 = vpack.c.b16 %v3265, %v3261
    %v5294 = vpack.c.b16 %v3270, %v3266
    %v5295 = vpack.c.b16 %v3271, %v3267
    %v5296 = vpack.c.b16 %v3272, %v3268
    %v5297 = vpack.c.b16 %v3273, %v3269
    %v5298 = vpack.c.b16 %v3278, %v3274
    %v5299 = vpack.c.b16 %v3279, %v3275
    %v5300 = vpack.c.b16 %v3280, %v3276
    %v5301 = vpack.c.b16 %v3281, %v3277
    %v5302 = vpack.c.b16 %v3286, %v3282
    %v5303 = vpack.c.b16 %v3287, %v3283
    %v5304 = vpack.c.b16 %v3288, %v3284
    %v5305 = vpack.c.b16 %v3289, %v3285
    %v5306 = vpack.c.b16 %v3294, %v3290
    %v5307 = vpack.c.b16 %v3295, %v3291
    %v5308 = vpack.c.b16 %v3296, %v3292
    %v5309 = vpack.c.b16 %v3297, %v3293
    %v5310 = vpack.c.b16 %v3302, %v3298
    %v5311 = vpack.c.b16 %v3303, %v3299
    %v5312 = vpack.c.b16 %v3304, %v3300
    %v5313 = vpack.c.b16 %v3305, %v3301
    %v5314 = vpack.c.b16 %v3310, %v3306
    %v5315 = vpack.c.b16 %v3311, %v3307
    %v5316 = vpack.c.b16 %v3312, %v3308
    %v5317 = vpack.c.b16 %v3313, %v3309
    %v5318 = vpack.c.b16 %v3318, %v3314
    %v5319 = vpack.c.b16 %v3319, %v3315
    %v5320 = vpack.c.b16 %v3320, %v3316
    %v5321 = vpack.c.b16 %v3321, %v3317
    %v5322 = vpack.c.b16 %v3326, %v3322
    %v5323 = vpack.c.b16 %v3327, %v3323
    %v5324 = vpack.c.b16 %v3328, %v3324
    %v5325 = vpack.c.b16 %v3329, %v3325
    %v5326 = vpack.c.b16 %v3334, %v3330
    %v5327 = vpack.c.b16 %v3335, %v3331
    %v5328 = vpack.c.b16 %v3336, %v3332
    %v5329 = vpack.c.b16 %v3337, %v3333
    %v5330 = vpack.c.b16 %v3342, %v3338
    %v5331 = vpack.c.b16 %v3343, %v3339
    %v5332 = vpack.c.b16 %v3344, %v3340
    %v5333 = vpack.c.b16 %v3345, %v3341
    %v5334 = vpack.c.b16 %v3350, %v3346
    %v5335 = vpack.c.b16 %v3351, %v3347
    %v5336 = vpack.c.b16 %v3352, %v3348
    %v5337 = vpack.c.b16 %v3353, %v3349
    %v5338 = vpack.c.b16 %v3358, %v3354
    %v5339 = vpack.c.b16 %v3359, %v3355
    %v5340 = vpack.c.b16 %v3360, %v3356
    %v5341 = vpack.c.b16 %v3361, %v3357
    %v5342 = vpack.c.b16 %v3366, %v3362
    %v5343 = vpack.c.b16 %v3367, %v3363
    %v5344 = vpack.c.b16 %v3368, %v3364
    %v5345 = vpack.c.b16 %v3369, %v3365
    %v5346 = vpack.c.b16 %v3374, %v3370
    %v5347 = vpack.c.b16 %v3375, %v3371
    %v5348 = vpack.c.b16 %v3376, %v3372
    %v5349 = vpack.c.b16 %v3377, %v3373
    %v5350 = vpack.c.b16 %v3382, %v3378
    %v5351 = vpack.c.b16 %v3383, %v3379
    %v5352 = vpack.c.b16 %v3384, %v3380
    %v5353 = vpack.c.b16 %v3385, %v3381
    %v5354 = vpack.c.b16 %v3390, %v3386
    %v5355 = vpack.c.b16 %v3391, %v3387
    %v5356 = vpack.c.b16 %v3392, %v3388
    %v5357 = vpack.c.b16 %v3393, %v3389
    %v5358 = vpack.c.b16 %v3398, %v3394
    %v5359 = vpack.c.b16 %v3399, %v3395
    %v5360 = vpack.c.b16 %v3400, %v3396
    %v5361 = vpack.c.b16 %v3401, %v3397
    %v5362 = vpack.c.b16 %v3406, %v3402
    %v5363 = vpack.c.b16 %v3407, %v3403
    %v5364 = vpack.c.b16 %v3408, %v3404
    %v5365 = vpack.c.b16 %v3409, %v3405
    %v5366 = vpack.c.b16 %v3414, %v3410
    %v5367 = vpack.c.b16 %v3415, %v3411
    %v5368 = vpack.c.b16 %v3416, %v3412
    %v5369 = vpack.c.b16 %v3417, %v3413
    %v5370 = vpack.c.b16 %v3422, %v3418
    %v5371 = vpack.c.b16 %v3423, %v3419
    %v5372 = vpack.c.b16 %v3424, %v3420
    %v5373 = vpack.c.b16 %v3425, %v3421
    %v5374 = vpack.c.b16 %v3430, %v3426
    %v5375 = vpack.c.b16 %v3431, %v3427
    %v5376 = vpack.c.b16 %v3432, %v3428
    %v5377 = vpack.c.b16 %v3433, %v3429
    %v5378 = vpack.c.b16 %v3438, %v3434
    %v5379 = vpack.c.b16 %v3439, %v3435
    %v5380 = vpack.c.b16 %v3440, %v3436
    %v5381 = vpack.c.b16 %v3441, %v3437
    %v5382 = vpack.c.b16 %v3446, %v3442
    %v5383 = vpack.c.b16 %v3447, %v3443
    %v5384 = vpack.c.b16 %v3448, %v3444
    %v5385 = vpack.c.b16 %v3449, %v3445
    %v5386 = vpack.c.b16 %v3454, %v3450
    %v5387 = vpack.c.b16 %v3455, %v3451
    %v5388 = vpack.c.b16 %v3456, %v3452
    %v5389 = vpack.c.b16 %v3457, %v3453
    %v5390 = vpack.c.b16 %v3462, %v3458
    %v5391 = vpack.c.b16 %v3463, %v3459
    %v5392 = vpack.c.b16 %v3464, %v3460
    %v5393 = vpack.c.b16 %v3465, %v3461
    %v5394 = vpack.c.b16 %v3470, %v3466
    %v5395 = vpack.c.b16 %v3471, %v3467
    %v5396 = vpack.c.b16 %v3472, %v3468
    %v5397 = vpack.c.b16 %v3473, %v3469
    %v5398 = vpack.c.b16 %v3478, %v3474
    %v5399 = vpack.c.b16 %v3479, %v3475
    %v5400 = vpack.c.b16 %v3480, %v3476
    %v5401 = vpack.c.b16 %v3481, %v3477
    %v5402 = vpack.c.b16 %v3486, %v3482
    %v5403 = vpack.c.b16 %v3487, %v3483
    %v5404 = vpack.c.b16 %v3488, %v3484
    %v5405 = vpack.c.b16 %v3489, %v3485
    %v5406 = vpack.c.b16 %v3494, %v3490
    %v5407 = vpack.c.b16 %v3495, %v3491
    %v5408 = vpack.c.b16 %v3496, %v3492
    %v5409 = vpack.c.b16 %v3497, %v3493
    %v5410 = vpack.c.b16 %v3502, %v3498
    %v5411 = vpack.c.b16 %v3503, %v3499
    %v5412 = vpack.c.b16 %v3504, %v3500
    %v5413 = vpack.c.b16 %v3505, %v3501
    %v5414 = vpack.c.b16 %v3510, %v3506
    %v5415 = vpack.c.b16 %v3511, %v3507
    %v5416 = vpack.c.b16 %v3512, %v3508
    %v5417 = vpack.c.b16 %v3513, %v3509
    %v5418 = vpack.c.b16 %v3518, %v3514
    %v5419 = vpack.c.b16 %v3519, %v3515
    %v5420 = vpack.c.b16 %v3520, %v3516
    %v5421 = vpack.c.b16 %v3521, %v3517
    %v5422 = vpack.c.b16 %v3526, %v3522
    %v5423 = vpack.c.b16 %v3527, %v3523
    %v5424 = vpack.c.b16 %v3528, %v3524
    %v5425 = vpack.c.b16 %v3529, %v3525
    %v5426 = vpack.c.b16 %v3534, %v3530
    %v5427 = vpack.c.b16 %v3535, %v3531
    %v5428 = vpack.c.b16 %v3536, %v3532
    %v5429 = vpack.c.b16 %v3537, %v3533
    %v5430 = vpack.c.b16 %v3542, %v3538
    %v5431 = vpack.c.b16 %v3543, %v3539
    %v5432 = vpack.c.b16 %v3544, %v3540
    %v5433 = vpack.c.b16 %v3545, %v3541
    %v5434 = vpack.c.b16 %v3550, %v3546
    %v5435 = vpack.c.b16 %v3551, %v3547
    %v5436 = vpack.c.b16 %v3552, %v3548
    %v5437 = vpack.c.b16 %v3553, %v3549
    %v5438 = vpack.c.b16 %v3558, %v3554
    %v5439 = vpack.c.b16 %v3559, %v3555
    %v5440 = vpack.c.b16 %v3560, %v3556
    %v5441 = vpack.c.b16 %v3561, %v3557
    %v5442 = vpack.c.b16 %v3566, %v3562
    %v5443 = vpack.c.b16 %v3567, %v3563
    %v5444 = vpack.c.b16 %v3568, %v3564
    %v5445 = vpack.c.b16 %v3569, %v3565
    %v5446 = vpack.c.b16 %v3574, %v3570
    %v5447 = vpack.c.b16 %v3575, %v3571
    %v5448 = vpack.c.b16 %v3576, %v3572
    %v5449 = vpack.c.b16 %v3577, %v3573
    %v5450 = vpack.c.b16 %v3582, %v3578
    %v5451 = vpack.c.b16 %v3583, %v3579
    %v5452 = vpack.c.b16 %v3584, %v3580
    %v5453 = vpack.c.b16 %v3585, %v3581
    %v5454 = vpack.c.b16 %v3590, %v3586
    %v5455 = vpack.c.b16 %v3591, %v3587
    %v5456 = vpack.c.b16 %v3592, %v3588
    %v5457 = vpack.c.b16 %v3593, %v3589
    %v5458 = vpack.c.b16 %v3598, %v3594
    %v5459 = vpack.c.b16 %v3599, %v3595
    %v5460 = vpack.c.b16 %v3600, %v3596
    %v5461 = vpack.c.b16 %v3601, %v3597
    %v5462 = vpack.c.b16 %v3606, %v3602
    %v5463 = vpack.c.b16 %v3607, %v3603
    %v5464 = vpack.c.b16 %v3608, %v3604
    %v5465 = vpack.c.b16 %v3609, %v3605
    %v5466 = vpack.c.b16 %v3614, %v3610
    %v5467 = vpack.c.b16 %v3615, %v3611
    %v5468 = vpack.c.b16 %v3616, %v3612
    %v5469 = vpack.c.b16 %v3617, %v3613
    %v5470 = vpack.c.b16 %v3622, %v3618
    %v5471 = vpack.c.b16 %v3623, %v3619
    %v5472 = vpack.c.b16 %v3624, %v3620
    %v5473 = vpack.c.b16 %v3625, %v3621
    %v5474 = vpack.c.b16 %v3630, %v3626
    %v5475 = vpack.c.b16 %v3631, %v3627
    %v5476 = vpack.c.b16 %v3632, %v3628
    %v5477 = vpack.c.b16 %v3633, %v3629
    %v5478 = vpack.c.b16 %v3638, %v3634
    %v5479 = vpack.c.b16 %v3639, %v3635
    %v5480 = vpack.c.b16 %v3640, %v3636
    %v5481 = vpack.c.b16 %v3641, %v3637
    %v5482 = vpack.c.b16 %v3646, %v3642
    %v5483 = vpack.c.b16 %v3647, %v3643
    %v5484 = vpack.c.b16 %v3648, %v3644
    %v5485 = vpack.c.b16 %v3649, %v3645
    %v5486 = vpack.c.b16 %v3654, %v3650
    %v5487 = vpack.c.b16 %v3655, %v3651
    %v5488 = vpack.c.b16 %v3656, %v3652
    %v5489 = vpack.c.b16 %v3657, %v3653
    %v5490 = vpack.c.b16 %v3662, %v3658
    %v5491 = vpack.c.b16 %v3663, %v3659
    %v5492 = vpack.c.b16 %v3664, %v3660
    %v5493 = vpack.c.b16 %v3665, %v3661
    %v5494 = vpack.c.b16 %v3670, %v3666
    %v5495 = vpack.c.b16 %v3671, %v3667
    %v5496 = vpack.c.b16 %v3672, %v3668
    %v5497 = vpack.c.b16 %v3673, %v3669
    %v5498 = vpack.c.b16 %v3678, %v3674
    %v5499 = vpack.c.b16 %v3679, %v3675
    %v5500 = vpack.c.b16 %v3680, %v3676
    %v5501 = vpack.c.b16 %v3681, %v3677
    %v5502 = vpack.c.b16 %v3686, %v3682
    %v5503 = vpack.c.b16 %v3687, %v3683
    %v5504 = vpack.c.b16 %v3688, %v3684
    %v5505 = vpack.c.b16 %v3689, %v3685
    %v5506 = vpack.c.b16 %v3694, %v3690
    %v5507 = vpack.c.b16 %v3695, %v3691
    %v5508 = vpack.c.b16 %v3696, %v3692
    %v5509 = vpack.c.b16 %v3697, %v3693
    %v5510 = vpack.c.b16 %v3702, %v3698
    %v5511 = vpack.c.b16 %v3703, %v3699
    %v5512 = vpack.c.b16 %v3704, %v3700
    %v5513 = vpack.c.b16 %v3705, %v3701
    %v5514 = vpack.c.b16 %v3710, %v3706
    %v5515 = vpack.c.b16 %v3711, %v3707
    %v5516 = vpack.c.b16 %v3712, %v3708
    %v5517 = vpack.c.b16 %v3713, %v3709
    %v5518 = vpack.c.b16 %v3718, %v3714
    %v5519 = vpack.c.b16 %v3719, %v3715
    %v5520 = vpack.c.b16 %v3720, %v3716
    %v5521 = vpack.c.b16 %v3721, %v3717
    %v5522 = vpack.c.b16 %v3726, %v3722
    %v5523 = vpack.c.b16 %v3727, %v3723
    %v5524 = vpack.c.b16 %v3728, %v3724
    %v5525 = vpack.c.b16 %v3729, %v3725
    %v5526 = vpack.c.b16 %v3734, %v3730
    %v5527 = vpack.c.b16 %v3735, %v3731
    %v5528 = vpack.c.b16 %v3736, %v3732
    %v5529 = vpack.c.b16 %v3737, %v3733
    %v5530 = vpack.c.b16 %v3742, %v3738
    %v5531 = vpack.c.b16 %v3743, %v3739
    %v5532 = vpack.c.b16 %v3744, %v3740
    %v5533 = vpack.c.b16 %v3745, %v3741
    %v5534 = vpack.c.b16 %v3750, %v3746
    %v5535 = vpack.c.b16 %v3751, %v3747
    %v5536 = vpack.c.b16 %v3752, %v3748
    %v5537 = vpack.c.b16 %v3753, %v3749
    %v5538 = vpack.c.b16 %v3758, %v3754
    %v5539 = vpack.c.b16 %v3759, %v3755
    %v5540 = vpack.c.b16 %v3760, %v3756
    %v5541 = vpack.c.b16 %v3761, %v3757
    %v5542 = vpack.c.b16 %v3766, %v3762
    %v5543 = vpack.c.b16 %v3767, %v3763
    %v5544 = vpack.c.b16 %v3768, %v3764
    %v5545 = vpack.c.b16 %v3769, %v3765
    %v5546 = vpack.c.b16 %v3774, %v3770
    %v5547 = vpack.c.b16 %v3775, %v3771
    %v5548 = vpack.c.b16 %v3776, %v3772
    %v5549 = vpack.c.b16 %v3777, %v3773
    %v5550 = vpack.c.b16 %v3782, %v3778
    %v5551 = vpack.c.b16 %v3783, %v3779
    %v5552 = vpack.c.b16 %v3784, %v3780
    %v5553 = vpack.c.b16 %v3785, %v3781
    %v5554 = vpack.c.b16 %v3790, %v3786
    %v5555 = vpack.c.b16 %v3791, %v3787
    %v5556 = vpack.c.b16 %v3792, %v3788
    %v5557 = vpack.c.b16 %v3793, %v3789
    %v5558 = vpack.c.b16 %v3798, %v3794
    %v5559 = vpack.c.b16 %v3799, %v3795
    %v5560 = vpack.c.b16 %v3800, %v3796
    %v5561 = vpack.c.b16 %v3801, %v3797
    %v5562 = vpack.c.b16 %v3806, %v3802
    %v5563 = vpack.c.b16 %v3807, %v3803
    %v5564 = vpack.c.b16 %v3808, %v3804
    %v5565 = vpack.c.b16 %v3809, %v3805
    %v5566 = vpack.c.b16 %v3814, %v3810
    %v5567 = vpack.c.b16 %v3815, %v3811
    %v5568 = vpack.c.b16 %v3816, %v3812
    %v5569 = vpack.c.b16 %v3817, %v3813
    %v5570 = vpack.c.b16 %v3822, %v3818
    %v5571 = vpack.c.b16 %v3823, %v3819
    %v5572 = vpack.c.b16 %v3824, %v3820
    %v5573 = vpack.c.b16 %v3825, %v3821
    %v5574 = vpack.c.b16 %v3830, %v3826
    %v5575 = vpack.c.b16 %v3831, %v3827
    %v5576 = vpack.c.b16 %v3832, %v3828
    %v5577 = vpack.c.b16 %v3833, %v3829
    %v5578 = vpack.c.b16 %v3838, %v3834
    %v5579 = vpack.c.b16 %v3839, %v3835
    %v5580 = vpack.c.b16 %v3840, %v3836
    %v5581 = vpack.c.b16 %v3841, %v3837
    %v5582 = vpack.c.b16 %v3846, %v3842
    %v5583 = vpack.c.b16 %v3847, %v3843
    %v5584 = vpack.c.b16 %v3848, %v3844
    %v5585 = vpack.c.b16 %v3849, %v3845
    %v5586 = vpack.c.b16 %v3854, %v3850
    %v5587 = vpack.c.b16 %v3855, %v3851
    %v5588 = vpack.c.b16 %v3856, %v3852
    %v5589 = vpack.c.b16 %v3857, %v3853
    %v5590 = vpack.c.b16 %v3862, %v3858
    %v5591 = vpack.c.b16 %v3863, %v3859
    %v5592 = vpack.c.b16 %v3864, %v3860
    %v5593 = vpack.c.b16 %v3865, %v3861
    %v5594 = vpack.c.b16 %v3870, %v3866
    %v5595 = vpack.c.b16 %v3871, %v3867
    %v5596 = vpack.c.b16 %v3872, %v3868
    %v5597 = vpack.c.b16 %v3873, %v3869
    %v5598 = vpack.c.b16 %v3878, %v3874
    %v5599 = vpack.c.b16 %v3879, %v3875
    %v5600 = vpack.c.b16 %v3880, %v3876
    %v5601 = vpack.c.b16 %v3881, %v3877
    %v5602 = vpack.c.b16 %v3886, %v3882
    %v5603 = vpack.c.b16 %v3887, %v3883
    %v5604 = vpack.c.b16 %v3888, %v3884
    %v5605 = vpack.c.b16 %v3889, %v3885
    %v5606 = vpack.c.b16 %v3894, %v3890
    %v5607 = vpack.c.b16 %v3895, %v3891
    %v5608 = vpack.c.b16 %v3896, %v3892
    %v5609 = vpack.c.b16 %v3897, %v3893
    %v5610 = vpack.c.b16 %v3902, %v3898
    %v5611 = vpack.c.b16 %v3903, %v3899
    %v5612 = vpack.c.b16 %v3904, %v3900
    %v5613 = vpack.c.b16 %v3905, %v3901
    %v5614 = vpack.c.b16 %v3910, %v3906
    %v5615 = vpack.c.b16 %v3911, %v3907
    %v5616 = vpack.c.b16 %v3912, %v3908
    %v5617 = vpack.c.b16 %v3913, %v3909
    %v5618 = vpack.c.b16 %v3918, %v3914
    %v5619 = vpack.c.b16 %v3919, %v3915
    %v5620 = vpack.c.b16 %v3920, %v3916
    %v5621 = vpack.c.b16 %v3921, %v3917
    %v5622 = vpack.c.b16 %v3926, %v3922
    %v5623 = vpack.c.b16 %v3927, %v3923
    %v5624 = vpack.c.b16 %v3928, %v3924
    %v5625 = vpack.c.b16 %v3929, %v3925
    %v5626 = vpack.c.b16 %v3934, %v3930
    %v5627 = vpack.c.b16 %v3935, %v3931
    %v5628 = vpack.c.b16 %v3936, %v3932
    %v5629 = vpack.c.b16 %v3937, %v3933
    %v5630 = vpack.c.b16 %v3942, %v3938
    %v5631 = vpack.c.b16 %v3943, %v3939
    %v5632 = vpack.c.b16 %v3944, %v3940
    %v5633 = vpack.c.b16 %v3945, %v3941
    %v5634 = vpack.c.b16 %v3950, %v3946
    %v5635 = vpack.c.b16 %v3951, %v3947
    %v5636 = vpack.c.b16 %v3952, %v3948
    %v5637 = vpack.c.b16 %v3953, %v3949
    %v5638 = vpack.c.b16 %v3958, %v3954
    %v5639 = vpack.c.b16 %v3959, %v3955
    %v5640 = vpack.c.b16 %v3960, %v3956
    %v5641 = vpack.c.b16 %v3961, %v3957
    %v5642 = vpack.c.b16 %v3966, %v3962
    %v5643 = vpack.c.b16 %v3967, %v3963
    %v5644 = vpack.c.b16 %v3968, %v3964
    %v5645 = vpack.c.b16 %v3969, %v3965
    %v5646 = vpack.c.b16 %v3974, %v3970
    %v5647 = vpack.c.b16 %v3975, %v3971
    %v5648 = vpack.c.b16 %v3976, %v3972
    %v5649 = vpack.c.b16 %v3977, %v3973
    %v5650 = vpack.c.b16 %v3982, %v3978
    %v5651 = vpack.c.b16 %v3983, %v3979
    %v5652 = vpack.c.b16 %v3984, %v3980
    %v5653 = vpack.c.b16 %v3985, %v3981
    %v5654 = vpack.c.b16 %v3990, %v3986
    %v5655 = vpack.c.b16 %v3991, %v3987
    %v5656 = vpack.c.b16 %v3992, %v3988
    %v5657 = vpack.c.b16 %v3993, %v3989
    %v5658 = vpack.c.b16 %v3998, %v3994
    %v5659 = vpack.c.b16 %v3999, %v3995
    %v5660 = vpack.c.b16 %v4000, %v3996
    %v5661 = vpack.c.b16 %v4001, %v3997
    %v5662 = vpack.c.b16 %v4006, %v4002
    %v5663 = vpack.c.b16 %v4007, %v4003
    %v5664 = vpack.c.b16 %v4008, %v4004
    %v5665 = vpack.c.b16 %v4009, %v4005
    %v5666 = vpack.c.b16 %v4014, %v4010
    %v5667 = vpack.c.b16 %v4015, %v4011
    %v5668 = vpack.c.b16 %v4016, %v4012
    %v5669 = vpack.c.b16 %v4017, %v4013
    %v5670 = vpack.c.b16 %v4022, %v4018
    %v5671 = vpack.c.b16 %v4023, %v4019
    %v5672 = vpack.c.b16 %v4024, %v4020
    %v5673 = vpack.c.b16 %v4025, %v4021
    %v5674 = vpack.c.b16 %v4030, %v4026
    %v5675 = vpack.c.b16 %v4031, %v4027
    %v5676 = vpack.c.b16 %v4032, %v4028
    %v5677 = vpack.c.b16 %v4033, %v4029
    %v5678 = vpack.c.b16 %v4038, %v4034
    %v5679 = vpack.c.b16 %v4039, %v4035
    %v5680 = vpack.c.b16 %v4040, %v4036
    %v5681 = vpack.c.b16 %v4041, %v4037
    %v5682 = vpack.c.b16 %v4046, %v4042
    %v5683 = vpack.c.b16 %v4047, %v4043
    %v5684 = vpack.c.b16 %v4048, %v4044
    %v5685 = vpack.c.b16 %v4049, %v4045
    %v5686 = vpack.c.b16 %v4054, %v4050
    %v5687 = vpack.c.b16 %v4055, %v4051
    %v5688 = vpack.c.b16 %v4056, %v4052
    %v5689 = vpack.c.b16 %v4057, %v4053
    %v5690 = vpack.c.b16 %v4062, %v4058
    %v5691 = vpack.c.b16 %v4063, %v4059
    %v5692 = vpack.c.b16 %v4064, %v4060
    %v5693 = vpack.c.b16 %v4065, %v4061
    %v5694 = vpack.c.b16 %v4070, %v4066
    %v5695 = vpack.c.b16 %v4071, %v4067
    %v5696 = vpack.c.b16 %v4072, %v4068
    %v5697 = vpack.c.b16 %v4073, %v4069
    %v5698 = vpack.c.b16 %v4078, %v4074
    %v5699 = vpack.c.b16 %v4079, %v4075
    %v5700 = vpack.c.b16 %v4080, %v4076
    %v5701 = vpack.c.b16 %v4081, %v4077
    %v5702 = vpack.c.b16 %v4086, %v4082
    %v5703 = vpack.c.b16 %v4087, %v4083
    %v5704 = vpack.c.b16 %v4088, %v4084
    %v5705 = vpack.c.b16 %v4089, %v4085
    %v5706 = vpack.c.b16 %v4094, %v4090
    %v5707 = vpack.c.b16 %v4095, %v4091
    %v5708 = vpack.c.b16 %v4096, %v4092
    %v5709 = vpack.c.b16 %v4097, %v4093
    %v5710 = vpack.c.b16 %v4102, %v4098
    %v5711 = vpack.c.b16 %v4103, %v4099
    %v5712 = vpack.c.b16 %v4104, %v4100
    %v5713 = vpack.c.b16 %v4105, %v4101
    %v5714 = vpack.c.b16 %v4110, %v4106
    %v5715 = vpack.c.b16 %v4111, %v4107
    %v5716 = vpack.c.b16 %v4112, %v4108
    %v5717 = vpack.c.b16 %v4113, %v4109
    %v5718 = vpack.c.b16 %v4118, %v4114
    %v5719 = vpack.c.b16 %v4119, %v4115
    %v5720 = vpack.c.b16 %v4120, %v4116
    %v5721 = vpack.c.b16 %v4121, %v4117
    %v5722 = vpack.c.b16 %v4126, %v4122
    %v5723 = vpack.c.b16 %v4127, %v4123
    %v5724 = vpack.c.b16 %v4128, %v4124
    %v5725 = vpack.c.b16 %v4129, %v4125
    %v5726 = vpack.c.b16 %v4134, %v4130
    %v5727 = vpack.c.b16 %v4135, %v4131
    %v5728 = vpack.c.b16 %v4136, %v4132
    %v5729 = vpack.c.b16 %v4137, %v4133
    %v5730 = vpack.c.b16 %v4142, %v4138
    %v5731 = vpack.c.b16 %v4143, %v4139
    %v5732 = vpack.c.b16 %v4144, %v4140
    %v5733 = vpack.c.b16 %v4145, %v4141
    %v5734 = vpack.c.b16 %v4150, %v4146
    %v5735 = vpack.c.b16 %v4151, %v4147
    %v5736 = vpack.c.b16 %v4152, %v4148
    %v5737 = vpack.c.b16 %v4153, %v4149
    %v5738 = vpack.c.b16 %v4158, %v4154
    %v5739 = vpack.c.b16 %v4159, %v4155
    %v5740 = vpack.c.b16 %v4160, %v4156
    %v5741 = vpack.c.b16 %v4161, %v4157
    %v5742 = vpack.c.b16 %v4166, %v4162
    %v5743 = vpack.c.b16 %v4167, %v4163
    %v5744 = vpack.c.b16 %v4168, %v4164
    %v5745 = vpack.c.b16 %v4169, %v4165
    %v5746 = vpack.c.b16 %v4174, %v4170
    %v5747 = vpack.c.b16 %v4175, %v4171
    %v5748 = vpack.c.b16 %v4176, %v4172
    %v5749 = vpack.c.b16 %v4177, %v4173
    %v5750 = vpack.c.b16 %v4182, %v4178
    %v5751 = vpack.c.b16 %v4183, %v4179
    %v5752 = vpack.c.b16 %v4184, %v4180
    %v5753 = vpack.c.b16 %v4185, %v4181
    %v5754 = vpack.c.b16 %v4190, %v4186
    %v5755 = vpack.c.b16 %v4191, %v4187
    %v5756 = vpack.c.b16 %v4192, %v4188
    %v5757 = vpack.c.b16 %v4193, %v4189
    %v5758 = vpack.c.b16 %v4198, %v4194
    %v5759 = vpack.c.b16 %v4199, %v4195
    %v5760 = vpack.c.b16 %v4200, %v4196
    %v5761 = vpack.c.b16 %v4201, %v4197
    %v5762 = vpack.c.b16 %v4206, %v4202
    %v5763 = vpack.c.b16 %v4207, %v4203
    %v5764 = vpack.c.b16 %v4208, %v4204
    %v5765 = vpack.c.b16 %v4209, %v4205
    %v5766 = vpack.c.b16 %v4214, %v4210
    %v5767 = vpack.c.b16 %v4215, %v4211
    %v5768 = vpack.c.b16 %v4216, %v4212
    %v5769 = vpack.c.b16 %v4217, %v4213
    %v5770 = vpack.c.b16 %v4222, %v4218
    %v5771 = vpack.c.b16 %v4223, %v4219
    %v5772 = vpack.c.b16 %v4224, %v4220
    %v5773 = vpack.c.b16 %v4225, %v4221
    %v5774 = vpack.c.b16 %v4230, %v4226
    %v5775 = vpack.c.b16 %v4231, %v4227
    %v5776 = vpack.c.b16 %v4232, %v4228
    %v5777 = vpack.c.b16 %v4233, %v4229
    %v5778 = vpack.c.b16 %v4238, %v4234
    %v5779 = vpack.c.b16 %v4239, %v4235
    %v5780 = vpack.c.b16 %v4240, %v4236
    %v5781 = vpack.c.b16 %v4241, %v4237
    %v5782 = vpack.c.b16 %v4246, %v4242
    %v5783 = vpack.c.b16 %v4247, %v4243
    %v5784 = vpack.c.b16 %v4248, %v4244
    %v5785 = vpack.c.b16 %v4249, %v4245
    %v5786 = vpack.c.b16 %v4254, %v4250
    %v5787 = vpack.c.b16 %v4255, %v4251
    %v5788 = vpack.c.b16 %v4256, %v4252
    %v5789 = vpack.c.b16 %v4257, %v4253
    %v5790 = vpack.c.b16 %v4262, %v4258
    %v5791 = vpack.c.b16 %v4263, %v4259
    %v5792 = vpack.c.b16 %v4264, %v4260
    %v5793 = vpack.c.b16 %v4265, %v4261
    %v5794 = vpack.c.b16 %v4270, %v4266
    %v5795 = vpack.c.b16 %v4271, %v4267
    %v5796 = vpack.c.b16 %v4272, %v4268
    %v5797 = vpack.c.b16 %v4273, %v4269
    %v5798 = vpack.c.b16 %v4278, %v4274
    %v5799 = vpack.c.b16 %v4279, %v4275
    %v5800 = vpack.c.b16 %v4280, %v4276
    %v5801 = vpack.c.b16 %v4281, %v4277
    %v5802 = vpack.c.b16 %v4286, %v4282
    %v5803 = vpack.c.b16 %v4287, %v4283
    %v5804 = vpack.c.b16 %v4288, %v4284
    %v5805 = vpack.c.b16 %v4289, %v4285
    %v5806 = vpack.c.b16 %v4294, %v4290
    %v5807 = vpack.c.b16 %v4295, %v4291
    %v5808 = vpack.c.b16 %v4296, %v4292
    %v5809 = vpack.c.b16 %v4297, %v4293
    %v5810 = vpack.c.b16 %v4302, %v4298
    %v5811 = vpack.c.b16 %v4303, %v4299
    %v5812 = vpack.c.b16 %v4304, %v4300
    %v5813 = vpack.c.b16 %v4305, %v4301
    %v5814 = vpack.c.b16 %v4310, %v4306
    %v5815 = vpack.c.b16 %v4311, %v4307
    %v5816 = vpack.c.b16 %v4312, %v4308
    %v5817 = vpack.c.b16 %v4313, %v4309
    %v5818 = vpack.c.b16 %v4318, %v4314
    %v5819 = vpack.c.b16 %v4319, %v4315
    %v5820 = vpack.c.b16 %v4320, %v4316
    %v5821 = vpack.c.b16 %v4321, %v4317
    %v5822 = vpack.c.b16 %v4326, %v4322
    %v5823 = vpack.c.b16 %v4327, %v4323
    %v5824 = vpack.c.b16 %v4328, %v4324
    %v5825 = vpack.c.b16 %v4329, %v4325
    %v5826 = vpack.c.b16 %v4334, %v4330
    %v5827 = vpack.c.b16 %v4335, %v4331
    %v5828 = vpack.c.b16 %v4336, %v4332
    %v5829 = vpack.c.b16 %v4337, %v4333
    %v5830 = vpack.c.b16 %v4342, %v4338
    %v5831 = vpack.c.b16 %v4343, %v4339
    %v5832 = vpack.c.b16 %v4344, %v4340
    %v5833 = vpack.c.b16 %v4345, %v4341
    %v5834 = vpack.c.b16 %v4350, %v4346
    %v5835 = vpack.c.b16 %v4351, %v4347
    %v5836 = vpack.c.b16 %v4352, %v4348
    %v5837 = vpack.c.b16 %v4353, %v4349
    %v5838 = vpack.c.b16 %v4358, %v4354
    %v5839 = vpack.c.b16 %v4359, %v4355
    %v5840 = vpack.c.b16 %v4360, %v4356
    %v5841 = vpack.c.b16 %v4361, %v4357
    %v5842 = vpack.c.b16 %v4366, %v4362
    %v5843 = vpack.c.b16 %v4367, %v4363
    %v5844 = vpack.c.b16 %v4368, %v4364
    %v5845 = vpack.c.b16 %v4369, %v4365
    %v5846 = vpack.c.b16 %v4374, %v4370
    %v5847 = vpack.c.b16 %v4375, %v4371
    %v5848 = vpack.c.b16 %v4376, %v4372
    %v5849 = vpack.c.b16 %v4377, %v4373
    %v5850 = vpack.c.b16 %v4382, %v4378
    %v5851 = vpack.c.b16 %v4383, %v4379
    %v5852 = vpack.c.b16 %v4384, %v4380
    %v5853 = vpack.c.b16 %v4385, %v4381
    %v5854 = vpack.c.b16 %v4390, %v4386
    %v5855 = vpack.c.b16 %v4391, %v4387
    %v5856 = vpack.c.b16 %v4392, %v4388
    %v5857 = vpack.c.b16 %v4393, %v4389
    %v5858 = vpack.c.b16 %v4398, %v4394
    %v5859 = vpack.c.b16 %v4399, %v4395
    %v5860 = vpack.c.b16 %v4400, %v4396
    %v5861 = vpack.c.b16 %v4401, %v4397
    %v5862 = vpack.c.b16 %v4406, %v4402
    %v5863 = vpack.c.b16 %v4407, %v4403
    %v5864 = vpack.c.b16 %v4408, %v4404
    %v5865 = vpack.c.b16 %v4409, %v4405
    %v5866 = vpack.c.b16 %v4414, %v4410
    %v5867 = vpack.c.b16 %v4415, %v4411
    %v5868 = vpack.c.b16 %v4416, %v4412
    %v5869 = vpack.c.b16 %v4417, %v4413
    %v5870 = vpack.c.b16 %v4422, %v4418
    %v5871 = vpack.c.b16 %v4423, %v4419
    %v5872 = vpack.c.b16 %v4424, %v4420
    %v5873 = vpack.c.b16 %v4425, %v4421
    %v5874 = vpack.c.b16 %v4430, %v4426
    %v5875 = vpack.c.b16 %v4431, %v4427
    %v5876 = vpack.c.b16 %v4432, %v4428
    %v5877 = vpack.c.b16 %v4433, %v4429
    %v5878 = vpack.c.b16 %v4438, %v4434
    %v5879 = vpack.c.b16 %v4439, %v4435
    %v5880 = vpack.c.b16 %v4440, %v4436
    %v5881 = vpack.c.b16 %v4441, %v4437
    %v5882 = vpack.c.b16 %v4446, %v4442
    %v5883 = vpack.c.b16 %v4447, %v4443
    %v5884 = vpack.c.b16 %v4448, %v4444
    %v5885 = vpack.c.b16 %v4449, %v4445
    %v5886 = vpack.c.b16 %v4454, %v4450
    %v5887 = vpack.c.b16 %v4455, %v4451
    %v5888 = vpack.c.b16 %v4456, %v4452
    %v5889 = vpack.c.b16 %v4457, %v4453
    %v5890 = vpack.c.b16 %v4462, %v4458
    %v5891 = vpack.c.b16 %v4463, %v4459
    %v5892 = vpack.c.b16 %v4464, %v4460
    %v5893 = vpack.c.b16 %v4465, %v4461
    %v5894 = vpack.c.b16 %v4470, %v4466
    %v5895 = vpack.c.b16 %v4471, %v4467
    %v5896 = vpack.c.b16 %v4472, %v4468
    %v5897 = vpack.c.b16 %v4473, %v4469
    %v5898 = vpack.c.b16 %v4478, %v4474
    %v5899 = vpack.c.b16 %v4479, %v4475
    %v5900 = vpack.c.b16 %v4480, %v4476
    %v5901 = vpack.c.b16 %v4481, %v4477
    %v5902 = vpack.c.b16 %v4486, %v4482
    %v5903 = vpack.c.b16 %v4487, %v4483
    %v5904 = vpack.c.b16 %v4488, %v4484
    %v5905 = vpack.c.b16 %v4489, %v4485
    %v5906 = vpack.c.b16 %v4494, %v4490
    %v5907 = vpack.c.b16 %v4495, %v4491
    %v5908 = vpack.c.b16 %v4496, %v4492
    %v5909 = vpack.c.b16 %v4497, %v4493
    %v5910 = vpack.c.b16 %v4502, %v4498
    %v5911 = vpack.c.b16 %v4503, %v4499
    %v5912 = vpack.c.b16 %v4504, %v4500
    %v5913 = vpack.c.b16 %v4505, %v4501
    %v5914 = vpack.c.b16 %v4510, %v4506
    %v5915 = vpack.c.b16 %v4511, %v4507
    %v5916 = vpack.c.b16 %v4512, %v4508
    %v5917 = vpack.c.b16 %v4513, %v4509
    %v5918 = vpack.c.b16 %v4518, %v4514
    %v5919 = vpack.c.b16 %v4519, %v4515
    %v5920 = vpack.c.b16 %v4520, %v4516
    %v5921 = vpack.c.b16 %v4521, %v4517
    %v5922 = vpack.c.b16 %v4526, %v4522
    %v5923 = vpack.c.b16 %v4527, %v4523
    %v5924 = vpack.c.b16 %v4528, %v4524
    %v5925 = vpack.c.b16 %v4529, %v4525
    %v5926 = vpack.c.b16 %v4534, %v4530
    %v5927 = vpack.c.b16 %v4535, %v4531
    %v5928 = vpack.c.b16 %v4536, %v4532
    %v5929 = vpack.c.b16 %v4537, %v4533
    %v5930 = vpack.c.b16 %v4542, %v4538
    %v5931 = vpack.c.b16 %v4543, %v4539
    %v5932 = vpack.c.b16 %v4544, %v4540
    %v5933 = vpack.c.b16 %v4545, %v4541
    %v5934 = vpack.c.b16 %v4550, %v4546
    %v5935 = vpack.c.b16 %v4551, %v4547
    %v5936 = vpack.c.b16 %v4552, %v4548
    %v5937 = vpack.c.b16 %v4553, %v4549
    %v5938 = vpack.c.b16 %v4558, %v4554
    %v5939 = vpack.c.b16 %v4559, %v4555
    %v5940 = vpack.c.b16 %v4560, %v4556
    %v5941 = vpack.c.b16 %v4561, %v4557
    %v5942 = vpack.c.b16 %v4566, %v4562
    %v5943 = vpack.c.b16 %v4567, %v4563
    %v5944 = vpack.c.b16 %v4568, %v4564
    %v5945 = vpack.c.b16 %v4569, %v4565
    %v5946 = vpack.c.b16 %v4574, %v4570
    %v5947 = vpack.c.b16 %v4575, %v4571
    %v5948 = vpack.c.b16 %v4576, %v4572
    %v5949 = vpack.c.b16 %v4577, %v4573
    %v5950 = vpack.c.b16 %v4582, %v4578
    %v5951 = vpack.c.b16 %v4583, %v4579
    %v5952 = vpack.c.b16 %v4584, %v4580
    %v5953 = vpack.c.b16 %v4585, %v4581
    %v5954 = vpack.c.b16 %v4590, %v4586
    %v5955 = vpack.c.b16 %v4591, %v4587
    %v5956 = vpack.c.b16 %v4592, %v4588
    %v5957 = vpack.c.b16 %v4593, %v4589
    %v5958 = vpack.c.b16 %v4598, %v4594
    %v5959 = vpack.c.b16 %v4599, %v4595
    %v5960 = vpack.c.b16 %v4600, %v4596
    %v5961 = vpack.c.b16 %v4601, %v4597
    %v5962 = vpack.c.b16 %v4606, %v4602
    %v5963 = vpack.c.b16 %v4607, %v4603
    %v5964 = vpack.c.b16 %v4608, %v4604
    %v5965 = vpack.c.b16 %v4609, %v4605
    %v5966 = vpack.c.b16 %v4614, %v4610
    %v5967 = vpack.c.b16 %v4615, %v4611
    %v5968 = vpack.c.b16 %v4616, %v4612
    %v5969 = vpack.c.b16 %v4617, %v4613
    %v5970 = vpack.c.b16 %v4622, %v4618
    %v5971 = vpack.c.b16 %v4623, %v4619
    %v5972 = vpack.c.b16 %v4624, %v4620
    %v5973 = vpack.c.b16 %v4625, %v4621
    %v5974 = vpack.c.b16 %v4630, %v4626
    %v5975 = vpack.c.b16 %v4631, %v4627
    %v5976 = vpack.c.b16 %v4632, %v4628
    %v5977 = vpack.c.b16 %v4633, %v4629
    %v5978 = vpack.c.b16 %v4638, %v4634
    %v5979 = vpack.c.b16 %v4639, %v4635
    %v5980 = vpack.c.b16 %v4640, %v4636
    %v5981 = vpack.c.b16 %v4641, %v4637
    %v5982 = vpack.c.b16 %v4646, %v4642
    %v5983 = vpack.c.b16 %v4647, %v4643
    %v5984 = vpack.c.b16 %v4648, %v4644
    %v5985 = vpack.c.b16 %v4649, %v4645
    %v5986 = vpack.c.b16 %v4654, %v4650
    %v5987 = vpack.c.b16 %v4655, %v4651
    %v5988 = vpack.c.b16 %v4656, %v4652
    %v5989 = vpack.c.b16 %v4657, %v4653
    %v5990 = vpack.c.b16 %v4662, %v4658
    %v5991 = vpack.c.b16 %v4663, %v4659
    %v5992 = vpack.c.b16 %v4664, %v4660
    %v5993 = vpack.c.b16 %v4665, %v4661
    %v5994 = vpack.c.b16 %v4670, %v4666
    %v5995 = vpack.c.b16 %v4671, %v4667
    %v5996 = vpack.c.b16 %v4672, %v4668
    %v5997 = vpack.c.b16 %v4673, %v4669
    %v5998 = vpack.c.b16 %v4678, %v4674
    %v5999 = vpack.c.b16 %v4679, %v4675
    %v6000 = vpack.c.b16 %v4680, %v4676
    %v6001 = vpack.c.b16 %v4681, %v4677
    %v6002 = vpack.c.b16 %v4686, %v4682
    %v6003 = vpack.c.b16 %v4687, %v4683
    %v6004 = vpack.c.b16 %v4688, %v4684
    %v6005 = vpack.c.b16 %v4689, %v4685
    %v6006 = vpack.c.b16 %v4694, %v4690
    %v6007 = vpack.c.b16 %v4695, %v4691
    %v6008 = vpack.c.b16 %v4696, %v4692
    %v6009 = vpack.c.b16 %v4697, %v4693
    %v6010 = vpack.c.b16 %v4702, %v4698
    %v6011 = vpack.c.b16 %v4703, %v4699
    %v6012 = vpack.c.b16 %v4704, %v4700
    %v6013 = vpack.c.b16 %v4705, %v4701
    %v6014 = vpack.c.b16 %v4710, %v4706
    %v6015 = vpack.c.b16 %v4711, %v4707
    %v6016 = vpack.c.b16 %v4712, %v4708
    %v6017 = vpack.c.b16 %v4713, %v4709
    %v6018 = vpack.c.b16 %v4718, %v4714
    %v6019 = vpack.c.b16 %v4719, %v4715
    %v6020 = vpack.c.b16 %v4720, %v4716
    %v6021 = vpack.c.b16 %v4721, %v4717
    %v6022 = vpack.c.b16 %v4726, %v4722
    %v6023 = vpack.c.b16 %v4727, %v4723
    %v6024 = vpack.c.b16 %v4728, %v4724
    %v6025 = vpack.c.b16 %v4729, %v4725
    %v6026 = vpack.c.b16 %v4734, %v4730
    %v6027 = vpack.c.b16 %v4735, %v4731
    %v6028 = vpack.c.b16 %v4736, %v4732
    %v6029 = vpack.c.b16 %v4737, %v4733
    %v6030 = vpack.c.b16 %v4742, %v4738
    %v6031 = vpack.c.b16 %v4743, %v4739
    %v6032 = vpack.c.b16 %v4744, %v4740
    %v6033 = vpack.c.b16 %v4745, %v4741
    %v6034 = vpack.c.b16 %v4750, %v4746
    %v6035 = vpack.c.b16 %v4751, %v4747
    %v6036 = vpack.c.b16 %v4752, %v4748
    %v6037 = vpack.c.b16 %v4753, %v4749
    %v6038 = vpack.c.b16 %v4758, %v4754
    %v6039 = vpack.c.b16 %v4759, %v4755
    %v6040 = vpack.c.b16 %v4760, %v4756
    %v6041 = vpack.c.b16 %v4761, %v4757
    %v6042 = vpack.c.b16 %v4766, %v4762
    %v6043 = vpack.c.b16 %v4767, %v4763
    %v6044 = vpack.c.b16 %v4768, %v4764
    %v6045 = vpack.c.b16 %v4769, %v4765
    %v6046 = vpack.c.b16 %v4774, %v4770
    %v6047 = vpack.c.b16 %v4775, %v4771
    %v6048 = vpack.c.b16 %v4776, %v4772
    %v6049 = vpack.c.b16 %v4777, %v4773
    %v6050 = vpack.c.b16 %v4782, %v4778
    %v6051 = vpack.c.b16 %v4783, %v4779
    %v6052 = vpack.c.b16 %v4784, %v4780
    %v6053 = vpack.c.b16 %v4785, %v4781
    %v6054 = vpack.c.b16 %v4790, %v4786
    %v6055 = vpack.c.b16 %v4791, %v4787
    %v6056 = vpack.c.b16 %v4792, %v4788
    %v6057 = vpack.c.b16 %v4793, %v4789
    %v6058 = vpack.c.b16 %v4798, %v4794
    %v6059 = vpack.c.b16 %v4799, %v4795
    %v6060 = vpack.c.b16 %v4800, %v4796
    %v6061 = vpack.c.b16 %v4801, %v4797
    %v6062 = vpack.c.b16 %v4806, %v4802
    %v6063 = vpack.c.b16 %v4807, %v4803
    %v6064 = vpack.c.b16 %v4808, %v4804
    %v6065 = vpack.c.b16 %v4809, %v4805
    %v6066 = vpack.c.b16 %v4814, %v4810
    %v6067 = vpack.c.b16 %v4815, %v4811
    %v6068 = vpack.c.b16 %v4816, %v4812
    %v6069 = vpack.c.b16 %v4817, %v4813
    %v6070 = vpack.c.b16 %v4822, %v4818
    %v6071 = vpack.c.b16 %v4823, %v4819
    %v6072 = vpack.c.b16 %v4824, %v4820
    %v6073 = vpack.c.b16 %v4825, %v4821
    %v6074 = vpack.c.b16 %v4830, %v4826
    %v6075 = vpack.c.b16 %v4831, %v4827
    %v6076 = vpack.c.b16 %v4832, %v4828
    %v6077 = vpack.c.b16 %v4833, %v4829
    %v6078 = vpack.c.b16 %v4838, %v4834
    %v6079 = vpack.c.b16 %v4839, %v4835
    %v6080 = vpack.c.b16 %v4840, %v4836
    %v6081 = vpack.c.b16 %v4841, %v4837
    %v6082 = vpack.c.b16 %v4846, %v4842
    %v6083 = vpack.c.b16 %v4847, %v4843
    %v6084 = vpack.c.b16 %v4848, %v4844
    %v6085 = vpack.c.b16 %v4849, %v4845
    %v6086 = vpack.c.b16 %v4854, %v4850
    %v6087 = vpack.c.b16 %v4855, %v4851
    %v6088 = vpack.c.b16 %v4856, %v4852
    %v6089 = vpack.c.b16 %v4857, %v4853
    %v6090 = vpack.c.b16 %v4862, %v4858
    %v6091 = vpack.c.b16 %v4863, %v4859
    %v6092 = vpack.c.b16 %v4864, %v4860
    %v6093 = vpack.c.b16 %v4865, %v4861
    %v6094 = vpack.c.b16 %v4870, %v4866
    %v6095 = vpack.c.b16 %v4871, %v4867
    %v6096 = vpack.c.b16 %v4872, %v4868
    %v6097 = vpack.c.b16 %v4873, %v4869
    %v6098 = vpack.c.b16 %v4878, %v4874
    %v6099 = vpack.c.b16 %v4879, %v4875
    %v6100 = vpack.c.b16 %v4880, %v4876
    %v6101 = vpack.c.b16 %v4881, %v4877
    %v6102 = vpack.c.b16 %v4886, %v4882
    %v6103 = vpack.c.b16 %v4887, %v4883
    %v6104 = vpack.c.b16 %v4888, %v4884
    %v6105 = vpack.c.b16 %v4889, %v4885
    %v6106 = vpack.c.b16 %v4894, %v4890
    %v6107 = vpack.c.b16 %v4895, %v4891
    %v6108 = vpack.c.b16 %v4896, %v4892
    %v6109 = vpack.c.b16 %v4897, %v4893
    %v6110 = vpack.c.b16 %v4902, %v4898
    %v6111 = vpack.c.b16 %v4903, %v4899
    %v6112 = vpack.c.b16 %v4904, %v4900
    %v6113 = vpack.c.b16 %v4905, %v4901
    %v6114 = vpack.c.b16 %v4910, %v4906
    %v6115 = vpack.c.b16 %v4911, %v4907
    %v6116 = vpack.c.b16 %v4912, %v4908
    %v6117 = vpack.c.b16 %v4913, %v4909
    %v6118 = vpack.c.b16 %v4918, %v4914
    %v6119 = vpack.c.b16 %v4919, %v4915
    %v6120 = vpack.c.b16 %v4920, %v4916
    %v6121 = vpack.c.b16 %v4921, %v4917
    %v6122 = vpack.c.b16 %v4926, %v4922
    %v6123 = vpack.c.b16 %v4927, %v4923
    %v6124 = vpack.c.b16 %v4928, %v4924
    %v6125 = vpack.c.b16 %v4929, %v4925
    %v6126 = vpack.c.b16 %v4934, %v4930
    %v6127 = vpack.c.b16 %v4935, %v4931
    %v6128 = vpack.c.b16 %v4936, %v4932
    %v6129 = vpack.c.b16 %v4937, %v4933
    %v6130 = vpack.c.b16 %v4942, %v4938
    %v6131 = vpack.c.b16 %v4943, %v4939
    %v6132 = vpack.c.b16 %v4944, %v4940
    %v6133 = vpack.c.b16 %v4945, %v4941
    %v6134 = vpack.c.b16 %v4950, %v4946
    %v6135 = vpack.c.b16 %v4951, %v4947
    %v6136 = vpack.c.b16 %v4952, %v4948
    %v6137 = vpack.c.b16 %v4953, %v4949
    %v6138 = vpack.c.b16 %v4958, %v4954
    %v6139 = vpack.c.b16 %v4959, %v4955
    %v6140 = vpack.c.b16 %v4960, %v4956
    %v6141 = vpack.c.b16 %v4961, %v4957
    %v6142 = vpack.c.b16 %v4966, %v4962
    %v6143 = vpack.c.b16 %v4967, %v4963
    %v6144 = vpack.c.b16 %v4968, %v4964
    %v6145 = vpack.c.b16 %v4969, %v4965
    %v6146 = vpack.c.b16 %v4974, %v4970
    %v6147 = vpack.c.b16 %v4975, %v4971
    %v6148 = vpack.c.b16 %v4976, %v4972
    %v6149 = vpack.c.b16 %v4977, %v4973
    %v6150 = vpack.c.b16 %v4982, %v4978
    %v6151 = vpack.c.b16 %v4983, %v4979
    %v6152 = vpack.c.b16 %v4984, %v4980
    %v6153 = vpack.c.b16 %v4985, %v4981
    %v6154 = vpack.c.b16 %v4990, %v4986
    %v6155 = vpack.c.b16 %v4991, %v4987
    %v6156 = vpack.c.b16 %v4992, %v4988
    %v6157 = vpack.c.b16 %v4993, %v4989
    %v6158 = vpack.c.b16 %v4998, %v4994
    %v6159 = vpack.c.b16 %v4999, %v4995
    %v6160 = vpack.c.b16 %v5000, %v4996
    %v6161 = vpack.c.b16 %v5001, %v4997
    %v6162 = vpack.c.b16 %v5006, %v5002
    %v6163 = vpack.c.b16 %v5007, %v5003
    %v6164 = vpack.c.b16 %v5008, %v5004
    %v6165 = vpack.c.b16 %v5009, %v5005
    %v6166 = vpack.c.b16 %v5014, %v5010
    %v6167 = vpack.c.b16 %v5015, %v5011
    %v6168 = vpack.c.b16 %v5016, %v5012
    %v6169 = vpack.c.b16 %v5017, %v5013
    %v6170 = vpack.c.b16 %v5022, %v5018
    %v6171 = vpack.c.b16 %v5023, %v5019
    %v6172 = vpack.c.b16 %v5024, %v5020
    %v6173 = vpack.c.b16 %v5025, %v5021
    %v6174 = vpack.c.b16 %v5030, %v5026
    %v6175 = vpack.c.b16 %v5031, %v5027
    %v6176 = vpack.c.b16 %v5032, %v5028
    %v6177 = vpack.c.b16 %v5033, %v5029
    %v6178 = vpack.c.b16 %v5038, %v5034
    %v6179 = vpack.c.b16 %v5039, %v5035
    %v6180 = vpack.c.b16 %v5040, %v5036
    %v6181 = vpack.c.b16 %v5041, %v5037
    %v6182 = vpack.c.b16 %v5046, %v5042
    %v6183 = vpack.c.b16 %v5047, %v5043
    %v6184 = vpack.c.b16 %v5048, %v5044
    %v6185 = vpack.c.b16 %v5049, %v5045
    %v6186 = vpack.c.b16 %v5054, %v5050
    %v6187 = vpack.c.b16 %v5055, %v5051
    %v6188 = vpack.c.b16 %v5056, %v5052
    %v6189 = vpack.c.b16 %v5057, %v5053
    %v6190 = vpack.c.b16 %v5062, %v5058
    %v6191 = vpack.c.b16 %v5063, %v5059
    %v6192 = vpack.c.b16 %v5064, %v5060
    %v6193 = vpack.c.b16 %v5065, %v5061
    %v6194 = vpack.c.b16 %v5070, %v5066
    %v6195 = vpack.c.b16 %v5071, %v5067
    %v6196 = vpack.c.b16 %v5072, %v5068
    %v6197 = vpack.c.b16 %v5073, %v5069
    %v6198 = vpack.c.b16 %v5078, %v5074
    %v6199 = vpack.c.b16 %v5079, %v5075
    %v6200 = vpack.c.b16 %v5080, %v5076
    %v6201 = vpack.c.b16 %v5081, %v5077
    %v6202 = vpack.c.b16 %v5086, %v5082
    %v6203 = vpack.c.b16 %v5087, %v5083
    %v6204 = vpack.c.b16 %v5088, %v5084
    %v6205 = vpack.c.b16 %v5089, %v5085
    %v6206 = vpack.c.b16 %v5094, %v5090
    %v6207 = vpack.c.b16 %v5095, %v5091
    %v6208 = vpack.c.b16 %v5096, %v5092
    %v6209 = vpack.c.b16 %v5097, %v5093
    %v6210 = vpack.c.b16 %v5102, %v5098
    %v6211 = vpack.c.b16 %v5103, %v5099
    %v6212 = vpack.c.b16 %v5104, %v5100
    %v6213 = vpack.c.b16 %v5105, %v5101
    %v6214 = vpack.c.b16 %v5110, %v5106
    %v6215 = vpack.c.b16 %v5111, %v5107
    %v6216 = vpack.c.b16 %v5112, %v5108
    %v6217 = vpack.c.b16 %v5113, %v5109
    %v6218 = vpack.c.b16 %v5118, %v5114
    %v6219 = vpack.c.b16 %v5119, %v5115
    %v6220 = vpack.c.b16 %v5120, %v5116
    %v6221 = vpack.c.b16 %v5121, %v5117
    %v6222 = vpack.c.b16 %v5126, %v5122
    %v6223 = vpack.c.b16 %v5127, %v5123
    %v6224 = vpack.c.b16 %v5128, %v5124
    %v6225 = vpack.c.b16 %v5129, %v5125
    %v6226 = vpack.c.b16 %v5134, %v5130
    %v6227 = vpack.c.b16 %v5135, %v5131
    %v6228 = vpack.c.b16 %v5136, %v5132
    %v6229 = vpack.c.b16 %v5137, %v5133
    %v6230 = vpack.c.b16 %v5142, %v5138
    %v6231 = vpack.c.b16 %v5143, %v5139
    %v6232 = vpack.c.b16 %v5144, %v5140
    %v6233 = vpack.c.b16 %v5145, %v5141
    %v6234 = vpack.c.b16 %v5150, %v5146
    %v6235 = vpack.c.b16 %v5151, %v5147
    %v6236 = vpack.c.b16 %v5152, %v5148
    %v6237 = vpack.c.b16 %v5153, %v5149
    %v6238 = vpack.c.b16 %v5158, %v5154
    %v6239 = vpack.c.b16 %v5159, %v5155
    %v6240 = vpack.c.b16 %v5160, %v5156
    %v6241 = vpack.c.b16 %v5161, %v5157
    %v6242 = vpack.c.b16 %v5166, %v5162
    %v6243 = vpack.c.b16 %v5167, %v5163
    %v6244 = vpack.c.b16 %v5168, %v5164
    %v6245 = vpack.c.b16 %v5169, %v5165
    %v6246 = vpack.c.b16 %v5174, %v5170
    %v6247 = vpack.c.b16 %v5175, %v5171
    %v6248 = vpack.c.b16 %v5176, %v5172
    %v6249 = vpack.c.b16 %v5177, %v5173
    %v6250 = vpack.c.b16 %v5182, %v5178
    %v6251 = vpack.c.b16 %v5183, %v5179
    %v6252 = vpack.c.b16 %v5184, %v5180
    %v6253 = vpack.c.b16 %v5185, %v5181
    %v6254 = vpack.c.b16 %v5190, %v5186
    %v6255 = vpack.c.b16 %v5191, %v5187
    %v6256 = vpack.c.b16 %v5192, %v5188
    %v6257 = vpack.c.b16 %v5193, %v5189
    %v6258 = vpack.c.b16 %v5198, %v5194
    %v6259 = vpack.c.b16 %v5199, %v5195
    %v6260 = vpack.c.b16 %v5200, %v5196
    %v6261 = vpack.c.b16 %v5201, %v5197
    %v6262 = vpack.c.b16 %v5206, %v5202
    %v6263 = vpack.c.b16 %v5207, %v5203
    %v6264 = vpack.c.b16 %v5208, %v5204
    %v6265 = vpack.c.b16 %v5209, %v5205
    %v6266 = vpack.c.b16 %v5214, %v5210
    %v6267 = vpack.c.b16 %v5215, %v5211
    %v6268 = vpack.c.b16 %v5216, %v5212
    %v6269 = vpack.c.b16 %v5217, %v5213
    %v6270 = vpack.c.b16 %v5222, %v5218
    %v6271 = vpack.c.b16 %v5223, %v5219
    %v6272 = vpack.c.b16 %v5224, %v5220
    %v6273 = vpack.c.b16 %v5225, %v5221
    %v6274 = vpack.c.b16 %v5230, %v5226
    %v6275 = vpack.c.b16 %v5231, %v5227
    %v6276 = vpack.c.b16 %v5232, %v5228
    %v6277 = vpack.c.b16 %v5233, %v5229
    %v6278 = vpack.c.b16 %v5238, %v5234
    %v6279 = vpack.c.b16 %v5239, %v5235
    %v6280 = vpack.c.b16 %v5240, %v5236
    %v6281 = vpack.c.b16 %v5241, %v5237
    %v6282 = vpack.c.b16 %v5246, %v5242
    %v6283 = vpack.c.b16 %v5247, %v5243
    %v6284 = vpack.c.b16 %v5248, %v5244
    %v6285 = vpack.c.b16 %v5249, %v5245
    %v6286 = vpack.c.b16 %v5254, %v5250
    %v6287 = vpack.c.b16 %v5255, %v5251
    %v6288 = vpack.c.b16 %v5256, %v5252
    %v6289 = vpack.c.b16 %v5257, %v5253
    %v6290 = vpack.c.b16 %v5262, %v5258
    %v6291 = vpack.c.b16 %v5263, %v5259
    %v6292 = vpack.c.b16 %v5264, %v5260
    %v6293 = vpack.c.b16 %v5265, %v5261
    %v6294 = vpack.c.b16 %v5270, %v5266
    %v6295 = vpack.c.b16 %v5271, %v5267
    %v6296 = vpack.c.b16 %v5272, %v5268
    %v6297 = vpack.c.b16 %v5273, %v5269
    %7322 = vmatprep.subr.bf16.mxu0 %v5275
    %7323 = vmatpush1.bf16.msra.mxu0 %v5274
    %7324 = vmatprep.subr.bf16.mxu0 %v5279
    %7325 = vmatpush1.bf16.msra.mxu0 %v5278
    %7326 = vmatprep.subr.bf16.mxu0 %v5283
    %7327 = vmatpush1.bf16.msra.mxu0 %v5282
    %7328 = vmatprep.subr.bf16.mxu0 %v5287
    %7329 = vmatpush1.bf16.msra.mxu0 %v5286
    %7330 = vmatprep.subr.bf16.mxu0 %v5291
    %7331 = vmatpush1.bf16.msra.mxu0 %v5290
    %7332 = vmatprep.subr.bf16.mxu0 %v5295
    %7333 = vmatpush1.bf16.msra.mxu0 %v5294
    %7334 = vmatprep.subr.bf16.mxu0 %v5299
    %7335 = vmatpush1.bf16.msra.mxu0 %v5298
    %7336 = vmatprep.subr.bf16.mxu0 %v5303
    %7337 = vmatpush1.bf16.msra.mxu0 %v5302
    %7338 = vmatprep.subr.bf16.mxu0 %v5307
    %7339 = vmatpush1.bf16.msra.mxu0 %v5306
    %7340 = vmatprep.subr.bf16.mxu0 %v5311
    %7341 = vmatpush1.bf16.msra.mxu0 %v5310
    %7342 = vmatprep.subr.bf16.mxu0 %v5315
    %7343 = vmatpush1.bf16.msra.mxu0 %v5314
    %7344 = vmatprep.subr.bf16.mxu0 %v5319
    %7345 = vmatpush1.bf16.msra.mxu0 %v5318
    %7346 = vmatprep.subr.bf16.mxu0 %v5323
    %7347 = vmatpush1.bf16.msra.mxu0 %v5322
    %7348 = vmatprep.subr.bf16.mxu0 %v5327
    %7349 = vmatpush1.bf16.msra.mxu0 %v5326
    %7350 = vmatprep.subr.bf16.mxu0 %v5331
    %7351 = vmatpush1.bf16.msra.mxu0 %v5330
    %7352 = vmatprep.subr.bf16.mxu0 %v5335
    %7353 = vmatpush1.bf16.msra.mxu0 %v5334
    %7354 = vmatprep.mubr.bf16.mxu0 %v2139
    %7355 = vmatmul.mubr.bf16.gmra.mrb[0].mxu0 %v2138
    %v7356 = vpop.f32.mrb[0].mxu0
    %v7357 = vadd.f32 %v2073, %v7356
    %v7358 = vpop.f32.mrb[0].mxu0
    %v7359 = vadd.f32 %v2077, %v7358
    %v7360 = vpop.f32.mrb[0].mxu0
    %v7361 = vpop.f32.mrb[0].mxu0
    %7362 = vdwg.mxu0
    %7363 = vmatprep.subr.bf16.mxu0 %v5339
    %7364 = vmatpush1.bf16.msra.mxu0 %v5338
    %7365 = vmatprep.subr.bf16.mxu0 %v5343
    %7366 = vmatpush1.bf16.msra.mxu0 %v5342
    %7367 = vmatprep.subr.bf16.mxu0 %v5347
    %7368 = vmatpush1.bf16.msra.mxu0 %v5346
    %7369 = vmatprep.subr.bf16.mxu0 %v5351
    %7370 = vmatpush1.bf16.msra.mxu0 %v5350
    %7371 = vmatprep.subr.bf16.mxu0 %v5355
    %7372 = vmatpush1.bf16.msra.mxu0 %v5354
    %7373 = vmatprep.subr.bf16.mxu0 %v5359
    %7374 = vmatpush1.bf16.msra.mxu0 %v5358
    %7375 = vmatprep.subr.bf16.mxu0 %v5363
    %7376 = vmatpush1.bf16.msra.mxu0 %v5362
    %7377 = vmatprep.subr.bf16.mxu0 %v5367
    %7378 = vmatpush1.bf16.msra.mxu0 %v5366
    %7379 = vmatprep.subr.bf16.mxu0 %v5371
    %7380 = vmatpush1.bf16.msra.mxu0 %v5370
    %7381 = vmatprep.subr.bf16.mxu0 %v5375
    %7382 = vmatpush1.bf16.msra.mxu0 %v5374
    %7383 = vmatprep.subr.bf16.mxu0 %v5379
    %7384 = vmatpush1.bf16.msra.mxu0 %v5378
    %7385 = vmatprep.subr.bf16.mxu0 %v5383
    %7386 = vmatpush1.bf16.msra.mxu0 %v5382
    %7387 = vmatprep.subr.bf16.mxu0 %v5387
    %7388 = vmatpush1.bf16.msra.mxu0 %v5386
    %7389 = vmatprep.subr.bf16.mxu0 %v5391
    %7390 = vmatpush1.bf16.msra.mxu0 %v5390
    %7391 = vmatprep.subr.bf16.mxu0 %v5395
    %7392 = vmatpush1.bf16.msra.mxu0 %v5394
    %7393 = vmatprep.subr.bf16.mxu0 %v5399
    %7394 = vmatpush1.bf16.msra.mxu0 %v5398
    %7395 = vmatprep.mubr.bf16.mxu0 %v2141
    %7396 = vmatmul.mubr.bf16.gmra.mrb[0].mxu0 %v2140
    %v7397 = vpop.f32.mrb[0].mxu0
    %v7398 = vadd.f32 %v7357, %v7397
    %v7399 = vpop.f32.mrb[0].mxu0
    %v7400 = vadd.f32 %v7359, %v7399
    %v7401 = vpop.f32.mrb[0].mxu0
    %v7402 = vpop.f32.mrb[0].mxu0
    %7403 = vdwg.mxu0
    %7404 = vmatprep.subr.bf16.mxu0 %v5403
    %7405 = vmatpush1.bf16.msra.mxu0 %v5402
    %7406 = vmatprep.subr.bf16.mxu0 %v5407
    %7407 = vmatpush1.bf16.msra.mxu0 %v5406
    %7408 = vmatprep.subr.bf16.mxu0 %v5411
    %7409 = vmatpush1.bf16.msra.mxu0 %v5410
    %7410 = vmatprep.subr.bf16.mxu0 %v5415
    %7411 = vmatpush1.bf16.msra.mxu0 %v5414
    %7412 = vmatprep.subr.bf16.mxu0 %v5419
    %7413 = vmatpush1.bf16.msra.mxu0 %v5418
    %7414 = vmatprep.subr.bf16.mxu0 %v5423
    %7415 = vmatpush1.bf16.msra.mxu0 %v5422
    %7416 = vmatprep.subr.bf16.mxu0 %v5427
    %7417 = vmatpush1.bf16.msra.mxu0 %v5426
    %7418 = vmatprep.subr.bf16.mxu0 %v5431
    %7419 = vmatpush1.bf16.msra.mxu0 %v5430
    %7420 = vmatprep.subr.bf16.mxu0 %v5435
    %7421 = vmatpush1.bf16.msra.mxu0 %v5434
    %7422 = vmatprep.subr.bf16.mxu0 %v5439
    %7423 = vmatpush1.bf16.msra.mxu0 %v5438
    %7424 = vmatprep.subr.bf16.mxu0 %v5443
    %7425 = vmatpush1.bf16.msra.mxu0 %v5442
    %7426 = vmatprep.subr.bf16.mxu0 %v5447
    %7427 = vmatpush1.bf16.msra.mxu0 %v5446
    %7428 = vmatprep.subr.bf16.mxu0 %v5451
    %7429 = vmatpush1.bf16.msra.mxu0 %v5450
    %7430 = vmatprep.subr.bf16.mxu0 %v5455
    %7431 = vmatpush1.bf16.msra.mxu0 %v5454
    %7432 = vmatprep.subr.bf16.mxu0 %v5459
    %7433 = vmatpush1.bf16.msra.mxu0 %v5458
    %7434 = vmatprep.subr.bf16.mxu0 %v5463
    %7435 = vmatpush1.bf16.msra.mxu0 %v5462
    %7436 = vmatprep.mubr.bf16.mxu0 %v2143
    %7437 = vmatmul.mubr.bf16.gmra.mrb[0].mxu0 %v2142
    %v7438 = vpop.f32.mrb[0].mxu0
    %v7439 = vadd.f32 %v7398, %v7438
    %v7440 = vpop.f32.mrb[0].mxu0
    %v7441 = vadd.f32 %v7400, %v7440
    %v7442 = vpop.f32.mrb[0].mxu0
    %v7443 = vpop.f32.mrb[0].mxu0
    %7444 = vdwg.mxu0
    %7445 = vmatprep.subr.bf16.mxu0 %v5467
    %7446 = vmatpush1.bf16.msra.mxu0 %v5466
    %7447 = vmatprep.subr.bf16.mxu0 %v5471
    %7448 = vmatpush1.bf16.msra.mxu0 %v5470
    %7449 = vmatprep.subr.bf16.mxu0 %v5475
    %7450 = vmatpush1.bf16.msra.mxu0 %v5474
    %7451 = vmatprep.subr.bf16.mxu0 %v5479
    %7452 = vmatpush1.bf16.msra.mxu0 %v5478
    %7453 = vmatprep.subr.bf16.mxu0 %v5483
    %7454 = vmatpush1.bf16.msra.mxu0 %v5482
    %7455 = vmatprep.subr.bf16.mxu0 %v5487
    %7456 = vmatpush1.bf16.msra.mxu0 %v5486
    %7457 = vmatprep.subr.bf16.mxu0 %v5491
    %7458 = vmatpush1.bf16.msra.mxu0 %v5490
    %7459 = vmatprep.subr.bf16.mxu0 %v5495
    %7460 = vmatpush1.bf16.msra.mxu0 %v5494
    %7461 = vmatprep.subr.bf16.mxu0 %v5499
    %7462 = vmatpush1.bf16.msra.mxu0 %v5498
    %7463 = vmatprep.subr.bf16.mxu0 %v5503
    %7464 = vmatpush1.bf16.msra.mxu0 %v5502
    %7465 = vmatprep.subr.bf16.mxu0 %v5507
    %7466 = vmatpush1.bf16.msra.mxu0 %v5506
    %7467 = vmatprep.subr.bf16.mxu0 %v5511
    %7468 = vmatpush1.bf16.msra.mxu0 %v5510
    %7469 = vmatprep.subr.bf16.mxu0 %v5515
    %7470 = vmatpush1.bf16.msra.mxu0 %v5514
    %7471 = vmatprep.subr.bf16.mxu0 %v5519
    %7472 = vmatpush1.bf16.msra.mxu0 %v5518
    %7473 = vmatprep.subr.bf16.mxu0 %v5523
    %7474 = vmatpush1.bf16.msra.mxu0 %v5522
    %7475 = vmatprep.subr.bf16.mxu0 %v5527
    %7476 = vmatpush1.bf16.msra.mxu0 %v5526
    %7477 = vmatprep.mubr.bf16.mxu0 %v2145
    %7478 = vmatmul.mubr.bf16.gmra.mrb[0].mxu0 %v2144
    %v7479 = vpop.f32.mrb[0].mxu0
    %v7480 = vadd.f32 %v7439, %v7479
    %v7481 = vpop.f32.mrb[0].mxu0
    %v7482 = vadd.f32 %v7441, %v7481
    %v7483 = vpop.f32.mrb[0].mxu0
    %v7484 = vpop.f32.mrb[0].mxu0
    %7485 = vdwg.mxu0
    %7486 = vmatprep.subr.bf16.mxu0 %v5531
    %7487 = vmatpush1.bf16.msra.mxu0 %v5530
    %7488 = vmatprep.subr.bf16.mxu0 %v5535
    %7489 = vmatpush1.bf16.msra.mxu0 %v5534
    %7490 = vmatprep.subr.bf16.mxu0 %v5539
    %7491 = vmatpush1.bf16.msra.mxu0 %v5538
    %7492 = vmatprep.subr.bf16.mxu0 %v5543
    %7493 = vmatpush1.bf16.msra.mxu0 %v5542
    %7494 = vmatprep.subr.bf16.mxu0 %v5547
    %7495 = vmatpush1.bf16.msra.mxu0 %v5546
    %7496 = vmatprep.subr.bf16.mxu0 %v5551
    %7497 = vmatpush1.bf16.msra.mxu0 %v5550
    %7498 = vmatprep.subr.bf16.mxu0 %v5555
    %7499 = vmatpush1.bf16.msra.mxu0 %v5554
    %7500 = vmatprep.subr.bf16.mxu0 %v5559
    %7501 = vmatpush1.bf16.msra.mxu0 %v5558
    %7502 = vmatprep.subr.bf16.mxu0 %v5563
    %7503 = vmatpush1.bf16.msra.mxu0 %v5562
    %7504 = vmatprep.subr.bf16.mxu0 %v5567
    %7505 = vmatpush1.bf16.msra.mxu0 %v5566
    %7506 = vmatprep.subr.bf16.mxu0 %v5571
    %7507 = vmatpush1.bf16.msra.mxu0 %v5570
    %7508 = vmatprep.subr.bf16.mxu0 %v5575
    %7509 = vmatpush1.bf16.msra.mxu0 %v5574
    %7510 = vmatprep.subr.bf16.mxu0 %v5579
    %7511 = vmatpush1.bf16.msra.mxu0 %v5578
    %7512 = vmatprep.subr.bf16.mxu0 %v5583
    %7513 = vmatpush1.bf16.msra.mxu0 %v5582
    %7514 = vmatprep.subr.bf16.mxu0 %v5587
    %7515 = vmatpush1.bf16.msra.mxu0 %v5586
    %7516 = vmatprep.subr.bf16.mxu0 %v5591
    %7517 = vmatpush1.bf16.msra.mxu0 %v5590
    %7518 = vmatprep.mubr.bf16.mxu0 %v2147
    %7519 = vmatmul.mubr.bf16.gmra.mrb[0].mxu0 %v2146
    %v7520 = vpop.f32.mrb[0].mxu0
    %v7521 = vadd.f32 %v7480, %v7520
    %v7522 = vpop.f32.mrb[0].mxu0
    %v7523 = vadd.f32 %v7482, %v7522
    %v7524 = vpop.f32.mrb[0].mxu0
    %v7525 = vpop.f32.mrb[0].mxu0
    %7526 = vdwg.mxu0
    %7527 = vmatprep.subr.bf16.mxu0 %v5595
    %7528 = vmatpush1.bf16.msra.mxu0 %v5594
    %7529 = vmatprep.subr.bf16.mxu0 %v5599
    %7530 = vmatpush1.bf16.msra.mxu0 %v5598
    %7531 = vmatprep.subr.bf16.mxu0 %v5603
    %7532 = vmatpush1.bf16.msra.mxu0 %v5602
    %7533 = vmatprep.subr.bf16.mxu0 %v5607
    %7534 = vmatpush1.bf16.msra.mxu0 %v5606
    %7535 = vmatprep.subr.bf16.mxu0 %v5611
    %7536 = vmatpush1.bf16.msra.mxu0 %v5610
    %7537 = vmatprep.subr.bf16.mxu0 %v5615
    %7538 = vmatpush1.bf16.msra.mxu0 %v5614
    %7539 = vmatprep.subr.bf16.mxu0 %v5619
    %7540 = vmatpush1.bf16.msra.mxu0 %v5618
    %7541 = vmatprep.subr.bf16.mxu0 %v5623
    %7542 = vmatpush1.bf16.msra.mxu0 %v5622
    %7543 = vmatprep.subr.bf16.mxu0 %v5627
    %7544 = vmatpush1.bf16.msra.mxu0 %v5626
    %7545 = vmatprep.subr.bf16.mxu0 %v5631
    %7546 = vmatpush1.bf16.msra.mxu0 %v5630
    %7547 = vmatprep.subr.bf16.mxu0 %v5635
    %7548 = vmatpush1.bf16.msra.mxu0 %v5634
    %7549 = vmatprep.subr.bf16.mxu0 %v5639
    %7550 = vmatpush1.bf16.msra.mxu0 %v5638
    %7551 = vmatprep.subr.bf16.mxu0 %v5643
    %7552 = vmatpush1.bf16.msra.mxu0 %v5642
    %7553 = vmatprep.subr.bf16.mxu0 %v5647
    %7554 = vmatpush1.bf16.msra.mxu0 %v5646
    %7555 = vmatprep.subr.bf16.mxu0 %v5651
    %7556 = vmatpush1.bf16.msra.mxu0 %v5650
    %7557 = vmatprep.subr.bf16.mxu0 %v5655
    %7558 = vmatpush1.bf16.msra.mxu0 %v5654
    %7559 = vmatprep.mubr.bf16.mxu0 %v2149
    %7560 = vmatmul.mubr.bf16.gmra.mrb[0].mxu0 %v2148
    %v7561 = vpop.f32.mrb[0].mxu0
    %v7562 = vadd.f32 %v7521, %v7561
    %v7563 = vpop.f32.mrb[0].mxu0
    %v7564 = vadd.f32 %v7523, %v7563
    %v7565 = vpop.f32.mrb[0].mxu0
    %v7566 = vpop.f32.mrb[0].mxu0
    %7567 = vdwg.mxu0
    %7568 = vmatprep.subr.bf16.mxu0 %v5659
    %7569 = vmatpush1.bf16.msra.mxu0 %v5658
    %7570 = vmatprep.subr.bf16.mxu0 %v5663
    %7571 = vmatpush1.bf16.msra.mxu0 %v5662
    %7572 = vmatprep.subr.bf16.mxu0 %v5667
    %7573 = vmatpush1.bf16.msra.mxu0 %v5666
    %7574 = vmatprep.subr.bf16.mxu0 %v5671
    %7575 = vmatpush1.bf16.msra.mxu0 %v5670
    %7576 = vmatprep.subr.bf16.mxu0 %v5675
    %7577 = vmatpush1.bf16.msra.mxu0 %v5674
    %7578 = vmatprep.subr.bf16.mxu0 %v5679
    %7579 = vmatpush1.bf16.msra.mxu0 %v5678
    %7580 = vmatprep.subr.bf16.mxu0 %v5683
    %7581 = vmatpush1.bf16.msra.mxu0 %v5682
    %7582 = vmatprep.subr.bf16.mxu0 %v5687
    %7583 = vmatpush1.bf16.msra.mxu0 %v5686
    %7584 = vmatprep.subr.bf16.mxu0 %v5691
    %7585 = vmatpush1.bf16.msra.mxu0 %v5690
    %7586 = vmatprep.subr.bf16.mxu0 %v5695
    %7587 = vmatpush1.bf16.msra.mxu0 %v5694
    %7588 = vmatprep.subr.bf16.mxu0 %v5699
    %7589 = vmatpush1.bf16.msra.mxu0 %v5698
    %7590 = vmatprep.subr.bf16.mxu0 %v5703
    %7591 = vmatpush1.bf16.msra.mxu0 %v5702
    %7592 = vmatprep.subr.bf16.mxu0 %v5707
    %7593 = vmatpush1.bf16.msra.mxu0 %v5706
    %7594 = vmatprep.subr.bf16.mxu0 %v5711
    %7595 = vmatpush1.bf16.msra.mxu0 %v5710
    %7596 = vmatprep.subr.bf16.mxu0 %v5715
    %7597 = vmatpush1.bf16.msra.mxu0 %v5714
    %7598 = vmatprep.subr.bf16.mxu0 %v5719
    %7599 = vmatpush1.bf16.msra.mxu0 %v5718
    %7600 = vmatprep.mubr.bf16.mxu0 %v2151
    %7601 = vmatmul.mubr.bf16.gmra.mrb[0].mxu0 %v2150
    %v7602 = vpop.f32.mrb[0].mxu0
    %v7603 = vadd.f32 %v7562, %v7602
    %v7604 = vpop.f32.mrb[0].mxu0
    %v7605 = vadd.f32 %v7564, %v7604
    %v7606 = vpop.f32.mrb[0].mxu0
    %v7607 = vpop.f32.mrb[0].mxu0
    %7608 = vdwg.mxu0
    %7609 = vmatprep.subr.bf16.mxu0 %v5723
    %7610 = vmatpush1.bf16.msra.mxu0 %v5722
    %7611 = vmatprep.subr.bf16.mxu0 %v5727
    %7612 = vmatpush1.bf16.msra.mxu0 %v5726
    %7613 = vmatprep.subr.bf16.mxu0 %v5731
    %7614 = vmatpush1.bf16.msra.mxu0 %v5730
    %7615 = vmatprep.subr.bf16.mxu0 %v5735
    %7616 = vmatpush1.bf16.msra.mxu0 %v5734
    %7617 = vmatprep.subr.bf16.mxu0 %v5739
    %7618 = vmatpush1.bf16.msra.mxu0 %v5738
    %7619 = vmatprep.subr.bf16.mxu0 %v5743
    %7620 = vmatpush1.bf16.msra.mxu0 %v5742
    %7621 = vmatprep.subr.bf16.mxu0 %v5747
    %7622 = vmatpush1.bf16.msra.mxu0 %v5746
    %7623 = vmatprep.subr.bf16.mxu0 %v5751
    %7624 = vmatpush1.bf16.msra.mxu0 %v5750
    %7625 = vmatprep.subr.bf16.mxu0 %v5755
    %7626 = vmatpush1.bf16.msra.mxu0 %v5754
    %7627 = vmatprep.subr.bf16.mxu0 %v5759
    %7628 = vmatpush1.bf16.msra.mxu0 %v5758
    %7629 = vmatprep.subr.bf16.mxu0 %v5763
    %7630 = vmatpush1.bf16.msra.mxu0 %v5762
    %7631 = vmatprep.subr.bf16.mxu0 %v5767
    %7632 = vmatpush1.bf16.msra.mxu0 %v5766
    %7633 = vmatprep.subr.bf16.mxu0 %v5771
    %7634 = vmatpush1.bf16.msra.mxu0 %v5770
    %7635 = vmatprep.subr.bf16.mxu0 %v5775
    %7636 = vmatpush1.bf16.msra.mxu0 %v5774
    %7637 = vmatprep.subr.bf16.mxu0 %v5779
    %7638 = vmatpush1.bf16.msra.mxu0 %v5778
    %7639 = vmatprep.subr.bf16.mxu0 %v5783
    %7640 = vmatpush1.bf16.msra.mxu0 %v5782
    %7641 = vmatprep.mubr.bf16.mxu0 %v2153
    %7642 = vmatmul.mubr.bf16.gmra.mrb[0].mxu0 %v2152
    %v7643 = vpop.f32.mrb[0].mxu0
    %v7644 = vadd.f32 %v7603, %v7643
    %v7645 = vpop.f32.mrb[0].mxu0
    %v7646 = vadd.f32 %v7605, %v7645
    %v7647 = vpop.f32.mrb[0].mxu0
    %v7648 = vpop.f32.mrb[0].mxu0
    %7649 = vdwg.mxu0
    %7650 = vmatprep.subr.bf16.mxu0 %v5787
    %7651 = vmatpush1.bf16.msra.mxu0 %v5786
    %7652 = vmatprep.subr.bf16.mxu0 %v5791
    %7653 = vmatpush1.bf16.msra.mxu0 %v5790
    %7654 = vmatprep.subr.bf16.mxu0 %v5795
    %7655 = vmatpush1.bf16.msra.mxu0 %v5794
    %7656 = vmatprep.subr.bf16.mxu0 %v5799
    %7657 = vmatpush1.bf16.msra.mxu0 %v5798
    %7658 = vmatprep.subr.bf16.mxu0 %v5803
    %7659 = vmatpush1.bf16.msra.mxu0 %v5802
    %7660 = vmatprep.subr.bf16.mxu0 %v5807
    %7661 = vmatpush1.bf16.msra.mxu0 %v5806
    %7662 = vmatprep.subr.bf16.mxu0 %v5811
    %7663 = vmatpush1.bf16.msra.mxu0 %v5810
    %7664 = vmatprep.subr.bf16.mxu0 %v5815
    %7665 = vmatpush1.bf16.msra.mxu0 %v5814
    %7666 = vmatprep.subr.bf16.mxu0 %v5819
    %7667 = vmatpush1.bf16.msra.mxu0 %v5818
    %7668 = vmatprep.subr.bf16.mxu0 %v5823
    %7669 = vmatpush1.bf16.msra.mxu0 %v5822
    %7670 = vmatprep.subr.bf16.mxu0 %v5827
    %7671 = vmatpush1.bf16.msra.mxu0 %v5826
    %7672 = vmatprep.subr.bf16.mxu0 %v5831
    %7673 = vmatpush1.bf16.msra.mxu0 %v5830
    %7674 = vmatprep.subr.bf16.mxu0 %v5835
    %7675 = vmatpush1.bf16.msra.mxu0 %v5834
    %7676 = vmatprep.subr.bf16.mxu0 %v5839
    %7677 = vmatpush1.bf16.msra.mxu0 %v5838
    %7678 = vmatprep.subr.bf16.mxu0 %v5843
    %7679 = vmatpush1.bf16.msra.mxu0 %v5842
    %7680 = vmatprep.subr.bf16.mxu0 %v5847
    %7681 = vmatpush1.bf16.msra.mxu0 %v5846
    %7682 = vmatprep.mubr.bf16.mxu0 %v2155
    %7683 = vmatmul.mubr.bf16.gmra.mrb[0].mxu0 %v2154
    %v7684 = vpop.f32.mrb[0].mxu0
    %v7685 = vadd.f32 %v7644, %v7684
    %v7686 = vpop.f32.mrb[0].mxu0
    %v7687 = vadd.f32 %v7646, %v7686
    %v7688 = vpop.f32.mrb[0].mxu0
    %v7689 = vpop.f32.mrb[0].mxu0
    %7690 = vdwg.mxu0
    %7691 = vmatprep.subr.bf16.mxu0 %v5851
    %7692 = vmatpush1.bf16.msra.mxu0 %v5850
    %7693 = vmatprep.subr.bf16.mxu0 %v5855
    %7694 = vmatpush1.bf16.msra.mxu0 %v5854
    %7695 = vmatprep.subr.bf16.mxu0 %v5859
    %7696 = vmatpush1.bf16.msra.mxu0 %v5858
    %7697 = vmatprep.subr.bf16.mxu0 %v5863
    %7698 = vmatpush1.bf16.msra.mxu0 %v5862
    %7699 = vmatprep.subr.bf16.mxu0 %v5867
    %7700 = vmatpush1.bf16.msra.mxu0 %v5866
    %7701 = vmatprep.subr.bf16.mxu0 %v5871
    %7702 = vmatpush1.bf16.msra.mxu0 %v5870
    %7703 = vmatprep.subr.bf16.mxu0 %v5875
    %7704 = vmatpush1.bf16.msra.mxu0 %v5874
    %7705 = vmatprep.subr.bf16.mxu0 %v5879
    %7706 = vmatpush1.bf16.msra.mxu0 %v5878
    %7707 = vmatprep.subr.bf16.mxu0 %v5883
    %7708 = vmatpush1.bf16.msra.mxu0 %v5882
    %7709 = vmatprep.subr.bf16.mxu0 %v5887
    %7710 = vmatpush1.bf16.msra.mxu0 %v5886
    %7711 = vmatprep.subr.bf16.mxu0 %v5891
    %7712 = vmatpush1.bf16.msra.mxu0 %v5890
    %7713 = vmatprep.subr.bf16.mxu0 %v5895
    %7714 = vmatpush1.bf16.msra.mxu0 %v5894
    %7715 = vmatprep.subr.bf16.mxu0 %v5899
    %7716 = vmatpush1.bf16.msra.mxu0 %v5898
    %7717 = vmatprep.subr.bf16.mxu0 %v5903
    %7718 = vmatpush1.bf16.msra.mxu0 %v5902
    %7719 = vmatprep.subr.bf16.mxu0 %v5907
    %7720 = vmatpush1.bf16.msra.mxu0 %v5906
    %7721 = vmatprep.subr.bf16.mxu0 %v5911
    %7722 = vmatpush1.bf16.msra.mxu0 %v5910
    %7723 = vmatprep.mubr.bf16.mxu0 %v2157
    %7724 = vmatmul.mubr.bf16.gmra.mrb[0].mxu0 %v2156
    %v7725 = vpop.f32.mrb[0].mxu0
    %v7726 = vadd.f32 %v7685, %v7725
    %v7727 = vpop.f32.mrb[0].mxu0
    %v7728 = vadd.f32 %v7687, %v7727
    %v7729 = vpop.f32.mrb[0].mxu0
    %v7730 = vpop.f32.mrb[0].mxu0
    %7731 = vdwg.mxu0
    %7732 = vmatprep.subr.bf16.mxu0 %v5915
    %7733 = vmatpush1.bf16.msra.mxu0 %v5914
    %7734 = vmatprep.subr.bf16.mxu0 %v5919
    %7735 = vmatpush1.bf16.msra.mxu0 %v5918
    %7736 = vmatprep.subr.bf16.mxu0 %v5923
    %7737 = vmatpush1.bf16.msra.mxu0 %v5922
    %7738 = vmatprep.subr.bf16.mxu0 %v5927
    %7739 = vmatpush1.bf16.msra.mxu0 %v5926
    %7740 = vmatprep.subr.bf16.mxu0 %v5931
    %7741 = vmatpush1.bf16.msra.mxu0 %v5930
    %7742 = vmatprep.subr.bf16.mxu0 %v5935
    %7743 = vmatpush1.bf16.msra.mxu0 %v5934
    %7744 = vmatprep.subr.bf16.mxu0 %v5939
    %7745 = vmatpush1.bf16.msra.mxu0 %v5938
    %7746 = vmatprep.subr.bf16.mxu0 %v5943
    %7747 = vmatpush1.bf16.msra.mxu0 %v5942
    %7748 = vmatprep.subr.bf16.mxu0 %v5947
    %7749 = vmatpush1.bf16.msra.mxu0 %v5946
    %7750 = vmatprep.subr.bf16.mxu0 %v5951
    %7751 = vmatpush1.bf16.msra.mxu0 %v5950
    %7752 = vmatprep.subr.bf16.mxu0 %v5955
    %7753 = vmatpush1.bf16.msra.mxu0 %v5954
    %7754 = vmatprep.subr.bf16.mxu0 %v5959
    %7755 = vmatpush1.bf16.msra.mxu0 %v5958
    %7756 = vmatprep.subr.bf16.mxu0 %v5963
    %7757 = vmatpush1.bf16.msra.mxu0 %v5962
    %7758 = vmatprep.subr.bf16.mxu0 %v5967
    %7759 = vmatpush1.bf16.msra.mxu0 %v5966
    %7760 = vmatprep.subr.bf16.mxu0 %v5971
    %7761 = vmatpush1.bf16.msra.mxu0 %v5970
    %7762 = vmatprep.subr.bf16.mxu0 %v5975
    %7763 = vmatpush1.bf16.msra.mxu0 %v5974
    %7764 = vmatprep.mubr.bf16.mxu0 %v2159
    %7765 = vmatmul.mubr.bf16.gmra.mrb[0].mxu0 %v2158
    %v7766 = vpop.f32.mrb[0].mxu0
    %v7767 = vadd.f32 %v7726, %v7766
    %v7768 = vpop.f32.mrb[0].mxu0
    %v7769 = vadd.f32 %v7728, %v7768
    %v7770 = vpop.f32.mrb[0].mxu0
    %v7771 = vpop.f32.mrb[0].mxu0
    %7772 = vdwg.mxu0
    %7773 = vmatprep.subr.bf16.mxu0 %v5979
    %7774 = vmatpush1.bf16.msra.mxu0 %v5978
    %7775 = vmatprep.subr.bf16.mxu0 %v5983
    %7776 = vmatpush1.bf16.msra.mxu0 %v5982
    %7777 = vmatprep.subr.bf16.mxu0 %v5987
    %7778 = vmatpush1.bf16.msra.mxu0 %v5986
    %7779 = vmatprep.subr.bf16.mxu0 %v5991
    %7780 = vmatpush1.bf16.msra.mxu0 %v5990
    %7781 = vmatprep.subr.bf16.mxu0 %v5995
    %7782 = vmatpush1.bf16.msra.mxu0 %v5994
    %7783 = vmatprep.subr.bf16.mxu0 %v5999
    %7784 = vmatpush1.bf16.msra.mxu0 %v5998
    %7785 = vmatprep.subr.bf16.mxu0 %v6003
    %7786 = vmatpush1.bf16.msra.mxu0 %v6002
    %7787 = vmatprep.subr.bf16.mxu0 %v6007
    %7788 = vmatpush1.bf16.msra.mxu0 %v6006
    %7789 = vmatprep.subr.bf16.mxu0 %v6011
    %7790 = vmatpush1.bf16.msra.mxu0 %v6010
    %7791 = vmatprep.subr.bf16.mxu0 %v6015
    %7792 = vmatpush1.bf16.msra.mxu0 %v6014
    %7793 = vmatprep.subr.bf16.mxu0 %v6019
    %7794 = vmatpush1.bf16.msra.mxu0 %v6018
    %7795 = vmatprep.subr.bf16.mxu0 %v6023
    %7796 = vmatpush1.bf16.msra.mxu0 %v6022
    %7797 = vmatprep.subr.bf16.mxu0 %v6027
    %7798 = vmatpush1.bf16.msra.mxu0 %v6026
    %7799 = vmatprep.subr.bf16.mxu0 %v6031
    %7800 = vmatpush1.bf16.msra.mxu0 %v6030
    %7801 = vmatprep.subr.bf16.mxu0 %v6035
    %7802 = vmatpush1.bf16.msra.mxu0 %v6034
    %7803 = vmatprep.subr.bf16.mxu0 %v6039
    %7804 = vmatpush1.bf16.msra.mxu0 %v6038
    %7805 = vmatprep.mubr.bf16.mxu0 %v2161
    %7806 = vmatmul.mubr.bf16.gmra.mrb[0].mxu0 %v2160
    %v7807 = vpop.f32.mrb[0].mxu0
    %v7808 = vadd.f32 %v7767, %v7807
    %v7809 = vpop.f32.mrb[0].mxu0
    %v7810 = vadd.f32 %v7769, %v7809
    %v7811 = vpop.f32.mrb[0].mxu0
    %v7812 = vpop.f32.mrb[0].mxu0
    %7813 = vdwg.mxu0
    %7814 = vmatprep.subr.bf16.mxu0 %v6043
    %7815 = vmatpush1.bf16.msra.mxu0 %v6042
    %7816 = vmatprep.subr.bf16.mxu0 %v6047
    %7817 = vmatpush1.bf16.msra.mxu0 %v6046
    %7818 = vmatprep.subr.bf16.mxu0 %v6051
    %7819 = vmatpush1.bf16.msra.mxu0 %v6050
    %7820 = vmatprep.subr.bf16.mxu0 %v6055
    %7821 = vmatpush1.bf16.msra.mxu0 %v6054
    %7822 = vmatprep.subr.bf16.mxu0 %v6059
    %7823 = vmatpush1.bf16.msra.mxu0 %v6058
    %7824 = vmatprep.subr.bf16.mxu0 %v6063
    %7825 = vmatpush1.bf16.msra.mxu0 %v6062
    %7826 = vmatprep.subr.bf16.mxu0 %v6067
    %7827 = vmatpush1.bf16.msra.mxu0 %v6066
    %7828 = vmatprep.subr.bf16.mxu0 %v6071
    %7829 = vmatpush1.bf16.msra.mxu0 %v6070
    %7830 = vmatprep.subr.bf16.mxu0 %v6075
    %7831 = vmatpush1.bf16.msra.mxu0 %v6074
    %7832 = vmatprep.subr.bf16.mxu0 %v6079
    %7833 = vmatpush1.bf16.msra.mxu0 %v6078
    %7834 = vmatprep.subr.bf16.mxu0 %v6083
    %7835 = vmatpush1.bf16.msra.mxu0 %v6082
    %7836 = vmatprep.subr.bf16.mxu0 %v6087
    %7837 = vmatpush1.bf16.msra.mxu0 %v6086
    %7838 = vmatprep.subr.bf16.mxu0 %v6091
    %7839 = vmatpush1.bf16.msra.mxu0 %v6090
    %7840 = vmatprep.subr.bf16.mxu0 %v6095
    %7841 = vmatpush1.bf16.msra.mxu0 %v6094
    %7842 = vmatprep.subr.bf16.mxu0 %v6099
    %7843 = vmatpush1.bf16.msra.mxu0 %v6098
    %7844 = vmatprep.subr.bf16.mxu0 %v6103
    %7845 = vmatpush1.bf16.msra.mxu0 %v6102
    %7846 = vmatprep.mubr.bf16.mxu0 %v2163
    %7847 = vmatmul.mubr.bf16.gmra.mrb[0].mxu0 %v2162
    %v7848 = vpop.f32.mrb[0].mxu0
    %v7849 = vadd.f32 %v7808, %v7848
    %v7850 = vpop.f32.mrb[0].mxu0
    %v7851 = vadd.f32 %v7810, %v7850
    %v7852 = vpop.f32.mrb[0].mxu0
    %v7853 = vpop.f32.mrb[0].mxu0
    %7854 = vdwg.mxu0
    %7855 = vmatprep.subr.bf16.mxu0 %v6107
    %7856 = vmatpush1.bf16.msra.mxu0 %v6106
    %7857 = vmatprep.subr.bf16.mxu0 %v6111
    %7858 = vmatpush1.bf16.msra.mxu0 %v6110
    %7859 = vmatprep.subr.bf16.mxu0 %v6115
    %7860 = vmatpush1.bf16.msra.mxu0 %v6114
    %7861 = vmatprep.subr.bf16.mxu0 %v6119
    %7862 = vmatpush1.bf16.msra.mxu0 %v6118
    %7863 = vmatprep.subr.bf16.mxu0 %v6123
    %7864 = vmatpush1.bf16.msra.mxu0 %v6122
    %7865 = vmatprep.subr.bf16.mxu0 %v6127
    %7866 = vmatpush1.bf16.msra.mxu0 %v6126
    %7867 = vmatprep.subr.bf16.mxu0 %v6131
    %7868 = vmatpush1.bf16.msra.mxu0 %v6130
    %7869 = vmatprep.subr.bf16.mxu0 %v6135
    %7870 = vmatpush1.bf16.msra.mxu0 %v6134
    %7871 = vmatprep.subr.bf16.mxu0 %v6139
    %7872 = vmatpush1.bf16.msra.mxu0 %v6138
    %7873 = vmatprep.subr.bf16.mxu0 %v6143
    %7874 = vmatpush1.bf16.msra.mxu0 %v6142
    %7875 = vmatprep.subr.bf16.mxu0 %v6147
    %7876 = vmatpush1.bf16.msra.mxu0 %v6146
    %7877 = vmatprep.subr.bf16.mxu0 %v6151
    %7878 = vmatpush1.bf16.msra.mxu0 %v6150
    %7879 = vmatprep.subr.bf16.mxu0 %v6155
    %7880 = vmatpush1.bf16.msra.mxu0 %v6154
    %7881 = vmatprep.subr.bf16.mxu0 %v6159
    %7882 = vmatpush1.bf16.msra.mxu0 %v6158
    %7883 = vmatprep.subr.bf16.mxu0 %v6163
    %7884 = vmatpush1.bf16.msra.mxu0 %v6162
    %7885 = vmatprep.subr.bf16.mxu0 %v6167
    %7886 = vmatpush1.bf16.msra.mxu0 %v6166
    %7887 = vmatprep.mubr.bf16.mxu0 %v2165
    %7888 = vmatmul.mubr.bf16.gmra.mrb[0].mxu0 %v2164
    %v7889 = vpop.f32.mrb[0].mxu0
    %v7890 = vadd.f32 %v7849, %v7889
    %v7891 = vpop.f32.mrb[0].mxu0
    %v7892 = vadd.f32 %v7851, %v7891
    %v7893 = vpop.f32.mrb[0].mxu0
    %v7894 = vpop.f32.mrb[0].mxu0
    %7895 = vdwg.mxu0
    %7896 = vmatprep.subr.bf16.mxu0 %v6171
    %7897 = vmatpush1.bf16.msra.mxu0 %v6170
    %7898 = vmatprep.subr.bf16.mxu0 %v6175
    %7899 = vmatpush1.bf16.msra.mxu0 %v6174
    %7900 = vmatprep.subr.bf16.mxu0 %v6179
    %7901 = vmatpush1.bf16.msra.mxu0 %v6178
    %7902 = vmatprep.subr.bf16.mxu0 %v6183
    %7903 = vmatpush1.bf16.msra.mxu0 %v6182
    %7904 = vmatprep.subr.bf16.mxu0 %v6187
    %7905 = vmatpush1.bf16.msra.mxu0 %v6186
    %7906 = vmatprep.subr.bf16.mxu0 %v6191
    %7907 = vmatpush1.bf16.msra.mxu0 %v6190
    %7908 = vmatprep.subr.bf16.mxu0 %v6195
    %7909 = vmatpush1.bf16.msra.mxu0 %v6194
    %7910 = vmatprep.subr.bf16.mxu0 %v6199
    %7911 = vmatpush1.bf16.msra.mxu0 %v6198
    %7912 = vmatprep.subr.bf16.mxu0 %v6203
    %7913 = vmatpush1.bf16.msra.mxu0 %v6202
    %7914 = vmatprep.subr.bf16.mxu0 %v6207
    %7915 = vmatpush1.bf16.msra.mxu0 %v6206
    %7916 = vmatprep.subr.bf16.mxu0 %v6211
    %7917 = vmatpush1.bf16.msra.mxu0 %v6210
    %7918 = vmatprep.subr.bf16.mxu0 %v6215
    %7919 = vmatpush1.bf16.msra.mxu0 %v6214
    %7920 = vmatprep.subr.bf16.mxu0 %v6219
    %7921 = vmatpush1.bf16.msra.mxu0 %v6218
    %7922 = vmatprep.subr.bf16.mxu0 %v6223
    %7923 = vmatpush1.bf16.msra.mxu0 %v6222
    %7924 = vmatprep.subr.bf16.mxu0 %v6227
    %7925 = vmatpush1.bf16.msra.mxu0 %v6226
    %7926 = vmatprep.subr.bf16.mxu0 %v6231
    %7927 = vmatpush1.bf16.msra.mxu0 %v6230
    %7928 = vmatprep.mubr.bf16.mxu0 %v2167
    %7929 = vmatmul.mubr.bf16.gmra.mrb[0].mxu0 %v2166
    %v7930 = vpop.f32.mrb[0].mxu0
    %v7931 = vadd.f32 %v7890, %v7930
    %v7932 = vpop.f32.mrb[0].mxu0
    %v7933 = vadd.f32 %v7892, %v7932
    %v7934 = vpop.f32.mrb[0].mxu0
    %v7935 = vpop.f32.mrb[0].mxu0
    %7936 = vdwg.mxu0
    %7937 = vmatprep.subr.bf16.mxu0 %v6235
    %7938 = vmatpush1.bf16.msra.mxu0 %v6234
    %7939 = vmatprep.subr.bf16.mxu0 %v6239
    %7940 = vmatpush1.bf16.msra.mxu0 %v6238
    %7941 = vmatprep.subr.bf16.mxu0 %v6243
    %7942 = vmatpush1.bf16.msra.mxu0 %v6242
    %7943 = vmatprep.subr.bf16.mxu0 %v6247
    %7944 = vmatpush1.bf16.msra.mxu0 %v6246
    %7945 = vmatprep.subr.bf16.mxu0 %v6251
    %7946 = vmatpush1.bf16.msra.mxu0 %v6250
    %7947 = vmatprep.subr.bf16.mxu0 %v6255
    %7948 = vmatpush1.bf16.msra.mxu0 %v6254
    %7949 = vmatprep.subr.bf16.mxu0 %v6259
    %7950 = vmatpush1.bf16.msra.mxu0 %v6258
    %7951 = vmatprep.subr.bf16.mxu0 %v6263
    %7952 = vmatpush1.bf16.msra.mxu0 %v6262
    %7953 = vmatprep.subr.bf16.mxu0 %v6267
    %7954 = vmatpush1.bf16.msra.mxu0 %v6266
    %7955 = vmatprep.subr.bf16.mxu0 %v6271
    %7956 = vmatpush1.bf16.msra.mxu0 %v6270
    %7957 = vmatprep.subr.bf16.mxu0 %v6275
    %7958 = vmatpush1.bf16.msra.mxu0 %v6274
    %7959 = vmatprep.subr.bf16.mxu0 %v6279
    %7960 = vmatpush1.bf16.msra.mxu0 %v6278
    %7961 = vmatprep.subr.bf16.mxu0 %v6283
    %7962 = vmatpush1.bf16.msra.mxu0 %v6282
    %7963 = vmatprep.subr.bf16.mxu0 %v6287
    %7964 = vmatpush1.bf16.msra.mxu0 %v6286
    %7965 = vmatprep.subr.bf16.mxu0 %v6291
    %7966 = vmatpush1.bf16.msra.mxu0 %v6290
    %7967 = vmatprep.subr.bf16.mxu0 %v6295
    %7968 = vmatpush1.bf16.msra.mxu0 %v6294
    %7969 = vmatprep.mubr.bf16.mxu0 %v2169
    %7970 = vmatmul.mubr.bf16.gmra.mrb[0].mxu0 %v2168
    %v7971 = vpop.f32.mrb[0].mxu0
    %v7972 = vadd.f32 %v7931, %v7971
    %v7973 = vpop.f32.mrb[0].mxu0
    %v7974 = vadd.f32 %v7933, %v7973
    %v7975 = vpop.f32.mrb[0].mxu0
    %v7976 = vpop.f32.mrb[0].mxu0
    %7977 = vdwg.mxu0
    %7978 = vmatprep.subr.bf16.mxu0 %v5277
    %7979 = vmatpush1.bf16.msra.mxu0 %v5276
    %7980 = vmatprep.subr.bf16.mxu0 %v5281
    %7981 = vmatpush1.bf16.msra.mxu0 %v5280
    %7982 = vmatprep.subr.bf16.mxu0 %v5285
    %7983 = vmatpush1.bf16.msra.mxu0 %v5284
    %7984 = vmatprep.subr.bf16.mxu0 %v5289
    %7985 = vmatpush1.bf16.msra.mxu0 %v5288
    %7986 = vmatprep.subr.bf16.mxu0 %v5293
    %7987 = vmatpush1.bf16.msra.mxu0 %v5292
    %7988 = vmatprep.subr.bf16.mxu0 %v5297
    %7989 = vmatpush1.bf16.msra.mxu0 %v5296
    %7990 = vmatprep.subr.bf16.mxu0 %v5301
    %7991 = vmatpush1.bf16.msra.mxu0 %v5300
    %7992 = vmatprep.subr.bf16.mxu0 %v5305
    %7993 = vmatpush1.bf16.msra.mxu0 %v5304
    %7994 = vmatprep.subr.bf16.mxu0 %v5309
    %7995 = vmatpush1.bf16.msra.mxu0 %v5308
    %7996 = vmatprep.subr.bf16.mxu0 %v5313
    %7997 = vmatpush1.bf16.msra.mxu0 %v5312
    %7998 = vmatprep.subr.bf16.mxu0 %v5317
    %7999 = vmatpush1.bf16.msra.mxu0 %v5316
    %8000 = vmatprep.subr.bf16.mxu0 %v5321
    %8001 = vmatpush1.bf16.msra.mxu0 %v5320
    %8002 = vmatprep.subr.bf16.mxu0 %v5325
    %8003 = vmatpush1.bf16.msra.mxu0 %v5324
    %8004 = vmatprep.subr.bf16.mxu0 %v5329
    %8005 = vmatpush1.bf16.msra.mxu0 %v5328
    %8006 = vmatprep.subr.bf16.mxu0 %v5333
    %8007 = vmatpush1.bf16.msra.mxu0 %v5332
    %8008 = vmatprep.subr.bf16.mxu0 %v5337
    %8009 = vmatpush1.bf16.msra.mxu0 %v5336
    %8010 = vmatprep.mubr.bf16.mxu0 %v2139
    %8011 = vmatmul.mubr.bf16.gmra.mrb[0].mxu0 %v2138
    %v8012 = vpop.f32.mrb[0].mxu0
    %v8013 = vadd.f32 %v2081, %v8012
    %v8014 = vpop.f32.mrb[0].mxu0
    %v8015 = vadd.f32 %v2085, %v8014
    %v8016 = vpop.f32.mrb[0].mxu0
    %v8017 = vpop.f32.mrb[0].mxu0
    %8018 = vdwg.mxu0
    %8019 = vmatprep.subr.bf16.mxu0 %v5341
    %8020 = vmatpush1.bf16.msra.mxu0 %v5340
    %8021 = vmatprep.subr.bf16.mxu0 %v5345
    %8022 = vmatpush1.bf16.msra.mxu0 %v5344
    %8023 = vmatprep.subr.bf16.mxu0 %v5349
    %8024 = vmatpush1.bf16.msra.mxu0 %v5348
    %8025 = vmatprep.subr.bf16.mxu0 %v5353
    %8026 = vmatpush1.bf16.msra.mxu0 %v5352
    %8027 = vmatprep.subr.bf16.mxu0 %v5357
    %8028 = vmatpush1.bf16.msra.mxu0 %v5356
    %8029 = vmatprep.subr.bf16.mxu0 %v5361
    %8030 = vmatpush1.bf16.msra.mxu0 %v5360
    %8031 = vmatprep.subr.bf16.mxu0 %v5365
    %8032 = vmatpush1.bf16.msra.mxu0 %v5364
    %8033 = vmatprep.subr.bf16.mxu0 %v5369
    %8034 = vmatpush1.bf16.msra.mxu0 %v5368
    %8035 = vmatprep.subr.bf16.mxu0 %v5373
    %8036 = vmatpush1.bf16.msra.mxu0 %v5372
    %8037 = vmatprep.subr.bf16.mxu0 %v5377
    %8038 = vmatpush1.bf16.msra.mxu0 %v5376
    %8039 = vmatprep.subr.bf16.mxu0 %v5381
    %8040 = vmatpush1.bf16.msra.mxu0 %v5380
    %8041 = vmatprep.subr.bf16.mxu0 %v5385
    %8042 = vmatpush1.bf16.msra.mxu0 %v5384
    %8043 = vmatprep.subr.bf16.mxu0 %v5389
    %8044 = vmatpush1.bf16.msra.mxu0 %v5388
    %8045 = vmatprep.subr.bf16.mxu0 %v5393
    %8046 = vmatpush1.bf16.msra.mxu0 %v5392
    %8047 = vmatprep.subr.bf16.mxu0 %v5397
    %8048 = vmatpush1.bf16.msra.mxu0 %v5396
    %8049 = vmatprep.subr.bf16.mxu0 %v5401
    %8050 = vmatpush1.bf16.msra.mxu0 %v5400
    %8051 = vmatprep.mubr.bf16.mxu0 %v2141
    %8052 = vmatmul.mubr.bf16.gmra.mrb[0].mxu0 %v2140
    %v8053 = vpop.f32.mrb[0].mxu0
    %v8054 = vadd.f32 %v8013, %v8053
    %v8055 = vpop.f32.mrb[0].mxu0
    %v8056 = vadd.f32 %v8015, %v8055
    %v8057 = vpop.f32.mrb[0].mxu0
    %v8058 = vpop.f32.mrb[0].mxu0
    %8059 = vdwg.mxu0
    %8060 = vmatprep.subr.bf16.mxu0 %v5405
    %8061 = vmatpush1.bf16.msra.mxu0 %v5404
    %8062 = vmatprep.subr.bf16.mxu0 %v5409
    %8063 = vmatpush1.bf16.msra.mxu0 %v5408
    %8064 = vmatprep.subr.bf16.mxu0 %v5413
    %8065 = vmatpush1.bf16.msra.mxu0 %v5412
    %8066 = vmatprep.subr.bf16.mxu0 %v5417
    %8067 = vmatpush1.bf16.msra.mxu0 %v5416
    %8068 = vmatprep.subr.bf16.mxu0 %v5421
    %8069 = vmatpush1.bf16.msra.mxu0 %v5420
    %8070 = vmatprep.subr.bf16.mxu0 %v5425
    %8071 = vmatpush1.bf16.msra.mxu0 %v5424
    %8072 = vmatprep.subr.bf16.mxu0 %v5429
    %8073 = vmatpush1.bf16.msra.mxu0 %v5428
    %8074 = vmatprep.subr.bf16.mxu0 %v5433
    %8075 = vmatpush1.bf16.msra.mxu0 %v5432
    %8076 = vmatprep.subr.bf16.mxu0 %v5437
    %8077 = vmatpush1.bf16.msra.mxu0 %v5436
    %8078 = vmatprep.subr.bf16.mxu0 %v5441
    %8079 = vmatpush1.bf16.msra.mxu0 %v5440
    %8080 = vmatprep.subr.bf16.mxu0 %v5445
    %8081 = vmatpush1.bf16.msra.mxu0 %v5444
    %8082 = vmatprep.subr.bf16.mxu0 %v5449
    %8083 = vmatpush1.bf16.msra.mxu0 %v5448
    %8084 = vmatprep.subr.bf16.mxu0 %v5453
    %8085 = vmatpush1.bf16.msra.mxu0 %v5452
    %8086 = vmatprep.subr.bf16.mxu0 %v5457
    %8087 = vmatpush1.bf16.msra.mxu0 %v5456
    %8088 = vmatprep.subr.bf16.mxu0 %v5461
    %8089 = vmatpush1.bf16.msra.mxu0 %v5460
    %8090 = vmatprep.subr.bf16.mxu0 %v5465
    %8091 = vmatpush1.bf16.msra.mxu0 %v5464
    %8092 = vmatprep.mubr.bf16.mxu0 %v2143
    %8093 = vmatmul.mubr.bf16.gmra.mrb[0].mxu0 %v2142
    %v8094 = vpop.f32.mrb[0].mxu0
    %v8095 = vadd.f32 %v8054, %v8094
    %v8096 = vpop.f32.mrb[0].mxu0
    %v8097 = vadd.f32 %v8056, %v8096
    %v8098 = vpop.f32.mrb[0].mxu0
    %v8099 = vpop.f32.mrb[0].mxu0
    %8100 = vdwg.mxu0
    %8101 = vmatprep.subr.bf16.mxu0 %v5469
    %8102 = vmatpush1.bf16.msra.mxu0 %v5468
    %8103 = vmatprep.subr.bf16.mxu0 %v5473
    %8104 = vmatpush1.bf16.msra.mxu0 %v5472
    %8105 = vmatprep.subr.bf16.mxu0 %v5477
    %8106 = vmatpush1.bf16.msra.mxu0 %v5476
    %8107 = vmatprep.subr.bf16.mxu0 %v5481
    %8108 = vmatpush1.bf16.msra.mxu0 %v5480
    %8109 = vmatprep.subr.bf16.mxu0 %v5485
    %8110 = vmatpush1.bf16.msra.mxu0 %v5484
    %8111 = vmatprep.subr.bf16.mxu0 %v5489
    %8112 = vmatpush1.bf16.msra.mxu0 %v5488
    %8113 = vmatprep.subr.bf16.mxu0 %v5493
    %8114 = vmatpush1.bf16.msra.mxu0 %v5492
    %8115 = vmatprep.subr.bf16.mxu0 %v5497
    %8116 = vmatpush1.bf16.msra.mxu0 %v5496
    %8117 = vmatprep.subr.bf16.mxu0 %v5501
    %8118 = vmatpush1.bf16.msra.mxu0 %v5500
    %8119 = vmatprep.subr.bf16.mxu0 %v5505
    %8120 = vmatpush1.bf16.msra.mxu0 %v5504
    %8121 = vmatprep.subr.bf16.mxu0 %v5509
    %8122 = vmatpush1.bf16.msra.mxu0 %v5508
    %8123 = vmatprep.subr.bf16.mxu0 %v5513
    %8124 = vmatpush1.bf16.msra.mxu0 %v5512
    %8125 = vmatprep.subr.bf16.mxu0 %v5517
    %8126 = vmatpush1.bf16.msra.mxu0 %v5516
    %8127 = vmatprep.subr.bf16.mxu0 %v5521
    %8128 = vmatpush1.bf16.msra.mxu0 %v5520
    %8129 = vmatprep.subr.bf16.mxu0 %v5525
    %8130 = vmatpush1.bf16.msra.mxu0 %v5524
    %8131 = vmatprep.subr.bf16.mxu0 %v5529
    %8132 = vmatpush1.bf16.msra.mxu0 %v5528
    %8133 = vmatprep.mubr.bf16.mxu0 %v2145
    %8134 = vmatmul.mubr.bf16.gmra.mrb[0].mxu0 %v2144
    %v8135 = vpop.f32.mrb[0].mxu0
    %v8136 = vadd.f32 %v8095, %v8135
    %v8137 = vpop.f32.mrb[0].mxu0
    %v8138 = vadd.f32 %v8097, %v8137
    %v8139 = vpop.f32.mrb[0].mxu0
    %v8140 = vpop.f32.mrb[0].mxu0
    %8141 = vdwg.mxu0
    %8142 = vmatprep.subr.bf16.mxu0 %v5533
    %8143 = vmatpush1.bf16.msra.mxu0 %v5532
    %8144 = vmatprep.subr.bf16.mxu0 %v5537
    %8145 = vmatpush1.bf16.msra.mxu0 %v5536
    %8146 = vmatprep.subr.bf16.mxu0 %v5541
    %8147 = vmatpush1.bf16.msra.mxu0 %v5540
    %8148 = vmatprep.subr.bf16.mxu0 %v5545
    %8149 = vmatpush1.bf16.msra.mxu0 %v5544
    %8150 = vmatprep.subr.bf16.mxu0 %v5549
    %8151 = vmatpush1.bf16.msra.mxu0 %v5548
    %8152 = vmatprep.subr.bf16.mxu0 %v5553
    %8153 = vmatpush1.bf16.msra.mxu0 %v5552
    %8154 = vmatprep.subr.bf16.mxu0 %v5557
    %8155 = vmatpush1.bf16.msra.mxu0 %v5556
    %8156 = vmatprep.subr.bf16.mxu0 %v5561
    %8157 = vmatpush1.bf16.msra.mxu0 %v5560
    %8158 = vmatprep.subr.bf16.mxu0 %v5565
    %8159 = vmatpush1.bf16.msra.mxu0 %v5564
    %8160 = vmatprep.subr.bf16.mxu0 %v5569
    %8161 = vmatpush1.bf16.msra.mxu0 %v5568
    %8162 = vmatprep.subr.bf16.mxu0 %v5573
    %8163 = vmatpush1.bf16.msra.mxu0 %v5572
    %8164 = vmatprep.subr.bf16.mxu0 %v5577
    %8165 = vmatpush1.bf16.msra.mxu0 %v5576
    %8166 = vmatprep.subr.bf16.mxu0 %v5581
    %8167 = vmatpush1.bf16.msra.mxu0 %v5580
    %8168 = vmatprep.subr.bf16.mxu0 %v5585
    %8169 = vmatpush1.bf16.msra.mxu0 %v5584
    %8170 = vmatprep.subr.bf16.mxu0 %v5589
    %8171 = vmatpush1.bf16.msra.mxu0 %v5588
    %8172 = vmatprep.subr.bf16.mxu0 %v5593
    %8173 = vmatpush1.bf16.msra.mxu0 %v5592
    %8174 = vmatprep.mubr.bf16.mxu0 %v2147
    %8175 = vmatmul.mubr.bf16.gmra.mrb[0].mxu0 %v2146
    %v8176 = vpop.f32.mrb[0].mxu0
    %v8177 = vadd.f32 %v8136, %v8176
    %v8178 = vpop.f32.mrb[0].mxu0
    %v8179 = vadd.f32 %v8138, %v8178
    %v8180 = vpop.f32.mrb[0].mxu0
    %v8181 = vpop.f32.mrb[0].mxu0
    %8182 = vdwg.mxu0
    %8183 = vmatprep.subr.bf16.mxu0 %v5597
    %8184 = vmatpush1.bf16.msra.mxu0 %v5596
    %8185 = vmatprep.subr.bf16.mxu0 %v5601
    %8186 = vmatpush1.bf16.msra.mxu0 %v5600
    %8187 = vmatprep.subr.bf16.mxu0 %v5605
    %8188 = vmatpush1.bf16.msra.mxu0 %v5604
    %8189 = vmatprep.subr.bf16.mxu0 %v5609
    %8190 = vmatpush1.bf16.msra.mxu0 %v5608
    %8191 = vmatprep.subr.bf16.mxu0 %v5613
    %8192 = vmatpush1.bf16.msra.mxu0 %v5612
    %8193 = vmatprep.subr.bf16.mxu0 %v5617
    %8194 = vmatpush1.bf16.msra.mxu0 %v5616
    %8195 = vmatprep.subr.bf16.mxu0 %v5621
    %8196 = vmatpush1.bf16.msra.mxu0 %v5620
    %8197 = vmatprep.subr.bf16.mxu0 %v5625
    %8198 = vmatpush1.bf16.msra.mxu0 %v5624
    %8199 = vmatprep.subr.bf16.mxu0 %v5629
    %8200 = vmatpush1.bf16.msra.mxu0 %v5628
    %8201 = vmatprep.subr.bf16.mxu0 %v5633
    %8202 = vmatpush1.bf16.msra.mxu0 %v5632
    %8203 = vmatprep.subr.bf16.mxu0 %v5637
    %8204 = vmatpush1.bf16.msra.mxu0 %v5636
    %8205 = vmatprep.subr.bf16.mxu0 %v5641
    %8206 = vmatpush1.bf16.msra.mxu0 %v5640
    %8207 = vmatprep.subr.bf16.mxu0 %v5645
    %8208 = vmatpush1.bf16.msra.mxu0 %v5644
    %8209 = vmatprep.subr.bf16.mxu0 %v5649
    %8210 = vmatpush1.bf16.msra.mxu0 %v5648
    %8211 = vmatprep.subr.bf16.mxu0 %v5653
    %8212 = vmatpush1.bf16.msra.mxu0 %v5652
    %8213 = vmatprep.subr.bf16.mxu0 %v5657
    %8214 = vmatpush1.bf16.msra.mxu0 %v5656
    %8215 = vmatprep.mubr.bf16.mxu0 %v2149
    %8216 = vmatmul.mubr.bf16.gmra.mrb[0].mxu0 %v2148
    %v8217 = vpop.f32.mrb[0].mxu0
    %v8218 = vadd.f32 %v8177, %v8217
    %v8219 = vpop.f32.mrb[0].mxu0
    %v8220 = vadd.f32 %v8179, %v8219
    %v8221 = vpop.f32.mrb[0].mxu0
    %v8222 = vpop.f32.mrb[0].mxu0
    %8223 = vdwg.mxu0
    %8224 = vmatprep.subr.bf16.mxu0 %v5661
    %8225 = vmatpush1.bf16.msra.mxu0 %v5660
    %8226 = vmatprep.subr.bf16.mxu0 %v5665
    %8227 = vmatpush1.bf16.msra.mxu0 %v5664
    %8228 = vmatprep.subr.bf16.mxu0 %v5669
    %8229 = vmatpush1.bf16.msra.mxu0 %v5668
    %8230 = vmatprep.subr.bf16.mxu0 %v5673
    %8231 = vmatpush1.bf16.msra.mxu0 %v5672
    %8232 = vmatprep.subr.bf16.mxu0 %v5677
    %8233 = vmatpush1.bf16.msra.mxu0 %v5676
    %8234 = vmatprep.subr.bf16.mxu0 %v5681
    %8235 = vmatpush1.bf16.msra.mxu0 %v5680
    %8236 = vmatprep.subr.bf16.mxu0 %v5685
    %8237 = vmatpush1.bf16.msra.mxu0 %v5684
    %8238 = vmatprep.subr.bf16.mxu0 %v5689
    %8239 = vmatpush1.bf16.msra.mxu0 %v5688
    %8240 = vmatprep.subr.bf16.mxu0 %v5693
    %8241 = vmatpush1.bf16.msra.mxu0 %v5692
    %8242 = vmatprep.subr.bf16.mxu0 %v5697
    %8243 = vmatpush1.bf16.msra.mxu0 %v5696
    %8244 = vmatprep.subr.bf16.mxu0 %v5701
    %8245 = vmatpush1.bf16.msra.mxu0 %v5700
    %8246 = vmatprep.subr.bf16.mxu0 %v5705
    %8247 = vmatpush1.bf16.msra.mxu0 %v5704
    %8248 = vmatprep.subr.bf16.mxu0 %v5709
    %8249 = vmatpush1.bf16.msra.mxu0 %v5708
    %8250 = vmatprep.subr.bf16.mxu0 %v5713
    %8251 = vmatpush1.bf16.msra.mxu0 %v5712
    %8252 = vmatprep.subr.bf16.mxu0 %v5717
    %8253 = vmatpush1.bf16.msra.mxu0 %v5716
    %8254 = vmatprep.subr.bf16.mxu0 %v5721
    %8255 = vmatpush1.bf16.msra.mxu0 %v5720
    %8256 = vmatprep.mubr.bf16.mxu0 %v2151
    %8257 = vmatmul.mubr.bf16.gmra.mrb[0].mxu0 %v2150
    %v8258 = vpop.f32.mrb[0].mxu0
    %v8259 = vadd.f32 %v8218, %v8258
    %v8260 = vpop.f32.mrb[0].mxu0
    %v8261 = vadd.f32 %v8220, %v8260
    %v8262 = vpop.f32.mrb[0].mxu0
    %v8263 = vpop.f32.mrb[0].mxu0
    %8264 = vdwg.mxu0
    %8265 = vmatprep.subr.bf16.mxu0 %v5725
    %8266 = vmatpush1.bf16.msra.mxu0 %v5724
    %8267 = vmatprep.subr.bf16.mxu0 %v5729
    %8268 = vmatpush1.bf16.msra.mxu0 %v5728
    %8269 = vmatprep.subr.bf16.mxu0 %v5733
    %8270 = vmatpush1.bf16.msra.mxu0 %v5732
    %8271 = vmatprep.subr.bf16.mxu0 %v5737
    %8272 = vmatpush1.bf16.msra.mxu0 %v5736
    %8273 = vmatprep.subr.bf16.mxu0 %v5741
    %8274 = vmatpush1.bf16.msra.mxu0 %v5740
    %8275 = vmatprep.subr.bf16.mxu0 %v5745
    %8276 = vmatpush1.bf16.msra.mxu0 %v5744
    %8277 = vmatprep.subr.bf16.mxu0 %v5749
    %8278 = vmatpush1.bf16.msra.mxu0 %v5748
    %8279 = vmatprep.subr.bf16.mxu0 %v5753
    %8280 = vmatpush1.bf16.msra.mxu0 %v5752
    %8281 = vmatprep.subr.bf16.mxu0 %v5757
    %8282 = vmatpush1.bf16.msra.mxu0 %v5756
    %8283 = vmatprep.subr.bf16.mxu0 %v5761
    %8284 = vmatpush1.bf16.msra.mxu0 %v5760
    %8285 = vmatprep.subr.bf16.mxu0 %v5765
    %8286 = vmatpush1.bf16.msra.mxu0 %v5764
    %8287 = vmatprep.subr.bf16.mxu0 %v5769
    %8288 = vmatpush1.bf16.msra.mxu0 %v5768
    %8289 = vmatprep.subr.bf16.mxu0 %v5773
    %8290 = vmatpush1.bf16.msra.mxu0 %v5772
    %8291 = vmatprep.subr.bf16.mxu0 %v5777
    %8292 = vmatpush1.bf16.msra.mxu0 %v5776
    %8293 = vmatprep.subr.bf16.mxu0 %v5781
    %8294 = vmatpush1.bf16.msra.mxu0 %v5780
    %8295 = vmatprep.subr.bf16.mxu0 %v5785
    %8296 = vmatpush1.bf16.msra.mxu0 %v5784
    %8297 = vmatprep.mubr.bf16.mxu0 %v2153
    %8298 = vmatmul.mubr.bf16.gmra.mrb[0].mxu0 %v2152
    %v8299 = vpop.f32.mrb[0].mxu0
    %v8300 = vadd.f32 %v8259, %v8299
    %v8301 = vpop.f32.mrb[0].mxu0
    %v8302 = vadd.f32 %v8261, %v8301
    %v8303 = vpop.f32.mrb[0].mxu0
    %v8304 = vpop.f32.mrb[0].mxu0
    %8305 = vdwg.mxu0
    %8306 = vmatprep.subr.bf16.mxu0 %v5789
    %8307 = vmatpush1.bf16.msra.mxu0 %v5788
    %8308 = vmatprep.subr.bf16.mxu0 %v5793
    %8309 = vmatpush1.bf16.msra.mxu0 %v5792
    %8310 = vmatprep.subr.bf16.mxu0 %v5797
    %8311 = vmatpush1.bf16.msra.mxu0 %v5796
    %8312 = vmatprep.subr.bf16.mxu0 %v5801
    %8313 = vmatpush1.bf16.msra.mxu0 %v5800
    %8314 = vmatprep.subr.bf16.mxu0 %v5805
    %8315 = vmatpush1.bf16.msra.mxu0 %v5804
    %8316 = vmatprep.subr.bf16.mxu0 %v5809
    %8317 = vmatpush1.bf16.msra.mxu0 %v5808
    %8318 = vmatprep.subr.bf16.mxu0 %v5813
    %8319 = vmatpush1.bf16.msra.mxu0 %v5812
    %8320 = vmatprep.subr.bf16.mxu0 %v5817
    %8321 = vmatpush1.bf16.msra.mxu0 %v5816
    %8322 = vmatprep.subr.bf16.mxu0 %v5821
    %8323 = vmatpush1.bf16.msra.mxu0 %v5820
    %8324 = vmatprep.subr.bf16.mxu0 %v5825
    %8325 = vmatpush1.bf16.msra.mxu0 %v5824
    %8326 = vmatprep.subr.bf16.mxu0 %v5829
    %8327 = vmatpush1.bf16.msra.mxu0 %v5828
    %8328 = vmatprep.subr.bf16.mxu0 %v5833
    %8329 = vmatpush1.bf16.msra.mxu0 %v5832
    %8330 = vmatprep.subr.bf16.mxu0 %v5837
    %8331 = vmatpush1.bf16.msra.mxu0 %v5836
    %8332 = vmatprep.subr.bf16.mxu0 %v5841
    %8333 = vmatpush1.bf16.msra.mxu0 %v5840
    %8334 = vmatprep.subr.bf16.mxu0 %v5845
    %8335 = vmatpush1.bf16.msra.mxu0 %v5844
    %8336 = vmatprep.subr.bf16.mxu0 %v5849
    %8337 = vmatpush1.bf16.msra.mxu0 %v5848
    %8338 = vmatprep.mubr.bf16.mxu0 %v2155
    %8339 = vmatmul.mubr.bf16.gmra.mrb[0].mxu0 %v2154
    %v8340 = vpop.f32.mrb[0].mxu0
    %v8341 = vadd.f32 %v8300, %v8340
    %v8342 = vpop.f32.mrb[0].mxu0
    %v8343 = vadd.f32 %v8302, %v8342
    %v8344 = vpop.f32.mrb[0].mxu0
    %v8345 = vpop.f32.mrb[0].mxu0
    %8346 = vdwg.mxu0
    %8347 = vmatprep.subr.bf16.mxu0 %v5853
    %8348 = vmatpush1.bf16.msra.mxu0 %v5852
    %8349 = vmatprep.subr.bf16.mxu0 %v5857
    %8350 = vmatpush1.bf16.msra.mxu0 %v5856
    %8351 = vmatprep.subr.bf16.mxu0 %v5861
    %8352 = vmatpush1.bf16.msra.mxu0 %v5860
    %8353 = vmatprep.subr.bf16.mxu0 %v5865
    %8354 = vmatpush1.bf16.msra.mxu0 %v5864
    %8355 = vmatprep.subr.bf16.mxu0 %v5869
    %8356 = vmatpush1.bf16.msra.mxu0 %v5868
    %8357 = vmatprep.subr.bf16.mxu0 %v5873
    %8358 = vmatpush1.bf16.msra.mxu0 %v5872
    %8359 = vmatprep.subr.bf16.mxu0 %v5877
    %8360 = vmatpush1.bf16.msra.mxu0 %v5876
    %8361 = vmatprep.subr.bf16.mxu0 %v5881
    %8362 = vmatpush1.bf16.msra.mxu0 %v5880
    %8363 = vmatprep.subr.bf16.mxu0 %v5885
    %8364 = vmatpush1.bf16.msra.mxu0 %v5884
    %8365 = vmatprep.subr.bf16.mxu0 %v5889
    %8366 = vmatpush1.bf16.msra.mxu0 %v5888
    %8367 = vmatprep.subr.bf16.mxu0 %v5893
    %8368 = vmatpush1.bf16.msra.mxu0 %v5892
    %8369 = vmatprep.subr.bf16.mxu0 %v5897
    %8370 = vmatpush1.bf16.msra.mxu0 %v5896
    %8371 = vmatprep.subr.bf16.mxu0 %v5901
    %8372 = vmatpush1.bf16.msra.mxu0 %v5900
    %8373 = vmatprep.subr.bf16.mxu0 %v5905
    %8374 = vmatpush1.bf16.msra.mxu0 %v5904
    %8375 = vmatprep.subr.bf16.mxu0 %v5909
    %8376 = vmatpush1.bf16.msra.mxu0 %v5908
    %8377 = vmatprep.subr.bf16.mxu0 %v5913
    %8378 = vmatpush1.bf16.msra.mxu0 %v5912
    %8379 = vmatprep.mubr.bf16.mxu0 %v2157
    %8380 = vmatmul.mubr.bf16.gmra.mrb[0].mxu0 %v2156
    %v8381 = vpop.f32.mrb[0].mxu0
    %v8382 = vadd.f32 %v8341, %v8381
    %v8383 = vpop.f32.mrb[0].mxu0
    %v8384 = vadd.f32 %v8343, %v8383
    %v8385 = vpop.f32.mrb[0].mxu0
    %v8386 = vpop.f32.mrb[0].mxu0
    %8387 = vdwg.mxu0
    %8388 = vmatprep.subr.bf16.mxu0 %v5917
    %8389 = vmatpush1.bf16.msra.mxu0 %v5916
    %8390 = vmatprep.subr.bf16.mxu0 %v5921
    %8391 = vmatpush1.bf16.msra.mxu0 %v5920
    %8392 = vmatprep.subr.bf16.mxu0 %v5925
    %8393 = vmatpush1.bf16.msra.mxu0 %v5924
    %8394 = vmatprep.subr.bf16.mxu0 %v5929
    %8395 = vmatpush1.bf16.msra.mxu0 %v5928
    %8396 = vmatprep.subr.bf16.mxu0 %v5933
    %8397 = vmatpush1.bf16.msra.mxu0 %v5932
    %8398 = vmatprep.subr.bf16.mxu0 %v5937
    %8399 = vmatpush1.bf16.msra.mxu0 %v5936
    %8400 = vmatprep.subr.bf16.mxu0 %v5941
    %8401 = vmatpush1.bf16.msra.mxu0 %v5940
    %8402 = vmatprep.subr.bf16.mxu0 %v5945
    %8403 = vmatpush1.bf16.msra.mxu0 %v5944
    %8404 = vmatprep.subr.bf16.mxu0 %v5949
    %8405 = vmatpush1.bf16.msra.mxu0 %v5948
    %8406 = vmatprep.subr.bf16.mxu0 %v5953
    %8407 = vmatpush1.bf16.msra.mxu0 %v5952
    %8408 = vmatprep.subr.bf16.mxu0 %v5957
    %8409 = vmatpush1.bf16.msra.mxu0 %v5956
    %8410 = vmatprep.subr.bf16.mxu0 %v5961
    %8411 = vmatpush1.bf16.msra.mxu0 %v5960
    %8412 = vmatprep.subr.bf16.mxu0 %v5965
    %8413 = vmatpush1.bf16.msra.mxu0 %v5964
    %8414 = vmatprep.subr.bf16.mxu0 %v5969
    %8415 = vmatpush1.bf16.msra.mxu0 %v5968
    %8416 = vmatprep.subr.bf16.mxu0 %v5973
    %8417 = vmatpush1.bf16.msra.mxu0 %v5972
    %8418 = vmatprep.subr.bf16.mxu0 %v5977
    %8419 = vmatpush1.bf16.msra.mxu0 %v5976
    %8420 = vmatprep.mubr.bf16.mxu0 %v2159
    %8421 = vmatmul.mubr.bf16.gmra.mrb[0].mxu0 %v2158
    %v8422 = vpop.f32.mrb[0].mxu0
    %v8423 = vadd.f32 %v8382, %v8422
    %v8424 = vpop.f32.mrb[0].mxu0
    %v8425 = vadd.f32 %v8384, %v8424
    %v8426 = vpop.f32.mrb[0].mxu0
    %v8427 = vpop.f32.mrb[0].mxu0
    %8428 = vdwg.mxu0
    %8429 = vmatprep.subr.bf16.mxu0 %v5981
    %8430 = vmatpush1.bf16.msra.mxu0 %v5980
    %8431 = vmatprep.subr.bf16.mxu0 %v5985
    %8432 = vmatpush1.bf16.msra.mxu0 %v5984
    %8433 = vmatprep.subr.bf16.mxu0 %v5989
    %8434 = vmatpush1.bf16.msra.mxu0 %v5988
    %8435 = vmatprep.subr.bf16.mxu0 %v5993
    %8436 = vmatpush1.bf16.msra.mxu0 %v5992
    %8437 = vmatprep.subr.bf16.mxu0 %v5997
    %8438 = vmatpush1.bf16.msra.mxu0 %v5996
    %8439 = vmatprep.subr.bf16.mxu0 %v6001
    %8440 = vmatpush1.bf16.msra.mxu0 %v6000
    %8441 = vmatprep.subr.bf16.mxu0 %v6005
    %8442 = vmatpush1.bf16.msra.mxu0 %v6004
    %8443 = vmatprep.subr.bf16.mxu0 %v6009
    %8444 = vmatpush1.bf16.msra.mxu0 %v6008
    %8445 = vmatprep.subr.bf16.mxu0 %v6013
    %8446 = vmatpush1.bf16.msra.mxu0 %v6012
    %8447 = vmatprep.subr.bf16.mxu0 %v6017
    %8448 = vmatpush1.bf16.msra.mxu0 %v6016
    %8449 = vmatprep.subr.bf16.mxu0 %v6021
    %8450 = vmatpush1.bf16.msra.mxu0 %v6020
    %8451 = vmatprep.subr.bf16.mxu0 %v6025
    %8452 = vmatpush1.bf16.msra.mxu0 %v6024
    %8453 = vmatprep.subr.bf16.mxu0 %v6029
    %8454 = vmatpush1.bf16.msra.mxu0 %v6028
    %8455 = vmatprep.subr.bf16.mxu0 %v6033
    %8456 = vmatpush1.bf16.msra.mxu0 %v6032
    %8457 = vmatprep.subr.bf16.mxu0 %v6037
    %8458 = vmatpush1.bf16.msra.mxu0 %v6036
    %8459 = vmatprep.subr.bf16.mxu0 %v6041
    %8460 = vmatpush1.bf16.msra.mxu0 %v6040
    %8461 = vmatprep.mubr.bf16.mxu0 %v2161
    %8462 = vmatmul.mubr.bf16.gmra.mrb[0].mxu0 %v2160
    %v8463 = vpop.f32.mrb[0].mxu0
    %v8464 = vadd.f32 %v8423, %v8463
    %v8465 = vpop.f32.mrb[0].mxu0
    %v8466 = vadd.f32 %v8425, %v8465
    %v8467 = vpop.f32.mrb[0].mxu0
    %v8468 = vpop.f32.mrb[0].mxu0
    %8469 = vdwg.mxu0
    %8470 = vmatprep.subr.bf16.mxu0 %v6045
    %8471 = vmatpush1.bf16.msra.mxu0 %v6044
    %8472 = vmatprep.subr.bf16.mxu0 %v6049
    %8473 = vmatpush1.bf16.msra.mxu0 %v6048
    %8474 = vmatprep.subr.bf16.mxu0 %v6053
    %8475 = vmatpush1.bf16.msra.mxu0 %v6052
    %8476 = vmatprep.subr.bf16.mxu0 %v6057
    %8477 = vmatpush1.bf16.msra.mxu0 %v6056
    %8478 = vmatprep.subr.bf16.mxu0 %v6061
    %8479 = vmatpush1.bf16.msra.mxu0 %v6060
    %8480 = vmatprep.subr.bf16.mxu0 %v6065
    %8481 = vmatpush1.bf16.msra.mxu0 %v6064
    %8482 = vmatprep.subr.bf16.mxu0 %v6069
    %8483 = vmatpush1.bf16.msra.mxu0 %v6068
    %8484 = vmatprep.subr.bf16.mxu0 %v6073
    %8485 = vmatpush1.bf16.msra.mxu0 %v6072
    %8486 = vmatprep.subr.bf16.mxu0 %v6077
    %8487 = vmatpush1.bf16.msra.mxu0 %v6076
    %8488 = vmatprep.subr.bf16.mxu0 %v6081
    %8489 = vmatpush1.bf16.msra.mxu0 %v6080
    %8490 = vmatprep.subr.bf16.mxu0 %v6085
    %8491 = vmatpush1.bf16.msra.mxu0 %v6084
    %8492 = vmatprep.subr.bf16.mxu0 %v6089
    %8493 = vmatpush1.bf16.msra.mxu0 %v6088
    %8494 = vmatprep.subr.bf16.mxu0 %v6093
    %8495 = vmatpush1.bf16.msra.mxu0 %v6092
    %8496 = vmatprep.subr.bf16.mxu0 %v6097
    %8497 = vmatpush1.bf16.msra.mxu0 %v6096
    %8498 = vmatprep.subr.bf16.mxu0 %v6101
    %8499 = vmatpush1.bf16.msra.mxu0 %v6100
    %8500 = vmatprep.subr.bf16.mxu0 %v6105
    %8501 = vmatpush1.bf16.msra.mxu0 %v6104
    %8502 = vmatprep.mubr.bf16.mxu0 %v2163
    %8503 = vmatmul.mubr.bf16.gmra.mrb[0].mxu0 %v2162
    %v8504 = vpop.f32.mrb[0].mxu0
    %v8505 = vadd.f32 %v8464, %v8504
    %v8506 = vpop.f32.mrb[0].mxu0
    %v8507 = vadd.f32 %v8466, %v8506
    %v8508 = vpop.f32.mrb[0].mxu0
    %v8509 = vpop.f32.mrb[0].mxu0
    %8510 = vdwg.mxu0
    %8511 = vmatprep.subr.bf16.mxu0 %v6109
    %8512 = vmatpush1.bf16.msra.mxu0 %v6108
    %8513 = vmatprep.subr.bf16.mxu0 %v6113
    %8514 = vmatpush1.bf16.msra.mxu0 %v6112
    %8515 = vmatprep.subr.bf16.mxu0 %v6117
    %8516 = vmatpush1.bf16.msra.mxu0 %v6116
    %8517 = vmatprep.subr.bf16.mxu0 %v6121
    %8518 = vmatpush1.bf16.msra.mxu0 %v6120
    %8519 = vmatprep.subr.bf16.mxu0 %v6125
    %8520 = vmatpush1.bf16.msra.mxu0 %v6124
    %8521 = vmatprep.subr.bf16.mxu0 %v6129
    %8522 = vmatpush1.bf16.msra.mxu0 %v6128
    %8523 = vmatprep.subr.bf16.mxu0 %v6133
    %8524 = vmatpush1.bf16.msra.mxu0 %v6132
    %8525 = vmatprep.subr.bf16.mxu0 %v6137
    %8526 = vmatpush1.bf16.msra.mxu0 %v6136
    %8527 = vmatprep.subr.bf16.mxu0 %v6141
    %8528 = vmatpush1.bf16.msra.mxu0 %v6140
    %8529 = vmatprep.subr.bf16.mxu0 %v6145
    %8530 = vmatpush1.bf16.msra.mxu0 %v6144
    %8531 = vmatprep.subr.bf16.mxu0 %v6149
    %8532 = vmatpush1.bf16.msra.mxu0 %v6148
    %8533 = vmatprep.subr.bf16.mxu0 %v6153
    %8534 = vmatpush1.bf16.msra.mxu0 %v6152
    %8535 = vmatprep.subr.bf16.mxu0 %v6157
    %8536 = vmatpush1.bf16.msra.mxu0 %v6156
    %8537 = vmatprep.subr.bf16.mxu0 %v6161
    %8538 = vmatpush1.bf16.msra.mxu0 %v6160
    %8539 = vmatprep.subr.bf16.mxu0 %v6165
    %8540 = vmatpush1.bf16.msra.mxu0 %v6164
    %8541 = vmatprep.subr.bf16.mxu0 %v6169
    %8542 = vmatpush1.bf16.msra.mxu0 %v6168
    %8543 = vmatprep.mubr.bf16.mxu0 %v2165
    %8544 = vmatmul.mubr.bf16.gmra.mrb[0].mxu0 %v2164
    %v8545 = vpop.f32.mrb[0].mxu0
    %v8546 = vadd.f32 %v8505, %v8545
    %v8547 = vpop.f32.mrb[0].mxu0
    %v8548 = vadd.f32 %v8507, %v8547
    %v8549 = vpop.f32.mrb[0].mxu0
    %v8550 = vpop.f32.mrb[0].mxu0
    %8551 = vdwg.mxu0
    %8552 = vmatprep.subr.bf16.mxu0 %v6173
    %8553 = vmatpush1.bf16.msra.mxu0 %v6172
    %8554 = vmatprep.subr.bf16.mxu0 %v6177
    %8555 = vmatpush1.bf16.msra.mxu0 %v6176
    %8556 = vmatprep.subr.bf16.mxu0 %v6181
    %8557 = vmatpush1.bf16.msra.mxu0 %v6180
    %8558 = vmatprep.subr.bf16.mxu0 %v6185
    %8559 = vmatpush1.bf16.msra.mxu0 %v6184
    %8560 = vmatprep.subr.bf16.mxu0 %v6189
    %8561 = vmatpush1.bf16.msra.mxu0 %v6188
    %8562 = vmatprep.subr.bf16.mxu0 %v6193
    %8563 = vmatpush1.bf16.msra.mxu0 %v6192
    %8564 = vmatprep.subr.bf16.mxu0 %v6197
    %8565 = vmatpush1.bf16.msra.mxu0 %v6196
    %8566 = vmatprep.subr.bf16.mxu0 %v6201
    %8567 = vmatpush1.bf16.msra.mxu0 %v6200
    %8568 = vmatprep.subr.bf16.mxu0 %v6205
    %8569 = vmatpush1.bf16.msra.mxu0 %v6204
    %8570 = vmatprep.subr.bf16.mxu0 %v6209
    %8571 = vmatpush1.bf16.msra.mxu0 %v6208
    %8572 = vmatprep.subr.bf16.mxu0 %v6213
    %8573 = vmatpush1.bf16.msra.mxu0 %v6212
    %8574 = vmatprep.subr.bf16.mxu0 %v6217
    %8575 = vmatpush1.bf16.msra.mxu0 %v6216
    %8576 = vmatprep.subr.bf16.mxu0 %v6221
    %8577 = vmatpush1.bf16.msra.mxu0 %v6220
    %8578 = vmatprep.subr.bf16.mxu0 %v6225
    %8579 = vmatpush1.bf16.msra.mxu0 %v6224
    %8580 = vmatprep.subr.bf16.mxu0 %v6229
    %8581 = vmatpush1.bf16.msra.mxu0 %v6228
    %8582 = vmatprep.subr.bf16.mxu0 %v6233
    %8583 = vmatpush1.bf16.msra.mxu0 %v6232
    %8584 = vmatprep.mubr.bf16.mxu0 %v2167
    %8585 = vmatmul.mubr.bf16.gmra.mrb[0].mxu0 %v2166
    %v8586 = vpop.f32.mrb[0].mxu0
    %v8587 = vadd.f32 %v8546, %v8586
    %v8588 = vpop.f32.mrb[0].mxu0
    %v8589 = vadd.f32 %v8548, %v8588
    %v8590 = vpop.f32.mrb[0].mxu0
    %v8591 = vpop.f32.mrb[0].mxu0
    %8592 = vdwg.mxu0
    %8593 = vmatprep.subr.bf16.mxu0 %v6237
    %8594 = vmatpush1.bf16.msra.mxu0 %v6236
    %8595 = vmatprep.subr.bf16.mxu0 %v6241
    %8596 = vmatpush1.bf16.msra.mxu0 %v6240
    %8597 = vmatprep.subr.bf16.mxu0 %v6245
    %8598 = vmatpush1.bf16.msra.mxu0 %v6244
    %8599 = vmatprep.subr.bf16.mxu0 %v6249
    %8600 = vmatpush1.bf16.msra.mxu0 %v6248
    %8601 = vmatprep.subr.bf16.mxu0 %v6253
    %8602 = vmatpush1.bf16.msra.mxu0 %v6252
    %8603 = vmatprep.subr.bf16.mxu0 %v6257
    %8604 = vmatpush1.bf16.msra.mxu0 %v6256
    %8605 = vmatprep.subr.bf16.mxu0 %v6261
    %8606 = vmatpush1.bf16.msra.mxu0 %v6260
    %8607 = vmatprep.subr.bf16.mxu0 %v6265
    %8608 = vmatpush1.bf16.msra.mxu0 %v6264
    %8609 = vmatprep.subr.bf16.mxu0 %v6269
    %8610 = vmatpush1.bf16.msra.mxu0 %v6268
    %8611 = vmatprep.subr.bf16.mxu0 %v6273
    %8612 = vmatpush1.bf16.msra.mxu0 %v6272
    %8613 = vmatprep.subr.bf16.mxu0 %v6277
    %8614 = vmatpush1.bf16.msra.mxu0 %v6276
    %8615 = vmatprep.subr.bf16.mxu0 %v6281
    %8616 = vmatpush1.bf16.msra.mxu0 %v6280
    %8617 = vmatprep.subr.bf16.mxu0 %v6285
    %8618 = vmatpush1.bf16.msra.mxu0 %v6284
    %8619 = vmatprep.subr.bf16.mxu0 %v6289
    %8620 = vmatpush1.bf16.msra.mxu0 %v6288
    %8621 = vmatprep.subr.bf16.mxu0 %v6293
    %8622 = vmatpush1.bf16.msra.mxu0 %v6292
    %8623 = vmatprep.subr.bf16.mxu0 %v6297
    %8624 = vmatpush1.bf16.msra.mxu0 %v6296
    %8625 = vmatprep.mubr.bf16.mxu0 %v2169
    %8626 = vmatmul.mubr.bf16.gmra.mrb[0].mxu0 %v2168
    %v8627 = vpop.f32.mrb[0].mxu0
    %v8628 = vadd.f32 %v8587, %v8627
    %v8629 = vpop.f32.mrb[0].mxu0
    %v8630 = vadd.f32 %v8589, %v8629
    %v8631 = vpop.f32.mrb[0].mxu0
    %v8632 = vpop.f32.mrb[0].mxu0
    %8633 = vdwg.mxu0
    %v8634 = vmax.f32 %v7972, 0.0
    %v8635 = vmax.f32 %v7974, 0.0
    %v8636 = vmax.f32 %v8628, 0.0
    %v8637 = vmax.f32 %v8630, 0.0
    %8638 = vst [vmem:[%s5] sm:$0xff] %v8634
    %8639 = vst [vmem:[%s5 + $0x8] sm:$0xff] %v8635
    %8640 = vst [vmem:[%s5 + $0x10] sm:$0xff] %v8636
    %8641 = vst [vmem:[%s5 + $0x18] sm:$0xff] %v8637
    // Predicated region
    $region38: #{cnn3d_forward.1} parent=1 // pred_check
      _
    $region39: #{cnn3d_forward.1} parent=1 // pred_check_branch
      %8643 = sbr.rel (0) target = $region41
    $region40: #{cnn3d_forward.1} parent=1 // pred_region
      _
    $region41: #{cnn3d_forward.1} parent=1 // pred_fallthru
      _
    // Predicated region
    $region42: #{cnn3d_forward.1} parent=1 // pred_check
      _
    $region43: #{cnn3d_forward.1} parent=1 // pred_check_branch
      %8645 = sbr.rel (0) target = $region45
    $region44: #{cnn3d_forward.1} parent=1 // pred_region
      _
    $region45: #{cnn3d_forward.1} parent=1 // pred_fallthru
      _
    %8646 = vsyncpa [#allocation4], 1
    %8647 = vsyncpa [#allocation6], 1
    %8648 = vsyncpa [#allocation9], 1

</llo_original>
